<compile_context>
chip_gen: v7x
topology: tpu7x:2x2x1
jax: 0.10.0
libtpu: 0.0.40
codegen_flags: <defaults>
</compile_context>

<pallas_src>
import functools

import jax
import jax.numpy as jnp
from jax.experimental import pallas as pl
from jax.experimental.pallas import tpu as pltpu

ALPHA = 0.2        # LeakyReLU negative slope used by the module
NEG_BIG = -1e30    # finite "-inf" sentinel
LANE = 128


def _ceil_to(x, m):
    return ((x + m - 1) // m) * m


def _pad2(a, rows, cols, fill=0):
    a = jnp.asarray(a)
    r, c = a.shape
    return jnp.pad(a, ((0, rows - r), (0, cols - c)), constant_values=fill)


def _apply_elu(x, n_elu):
    """ELU applied `n_elu` times (0/1/2), fused into a single select."""
    if n_elu == 0:
        return x
    neg = jnp.minimum(x, 0.0)          # clamp so exp never overflows
    y = jnp.exp(neg) - 1.0             # elu(x) on the non-positive branch
    if n_elu == 2:
        y = jnp.exp(y) - 1.0           # elu of a value already in (-1, 0]
    return jnp.where(x > 0.0, x, y)


def _attention_step(adj_ref, wh_ref, s1_ref, s2_ref, m_scr, l_scr, acc_scr):
    """One (row-tile, column-tile) step of masked edge attention, online softmax.

    adj_ref : (tr, tc) int8   adjacency tile (nonzero == node i attends node j)
    wh_ref  : (tc, Fp) bf16   precomputed W @ h_j for this column tile (streamed)
    s1_ref  : (tr, 1)  f32    precomputed a_left  . (W h_i)  (target-node score)
    s2_ref  : (1, tc)  f32    precomputed a_right . (W h_j)  (source-node score)
    scratch : m (tr,1), l (tr,1), acc (tr,Fp) -- resident across the k axis
    """
    @pl.when(pl.program_id(1) == 0)
    def _init():
        m_scr[...] = jnp.full_like(m_scr, NEG_BIG)
        l_scr[...] = jnp.zeros_like(l_scr)
        acc_scr[...] = jnp.zeros_like(acc_scr)

    # e_ij = leakyrelu(s1_i + s2_j), restricted to edges of this adjacency tile.
    e = s1_ref[...] + s2_ref[...]                       # (tr, tc) broadcast add
    e = jnp.where(e > 0.0, e, ALPHA * e)
    mask = adj_ref[...] != 0                            # bool straight from int8
    e = jnp.where(mask, e, NEG_BIG)

    # Online (flash-style) softmax update of running max / denominator / numerator.
    m_prev = m_scr[...]
    m_new = jnp.maximum(m_prev, jnp.max(e, axis=-1, keepdims=True))
    # Explicit mask on p keeps all-masked rows identically zero (there
    # m_new == NEG_BIG, so exp(e - m_new) alone would be 1, not 0).
    p = jnp.where(mask, jnp.exp(e - m_new), 0.0)
    scale = jnp.exp(m_prev - m_new)
    l_scr[...] = l_scr[...] * scale + jnp.sum(p, axis=-1, keepdims=True)
    acc_scr[...] = acc_scr[...] * scale + jnp.dot(
        p.astype(jnp.bfloat16), wh_ref[...], preferred_element_type=jnp.float32)
    m_scr[...] = m_new


def _finalize_hprime(l_scr, acc_scr):
    """h' = softmax-normalized accumulator; rows with no edges stay all-zero."""
    l = l_scr[...]
    inv = pl.reciprocal(jnp.where(l > 0.0, l, 1.0), approx=False)
    return acc_scr[...] * inv


def gat_layer_kernel(adj_ref, wh_ref, s1_ref, s2_ref, out_ref,
                     m_scr, l_scr, acc_scr, *, n_elu):
    _attention_step(adj_ref, wh_ref, s1_ref, s2_ref, m_scr, l_scr, acc_scr)

    @pl.when(pl.program_id(1) == pl.num_programs(1) - 1)
    def _finalize():
        hp = _finalize_hprime(l_scr, acc_scr)
        out_ref[...] = _apply_elu(hp, n_elu).astype(out_ref.dtype)


def gat_fc_kernel(adj_ref, wh_ref, s1_ref, s2_ref, fcT_ref, fcb_ref,
                  z_ref, logp_ref, m_scr, l_scr, acc_scr):
    _attention_step(adj_ref, wh_ref, s1_ref, s2_ref, m_scr, l_scr, acc_scr)

    @pl.when(pl.program_id(1) == pl.num_programs(1) - 1)
    def _finalize():
        z = _finalize_hprime(l_scr, acc_scr)      # gat2 output (concat=False: no ELU)
        z_ref[...] = z.astype(z_ref.dtype)
        # fc + log_softmax fused in the same call; padded classes carry a -1e30 bias
        # so they contribute nothing to the logsumexp.
        logits = jnp.dot(z.astype(jnp.bfloat16), fcT_ref[...],
                         preferred_element_type=jnp.float32) + fcb_ref[...]
        mx = jnp.max(logits, axis=-1, keepdims=True)
        sh = logits - mx
        lse = jnp.log(jnp.sum(jnp.exp(sh), axis=-1, keepdims=True))
        logp_ref[...] = sh - lse


def _layer_inputs(h, w, a, n_pr, n_pc):
    """Hoisted per-layer precompute (XLA): Wh = h @ W^T plus the two attention score
    vectors, padded into the streaming layouts the attention kernel expects."""
    f_out = w.shape[0]
    f_out_p = _ceil_to(f_out, LANE)
    wh = jnp.dot(h.astype(jnp.float32), w.T.astype(jnp.float32),
                 preferred_element_type=jnp.float32)             # (n, f_out)
    s1 = wh @ a[:, :f_out].T                                     # (n, 1) target term
    s2 = wh @ a[:, f_out:].T                                     # (n, 1) source term
    wh_p = _pad2(wh, n_pc, f_out_p).astype(jnp.bfloat16)         # streamed by k, bf16
    s1_p = _pad2(s1, n_pr, 1).astype(jnp.float32)                # streamed by i
    s2_p = _pad2(s2.T, 1, n_pc).astype(jnp.float32)              # streamed by k
    return wh_p, s1_p, s2_p, f_out_p


def gat_forward(x, adj, params, *, tile_r=256, tile_c=512):
    """Full GAT.forward. Returns (log_softmax(fc(Z1), dim=1), Z1)."""
    n = x.shape[0]
    h1 = params["w1"].shape[0]
    h2 = params["w2"].shape[0]
    n_class = params["fc_w"].shape[0]

    # Row tiles: even count >= 2 so the "parallel" axis shards evenly over the two
    # v7x TensorCores.  Column tiles are wide (lane-dense adj DMAs, fewer grid steps).
    n_pr = _ceil_to(n, 2 * tile_r)
    n_pc = _ceil_to(n, tile_c)
    grid = (n_pr // tile_r, n_pc // tile_c)

    # Adjacency as an int8 mask: dominant HBM stream, 4x less traffic than f32.
    adj_i8 = _pad2((adj != 0).astype(jnp.int8), n_pr, n_pc)

    cp = _ceil_to(n_class, LANE)
    f2p_const = _ceil_to(h2, LANE)
    fcT = _pad2(params["fc_w"].T, f2p_const, cp).astype(jnp.bfloat16)
    fcb = _pad2(params["fc_b"].reshape(1, -1), 1, cp,
                fill=NEG_BIG).astype(jnp.float32)

    cparams = pltpu.CompilerParams(
        dimension_semantics=("parallel", "arbitrary"),
        vmem_limit_bytes=32 * 1024 * 1024)   # far above need; safe on v7x's 64 MiB

    def adj_spec():
        return pl.BlockSpec((tile_r, tile_c), lambda i, k: (i, k))

    def stream_specs(f_out_p):
        return [
            pl.BlockSpec((tile_c, f_out_p), lambda i, k: (k, 0)),   # Wh by col tile
            pl.BlockSpec((tile_r, 1), lambda i, k: (i, 0)),         # s1 by row tile
            pl.BlockSpec((1, tile_c), lambda i, k: (0, k)),         # s2 by col tile
        ]

    def scratch(f_out_p):
        return [
            pltpu.VMEM((tile_r, 1), jnp.float32),        # running max
            pltpu.VMEM((tile_r, 1), jnp.float32),        # running denominator
            pltpu.VMEM((tile_r, f_out_p), jnp.float32),  # running numerator (h')
        ]

    # ---- layer 1: gat1 (concat=True -> ELU) + the extra ELU in GAT.forward ----
    wh1, s1_1, s2_1, f1p = _layer_inputs(x, params["w1"], params["a1"], n_pr, n_pc)
    h1p = pl.pallas_call(
        functools.partial(gat_layer_kernel, n_elu=2),
        grid=grid,
        in_specs=[adj_spec()] + stream_specs(f1p),
        out_specs=pl.BlockSpec((tile_r, f1p), lambda i, k: (i, 0)),
        out_shape=jax.ShapeDtypeStruct((n_pr, f1p), jnp.bfloat16),
        scratch_shapes=scratch(f1p),
        compiler_params=cparams,
    )(adj_i8, wh1, s1_1, s2_1)

    # TODO(synk): dropout(h1) / dropout(attention values) are identity in eval mode.

    # ---- layer 2 (gat2, concat=False) fused with fc + log_softmax ----
    wh2, s1_2, s2_2, f2p = _layer_inputs(h1p[:n, :h1], params["w2"], params["a2"],
                                         n_pr, n_pc)
    z1p, logp_p = pl.pallas_call(
        gat_fc_kernel,
        grid=grid,
        in_specs=[adj_spec()] + stream_specs(f2p) + [
            pl.BlockSpec((f2p, cp), lambda i, k: (0, 0)),   # fc weights (tiny, const)
            pl.BlockSpec((1, cp), lambda i, k: (0, 0)),     # fc bias
        ],
        out_specs=(
            pl.BlockSpec((tile_r, f2p), lambda i, k: (i, 0)),   # Z1 (bf16 writeback)
            pl.BlockSpec((tile_r, cp), lambda i, k: (i, 0)),    # log-probs
        ),
        out_shape=(jax.ShapeDtypeStruct((n_pr, f2p), jnp.bfloat16),
                   jax.ShapeDtypeStruct((n_pr, cp), jnp.float32)),
        scratch_shapes=scratch(f2p),
        compiler_params=cparams,
    )(adj_i8, wh2, s1_2, s2_2, fcT, fcb)

    return logp_p[:n, :n_class], z1p[:n, :h2].astype(jnp.float32)


def xavier_uniform(key, shape):
    # torch.nn.init.xavier_uniform_ on a (out, in) Linear weight.
    fan_out, fan_in = shape
    bound = (6.0 / (fan_in + fan_out)) ** 0.5
    return jax.random.uniform(key, shape, jnp.float32, -bound, bound)


if __name__ == "__main__":
    # Small, deterministic problem sizes (matching the module's constructor args).
    num_nodes = 16
    n_feat, n_hidden_1, n_hidden_2, n_class = 8, 16, 8, 4

    key = jax.random.PRNGKey(0)
    kx, kadj, kw1, ka1, kw2, ka2, kfc, kfb = jax.random.split(key, 8)

    x = jax.random.normal(kx, (num_nodes, n_feat), jnp.float32)

    # Dense adjacency: random edges plus self-loops (nonzero == edge).
    adj = (jax.random.uniform(kadj, (num_nodes, num_nodes)) > 0.6).astype(jnp.float32)
    adj = jnp.maximum(adj, jnp.eye(num_nodes, dtype=jnp.float32))

    bnd = 1.0 / n_hidden_2 ** 0.5
    params = {
        "w1": xavier_uniform(kw1, (n_hidden_1, n_feat)),       # gat1.W.weight
        "a1": xavier_uniform(ka1, (1, 2 * n_hidden_1)),        # gat1.a.weight
        "w2": xavier_uniform(kw2, (n_hidden_2, n_hidden_1)),   # gat2.W.weight
        "a2": xavier_uniform(ka2, (1, 2 * n_hidden_2)),        # gat2.a.weight
        "fc_w": xavier_uniform(kfc, (n_class, n_hidden_2)),    # fc.weight
        "fc_b": jax.random.uniform(kfb, (n_class,), jnp.float32, -bnd, bnd),
    }

    fwd = jax.jit(gat_forward)
    log_probs, z1 = fwd(x, adj, params)
    jax.block_until_ready((log_probs, z1))

    assert log_probs.shape == (num_nodes, n_class)
    assert z1.shape == (num_nodes, n_hidden_2)
    assert bool(jnp.all(jnp.isfinite(log_probs)))
    assert bool(jnp.all(jnp.isfinite(z1)))
    # log_softmax rows must normalize to 1 in probability space.
    assert bool(jnp.allclose(jnp.exp(log_probs).sum(axis=1), 1.0, atol=1e-3))
    print("KERNEL_OK")
</pallas_src>

<mosaic_0001>
module attributes {stable_mosaic.version = 11 : i64} {
  func.func @gat_layer_kernel(%arg0: i32, %arg1: i32, %arg2: memref<256x512xi8, #tpu.memory_space<vmem>>, %arg3: memref<512x128xbf16, #tpu.memory_space<vmem>>, %arg4: memref<256x1xf32, #tpu.memory_space<vmem>>, %arg5: memref<1x512xf32, #tpu.memory_space<vmem>>, %arg6: memref<256x128xbf16, #tpu.memory_space<vmem>>, %arg7: memref<256x1xf32, #tpu.memory_space<vmem>>, %arg8: memref<256x1xf32, #tpu.memory_space<vmem>>, %arg9: memref<256x128xf32, #tpu.memory_space<vmem>>) attributes {dimension_semantics = [#tpu.dimension_semantics<parallel>, #tpu.dimension_semantics<arbitrary>], iteration_bounds = array<i64: 2, 1>, scalar_prefetch = 0 : i64, scratch_operands = 3 : i64, tpu.core_type = #tpu.core_type<tc>, window_params = [{transform_indices = @transform_0, window_bounds = array<i64: 256, 512>}, {transform_indices = @transform_1, window_bounds = array<i64: 512, 128>}, {transform_indices = @transform_2, window_bounds = array<i64: 256, 1>}, {transform_indices = @transform_3, window_bounds = array<i64: 1, 512>}, {transform_indices = @transform_4, window_bounds = array<i64: 256, 128>}]} {
    %c0_i32 = arith.constant 0 : i32
    %0 = arith.cmpi eq, %arg1, %c0_i32 : i32
    %1 = arith.extui %0 : i1 to i32
    %c0_i32_0 = arith.constant 0 : i32
    %2 = arith.cmpi ne, %1, %c0_i32_0 : i32
    scf.if %2 {
      %cst_28 = arith.constant -1.000000e+30 : f32
      %47 = vector.broadcast %cst_28 : f32 to vector<256x1xf32>
      %c0_29 = arith.constant 0 : index
      %c0_30 = arith.constant 0 : index
      %48 = vector.load %arg7[%c0_29, %c0_30] : memref<256x1xf32, #tpu.memory_space<vmem>>, vector<256x1xf32>
      tpu.vector_store %arg7[%c0_29, %c0_30], %47 {strides = array<i32>} : memref<256x1xf32, #tpu.memory_space<vmem>>, vector<256x1xf32>,
      %cst_31 = arith.constant 0.000000e+00 : f32
      %49 = vector.broadcast %cst_31 : f32 to vector<256x1xf32>
      %c0_32 = arith.constant 0 : index
      %c0_33 = arith.constant 0 : index
      %50 = vector.load %arg8[%c0_32, %c0_33] : memref<256x1xf32, #tpu.memory_space<vmem>>, vector<256x1xf32>
      tpu.vector_store %arg8[%c0_32, %c0_33], %49 {strides = array<i32>} : memref<256x1xf32, #tpu.memory_space<vmem>>, vector<256x1xf32>,
      %cst_34 = arith.constant 0.000000e+00 : f32
      %51 = vector.broadcast %cst_34 : f32 to vector<256x128xf32>
      %c0_35 = arith.constant 0 : index
      %c0_36 = arith.constant 0 : index
      %52 = vector.load %arg9[%c0_35, %c0_36] : memref<256x128xf32, #tpu.memory_space<vmem>>, vector<256x128xf32>
      tpu.vector_store %arg9[%c0_35, %c0_36], %51 {strides = array<i32>} : memref<256x128xf32, #tpu.memory_space<vmem>>, vector<256x128xf32>,
    } else {
    }
    %c0 = arith.constant 0 : index
    %c0_1 = arith.constant 0 : index
    %3 = vector.load %arg4[%c0, %c0_1] : memref<256x1xf32, #tpu.memory_space<vmem>>, vector<256x1xf32>
    %c0_2 = arith.constant 0 : index
    %c0_3 = arith.constant 0 : index
    %4 = vector.load %arg5[%c0_2, %c0_3] : memref<1x512xf32, #tpu.memory_space<vmem>>, vector<1x512xf32>
    %5 = vector.broadcast %3 : vector<256x1xf32> to vector<256x512xf32>
    %6 = vector.broadcast %4 : vector<1x512xf32> to vector<256x512xf32>
    %7 = arith.addf %5, %6 : vector<256x512xf32>
    %cst = arith.constant 0.000000e+00 : f32
    %8 = vector.broadcast %cst : f32 to vector<256x512xf32>
    %9 = arith.cmpf ogt, %7, %8 : vector<256x512xf32>
    %cst_4 = arith.constant 2.000000e-01 : f32
    %10 = vector.broadcast %cst_4 : f32 to vector<256x512xf32>
    %11 = arith.mulf %10, %7 : vector<256x512xf32>
    %12 = arith.select %9, %7, %11 : vector<256x512xi1>, vector<256x512xf32>
    %c0_5 = arith.constant 0 : index
    %c0_6 = arith.constant 0 : index
    %13 = vector.load %arg2[%c0_5, %c0_6] : memref<256x512xi8, #tpu.memory_space<vmem>>, vector<256x512xi8>
    %c0_i8 = arith.constant 0 : i8
    %14 = vector.broadcast %c0_i8 : i8 to vector<256x512xi8>
    %15 = arith.cmpi ne, %13, %14 : vector<256x512xi8>
    %cst_7 = arith.constant -1.000000e+30 : f32
    %16 = vector.broadcast %cst_7 : f32 to vector<256x512xf32>
    %17 = arith.select %15, %12, %16 : vector<256x512xi1>, vector<256x512xf32>
    %c0_8 = arith.constant 0 : index
    %c0_9 = arith.constant 0 : index
    %18 = vector.load %arg7[%c0_8, %c0_9] : memref<256x1xf32, #tpu.memory_space<vmem>>, vector<256x1xf32>
    %cst_10 = arith.constant dense<0xFF800000> : vector<256xf32>
    %19 = vector.multi_reduction <maximumf>, %17, %cst_10 [1] : vector<256x512xf32> to vector<256xf32>
    %20 = vector.shape_cast %19 : vector<256xf32> to vector<256x1xf32>
    %21 = arith.maximumf %18, %20 : vector<256x1xf32>
    %22 = vector.broadcast %21 : vector<256x1xf32> to vector<256x512xf32>
    %23 = arith.subf %17, %22 : vector<256x512xf32>
    %24 = math.exp %23 : vector<256x512xf32>
    %cst_11 = arith.constant 0.000000e+00 : f32
    %25 = vector.broadcast %cst_11 : f32 to vector<256x512xf32>
    %26 = arith.select %15, %24, %25 : vector<256x512xi1>, vector<256x512xf32>
    %27 = arith.subf %18, %21 : vector<256x1xf32>
    %28 = math.exp %27 : vector<256x1xf32>
    %c0_12 = arith.constant 0 : index
    %c0_13 = arith.constant 0 : index
    %29 = vector.load %arg8[%c0_12, %c0_13] : memref<256x1xf32, #tpu.memory_space<vmem>>, vector<256x1xf32>
    %30 = arith.mulf %29, %28 : vector<256x1xf32>
    %cst_14 = arith.constant dense<0.000000e+00> : vector<256xf32>
    %31 = vector.multi_reduction <add>, %26, %cst_14 [1] : vector<256x512xf32> to vector<256xf32>
    %32 = vector.shape_cast %31 : vector<256xf32> to vector<256x1xf32>
    %33 = arith.addf %30, %32 : vector<256x1xf32>
    %c0_15 = arith.constant 0 : index
    %c0_16 = arith.constant 0 : index
    %34 = vector.load %arg8[%c0_15, %c0_16] : memref<256x1xf32, #tpu.memory_space<vmem>>, vector<256x1xf32>
    tpu.vector_store %arg8[%c0_15, %c0_16], %33 {strides = array<i32>} : memref<256x1xf32, #tpu.memory_space<vmem>>, vector<256x1xf32>,
    %c0_17 = arith.constant 0 : index
    %c0_18 = arith.constant 0 : index
    %35 = vector.load %arg9[%c0_17, %c0_18] : memref<256x128xf32, #tpu.memory_space<vmem>>, vector<256x128xf32>
    %36 = vector.broadcast %28 : vector<256x1xf32> to vector<256x128xf32>
    %37 = arith.mulf %35, %36 : vector<256x128xf32>
    %38 = arith.truncf %26 : vector<256x512xf32> to vector<256x512xbf16>
    %c0_19 = arith.constant 0 : index
    %c0_20 = arith.constant 0 : index
    %39 = vector.load %arg3[%c0_19, %c0_20] : memref<512x128xbf16, #tpu.memory_space<vmem>>, vector<512x128xbf16>
    %cst_21 = arith.constant dense<0.000000e+00> : vector<256x128xf32>
    %40 = tpu.matmul %38, %39, %cst_21 {dimension_numbers = #tpu.dot_dimension_numbers<[1], [0], [0], [1], [0, 0, 1, 1], [], []>} : vector<256x512xbf16>, vector<512x128xbf16>, vector<256x128xf32> -> vector<256x128xf32>
    %41 = arith.addf %37, %40 : vector<256x128xf32>
    %c0_22 = arith.constant 0 : index
    %c0_23 = arith.constant 0 : index
    %42 = vector.load %arg9[%c0_22, %c0_23] : memref<256x128xf32, #tpu.memory_space<vmem>>, vector<256x128xf32>
    tpu.vector_store %arg9[%c0_22, %c0_23], %41 {strides = array<i32>} : memref<256x128xf32, #tpu.memory_space<vmem>>, vector<256x128xf32>,
    %c0_24 = arith.constant 0 : index
    %c0_25 = arith.constant 0 : index
    %43 = vector.load %arg7[%c0_24, %c0_25] : memref<256x1xf32, #tpu.memory_space<vmem>>, vector<256x1xf32>
    tpu.vector_store %arg7[%c0_24, %c0_25], %21 {strides = array<i32>} : memref<256x1xf32, #tpu.memory_space<vmem>>, vector<256x1xf32>,
    %c0_i32_26 = arith.constant 0 : i32
    %44 = arith.cmpi eq, %arg1, %c0_i32_26 : i32
    %45 = arith.extui %44 : i1 to i32
    %c0_i32_27 = arith.constant 0 : i32
    %46 = arith.cmpi ne, %45, %c0_i32_27 : i32
    scf.if %46 {
      %c0_28 = arith.constant 0 : index
      %c0_29 = arith.constant 0 : index
      %47 = vector.load %arg8[%c0_28, %c0_29] : memref<256x1xf32, #tpu.memory_space<vmem>>, vector<256x1xf32>
      %cst_30 = arith.constant 0.000000e+00 : f32
      %48 = vector.broadcast %cst_30 : f32 to vector<256x1xf32>
      %49 = arith.cmpf ogt, %47, %48 : vector<256x1xf32>
      %cst_31 = arith.constant 1.000000e+00 : f32
      %50 = vector.broadcast %cst_31 : f32 to vector<256x1xf32>
      %51 = arith.select %49, %47, %50 : vector<256x1xi1>, vector<256x1xf32>
      %52 = tpu.reciprocal %51 : vector<256x1xf32> -> vector<256x1xf32>
      %c0_32 = arith.constant 0 : index
      %c0_33 = arith.constant 0 : index
      %53 = vector.load %arg9[%c0_32, %c0_33] : memref<256x128xf32, #tpu.memory_space<vmem>>, vector<256x128xf32>
      %54 = vector.broadcast %52 : vector<256x1xf32> to vector<256x128xf32>
      %55 = arith.mulf %53, %54 : vector<256x128xf32>
      %cst_34 = arith.constant 0.000000e+00 : f32
      %56 = vector.broadcast %cst_34 : f32 to vector<256x128xf32>
      %57 = arith.minimumf %55, %56 : vector<256x128xf32>
      %58 = math.exp %57 : vector<256x128xf32>
      %cst_35 = arith.constant 1.000000e+00 : f32
      %59 = vector.broadcast %cst_35 : f32 to vector<256x128xf32>
      %60 = arith.subf %58, %59 : vector<256x128xf32>
      %61 = math.exp %60 : vector<256x128xf32>
      %cst_36 = arith.constant 1.000000e+00 : f32
      %62 = vector.broadcast %cst_36 : f32 to vector<256x128xf32>
      %63 = arith.subf %61, %62 : vector<256x128xf32>
      %cst_37 = arith.constant 0.000000e+00 : f32
      %64 = vector.broadcast %cst_37 : f32 to vector<256x128xf32>
      %65 = arith.cmpf ogt, %55, %64 : vector<256x128xf32>
      %66 = arith.select %65, %55, %63 : vector<256x128xi1>, vector<256x128xf32>
      %67 = arith.truncf %66 : vector<256x128xf32> to vector<256x128xbf16>
      %c0_38 = arith.constant 0 : index
      %c0_39 = arith.constant 0 : index
      %68 = vector.load %arg6[%c0_38, %c0_39] : memref<256x128xbf16, #tpu.memory_space<vmem>>, vector<256x128xbf16>
      tpu.vector_store %arg6[%c0_38, %c0_39], %67 {strides = array<i32>} : memref<256x128xbf16, #tpu.memory_space<vmem>>, vector<256x128xbf16>,
    } else {
    }
    return
  }
  func.func @transform_0(%arg0: i32, %arg1: i32) -> (i32, i32) {
    %c0_i32 = arith.constant 0 : i32
    return %arg0, %arg1 : i32, i32
  }
  func.func @transform_1(%arg0: i32, %arg1: i32) -> (i32, i32) {
    %c0_i32 = arith.constant 0 : i32
    %c0_i32_0 = arith.constant 0 : i32
    return %arg1, %c0_i32 : i32, i32
  }
  func.func @transform_2(%arg0: i32, %arg1: i32) -> (i32, i32) {
    %c0_i32 = arith.constant 0 : i32
    %c0_i32_0 = arith.constant 0 : i32
    return %arg0, %c0_i32 : i32, i32
  }
  func.func @transform_3(%arg0: i32, %arg1: i32) -> (i32, i32) {
    %c0_i32 = arith.constant 0 : i32
    %c0_i32_0 = arith.constant 0 : i32
    return %c0_i32, %arg1 : i32, i32
  }
  func.func @transform_4(%arg0: i32, %arg1: i32) -> (i32, i32) {
    %c0_i32 = arith.constant 0 : i32
    %c0_i32_0 = arith.constant 0 : i32
    return %arg0, %c0_i32 : i32, i32
  }
}

module attributes {stable_mosaic.version = 11 : i64} {
  func.func @gat_fc_kernel(%arg0: i32, %arg1: i32, %arg2: memref<256x512xi8, #tpu.memory_space<vmem>>, %arg3: memref<512x128xbf16, #tpu.memory_space<vmem>>, %arg4: memref<256x1xf32, #tpu.memory_space<vmem>>, %arg5: memref<1x512xf32, #tpu.memory_space<vmem>>, %arg6: memref<128x128xbf16, #tpu.memory_space<vmem>>, %arg7: memref<1x128xf32, #tpu.memory_space<vmem>>, %arg8: memref<256x128xbf16, #tpu.memory_space<vmem>>, %arg9: memref<256x128xf32, #tpu.memory_space<vmem>>, %arg10: memref<256x1xf32, #tpu.memory_space<vmem>>, %arg11: memref<256x1xf32, #tpu.memory_space<vmem>>, %arg12: memref<256x128xf32, #tpu.memory_space<vmem>>) attributes {dimension_semantics = [#tpu.dimension_semantics<parallel>, #tpu.dimension_semantics<arbitrary>], iteration_bounds = array<i64: 2, 1>, scalar_prefetch = 0 : i64, scratch_operands = 3 : i64, tpu.core_type = #tpu.core_type<tc>, window_params = [{transform_indices = @transform_0, window_bounds = array<i64: 256, 512>}, {transform_indices = @transform_1, window_bounds = array<i64: 512, 128>}, {transform_indices = @transform_2, window_bounds = array<i64: 256, 1>}, {transform_indices = @transform_3, window_bounds = array<i64: 1, 512>}, {pipeline_mode = #tpu.pipeline_mode<synchronous>, transform_indices = @transform_4, window_bounds = array<i64: 128, 128>}, {pipeline_mode = #tpu.pipeline_mode<synchronous>, transform_indices = @transform_5, window_bounds = array<i64: 1, 128>}, {transform_indices = @transform_6, window_bounds = array<i64: 256, 128>}, {transform_indices = @transform_7, window_bounds = array<i64: 256, 128>}]} {
    %c0_i32 = arith.constant 0 : i32
    %0 = arith.cmpi eq, %arg1, %c0_i32 : i32
    %1 = arith.extui %0 : i1 to i32
    %c0_i32_0 = arith.constant 0 : i32
    %2 = arith.cmpi ne, %1, %c0_i32_0 : i32
    scf.if %2 {
      %cst_28 = arith.constant -1.000000e+30 : f32
      %47 = vector.broadcast %cst_28 : f32 to vector<256x1xf32>
      %c0_29 = arith.constant 0 : index
      %c0_30 = arith.constant 0 : index
      %48 = vector.load %arg10[%c0_29, %c0_30] : memref<256x1xf32, #tpu.memory_space<vmem>>, vector<256x1xf32>
      tpu.vector_store %arg10[%c0_29, %c0_30], %47 {strides = array<i32>} : memref<256x1xf32, #tpu.memory_space<vmem>>, vector<256x1xf32>,
      %cst_31 = arith.constant 0.000000e+00 : f32
      %49 = vector.broadcast %cst_31 : f32 to vector<256x1xf32>
      %c0_32 = arith.constant 0 : index
      %c0_33 = arith.constant 0 : index
      %50 = vector.load %arg11[%c0_32, %c0_33] : memref<256x1xf32, #tpu.memory_space<vmem>>, vector<256x1xf32>
      tpu.vector_store %arg11[%c0_32, %c0_33], %49 {strides = array<i32>} : memref<256x1xf32, #tpu.memory_space<vmem>>, vector<256x1xf32>,
      %cst_34 = arith.constant 0.000000e+00 : f32
      %51 = vector.broadcast %cst_34 : f32 to vector<256x128xf32>
      %c0_35 = arith.constant 0 : index
      %c0_36 = arith.constant 0 : index
      %52 = vector.load %arg12[%c0_35, %c0_36] : memref<256x128xf32, #tpu.memory_space<vmem>>, vector<256x128xf32>
      tpu.vector_store %arg12[%c0_35, %c0_36], %51 {strides = array<i32>} : memref<256x128xf32, #tpu.memory_space<vmem>>, vector<256x128xf32>,
    } else {
    }
    %c0 = arith.constant 0 : index
    %c0_1 = arith.constant 0 : index
    %3 = vector.load %arg4[%c0, %c0_1] : memref<256x1xf32, #tpu.memory_space<vmem>>, vector<256x1xf32>
    %c0_2 = arith.constant 0 : index
    %c0_3 = arith.constant 0 : index
    %4 = vector.load %arg5[%c0_2, %c0_3] : memref<1x512xf32, #tpu.memory_space<vmem>>, vector<1x512xf32>
    %5 = vector.broadcast %3 : vector<256x1xf32> to vector<256x512xf32>
    %6 = vector.broadcast %4 : vector<1x512xf32> to vector<256x512xf32>
    %7 = arith.addf %5, %6 : vector<256x512xf32>
    %cst = arith.constant 0.000000e+00 : f32
    %8 = vector.broadcast %cst : f32 to vector<256x512xf32>
    %9 = arith.cmpf ogt, %7, %8 : vector<256x512xf32>
    %cst_4 = arith.constant 2.000000e-01 : f32
    %10 = vector.broadcast %cst_4 : f32 to vector<256x512xf32>
    %11 = arith.mulf %10, %7 : vector<256x512xf32>
    %12 = arith.select %9, %7, %11 : vector<256x512xi1>, vector<256x512xf32>
    %c0_5 = arith.constant 0 : index
    %c0_6 = arith.constant 0 : index
    %13 = vector.load %arg2[%c0_5, %c0_6] : memref<256x512xi8, #tpu.memory_space<vmem>>, vector<256x512xi8>
    %c0_i8 = arith.constant 0 : i8
    %14 = vector.broadcast %c0_i8 : i8 to vector<256x512xi8>
    %15 = arith.cmpi ne, %13, %14 : vector<256x512xi8>
    %cst_7 = arith.constant -1.000000e+30 : f32
    %16 = vector.broadcast %cst_7 : f32 to vector<256x512xf32>
    %17 = arith.select %15, %12, %16 : vector<256x512xi1>, vector<256x512xf32>
    %c0_8 = arith.constant 0 : index
    %c0_9 = arith.constant 0 : index
    %18 = vector.load %arg10[%c0_8, %c0_9] : memref<256x1xf32, #tpu.memory_space<vmem>>, vector<256x1xf32>
    %cst_10 = arith.constant dense<0xFF800000> : vector<256xf32>
    %19 = vector.multi_reduction <maximumf>, %17, %cst_10 [1] : vector<256x512xf32> to vector<256xf32>
    %20 = vector.shape_cast %19 : vector<256xf32> to vector<256x1xf32>
    %21 = arith.maximumf %18, %20 : vector<256x1xf32>
    %22 = vector.broadcast %21 : vector<256x1xf32> to vector<256x512xf32>
    %23 = arith.subf %17, %22 : vector<256x512xf32>
    %24 = math.exp %23 : vector<256x512xf32>
    %cst_11 = arith.constant 0.000000e+00 : f32
    %25 = vector.broadcast %cst_11 : f32 to vector<256x512xf32>
    %26 = arith.select %15, %24, %25 : vector<256x512xi1>, vector<256x512xf32>
    %27 = arith.subf %18, %21 : vector<256x1xf32>
    %28 = math.exp %27 : vector<256x1xf32>
    %c0_12 = arith.constant 0 : index
    %c0_13 = arith.constant 0 : index
    %29 = vector.load %arg11[%c0_12, %c0_13] : memref<256x1xf32, #tpu.memory_space<vmem>>, vector<256x1xf32>
    %30 = arith.mulf %29, %28 : vector<256x1xf32>
    %cst_14 = arith.constant dense<0.000000e+00> : vector<256xf32>
    %31 = vector.multi_reduction <add>, %26, %cst_14 [1] : vector<256x512xf32> to vector<256xf32>
    %32 = vector.shape_cast %31 : vector<256xf32> to vector<256x1xf32>
    %33 = arith.addf %30, %32 : vector<256x1xf32>
    %c0_15 = arith.constant 0 : index
    %c0_16 = arith.constant 0 : index
    %34 = vector.load %arg11[%c0_15, %c0_16] : memref<256x1xf32, #tpu.memory_space<vmem>>, vector<256x1xf32>
    tpu.vector_store %arg11[%c0_15, %c0_16], %33 {strides = array<i32>} : memref<256x1xf32, #tpu.memory_space<vmem>>, vector<256x1xf32>,
    %c0_17 = arith.constant 0 : index
    %c0_18 = arith.constant 0 : index
    %35 = vector.load %arg12[%c0_17, %c0_18] : memref<256x128xf32, #tpu.memory_space<vmem>>, vector<256x128xf32>
    %36 = vector.broadcast %28 : vector<256x1xf32> to vector<256x128xf32>
    %37 = arith.mulf %35, %36 : vector<256x128xf32>
    %38 = arith.truncf %26 : vector<256x512xf32> to vector<256x512xbf16>
    %c0_19 = arith.constant 0 : index
    %c0_20 = arith.constant 0 : index
    %39 = vector.load %arg3[%c0_19, %c0_20] : memref<512x128xbf16, #tpu.memory_space<vmem>>, vector<512x128xbf16>
    %cst_21 = arith.constant dense<0.000000e+00> : vector<256x128xf32>
    %40 = tpu.matmul %38, %39, %cst_21 {dimension_numbers = #tpu.dot_dimension_numbers<[1], [0], [0], [1], [0, 0, 1, 1], [], []>} : vector<256x512xbf16>, vector<512x128xbf16>, vector<256x128xf32> -> vector<256x128xf32>
    %41 = arith.addf %37, %40 : vector<256x128xf32>
    %c0_22 = arith.constant 0 : index
    %c0_23 = arith.constant 0 : index
    %42 = vector.load %arg12[%c0_22, %c0_23] : memref<256x128xf32, #tpu.memory_space<vmem>>, vector<256x128xf32>
    tpu.vector_store %arg12[%c0_22, %c0_23], %41 {strides = array<i32>} : memref<256x128xf32, #tpu.memory_space<vmem>>, vector<256x128xf32>,
    %c0_24 = arith.constant 0 : index
    %c0_25 = arith.constant 0 : index
    %43 = vector.load %arg10[%c0_24, %c0_25] : memref<256x1xf32, #tpu.memory_space<vmem>>, vector<256x1xf32>
    tpu.vector_store %arg10[%c0_24, %c0_25], %21 {strides = array<i32>} : memref<256x1xf32, #tpu.memory_space<vmem>>, vector<256x1xf32>,
    %c0_i32_26 = arith.constant 0 : i32
    %44 = arith.cmpi eq, %arg1, %c0_i32_26 : i32
    %45 = arith.extui %44 : i1 to i32
    %c0_i32_27 = arith.constant 0 : i32
    %46 = arith.cmpi ne, %45, %c0_i32_27 : i32
    scf.if %46 {
      %c0_28 = arith.constant 0 : index
      %c0_29 = arith.constant 0 : index
      %47 = vector.load %arg11[%c0_28, %c0_29] : memref<256x1xf32, #tpu.memory_space<vmem>>, vector<256x1xf32>
      %cst_30 = arith.constant 0.000000e+00 : f32
      %48 = vector.broadcast %cst_30 : f32 to vector<256x1xf32>
      %49 = arith.cmpf ogt, %47, %48 : vector<256x1xf32>
      %cst_31 = arith.constant 1.000000e+00 : f32
      %50 = vector.broadcast %cst_31 : f32 to vector<256x1xf32>
      %51 = arith.select %49, %47, %50 : vector<256x1xi1>, vector<256x1xf32>
      %52 = tpu.reciprocal %51 : vector<256x1xf32> -> vector<256x1xf32>
      %c0_32 = arith.constant 0 : index
      %c0_33 = arith.constant 0 : index
      %53 = vector.load %arg12[%c0_32, %c0_33] : memref<256x128xf32, #tpu.memory_space<vmem>>, vector<256x128xf32>
      %54 = vector.broadcast %52 : vector<256x1xf32> to vector<256x128xf32>
      %55 = arith.mulf %53, %54 : vector<256x128xf32>
      %56 = arith.truncf %55 : vector<256x128xf32> to vector<256x128xbf16>
      %c0_34 = arith.constant 0 : index
      %c0_35 = arith.constant 0 : index
      %57 = vector.load %arg8[%c0_34, %c0_35] : memref<256x128xbf16, #tpu.memory_space<vmem>>, vector<256x128xbf16>
      tpu.vector_store %arg8[%c0_34, %c0_35], %56 {strides = array<i32>} : memref<256x128xbf16, #tpu.memory_space<vmem>>, vector<256x128xbf16>,
      %58 = arith.truncf %55 : vector<256x128xf32> to vector<256x128xbf16>
      %c0_36 = arith.constant 0 : index
      %c0_37 = arith.constant 0 : index
      %59 = vector.load %arg6[%c0_36, %c0_37] : memref<128x128xbf16, #tpu.memory_space<vmem>>, vector<128x128xbf16>
      %cst_38 = arith.constant dense<0.000000e+00> : vector<256x128xf32>
      %60 = tpu.matmul %58, %59, %cst_38 {dimension_numbers = #tpu.dot_dimension_numbers<[1], [0], [0], [1], [0, 0, 1, 1], [], []>} : vector<256x128xbf16>, vector<128x128xbf16>, vector<256x128xf32> -> vector<256x128xf32>
      %c0_39 = arith.constant 0 : index
      %c0_40 = arith.constant 0 : index
      %61 = vector.load %arg7[%c0_39, %c0_40] : memref<1x128xf32, #tpu.memory_space<vmem>>, vector<1x128xf32>
      %62 = vector.broadcast %61 : vector<1x128xf32> to vector<256x128xf32>
      %63 = arith.addf %60, %62 : vector<256x128xf32>
      %cst_41 = arith.constant dense<0xFF800000> : vector<256xf32>
      %64 = vector.multi_reduction <maximumf>, %63, %cst_41 [1] : vector<256x128xf32> to vector<256xf32>
      %65 = vector.shape_cast %64 : vector<256xf32> to vector<256x1xf32>
      %66 = vector.broadcast %65 : vector<256x1xf32> to vector<256x128xf32>
      %67 = arith.subf %63, %66 : vector<256x128xf32>
      %68 = math.exp %67 : vector<256x128xf32>
      %cst_42 = arith.constant dense<0.000000e+00> : vector<256xf32>
      %69 = vector.multi_reduction <add>, %68, %cst_42 [1] : vector<256x128xf32> to vector<256xf32>
      %70 = vector.shape_cast %69 : vector<256xf32> to vector<256x1xf32>
      %71 = math.log %70 : vector<256x1xf32>
      %72 = vector.broadcast %71 : vector<256x1xf32> to vector<256x128xf32>
      %73 = arith.subf %67, %72 : vector<256x128xf32>
      %c0_43 = arith.constant 0 : index
      %c0_44 = arith.constant 0 : index
      %74 = vector.load %arg9[%c0_43, %c0_44] : memref<256x128xf32, #tpu.memory_space<vmem>>, vector<256x128xf32>
      tpu.vector_store %arg9[%c0_43, %c0_44], %73 {strides = array<i32>} : memref<256x128xf32, #tpu.memory_space<vmem>>, vector<256x128xf32>,
    } else {
    }
    return
  }
  func.func @transform_0(%arg0: i32, %arg1: i32) -> (i32, i32) {
    %c0_i32 = arith.constant 0 : i32
    return %arg0, %arg1 : i32, i32
  }
  func.func @transform_1(%arg0: i32, %arg1: i32) -> (i32, i32) {
    %c0_i32 = arith.constant 0 : i32
    %c0_i32_0 = arith.constant 0 : i32
    return %arg1, %c0_i32 : i32, i32
  }
  func.func @transform_2(%arg0: i32, %arg1: i32) -> (i32, i32) {
    %c0_i32 = arith.constant 0 : i32
    %c0_i32_0 = arith.constant 0 : i32
    return %arg0, %c0_i32 : i32, i32
  }
  func.func @transform_3(%arg0: i32, %arg1: i32) -> (i32, i32) {
    %c0_i32 = arith.constant 0 : i32
    %c0_i32_0 = arith.constant 0 : i32
    return %c0_i32, %arg1 : i32, i32
  }
  func.func @transform_4(%arg0: i32, %arg1: i32) -> (i32, i32) {
    %c0_i32 = arith.constant 0 : i32
    %c0_i32_0 = arith.constant 0 : i32
    %c0_i32_1 = arith.constant 0 : i32
    return %c0_i32, %c0_i32_0 : i32, i32
  }
  func.func @transform_5(%arg0: i32, %arg1: i32) -> (i32, i32) {
    %c0_i32 = arith.constant 0 : i32
    %c0_i32_0 = arith.constant 0 : i32
    %c0_i32_1 = arith.constant 0 : i32
    return %c0_i32, %c0_i32_0 : i32, i32
  }
  func.func @transform_6(%arg0: i32, %arg1: i32) -> (i32, i32) {
    %c0_i32 = arith.constant 0 : i32
    %c0_i32_0 = arith.constant 0 : i32
    return %arg0, %c0_i32 : i32, i32
  }
  func.func @transform_7(%arg0: i32, %arg1: i32) -> (i32, i32) {
    %c0_i32 = arith.constant 0 : i32
    %c0_i32_0 = arith.constant 0 : i32
    return %arg0, %c0_i32 : i32, i32
  }
}

</mosaic_0001>

<llo_original>
// kernel: gat_forward.2
$region0: #{gat_forward.2}
  #allocation0 [shape = 'u32[]', space=smem, size = 0x4, offset = 0x4, fixed_abs, tag = 'smem constant byte address 0x4 - core index']
  #allocation1 [shape = 'u32[144,128]{1,0:T(1,128)}', space=vmem, size = 0x12000, scoped, tag = 'internal scratch']
  #allocation2 [shape = 'f32[256,1]{1,0:T(8,128)}', space=vmem, size = 0x20000, scoped, tag = 'scratch operand']
  #allocation3 [shape = 'f32[256,1]{1,0:T(8,128)}', space=vmem, size = 0x20000, scoped, tag = 'scratch operand']
  #allocation4 [shape = 'f32[256,128]{1,0:T(8,128)}', space=vmem, size = 0x20000, scoped, tag = 'scratch operand']
  %s0 = inlined_call_operand.vmem [shape: s8[512,512], index: 0, kind: input, shape index: {}]
  %s1 = inlined_call_operand.vmem [shape: bf16[512,128], index: 1, kind: input, shape index: {}]
  %s2 = inlined_call_operand.vmem [shape: f32[512,1], index: 2, kind: input, shape index: {}]
  %s3 = inlined_call_operand.vmem [shape: f32[1,512], index: 3, kind: input, shape index: {}]
  %s4 = inlined_call_operand.vmem [shape: bf16[512,128], index: 4, kind: output, shape index: {}]
  %s5 = sld [smem:[#allocation0]]
  $region57: #{gat_forward.2} parent=0
    _
  %s7 = ssub.s32 1, %s5
  %s8 = scalar_select 0, %s7, %s5
  loop: start=0, step=1, limit=4
  $region2: #{gat_forward.2} parent=0 // loop_pre_header
    _
  $region3: #{gat_forward.2} parent=0 // loop_header
    %s10 = sphi 0, %s14
    %p11 = scmp.ge.s32.totalorder %s10, 4
    %s17 = sphi 0, %s29
    %s18 = sphi 0, %s25
    %s19 = sphi 0, %s17
    %s20 = sphi 0, %s18
    %s21 = sphi 0, %s19
    %s22 = sphi 0, %s20
    %s34 = sphi 0, %s36
    %s37 = sphi 0, %s34
    %s38 = sphi 0, %s37
    %s54 = sphi 0, %s38
    %s60 = sphi 0, %s62
    %s63 = sphi 0, %s60
    %s64 = sphi 0, %s63
    %s80 = sphi 0, %s64
    %s86 = sphi 0, %s88
    %s89 = sphi 0, %s86
    %s90 = sphi 0, %s89
    %s106 = sphi 0, %s90
    %s112 = sphi 0, %s114
    %s115 = sphi 0, %s112
    %s116 = sphi 0, %s115
    %s132 = sphi 0, %s116
    %s138 = sphi 0, %s140
    %s141 = sphi 0, %s138
    %s142 = sphi 0, %s141
    %s158 = sphi 0, %s142
  $region4: #{gat_forward.2} parent=0 // loop_header_branch
    %13 = sbr.rel (%p11) target = $region8
  $region5: #{gat_forward.2} parent=0 // loop_body
    %s15 = ssub.s32 %s10, 1
    %s16 = ssub.s32 %s10, 2
    %s23 = sadd.s32 1, %s18
    %p24 = scmp.ge.s32.totalorder %s23, 1
    %s25 = scalar_select %p24, 0, %s23
    %s26 = sadd.s32 1, %s17
    %s27 = scalar_select %p24, %s26, %s17
    %p28 = scmp.ge.s32.totalorder %s27, 2
    %s29 = scalar_select %p28, 0, %s27
    %s30 = ssub.s32 %s17, %s29
    %s31 = ssub.s32 %s18, %s25
    %s32 = sor.u32 %s30, %s31
    %p33 = scmp.eq.s32.totalorder %s32, 0
    %s35 = sadd.s32 %s34, 1
    %s36 = scalar_select %p33, %s34, %s35
    %p39 = pneg %p33
    %p40 = scmp.eq.s32.totalorder %s10, 1
    %p41 = por %p39, %p40
    %p42 = scmp.ne.s32.totalorder %s34, %s37
    %p43 = scmp.eq.s32.totalorder %s10, 0
    %p44 = por %p42, %p43
    %p45 = scmp.ne.s32.totalorder %s34, %s37
    %p46 = scmp.eq.s32.totalorder %s15, 1
    %p47 = por %p45, %p46
    %p48 = scmp.ne.s32.totalorder %s37, %s38
    %p49 = scmp.eq.s32.totalorder %s15, 0
    %p50 = por %p48, %p49
    %p51 = scmp.ne.s32.totalorder %s37, %s38
    %p52 = scmp.eq.s32.totalorder %s16, 1
    %p53 = por %p51, %p52
    %p55 = scmp.ne.s32.totalorder %s38, %s54
    %p56 = scmp.eq.s32.totalorder %s16, 0
    %p57 = por %p55, %p56
    %s58 = ssub.s32 %s18, %s25
    %p59 = scmp.eq.s32.totalorder %s58, 0
    %s61 = sadd.s32 %s60, 1
    %s62 = scalar_select %p59, %s60, %s61
    %p65 = pneg %p59
    %p66 = scmp.eq.s32.totalorder %s10, 1
    %p67 = por %p65, %p66
    %p68 = scmp.ne.s32.totalorder %s60, %s63
    %p69 = scmp.eq.s32.totalorder %s10, 0
    %p70 = por %p68, %p69
    %p71 = scmp.ne.s32.totalorder %s60, %s63
    %p72 = scmp.eq.s32.totalorder %s15, 1
    %p73 = por %p71, %p72
    %p74 = scmp.ne.s32.totalorder %s63, %s64
    %p75 = scmp.eq.s32.totalorder %s15, 0
    %p76 = por %p74, %p75
    %p77 = scmp.ne.s32.totalorder %s63, %s64
    %p78 = scmp.eq.s32.totalorder %s16, 1
    %p79 = por %p77, %p78
    %p81 = scmp.ne.s32.totalorder %s64, %s80
    %p82 = scmp.eq.s32.totalorder %s16, 0
    %p83 = por %p81, %p82
    %s84 = ssub.s32 %s17, %s29
    %p85 = scmp.eq.s32.totalorder %s84, 0
    %s87 = sadd.s32 %s86, 1
    %s88 = scalar_select %p85, %s86, %s87
    %p91 = pneg %p85
    %p92 = scmp.eq.s32.totalorder %s10, 1
    %p93 = por %p91, %p92
    %p94 = scmp.ne.s32.totalorder %s86, %s89
    %p95 = scmp.eq.s32.totalorder %s10, 0
    %p96 = por %p94, %p95
    %p97 = scmp.ne.s32.totalorder %s86, %s89
    %p98 = scmp.eq.s32.totalorder %s15, 1
    %p99 = por %p97, %p98
    %p100 = scmp.ne.s32.totalorder %s89, %s90
    %p101 = scmp.eq.s32.totalorder %s15, 0
    %p102 = por %p100, %p101
    %p103 = scmp.ne.s32.totalorder %s89, %s90
    %p104 = scmp.eq.s32.totalorder %s16, 1
    %p105 = por %p103, %p104
    %p107 = scmp.ne.s32.totalorder %s90, %s106
    %p108 = scmp.eq.s32.totalorder %s16, 0
    %p109 = por %p107, %p108
    %s110 = ssub.s32 %s18, %s25
    %p111 = scmp.eq.s32.totalorder %s110, 0
    %s113 = sadd.s32 %s112, 1
    %s114 = scalar_select %p111, %s112, %s113
    %p117 = pneg %p111
    %p118 = scmp.eq.s32.totalorder %s10, 1
    %p119 = por %p117, %p118
    %p120 = scmp.ne.s32.totalorder %s112, %s115
    %p121 = scmp.eq.s32.totalorder %s10, 0
    %p122 = por %p120, %p121
    %p123 = scmp.ne.s32.totalorder %s112, %s115
    %p124 = scmp.eq.s32.totalorder %s15, 1
    %p125 = por %p123, %p124
    %p126 = scmp.ne.s32.totalorder %s115, %s116
    %p127 = scmp.eq.s32.totalorder %s15, 0
    %p128 = por %p126, %p127
    %p129 = scmp.ne.s32.totalorder %s115, %s116
    %p130 = scmp.eq.s32.totalorder %s16, 1
    %p131 = por %p129, %p130
    %p133 = scmp.ne.s32.totalorder %s116, %s132
    %p134 = scmp.eq.s32.totalorder %s16, 0
    %p135 = por %p133, %p134
    %s136 = ssub.s32 %s17, %s29
    %p137 = scmp.eq.s32.totalorder %s136, 0
    %s139 = sadd.s32 %s138, 1
    %s140 = scalar_select %p137, %s138, %s139
    %p143 = pneg %p137
    %p144 = scmp.eq.s32.totalorder %s10, 1
    %p145 = por %p143, %p144
    %p146 = scmp.ne.s32.totalorder %s138, %s141
    %p147 = scmp.eq.s32.totalorder %s10, 0
    %p148 = por %p146, %p147
    %p149 = scmp.ne.s32.totalorder %s138, %s141
    %p150 = scmp.eq.s32.totalorder %s15, 1
    %p151 = por %p149, %p150
    %p152 = scmp.ne.s32.totalorder %s141, %s142
    %p153 = scmp.eq.s32.totalorder %s15, 0
    %p154 = por %p152, %p153
    %p155 = scmp.ne.s32.totalorder %s141, %s142
    %p156 = scmp.eq.s32.totalorder %s16, 1
    %p157 = por %p155, %p156
    %p159 = scmp.ne.s32.totalorder %s142, %s158
    %p160 = scmp.eq.s32.totalorder %s16, 0
    %p161 = por %p159, %p160
    %p162 = scmp.le.s32.totalorder 1, %s10
    %p163 = scmp.lt.s32.totalorder %s10, 3
    %p164 = pnand %p162, %p163
    %p165 = pneg %p164
    // Predicated region
    $region9: #{gat_forward.2} parent=5 // pred_check
      _
    $region10: #{gat_forward.2} parent=5 // pred_check_branch
      %167 = sbr.rel (%p164) target = $region12
    $region11: #{gat_forward.2} parent=5 // pred_region
      %s168 = ssub.s32 %s10, 1
      // Predicated region
      $region13: #{gat_forward.2} parent=11 // pred_check
        %p169 = pneg %p76
      $region14: #{gat_forward.2} parent=11 // pred_check_branch
        %171 = sbr.rel (%p169) target = $region16
      $region15: #{gat_forward.2} parent=11 // pred_region
        %s172 = smul.u32 64, %s20
        %p173 = scmp.lt.s32.totalorder %s172, 63
        %s174 = scalar_select %p173, %s172, 63
        %s175 = smul.addr %s174, 4
        %s176 = scalar_lea.vmem %s1, %s175
        %s177 = smul.u32 64, %s20
      $region16: #{gat_forward.2} parent=11 // pred_fallthru
        _
      // Predicated region
      $region17: #{gat_forward.2} parent=11 // pred_check
        %p178 = pneg %p128
      $region18: #{gat_forward.2} parent=11 // pred_check_branch
        %180 = sbr.rel (%p178) target = $region20
      $region19: #{gat_forward.2} parent=11 // pred_region
        %s181 = smul.u32 4, %s20
        %p182 = scmp.lt.s32.totalorder %s181, 3
        %s183 = scalar_select %p182, %s181, 3
        %s184 = scalar_lea.vmem %s3, %s183
        %s185 = smul.u32 4, %s20
      $region20: #{gat_forward.2} parent=11 // pred_fallthru
        _
    $region12: #{gat_forward.2} parent=5 // pred_fallthru
      _
    %p186 = scmp.lt.s32.totalorder %s10, 2
    // Predicated region
    $region21: #{gat_forward.2} parent=5 // pred_check
      %p187 = pneg %p186
    $region22: #{gat_forward.2} parent=5 // pred_check_branch
      %189 = sbr.rel (%p187) target = $region24
    $region23: #{gat_forward.2} parent=5 // pred_region
      // Predicated region
      $region25: #{gat_forward.2} parent=23 // pred_check
        %p190 = pneg %p44
      $region26: #{gat_forward.2} parent=23 // pred_check_branch
        %192 = sbr.rel (%p190) target = $region28
      $region27: #{gat_forward.2} parent=23 // pred_region
        %s193 = smul.u32 8, %s17
        %s194 = smul.u32 4, %s18
        %p195 = scmp.lt.s32.totalorder %s193, 15
        %s196 = scalar_select %p195, %s193, 15
        %p197 = scmp.lt.s32.totalorder %s194, 3
        %s198 = scalar_select %p197, %s194, 3
        %s199 = smul.addr %s196, 4
        %s200 = sadd.s32 %s198, %s199
        %s201 = smul.addr %s200, 8
        %s202 = scalar_lea.vmem %s0, %s201
        %s203 = smul.u32 8, %s17
        %s204 = smul.u32 4, %s18
      $region28: #{gat_forward.2} parent=23 // pred_fallthru
        _
      // Predicated region
      $region29: #{gat_forward.2} parent=23 // pred_check
        %p205 = pneg %p96
      $region30: #{gat_forward.2} parent=23 // pred_check_branch
        %207 = sbr.rel (%p205) target = $region32
      $region31: #{gat_forward.2} parent=23 // pred_region
        %s208 = smul.u32 32, %s17
        %p209 = scmp.lt.s32.totalorder %s208, 63
        %s210 = scalar_select %p209, %s208, 63
        %s211 = smul.addr %s210, 8
        %s212 = scalar_lea.vmem %s2, %s211
        %s213 = smul.u32 32, %s17
      $region32: #{gat_forward.2} parent=23 // pred_fallthru
        _
    $region24: #{gat_forward.2} parent=5 // pred_fallthru
      _
    %p214 = scmp.le.s32.totalorder 1, %s10
    %p215 = scmp.lt.s32.totalorder %s10, 3
    %p216 = pnand %p214, %p215
    %p217 = pneg %p216
    // Predicated region
    $region33: #{gat_forward.2} parent=5 // pred_check
      _
    $region34: #{gat_forward.2} parent=5 // pred_check_branch
      %219 = sbr.rel (%p216) target = $region36
    $region35: #{gat_forward.2} parent=5 // pred_region
      %s220 = ssub.s32 %s10, 1
      %s221 = smul.u32 8, %s19
      %s222 = smul.u32 4, %s20
      %p223 = scmp.lt.s32.totalorder %s221, 15
      %s224 = scalar_select %p223, %s221, 15
      %p225 = scmp.lt.s32.totalorder %s222, 3
      %s226 = scalar_select %p225, %s222, 3
      %s227 = smul.addr %s224, 4
      %s228 = sadd.s32 %s226, %s227
      %s229 = smul.addr %s228, 8
      %s230 = scalar_lea.vmem %s0, %s229
      %p231 = pneg %p50
      %p232 = pneg %p47
      %s233 = smul.u32 64, %s20
      %p234 = scmp.lt.s32.totalorder %s233, 63
      %s235 = scalar_select %p234, %s233, 63
      %s236 = smul.addr %s235, 4
      %s237 = scalar_lea.vmem %s1, %s236
      %p238 = pneg %p76
      %p239 = pneg %p73
      %s240 = smul.u32 32, %s19
      %p241 = scmp.lt.s32.totalorder %s240, 63
      %s242 = scalar_select %p241, %s240, 63
      %s243 = smul.addr %s242, 8
      %s244 = scalar_lea.vmem %s2, %s243
      %p245 = pneg %p102
      %p246 = pneg %p99
      %s247 = smul.u32 4, %s20
      %p248 = scmp.lt.s32.totalorder %s247, 3
      %s249 = scalar_select %p248, %s247, 3
      %s250 = scalar_lea.vmem %s3, %s249
      %p251 = pneg %p128
      %p252 = pneg %p125
      %p253 = pneg %p154
      %p254 = pneg %p151
      %s255 = smul.u32 16, %s19
      %p256 = scmp.lt.s32.totalorder %s255, 31
      %s257 = scalar_select %p256, %s255, 31
      %s258 = smul.addr %s257, 8
      %s259 = scalar_lea.vmem %s4, %s258
      %s260 = smul.u32 8, %s19
      %s261 = smul.u32 4, %s20
      %p262 = scmp.lt.s32.totalorder %s260, 15
      %s263 = scalar_select %p262, %s260, 15
      %p264 = scmp.lt.s32.totalorder %s261, 3
      %s265 = scalar_select %p264, %s261, 3
      %s266 = smul.addr %s263, 4
      %s267 = sadd.s32 %s265, %s266
      %s268 = smul.addr %s267, 8
      %s269 = scalar_lea.vmem %s0, %s268
      %s270 = smul.u32 8, %s19
      %s271 = smul.u32 4, %s20
      %s272 = smul.u32 64, %s20
      %p273 = scmp.lt.s32.totalorder %s272, 63
      %s274 = scalar_select %p273, %s272, 63
      %s275 = smul.addr %s274, 4
      %s276 = scalar_lea.vmem %s1, %s275
      %s277 = smul.u32 64, %s20
      %s278 = smul.u32 32, %s19
      %p279 = scmp.lt.s32.totalorder %s278, 63
      %s280 = scalar_select %p279, %s278, 63
      %s281 = smul.addr %s280, 8
      %s282 = scalar_lea.vmem %s2, %s281
      %s283 = smul.u32 32, %s19
      %s284 = smul.u32 4, %s20
      %p285 = scmp.lt.s32.totalorder %s284, 3
      %s286 = scalar_select %p285, %s284, 3
      %s287 = scalar_lea.vmem %s3, %s286
      %s288 = smul.u32 4, %s20
      %s289 = smul.u32 16, %s19
      %p290 = scmp.lt.s32.totalorder %s289, 31
      %s291 = scalar_select %p290, %s289, 31
      %s292 = smul.addr %s291, 8
      %s293 = scalar_lea.vmem %s4, %s292
      %s294 = smul.u32 16, %s19
      %p298 = scmp.eq.s32.totalorder %s20, 0
      // Predicated region
      $region37: #{gat_forward.2} parent=35 // pred_check
        %p299 = pneg %p298
      $region38: #{gat_forward.2} parent=35 // pred_check_branch
        %301 = sbr.rel (%p299) target = $region40
      $region39: #{gat_forward.2} parent=35 // pred_region
        %vm302 = vcmask 7168
        %303 = vst.msk [vmem:[#allocation2] sm:$0xff] %vm302, -1e+30
        %304 = vst.msk [vmem:[#allocation2 + $0x8] sm:$0xff] %vm302, -1e+30
        %305 = vst.msk [vmem:[#allocation2 + $0x10] sm:$0xff] %vm302, -1e+30
        %306 = vst.msk [vmem:[#allocation2 + $0x18] sm:$0xff] %vm302, -1e+30
        %307 = vst.msk [vmem:[#allocation2 + $0x20] sm:$0xff] %vm302, -1e+30
        %308 = vst.msk [vmem:[#allocation2 + $0x28] sm:$0xff] %vm302, -1e+30
        %309 = vst.msk [vmem:[#allocation2 + $0x30] sm:$0xff] %vm302, -1e+30
        %310 = vst.msk [vmem:[#allocation2 + $0x38] sm:$0xff] %vm302, -1e+30
        %311 = vst.msk [vmem:[#allocation2 + $0x40] sm:$0xff] %vm302, -1e+30
        %312 = vst.msk [vmem:[#allocation2 + $0x48] sm:$0xff] %vm302, -1e+30
        %313 = vst.msk [vmem:[#allocation2 + $0x50] sm:$0xff] %vm302, -1e+30
        %314 = vst.msk [vmem:[#allocation2 + $0x58] sm:$0xff] %vm302, -1e+30
        %315 = vst.msk [vmem:[#allocation2 + $0x60] sm:$0xff] %vm302, -1e+30
        %316 = vst.msk [vmem:[#allocation2 + $0x68] sm:$0xff] %vm302, -1e+30
        %317 = vst.msk [vmem:[#allocation2 + $0x70] sm:$0xff] %vm302, -1e+30
        %318 = vst.msk [vmem:[#allocation2 + $0x78] sm:$0xff] %vm302, -1e+30
        %319 = vst.msk [vmem:[#allocation2 + $0x80] sm:$0xff] %vm302, -1e+30
        %320 = vst.msk [vmem:[#allocation2 + $0x88] sm:$0xff] %vm302, -1e+30
        %321 = vst.msk [vmem:[#allocation2 + $0x90] sm:$0xff] %vm302, -1e+30
        %322 = vst.msk [vmem:[#allocation2 + $0x98] sm:$0xff] %vm302, -1e+30
        %323 = vst.msk [vmem:[#allocation2 + $0xa0] sm:$0xff] %vm302, -1e+30
        %324 = vst.msk [vmem:[#allocation2 + $0xa8] sm:$0xff] %vm302, -1e+30
        %325 = vst.msk [vmem:[#allocation2 + $0xb0] sm:$0xff] %vm302, -1e+30
        %326 = vst.msk [vmem:[#allocation2 + $0xb8] sm:$0xff] %vm302, -1e+30
        %327 = vst.msk [vmem:[#allocation2 + $0xc0] sm:$0xff] %vm302, -1e+30
        %328 = vst.msk [vmem:[#allocation2 + $0xc8] sm:$0xff] %vm302, -1e+30
        %329 = vst.msk [vmem:[#allocation2 + $0xd0] sm:$0xff] %vm302, -1e+30
        %330 = vst.msk [vmem:[#allocation2 + $0xd8] sm:$0xff] %vm302, -1e+30
        %331 = vst.msk [vmem:[#allocation2 + $0xe0] sm:$0xff] %vm302, -1e+30
        %332 = vst.msk [vmem:[#allocation2 + $0xe8] sm:$0xff] %vm302, -1e+30
        %333 = vst.msk [vmem:[#allocation2 + $0xf0] sm:$0xff] %vm302, -1e+30
        %334 = vst.msk [vmem:[#allocation2 + $0xf8] sm:$0xff] %vm302, -1e+30
        %335 = vst.msk [vmem:[#allocation3] sm:$0xff] %vm302, 0.0
        %336 = vst.msk [vmem:[#allocation3 + $0x8] sm:$0xff] %vm302, 0.0
        %337 = vst.msk [vmem:[#allocation3 + $0x10] sm:$0xff] %vm302, 0.0
        %338 = vst.msk [vmem:[#allocation3 + $0x18] sm:$0xff] %vm302, 0.0
        %339 = vst.msk [vmem:[#allocation3 + $0x20] sm:$0xff] %vm302, 0.0
        %340 = vst.msk [vmem:[#allocation3 + $0x28] sm:$0xff] %vm302, 0.0
        %341 = vst.msk [vmem:[#allocation3 + $0x30] sm:$0xff] %vm302, 0.0
        %342 = vst.msk [vmem:[#allocation3 + $0x38] sm:$0xff] %vm302, 0.0
        %343 = vst.msk [vmem:[#allocation3 + $0x40] sm:$0xff] %vm302, 0.0
        %344 = vst.msk [vmem:[#allocation3 + $0x48] sm:$0xff] %vm302, 0.0
        %345 = vst.msk [vmem:[#allocation3 + $0x50] sm:$0xff] %vm302, 0.0
        %346 = vst.msk [vmem:[#allocation3 + $0x58] sm:$0xff] %vm302, 0.0
        %347 = vst.msk [vmem:[#allocation3 + $0x60] sm:$0xff] %vm302, 0.0
        %348 = vst.msk [vmem:[#allocation3 + $0x68] sm:$0xff] %vm302, 0.0
        %349 = vst.msk [vmem:[#allocation3 + $0x70] sm:$0xff] %vm302, 0.0
        %350 = vst.msk [vmem:[#allocation3 + $0x78] sm:$0xff] %vm302, 0.0
        %351 = vst.msk [vmem:[#allocation3 + $0x80] sm:$0xff] %vm302, 0.0
        %352 = vst.msk [vmem:[#allocation3 + $0x88] sm:$0xff] %vm302, 0.0
        %353 = vst.msk [vmem:[#allocation3 + $0x90] sm:$0xff] %vm302, 0.0
        %354 = vst.msk [vmem:[#allocation3 + $0x98] sm:$0xff] %vm302, 0.0
        %355 = vst.msk [vmem:[#allocation3 + $0xa0] sm:$0xff] %vm302, 0.0
        %356 = vst.msk [vmem:[#allocation3 + $0xa8] sm:$0xff] %vm302, 0.0
        %357 = vst.msk [vmem:[#allocation3 + $0xb0] sm:$0xff] %vm302, 0.0
        %358 = vst.msk [vmem:[#allocation3 + $0xb8] sm:$0xff] %vm302, 0.0
        %359 = vst.msk [vmem:[#allocation3 + $0xc0] sm:$0xff] %vm302, 0.0
        %360 = vst.msk [vmem:[#allocation3 + $0xc8] sm:$0xff] %vm302, 0.0
        %361 = vst.msk [vmem:[#allocation3 + $0xd0] sm:$0xff] %vm302, 0.0
        %362 = vst.msk [vmem:[#allocation3 + $0xd8] sm:$0xff] %vm302, 0.0
        %363 = vst.msk [vmem:[#allocation3 + $0xe0] sm:$0xff] %vm302, 0.0
        %364 = vst.msk [vmem:[#allocation3 + $0xe8] sm:$0xff] %vm302, 0.0
        %365 = vst.msk [vmem:[#allocation3 + $0xf0] sm:$0xff] %vm302, 0.0
        %366 = vst.msk [vmem:[#allocation3 + $0xf8] sm:$0xff] %vm302, 0.0
        %367 = vst [vmem:[#allocation4] sm:$0xff] 0.0
        %368 = vst [vmem:[#allocation4 + $0x8] sm:$0xff] 0.0
        %369 = vst [vmem:[#allocation4 + $0x10] sm:$0xff] 0.0
        %370 = vst [vmem:[#allocation4 + $0x18] sm:$0xff] 0.0
        %371 = vst [vmem:[#allocation4 + $0x20] sm:$0xff] 0.0
        %372 = vst [vmem:[#allocation4 + $0x28] sm:$0xff] 0.0
        %373 = vst [vmem:[#allocation4 + $0x30] sm:$0xff] 0.0
        %374 = vst [vmem:[#allocation4 + $0x38] sm:$0xff] 0.0
        %375 = vst [vmem:[#allocation4 + $0x40] sm:$0xff] 0.0
        %376 = vst [vmem:[#allocation4 + $0x48] sm:$0xff] 0.0
        %377 = vst [vmem:[#allocation4 + $0x50] sm:$0xff] 0.0
        %378 = vst [vmem:[#allocation4 + $0x58] sm:$0xff] 0.0
        %379 = vst [vmem:[#allocation4 + $0x60] sm:$0xff] 0.0
        %380 = vst [vmem:[#allocation4 + $0x68] sm:$0xff] 0.0
        %381 = vst [vmem:[#allocation4 + $0x70] sm:$0xff] 0.0
        %382 = vst [vmem:[#allocation4 + $0x78] sm:$0xff] 0.0
        %383 = vst [vmem:[#allocation4 + $0x80] sm:$0xff] 0.0
        %384 = vst [vmem:[#allocation4 + $0x88] sm:$0xff] 0.0
        %385 = vst [vmem:[#allocation4 + $0x90] sm:$0xff] 0.0
        %386 = vst [vmem:[#allocation4 + $0x98] sm:$0xff] 0.0
        %387 = vst [vmem:[#allocation4 + $0xa0] sm:$0xff] 0.0
        %388 = vst [vmem:[#allocation4 + $0xa8] sm:$0xff] 0.0
        %389 = vst [vmem:[#allocation4 + $0xb0] sm:$0xff] 0.0
        %390 = vst [vmem:[#allocation4 + $0xb8] sm:$0xff] 0.0
        %391 = vst [vmem:[#allocation4 + $0xc0] sm:$0xff] 0.0
        %392 = vst [vmem:[#allocation4 + $0xc8] sm:$0xff] 0.0
        %393 = vst [vmem:[#allocation4 + $0xd0] sm:$0xff] 0.0
        %394 = vst [vmem:[#allocation4 + $0xd8] sm:$0xff] 0.0
        %395 = vst [vmem:[#allocation4 + $0xe0] sm:$0xff] 0.0
        %396 = vst [vmem:[#allocation4 + $0xe8] sm:$0xff] 0.0
        %397 = vst [vmem:[#allocation4 + $0xf0] sm:$0xff] 0.0
        %398 = vst [vmem:[#allocation4 + $0xf8] sm:$0xff] 0.0
      $region40: #{gat_forward.2} parent=35 // pred_fallthru
        _
      %v399 = vld [vmem:[%s282] sm:$0xff]
      %v400 = vld [vmem:[%s282 + $0x8] sm:$0xff]
      %v401 = vld [vmem:[%s282 + $0x10] sm:$0xff]
      %v402 = vld [vmem:[%s282 + $0x18] sm:$0xff]
      %v403 = vld [vmem:[%s282 + $0x20] sm:$0xff]
      %v404 = vld [vmem:[%s282 + $0x28] sm:$0xff]
      %v405 = vld [vmem:[%s282 + $0x30] sm:$0xff]
      %v406 = vld [vmem:[%s282 + $0x38] sm:$0xff]
      %v407 = vld [vmem:[%s282 + $0x40] sm:$0xff]
      %v408 = vld [vmem:[%s282 + $0x48] sm:$0xff]
      %v409 = vld [vmem:[%s282 + $0x50] sm:$0xff]
      %v410 = vld [vmem:[%s282 + $0x58] sm:$0xff]
      %v411 = vld [vmem:[%s282 + $0x60] sm:$0xff]
      %v412 = vld [vmem:[%s282 + $0x68] sm:$0xff]
      %v413 = vld [vmem:[%s282 + $0x70] sm:$0xff]
      %v414 = vld [vmem:[%s282 + $0x78] sm:$0xff]
      %v415 = vld [vmem:[%s282 + $0x80] sm:$0xff]
      %v416 = vld [vmem:[%s282 + $0x88] sm:$0xff]
      %v417 = vld [vmem:[%s282 + $0x90] sm:$0xff]
      %v418 = vld [vmem:[%s282 + $0x98] sm:$0xff]
      %v419 = vld [vmem:[%s282 + $0xa0] sm:$0xff]
      %v420 = vld [vmem:[%s282 + $0xa8] sm:$0xff]
      %v421 = vld [vmem:[%s282 + $0xb0] sm:$0xff]
      %v422 = vld [vmem:[%s282 + $0xb8] sm:$0xff]
      %v423 = vld [vmem:[%s282 + $0xc0] sm:$0xff]
      %v424 = vld [vmem:[%s282 + $0xc8] sm:$0xff]
      %v425 = vld [vmem:[%s282 + $0xd0] sm:$0xff]
      %v426 = vld [vmem:[%s282 + $0xd8] sm:$0xff]
      %v427 = vld [vmem:[%s282 + $0xe0] sm:$0xff]
      %v428 = vld [vmem:[%s282 + $0xe8] sm:$0xff]
      %v429 = vld [vmem:[%s282 + $0xf0] sm:$0xff]
      %v430 = vld [vmem:[%s282 + $0xf8] sm:$0xff]
      %v431 = vld [vmem:[%s287] sm:$0xf]
      %433 = vset.pattern.permute.xlu0 0
      %434 = vperm.xlu0 %433, %v399
      %v435 = vpop.permute.xlu0 %434
      %438 = vset.pattern.permute.xlu0 0
      %439 = vperm.xlu0 %438, %v400
      %v440 = vpop.permute.xlu0 %439
      %443 = vset.pattern.permute.xlu0 0
      %444 = vperm.xlu0 %443, %v401
      %v445 = vpop.permute.xlu0 %444
      %448 = vset.pattern.permute.xlu0 0
      %449 = vperm.xlu0 %448, %v402
      %v450 = vpop.permute.xlu0 %449
      %453 = vset.pattern.permute.xlu0 0
      %454 = vperm.xlu0 %453, %v403
      %v455 = vpop.permute.xlu0 %454
      %458 = vset.pattern.permute.xlu0 0
      %459 = vperm.xlu0 %458, %v404
      %v460 = vpop.permute.xlu0 %459
      %463 = vset.pattern.permute.xlu0 0
      %464 = vperm.xlu0 %463, %v405
      %v465 = vpop.permute.xlu0 %464
      %468 = vset.pattern.permute.xlu0 0
      %469 = vperm.xlu0 %468, %v406
      %v470 = vpop.permute.xlu0 %469
      %473 = vset.pattern.permute.xlu0 0
      %474 = vperm.xlu0 %473, %v407
      %v475 = vpop.permute.xlu0 %474
      %478 = vset.pattern.permute.xlu0 0
      %479 = vperm.xlu0 %478, %v408
      %v480 = vpop.permute.xlu0 %479
      %483 = vset.pattern.permute.xlu0 0
      %484 = vperm.xlu0 %483, %v409
      %v485 = vpop.permute.xlu0 %484
      %488 = vset.pattern.permute.xlu0 0
      %489 = vperm.xlu0 %488, %v410
      %v490 = vpop.permute.xlu0 %489
      %493 = vset.pattern.permute.xlu0 0
      %494 = vperm.xlu0 %493, %v411
      %v495 = vpop.permute.xlu0 %494
      %498 = vset.pattern.permute.xlu0 0
      %499 = vperm.xlu0 %498, %v412
      %v500 = vpop.permute.xlu0 %499
      %503 = vset.pattern.permute.xlu0 0
      %504 = vperm.xlu0 %503, %v413
      %v505 = vpop.permute.xlu0 %504
      %508 = vset.pattern.permute.xlu0 0
      %509 = vperm.xlu0 %508, %v414
      %v510 = vpop.permute.xlu0 %509
      %513 = vset.pattern.permute.xlu0 0
      %514 = vperm.xlu0 %513, %v415
      %v515 = vpop.permute.xlu0 %514
      %518 = vset.pattern.permute.xlu0 0
      %519 = vperm.xlu0 %518, %v416
      %v520 = vpop.permute.xlu0 %519
      %523 = vset.pattern.permute.xlu0 0
      %524 = vperm.xlu0 %523, %v417
      %v525 = vpop.permute.xlu0 %524
      %528 = vset.pattern.permute.xlu0 0
      %529 = vperm.xlu0 %528, %v418
      %v530 = vpop.permute.xlu0 %529
      %533 = vset.pattern.permute.xlu0 0
      %534 = vperm.xlu0 %533, %v419
      %v535 = vpop.permute.xlu0 %534
      %538 = vset.pattern.permute.xlu0 0
      %539 = vperm.xlu0 %538, %v420
      %v540 = vpop.permute.xlu0 %539
      %543 = vset.pattern.permute.xlu0 0
      %544 = vperm.xlu0 %543, %v421
      %v545 = vpop.permute.xlu0 %544
      %548 = vset.pattern.permute.xlu0 0
      %549 = vperm.xlu0 %548, %v422
      %v550 = vpop.permute.xlu0 %549
      %553 = vset.pattern.permute.xlu0 0
      %554 = vperm.xlu0 %553, %v423
      %v555 = vpop.permute.xlu0 %554
      %558 = vset.pattern.permute.xlu0 0
      %559 = vperm.xlu0 %558, %v424
      %v560 = vpop.permute.xlu0 %559
      %563 = vset.pattern.permute.xlu0 0
      %564 = vperm.xlu0 %563, %v425
      %v565 = vpop.permute.xlu0 %564
      %568 = vset.pattern.permute.xlu0 0
      %569 = vperm.xlu0 %568, %v426
      %v570 = vpop.permute.xlu0 %569
      %573 = vset.pattern.permute.xlu0 0
      %574 = vperm.xlu0 %573, %v427
      %v575 = vpop.permute.xlu0 %574
      %578 = vset.pattern.permute.xlu0 0
      %579 = vperm.xlu0 %578, %v428
      %v580 = vpop.permute.xlu0 %579
      %583 = vset.pattern.permute.xlu0 0
      %584 = vperm.xlu0 %583, %v429
      %v585 = vpop.permute.xlu0 %584
      %588 = vset.pattern.permute.xlu0 0
      %589 = vperm.xlu0 %588, %v430
      %v590 = vpop.permute.xlu0 %589
      %v593 = vlaneseq
      %v594 = vshrl.u32 %v593, 7
      %v595 = vsub.s32 0, %v594
      %v596 = vrot.slane %v431, %v595
      %v597 = vlaneseq
      %v598 = vshrl.u32 %v597, 7
      %v599 = vsub.s32 1, %v598
      %v600 = vrot.slane %v431, %v599
      %v601 = vlaneseq
      %v602 = vshrl.u32 %v601, 7
      %v603 = vsub.s32 2, %v602
      %v604 = vrot.slane %v431, %v603
      %v605 = vlaneseq
      %v606 = vshrl.u32 %v605, 7
      %v607 = vsub.s32 3, %v606
      %v608 = vrot.slane %v431, %v607
      %v613 = vadd.f32 %v435, %v596
      %v614 = vadd.f32 %v435, %v600
      %v615 = vadd.f32 %v435, %v604
      %v616 = vadd.f32 %v435, %v608
      %v617 = vadd.f32 %v440, %v596
      %v618 = vadd.f32 %v440, %v600
      %v619 = vadd.f32 %v440, %v604
      %v620 = vadd.f32 %v440, %v608
      %v621 = vadd.f32 %v445, %v596
      %v622 = vadd.f32 %v445, %v600
      %v623 = vadd.f32 %v445, %v604
      %v624 = vadd.f32 %v445, %v608
      %v625 = vadd.f32 %v450, %v596
      %v626 = vadd.f32 %v450, %v600
      %v627 = vadd.f32 %v450, %v604
      %v628 = vadd.f32 %v450, %v608
      %v629 = vadd.f32 %v455, %v596
      %v630 = vadd.f32 %v455, %v600
      %v631 = vadd.f32 %v455, %v604
      %v632 = vadd.f32 %v455, %v608
      %v633 = vadd.f32 %v460, %v596
      %v634 = vadd.f32 %v460, %v600
      %v635 = vadd.f32 %v460, %v604
      %v636 = vadd.f32 %v460, %v608
      %v637 = vadd.f32 %v465, %v596
      %v638 = vadd.f32 %v465, %v600
      %v639 = vadd.f32 %v465, %v604
      %v640 = vadd.f32 %v465, %v608
      %v641 = vadd.f32 %v470, %v596
      %v642 = vadd.f32 %v470, %v600
      %v643 = vadd.f32 %v470, %v604
      %v644 = vadd.f32 %v470, %v608
      %v645 = vadd.f32 %v475, %v596
      %v646 = vadd.f32 %v475, %v600
      %v647 = vadd.f32 %v475, %v604
      %v648 = vadd.f32 %v475, %v608
      %v649 = vadd.f32 %v480, %v596
      %v650 = vadd.f32 %v480, %v600
      %v651 = vadd.f32 %v480, %v604
      %v652 = vadd.f32 %v480, %v608
      %v653 = vadd.f32 %v485, %v596
      %v654 = vadd.f32 %v485, %v600
      %v655 = vadd.f32 %v485, %v604
      %v656 = vadd.f32 %v485, %v608
      %v657 = vadd.f32 %v490, %v596
      %v658 = vadd.f32 %v490, %v600
      %v659 = vadd.f32 %v490, %v604
      %v660 = vadd.f32 %v490, %v608
      %v661 = vadd.f32 %v495, %v596
      %v662 = vadd.f32 %v495, %v600
      %v663 = vadd.f32 %v495, %v604
      %v664 = vadd.f32 %v495, %v608
      %v665 = vadd.f32 %v500, %v596
      %v666 = vadd.f32 %v500, %v600
      %v667 = vadd.f32 %v500, %v604
      %v668 = vadd.f32 %v500, %v608
      %v669 = vadd.f32 %v505, %v596
      %v670 = vadd.f32 %v505, %v600
      %v671 = vadd.f32 %v505, %v604
      %v672 = vadd.f32 %v505, %v608
      %v673 = vadd.f32 %v510, %v596
      %v674 = vadd.f32 %v510, %v600
      %v675 = vadd.f32 %v510, %v604
      %v676 = vadd.f32 %v510, %v608
      %v677 = vadd.f32 %v515, %v596
      %v678 = vadd.f32 %v515, %v600
      %v679 = vadd.f32 %v515, %v604
      %v680 = vadd.f32 %v515, %v608
      %v681 = vadd.f32 %v520, %v596
      %v682 = vadd.f32 %v520, %v600
      %v683 = vadd.f32 %v520, %v604
      %v684 = vadd.f32 %v520, %v608
      %v685 = vadd.f32 %v525, %v596
      %v686 = vadd.f32 %v525, %v600
      %v687 = vadd.f32 %v525, %v604
      %v688 = vadd.f32 %v525, %v608
      %v689 = vadd.f32 %v530, %v596
      %v690 = vadd.f32 %v530, %v600
      %v691 = vadd.f32 %v530, %v604
      %v692 = vadd.f32 %v530, %v608
      %v693 = vadd.f32 %v535, %v596
      %v694 = vadd.f32 %v535, %v600
      %v695 = vadd.f32 %v535, %v604
      %v696 = vadd.f32 %v535, %v608
      %v697 = vadd.f32 %v540, %v596
      %v698 = vadd.f32 %v540, %v600
      %v699 = vadd.f32 %v540, %v604
      %v700 = vadd.f32 %v540, %v608
      %v701 = vadd.f32 %v545, %v596
      %v702 = vadd.f32 %v545, %v600
      %v703 = vadd.f32 %v545, %v604
      %v704 = vadd.f32 %v545, %v608
      %v705 = vadd.f32 %v550, %v596
      %v706 = vadd.f32 %v550, %v600
      %v707 = vadd.f32 %v550, %v604
      %v708 = vadd.f32 %v550, %v608
      %v709 = vadd.f32 %v555, %v596
      %v710 = vadd.f32 %v555, %v600
      %v711 = vadd.f32 %v555, %v604
      %v712 = vadd.f32 %v555, %v608
      %v713 = vadd.f32 %v560, %v596
      %v714 = vadd.f32 %v560, %v600
      %v715 = vadd.f32 %v560, %v604
      %v716 = vadd.f32 %v560, %v608
      %v717 = vadd.f32 %v565, %v596
      %v718 = vadd.f32 %v565, %v600
      %v719 = vadd.f32 %v565, %v604
      %v720 = vadd.f32 %v565, %v608
      %v721 = vadd.f32 %v570, %v596
      %v722 = vadd.f32 %v570, %v600
      %v723 = vadd.f32 %v570, %v604
      %v724 = vadd.f32 %v570, %v608
      %v725 = vadd.f32 %v575, %v596
      %v726 = vadd.f32 %v575, %v600
      %v727 = vadd.f32 %v575, %v604
      %v728 = vadd.f32 %v575, %v608
      %v729 = vadd.f32 %v580, %v596
      %v730 = vadd.f32 %v580, %v600
      %v731 = vadd.f32 %v580, %v604
      %v732 = vadd.f32 %v580, %v608
      %v733 = vadd.f32 %v585, %v596
      %v734 = vadd.f32 %v585, %v600
      %v735 = vadd.f32 %v585, %v604
      %v736 = vadd.f32 %v585, %v608
      %v737 = vadd.f32 %v590, %v596
      %v738 = vadd.f32 %v590, %v600
      %v739 = vadd.f32 %v590, %v604
      %v740 = vadd.f32 %v590, %v608
      %vm741 = vcmp.gt.f32.partialorder %v613, 0.0
      %vm742 = vcmp.gt.f32.partialorder %v614, 0.0
      %vm743 = vcmp.gt.f32.partialorder %v615, 0.0
      %vm744 = vcmp.gt.f32.partialorder %v616, 0.0
      %vm745 = vcmp.gt.f32.partialorder %v617, 0.0
      %vm746 = vcmp.gt.f32.partialorder %v618, 0.0
      %vm747 = vcmp.gt.f32.partialorder %v619, 0.0
      %vm748 = vcmp.gt.f32.partialorder %v620, 0.0
      %vm749 = vcmp.gt.f32.partialorder %v621, 0.0
      %vm750 = vcmp.gt.f32.partialorder %v622, 0.0
      %vm751 = vcmp.gt.f32.partialorder %v623, 0.0
      %vm752 = vcmp.gt.f32.partialorder %v624, 0.0
      %vm753 = vcmp.gt.f32.partialorder %v625, 0.0
      %vm754 = vcmp.gt.f32.partialorder %v626, 0.0
      %vm755 = vcmp.gt.f32.partialorder %v627, 0.0
      %vm756 = vcmp.gt.f32.partialorder %v628, 0.0
      %vm757 = vcmp.gt.f32.partialorder %v629, 0.0
      %vm758 = vcmp.gt.f32.partialorder %v630, 0.0
      %vm759 = vcmp.gt.f32.partialorder %v631, 0.0
      %vm760 = vcmp.gt.f32.partialorder %v632, 0.0
      %vm761 = vcmp.gt.f32.partialorder %v633, 0.0
      %vm762 = vcmp.gt.f32.partialorder %v634, 0.0
      %vm763 = vcmp.gt.f32.partialorder %v635, 0.0
      %vm764 = vcmp.gt.f32.partialorder %v636, 0.0
      %vm765 = vcmp.gt.f32.partialorder %v637, 0.0
      %vm766 = vcmp.gt.f32.partialorder %v638, 0.0
      %vm767 = vcmp.gt.f32.partialorder %v639, 0.0
      %vm768 = vcmp.gt.f32.partialorder %v640, 0.0
      %vm769 = vcmp.gt.f32.partialorder %v641, 0.0
      %vm770 = vcmp.gt.f32.partialorder %v642, 0.0
      %vm771 = vcmp.gt.f32.partialorder %v643, 0.0
      %vm772 = vcmp.gt.f32.partialorder %v644, 0.0
      %vm773 = vcmp.gt.f32.partialorder %v645, 0.0
      %vm774 = vcmp.gt.f32.partialorder %v646, 0.0
      %vm775 = vcmp.gt.f32.partialorder %v647, 0.0
      %vm776 = vcmp.gt.f32.partialorder %v648, 0.0
      %vm777 = vcmp.gt.f32.partialorder %v649, 0.0
      %vm778 = vcmp.gt.f32.partialorder %v650, 0.0
      %vm779 = vcmp.gt.f32.partialorder %v651, 0.0
      %vm780 = vcmp.gt.f32.partialorder %v652, 0.0
      %vm781 = vcmp.gt.f32.partialorder %v653, 0.0
      %vm782 = vcmp.gt.f32.partialorder %v654, 0.0
      %vm783 = vcmp.gt.f32.partialorder %v655, 0.0
      %vm784 = vcmp.gt.f32.partialorder %v656, 0.0
      %vm785 = vcmp.gt.f32.partialorder %v657, 0.0
      %vm786 = vcmp.gt.f32.partialorder %v658, 0.0
      %vm787 = vcmp.gt.f32.partialorder %v659, 0.0
      %vm788 = vcmp.gt.f32.partialorder %v660, 0.0
      %vm789 = vcmp.gt.f32.partialorder %v661, 0.0
      %vm790 = vcmp.gt.f32.partialorder %v662, 0.0
      %vm791 = vcmp.gt.f32.partialorder %v663, 0.0
      %vm792 = vcmp.gt.f32.partialorder %v664, 0.0
      %vm793 = vcmp.gt.f32.partialorder %v665, 0.0
      %vm794 = vcmp.gt.f32.partialorder %v666, 0.0
      %vm795 = vcmp.gt.f32.partialorder %v667, 0.0
      %vm796 = vcmp.gt.f32.partialorder %v668, 0.0
      %vm797 = vcmp.gt.f32.partialorder %v669, 0.0
      %vm798 = vcmp.gt.f32.partialorder %v670, 0.0
      %vm799 = vcmp.gt.f32.partialorder %v671, 0.0
      %vm800 = vcmp.gt.f32.partialorder %v672, 0.0
      %vm801 = vcmp.gt.f32.partialorder %v673, 0.0
      %vm802 = vcmp.gt.f32.partialorder %v674, 0.0
      %vm803 = vcmp.gt.f32.partialorder %v675, 0.0
      %vm804 = vcmp.gt.f32.partialorder %v676, 0.0
      %vm805 = vcmp.gt.f32.partialorder %v677, 0.0
      %vm806 = vcmp.gt.f32.partialorder %v678, 0.0
      %vm807 = vcmp.gt.f32.partialorder %v679, 0.0
      %vm808 = vcmp.gt.f32.partialorder %v680, 0.0
      %vm809 = vcmp.gt.f32.partialorder %v681, 0.0
      %vm810 = vcmp.gt.f32.partialorder %v682, 0.0
      %vm811 = vcmp.gt.f32.partialorder %v683, 0.0
      %vm812 = vcmp.gt.f32.partialorder %v684, 0.0
      %vm813 = vcmp.gt.f32.partialorder %v685, 0.0
      %vm814 = vcmp.gt.f32.partialorder %v686, 0.0
      %vm815 = vcmp.gt.f32.partialorder %v687, 0.0
      %vm816 = vcmp.gt.f32.partialorder %v688, 0.0
      %vm817 = vcmp.gt.f32.partialorder %v689, 0.0
      %vm818 = vcmp.gt.f32.partialorder %v690, 0.0
      %vm819 = vcmp.gt.f32.partialorder %v691, 0.0
      %vm820 = vcmp.gt.f32.partialorder %v692, 0.0
      %vm821 = vcmp.gt.f32.partialorder %v693, 0.0
      %vm822 = vcmp.gt.f32.partialorder %v694, 0.0
      %vm823 = vcmp.gt.f32.partialorder %v695, 0.0
      %vm824 = vcmp.gt.f32.partialorder %v696, 0.0
      %vm825 = vcmp.gt.f32.partialorder %v697, 0.0
      %vm826 = vcmp.gt.f32.partialorder %v698, 0.0
      %vm827 = vcmp.gt.f32.partialorder %v699, 0.0
      %vm828 = vcmp.gt.f32.partialorder %v700, 0.0
      %vm829 = vcmp.gt.f32.partialorder %v701, 0.0
      %vm830 = vcmp.gt.f32.partialorder %v702, 0.0
      %vm831 = vcmp.gt.f32.partialorder %v703, 0.0
      %vm832 = vcmp.gt.f32.partialorder %v704, 0.0
      %vm833 = vcmp.gt.f32.partialorder %v705, 0.0
      %vm834 = vcmp.gt.f32.partialorder %v706, 0.0
      %vm835 = vcmp.gt.f32.partialorder %v707, 0.0
      %vm836 = vcmp.gt.f32.partialorder %v708, 0.0
      %vm837 = vcmp.gt.f32.partialorder %v709, 0.0
      %vm838 = vcmp.gt.f32.partialorder %v710, 0.0
      %vm839 = vcmp.gt.f32.partialorder %v711, 0.0
      %vm840 = vcmp.gt.f32.partialorder %v712, 0.0
      %vm841 = vcmp.gt.f32.partialorder %v713, 0.0
      %vm842 = vcmp.gt.f32.partialorder %v714, 0.0
      %vm843 = vcmp.gt.f32.partialorder %v715, 0.0
      %vm844 = vcmp.gt.f32.partialorder %v716, 0.0
      %vm845 = vcmp.gt.f32.partialorder %v717, 0.0
      %vm846 = vcmp.gt.f32.partialorder %v718, 0.0
      %vm847 = vcmp.gt.f32.partialorder %v719, 0.0
      %vm848 = vcmp.gt.f32.partialorder %v720, 0.0
      %vm849 = vcmp.gt.f32.partialorder %v721, 0.0
      %vm850 = vcmp.gt.f32.partialorder %v722, 0.0
      %vm851 = vcmp.gt.f32.partialorder %v723, 0.0
      %vm852 = vcmp.gt.f32.partialorder %v724, 0.0
      %vm853 = vcmp.gt.f32.partialorder %v725, 0.0
      %vm854 = vcmp.gt.f32.partialorder %v726, 0.0
      %vm855 = vcmp.gt.f32.partialorder %v727, 0.0
      %vm856 = vcmp.gt.f32.partialorder %v728, 0.0
      %vm857 = vcmp.gt.f32.partialorder %v729, 0.0
      %vm858 = vcmp.gt.f32.partialorder %v730, 0.0
      %vm859 = vcmp.gt.f32.partialorder %v731, 0.0
      %vm860 = vcmp.gt.f32.partialorder %v732, 0.0
      %vm861 = vcmp.gt.f32.partialorder %v733, 0.0
      %vm862 = vcmp.gt.f32.partialorder %v734, 0.0
      %vm863 = vcmp.gt.f32.partialorder %v735, 0.0
      %vm864 = vcmp.gt.f32.partialorder %v736, 0.0
      %vm865 = vcmp.gt.f32.partialorder %v737, 0.0
      %vm866 = vcmp.gt.f32.partialorder %v738, 0.0
      %vm867 = vcmp.gt.f32.partialorder %v739, 0.0
      %vm868 = vcmp.gt.f32.partialorder %v740, 0.0
      %v869 = vmul.f32 %v613, 0.2
      %v870 = vmul.f32 %v614, 0.2
      %v871 = vmul.f32 %v615, 0.2
      %v872 = vmul.f32 %v616, 0.2
      %v873 = vmul.f32 %v617, 0.2
      %v874 = vmul.f32 %v618, 0.2
      %v875 = vmul.f32 %v619, 0.2
      %v876 = vmul.f32 %v620, 0.2
      %v877 = vmul.f32 %v621, 0.2
      %v878 = vmul.f32 %v622, 0.2
      %v879 = vmul.f32 %v623, 0.2
      %v880 = vmul.f32 %v624, 0.2
      %v881 = vmul.f32 %v625, 0.2
      %v882 = vmul.f32 %v626, 0.2
      %v883 = vmul.f32 %v627, 0.2
      %v884 = vmul.f32 %v628, 0.2
      %v885 = vmul.f32 %v629, 0.2
      %v886 = vmul.f32 %v630, 0.2
      %v887 = vmul.f32 %v631, 0.2
      %v888 = vmul.f32 %v632, 0.2
      %v889 = vmul.f32 %v633, 0.2
      %v890 = vmul.f32 %v634, 0.2
      %v891 = vmul.f32 %v635, 0.2
      %v892 = vmul.f32 %v636, 0.2
      %v893 = vmul.f32 %v637, 0.2
      %v894 = vmul.f32 %v638, 0.2
      %v895 = vmul.f32 %v639, 0.2
      %v896 = vmul.f32 %v640, 0.2
      %v897 = vmul.f32 %v641, 0.2
      %v898 = vmul.f32 %v642, 0.2
      %v899 = vmul.f32 %v643, 0.2
      %v900 = vmul.f32 %v644, 0.2
      %v901 = vmul.f32 %v645, 0.2
      %v902 = vmul.f32 %v646, 0.2
      %v903 = vmul.f32 %v647, 0.2
      %v904 = vmul.f32 %v648, 0.2
      %v905 = vmul.f32 %v649, 0.2
      %v906 = vmul.f32 %v650, 0.2
      %v907 = vmul.f32 %v651, 0.2
      %v908 = vmul.f32 %v652, 0.2
      %v909 = vmul.f32 %v653, 0.2
      %v910 = vmul.f32 %v654, 0.2
      %v911 = vmul.f32 %v655, 0.2
      %v912 = vmul.f32 %v656, 0.2
      %v913 = vmul.f32 %v657, 0.2
      %v914 = vmul.f32 %v658, 0.2
      %v915 = vmul.f32 %v659, 0.2
      %v916 = vmul.f32 %v660, 0.2
      %v917 = vmul.f32 %v661, 0.2
      %v918 = vmul.f32 %v662, 0.2
      %v919 = vmul.f32 %v663, 0.2
      %v920 = vmul.f32 %v664, 0.2
      %v921 = vmul.f32 %v665, 0.2
      %v922 = vmul.f32 %v666, 0.2
      %v923 = vmul.f32 %v667, 0.2
      %v924 = vmul.f32 %v668, 0.2
      %v925 = vmul.f32 %v669, 0.2
      %v926 = vmul.f32 %v670, 0.2
      %v927 = vmul.f32 %v671, 0.2
      %v928 = vmul.f32 %v672, 0.2
      %v929 = vmul.f32 %v673, 0.2
      %v930 = vmul.f32 %v674, 0.2
      %v931 = vmul.f32 %v675, 0.2
      %v932 = vmul.f32 %v676, 0.2
      %v933 = vmul.f32 %v677, 0.2
      %v934 = vmul.f32 %v678, 0.2
      %v935 = vmul.f32 %v679, 0.2
      %v936 = vmul.f32 %v680, 0.2
      %v937 = vmul.f32 %v681, 0.2
      %v938 = vmul.f32 %v682, 0.2
      %v939 = vmul.f32 %v683, 0.2
      %v940 = vmul.f32 %v684, 0.2
      %v941 = vmul.f32 %v685, 0.2
      %v942 = vmul.f32 %v686, 0.2
      %v943 = vmul.f32 %v687, 0.2
      %v944 = vmul.f32 %v688, 0.2
      %v945 = vmul.f32 %v689, 0.2
      %v946 = vmul.f32 %v690, 0.2
      %v947 = vmul.f32 %v691, 0.2
      %v948 = vmul.f32 %v692, 0.2
      %v949 = vmul.f32 %v693, 0.2
      %v950 = vmul.f32 %v694, 0.2
      %v951 = vmul.f32 %v695, 0.2
      %v952 = vmul.f32 %v696, 0.2
      %v953 = vmul.f32 %v697, 0.2
      %v954 = vmul.f32 %v698, 0.2
      %v955 = vmul.f32 %v699, 0.2
      %v956 = vmul.f32 %v700, 0.2
      %v957 = vmul.f32 %v701, 0.2
      %v958 = vmul.f32 %v702, 0.2
      %v959 = vmul.f32 %v703, 0.2
      %v960 = vmul.f32 %v704, 0.2
      %v961 = vmul.f32 %v705, 0.2
      %v962 = vmul.f32 %v706, 0.2
      %v963 = vmul.f32 %v707, 0.2
      %v964 = vmul.f32 %v708, 0.2
      %v965 = vmul.f32 %v709, 0.2
      %v966 = vmul.f32 %v710, 0.2
      %v967 = vmul.f32 %v711, 0.2
      %v968 = vmul.f32 %v712, 0.2
      %v969 = vmul.f32 %v713, 0.2
      %v970 = vmul.f32 %v714, 0.2
      %v971 = vmul.f32 %v715, 0.2
      %v972 = vmul.f32 %v716, 0.2
      %v973 = vmul.f32 %v717, 0.2
      %v974 = vmul.f32 %v718, 0.2
      %v975 = vmul.f32 %v719, 0.2
      %v976 = vmul.f32 %v720, 0.2
      %v977 = vmul.f32 %v721, 0.2
      %v978 = vmul.f32 %v722, 0.2
      %v979 = vmul.f32 %v723, 0.2
      %v980 = vmul.f32 %v724, 0.2
      %v981 = vmul.f32 %v725, 0.2
      %v982 = vmul.f32 %v726, 0.2
      %v983 = vmul.f32 %v727, 0.2
      %v984 = vmul.f32 %v728, 0.2
      %v985 = vmul.f32 %v729, 0.2
      %v986 = vmul.f32 %v730, 0.2
      %v987 = vmul.f32 %v731, 0.2
      %v988 = vmul.f32 %v732, 0.2
      %v989 = vmul.f32 %v733, 0.2
      %v990 = vmul.f32 %v734, 0.2
      %v991 = vmul.f32 %v735, 0.2
      %v992 = vmul.f32 %v736, 0.2
      %v993 = vmul.f32 %v737, 0.2
      %v994 = vmul.f32 %v738, 0.2
      %v995 = vmul.f32 %v739, 0.2
      %v996 = vmul.f32 %v740, 0.2
      %v997 = vsel %vm741, %v613, %v869
      %v998 = vsel %vm742, %v614, %v870
      %v999 = vsel %vm743, %v615, %v871
      %v1000 = vsel %vm744, %v616, %v872
      %v1001 = vsel %vm745, %v617, %v873
      %v1002 = vsel %vm746, %v618, %v874
      %v1003 = vsel %vm747, %v619, %v875
      %v1004 = vsel %vm748, %v620, %v876
      %v1005 = vsel %vm749, %v621, %v877
      %v1006 = vsel %vm750, %v622, %v878
      %v1007 = vsel %vm751, %v623, %v879
      %v1008 = vsel %vm752, %v624, %v880
      %v1009 = vsel %vm753, %v625, %v881
      %v1010 = vsel %vm754, %v626, %v882
      %v1011 = vsel %vm755, %v627, %v883
      %v1012 = vsel %vm756, %v628, %v884
      %v1013 = vsel %vm757, %v629, %v885
      %v1014 = vsel %vm758, %v630, %v886
      %v1015 = vsel %vm759, %v631, %v887
      %v1016 = vsel %vm760, %v632, %v888
      %v1017 = vsel %vm761, %v633, %v889
      %v1018 = vsel %vm762, %v634, %v890
      %v1019 = vsel %vm763, %v635, %v891
      %v1020 = vsel %vm764, %v636, %v892
      %v1021 = vsel %vm765, %v637, %v893
      %v1022 = vsel %vm766, %v638, %v894
      %v1023 = vsel %vm767, %v639, %v895
      %v1024 = vsel %vm768, %v640, %v896
      %v1025 = vsel %vm769, %v641, %v897
      %v1026 = vsel %vm770, %v642, %v898
      %v1027 = vsel %vm771, %v643, %v899
      %v1028 = vsel %vm772, %v644, %v900
      %v1029 = vsel %vm773, %v645, %v901
      %v1030 = vsel %vm774, %v646, %v902
      %v1031 = vsel %vm775, %v647, %v903
      %v1032 = vsel %vm776, %v648, %v904
      %v1033 = vsel %vm777, %v649, %v905
      %v1034 = vsel %vm778, %v650, %v906
      %v1035 = vsel %vm779, %v651, %v907
      %v1036 = vsel %vm780, %v652, %v908
      %v1037 = vsel %vm781, %v653, %v909
      %v1038 = vsel %vm782, %v654, %v910
      %v1039 = vsel %vm783, %v655, %v911
      %v1040 = vsel %vm784, %v656, %v912
      %v1041 = vsel %vm785, %v657, %v913
      %v1042 = vsel %vm786, %v658, %v914
      %v1043 = vsel %vm787, %v659, %v915
      %v1044 = vsel %vm788, %v660, %v916
      %v1045 = vsel %vm789, %v661, %v917
      %v1046 = vsel %vm790, %v662, %v918
      %v1047 = vsel %vm791, %v663, %v919
      %v1048 = vsel %vm792, %v664, %v920
      %v1049 = vsel %vm793, %v665, %v921
      %v1050 = vsel %vm794, %v666, %v922
      %v1051 = vsel %vm795, %v667, %v923
      %v1052 = vsel %vm796, %v668, %v924
      %v1053 = vsel %vm797, %v669, %v925
      %v1054 = vsel %vm798, %v670, %v926
      %v1055 = vsel %vm799, %v671, %v927
      %v1056 = vsel %vm800, %v672, %v928
      %v1057 = vsel %vm801, %v673, %v929
      %v1058 = vsel %vm802, %v674, %v930
      %v1059 = vsel %vm803, %v675, %v931
      %v1060 = vsel %vm804, %v676, %v932
      %v1061 = vsel %vm805, %v677, %v933
      %v1062 = vsel %vm806, %v678, %v934
      %v1063 = vsel %vm807, %v679, %v935
      %v1064 = vsel %vm808, %v680, %v936
      %v1065 = vsel %vm809, %v681, %v937
      %v1066 = vsel %vm810, %v682, %v938
      %v1067 = vsel %vm811, %v683, %v939
      %v1068 = vsel %vm812, %v684, %v940
      %v1069 = vsel %vm813, %v685, %v941
      %v1070 = vsel %vm814, %v686, %v942
      %v1071 = vsel %vm815, %v687, %v943
      %v1072 = vsel %vm816, %v688, %v944
      %v1073 = vsel %vm817, %v689, %v945
      %v1074 = vsel %vm818, %v690, %v946
      %v1075 = vsel %vm819, %v691, %v947
      %v1076 = vsel %vm820, %v692, %v948
      %v1077 = vsel %vm821, %v693, %v949
      %v1078 = vsel %vm822, %v694, %v950
      %v1079 = vsel %vm823, %v695, %v951
      %v1080 = vsel %vm824, %v696, %v952
      %v1081 = vsel %vm825, %v697, %v953
      %v1082 = vsel %vm826, %v698, %v954
      %v1083 = vsel %vm827, %v699, %v955
      %v1084 = vsel %vm828, %v700, %v956
      %v1085 = vsel %vm829, %v701, %v957
      %v1086 = vsel %vm830, %v702, %v958
      %v1087 = vsel %vm831, %v703, %v959
      %v1088 = vsel %vm832, %v704, %v960
      %v1089 = vsel %vm833, %v705, %v961
      %v1090 = vsel %vm834, %v706, %v962
      %v1091 = vsel %vm835, %v707, %v963
      %v1092 = vsel %vm836, %v708, %v964
      %v1093 = vsel %vm837, %v709, %v965
      %v1094 = vsel %vm838, %v710, %v966
      %v1095 = vsel %vm839, %v711, %v967
      %v1096 = vsel %vm840, %v712, %v968
      %v1097 = vsel %vm841, %v713, %v969
      %v1098 = vsel %vm842, %v714, %v970
      %v1099 = vsel %vm843, %v715, %v971
      %v1100 = vsel %vm844, %v716, %v972
      %v1101 = vsel %vm845, %v717, %v973
      %v1102 = vsel %vm846, %v718, %v974
      %v1103 = vsel %vm847, %v719, %v975
      %v1104 = vsel %vm848, %v720, %v976
      %v1105 = vsel %vm849, %v721, %v977
      %v1106 = vsel %vm850, %v722, %v978
      %v1107 = vsel %vm851, %v723, %v979
      %v1108 = vsel %vm852, %v724, %v980
      %v1109 = vsel %vm853, %v725, %v981
      %v1110 = vsel %vm854, %v726, %v982
      %v1111 = vsel %vm855, %v727, %v983
      %v1112 = vsel %vm856, %v728, %v984
      %v1113 = vsel %vm857, %v729, %v985
      %v1114 = vsel %vm858, %v730, %v986
      %v1115 = vsel %vm859, %v731, %v987
      %v1116 = vsel %vm860, %v732, %v988
      %v1117 = vsel %vm861, %v733, %v989
      %v1118 = vsel %vm862, %v734, %v990
      %v1119 = vsel %vm863, %v735, %v991
      %v1120 = vsel %vm864, %v736, %v992
      %v1121 = vsel %vm865, %v737, %v993
      %v1122 = vsel %vm866, %v738, %v994
      %v1123 = vsel %vm867, %v739, %v995
      %v1124 = vsel %vm868, %v740, %v996
      %v1125 = vld [vmem:[%s269] sm:$0xff]
      %v1126 = vld [vmem:[%s269 + $0x8] sm:$0xff]
      %v1127 = vld [vmem:[%s269 + $0x10] sm:$0xff]
      %v1128 = vld [vmem:[%s269 + $0x18] sm:$0xff]
      %v1129 = vld [vmem:[%s269 + $0x20] sm:$0xff]
      %v1130 = vld [vmem:[%s269 + $0x28] sm:$0xff]
      %v1131 = vld [vmem:[%s269 + $0x30] sm:$0xff]
      %v1132 = vld [vmem:[%s269 + $0x38] sm:$0xff]
      %v1133 = vld [vmem:[%s269 + $0x40] sm:$0xff]
      %v1134 = vld [vmem:[%s269 + $0x48] sm:$0xff]
      %v1135 = vld [vmem:[%s269 + $0x50] sm:$0xff]
      %v1136 = vld [vmem:[%s269 + $0x58] sm:$0xff]
      %v1137 = vld [vmem:[%s269 + $0x60] sm:$0xff]
      %v1138 = vld [vmem:[%s269 + $0x68] sm:$0xff]
      %v1139 = vld [vmem:[%s269 + $0x70] sm:$0xff]
      %v1140 = vld [vmem:[%s269 + $0x78] sm:$0xff]
      %v1141 = vld [vmem:[%s269 + $0x80] sm:$0xff]
      %v1142 = vld [vmem:[%s269 + $0x88] sm:$0xff]
      %v1143 = vld [vmem:[%s269 + $0x90] sm:$0xff]
      %v1144 = vld [vmem:[%s269 + $0x98] sm:$0xff]
      %v1145 = vld [vmem:[%s269 + $0xa0] sm:$0xff]
      %v1146 = vld [vmem:[%s269 + $0xa8] sm:$0xff]
      %v1147 = vld [vmem:[%s269 + $0xb0] sm:$0xff]
      %v1148 = vld [vmem:[%s269 + $0xb8] sm:$0xff]
      %v1149 = vld [vmem:[%s269 + $0xc0] sm:$0xff]
      %v1150 = vld [vmem:[%s269 + $0xc8] sm:$0xff]
      %v1151 = vld [vmem:[%s269 + $0xd0] sm:$0xff]
      %v1152 = vld [vmem:[%s269 + $0xd8] sm:$0xff]
      %v1153 = vld [vmem:[%s269 + $0xe0] sm:$0xff]
      %v1154 = vld [vmem:[%s269 + $0xe8] sm:$0xff]
      %v1155 = vld [vmem:[%s269 + $0xf0] sm:$0xff]
      %v1156 = vld [vmem:[%s269 + $0xf8] sm:$0xff]
      %vm1157 = vnez %v1125
      %vm1158 = vnez %v1126
      %vm1159 = vnez %v1127
      %vm1160 = vnez %v1128
      %vm1161 = vnez %v1129
      %vm1162 = vnez %v1130
      %vm1163 = vnez %v1131
      %vm1164 = vnez %v1132
      %vm1165 = vnez %v1133
      %vm1166 = vnez %v1134
      %vm1167 = vnez %v1135
      %vm1168 = vnez %v1136
      %vm1169 = vnez %v1137
      %vm1170 = vnez %v1138
      %vm1171 = vnez %v1139
      %vm1172 = vnez %v1140
      %vm1173 = vnez %v1141
      %vm1174 = vnez %v1142
      %vm1175 = vnez %v1143
      %vm1176 = vnez %v1144
      %vm1177 = vnez %v1145
      %vm1178 = vnez %v1146
      %vm1179 = vnez %v1147
      %vm1180 = vnez %v1148
      %vm1181 = vnez %v1149
      %vm1182 = vnez %v1150
      %vm1183 = vnez %v1151
      %vm1184 = vnez %v1152
      %vm1185 = vnez %v1153
      %vm1186 = vnez %v1154
      %vm1187 = vnez %v1155
      %vm1188 = vnez %v1156
      %v1189 = vsel %vm1157, 16843009, 0
      %v1190 = vsel %vm1158, 16843009, 0
      %v1191 = vsel %vm1159, 16843009, 0
      %v1192 = vsel %vm1160, 16843009, 0
      %v1193 = vsel %vm1161, 16843009, 0
      %v1194 = vsel %vm1162, 16843009, 0
      %v1195 = vsel %vm1163, 16843009, 0
      %v1196 = vsel %vm1164, 16843009, 0
      %v1197 = vsel %vm1165, 16843009, 0
      %v1198 = vsel %vm1166, 16843009, 0
      %v1199 = vsel %vm1167, 16843009, 0
      %v1200 = vsel %vm1168, 16843009, 0
      %v1201 = vsel %vm1169, 16843009, 0
      %v1202 = vsel %vm1170, 16843009, 0
      %v1203 = vsel %vm1171, 16843009, 0
      %v1204 = vsel %vm1172, 16843009, 0
      %v1205 = vsel %vm1173, 16843009, 0
      %v1206 = vsel %vm1174, 16843009, 0
      %v1207 = vsel %vm1175, 16843009, 0
      %v1208 = vsel %vm1176, 16843009, 0
      %v1209 = vsel %vm1177, 16843009, 0
      %v1210 = vsel %vm1178, 16843009, 0
      %v1211 = vsel %vm1179, 16843009, 0
      %v1212 = vsel %vm1180, 16843009, 0
      %v1213 = vsel %vm1181, 16843009, 0
      %v1214 = vsel %vm1182, 16843009, 0
      %v1215 = vsel %vm1183, 16843009, 0
      %v1216 = vsel %vm1184, 16843009, 0
      %v1217 = vsel %vm1185, 16843009, 0
      %v1218 = vsel %vm1186, 16843009, 0
      %v1219 = vsel %vm1187, 16843009, 0
      %v1220 = vsel %vm1188, 16843009, 0
      %v1221 = vunpack.c.0.s8 %v1189
      %v1222 = vunpack.c.0.s8 %v1190
      %v1223 = vunpack.c.0.s8 %v1191
      %v1224 = vunpack.c.0.s8 %v1192
      %v1225 = vunpack.c.1.s8 %v1189
      %v1226 = vunpack.c.1.s8 %v1190
      %v1227 = vunpack.c.1.s8 %v1191
      %v1228 = vunpack.c.1.s8 %v1192
      %v1229 = vunpack.c.2.s8 %v1189
      %v1230 = vunpack.c.2.s8 %v1190
      %v1231 = vunpack.c.2.s8 %v1191
      %v1232 = vunpack.c.2.s8 %v1192
      %v1233 = vunpack.c.3.s8 %v1189
      %v1234 = vunpack.c.3.s8 %v1190
      %v1235 = vunpack.c.3.s8 %v1191
      %v1236 = vunpack.c.3.s8 %v1192
      %v1237 = vunpack.c.0.s8 %v1193
      %v1238 = vunpack.c.0.s8 %v1194
      %v1239 = vunpack.c.0.s8 %v1195
      %v1240 = vunpack.c.0.s8 %v1196
      %v1241 = vunpack.c.1.s8 %v1193
      %v1242 = vunpack.c.1.s8 %v1194
      %v1243 = vunpack.c.1.s8 %v1195
      %v1244 = vunpack.c.1.s8 %v1196
      %v1245 = vunpack.c.2.s8 %v1193
      %v1246 = vunpack.c.2.s8 %v1194
      %v1247 = vunpack.c.2.s8 %v1195
      %v1248 = vunpack.c.2.s8 %v1196
      %v1249 = vunpack.c.3.s8 %v1193
      %v1250 = vunpack.c.3.s8 %v1194
      %v1251 = vunpack.c.3.s8 %v1195
      %v1252 = vunpack.c.3.s8 %v1196
      %v1253 = vunpack.c.0.s8 %v1197
      %v1254 = vunpack.c.0.s8 %v1198
      %v1255 = vunpack.c.0.s8 %v1199
      %v1256 = vunpack.c.0.s8 %v1200
      %v1257 = vunpack.c.1.s8 %v1197
      %v1258 = vunpack.c.1.s8 %v1198
      %v1259 = vunpack.c.1.s8 %v1199
      %v1260 = vunpack.c.1.s8 %v1200
      %v1261 = vunpack.c.2.s8 %v1197
      %v1262 = vunpack.c.2.s8 %v1198
      %v1263 = vunpack.c.2.s8 %v1199
      %v1264 = vunpack.c.2.s8 %v1200
      %v1265 = vunpack.c.3.s8 %v1197
      %v1266 = vunpack.c.3.s8 %v1198
      %v1267 = vunpack.c.3.s8 %v1199
      %v1268 = vunpack.c.3.s8 %v1200
      %v1269 = vunpack.c.0.s8 %v1201
      %v1270 = vunpack.c.0.s8 %v1202
      %v1271 = vunpack.c.0.s8 %v1203
      %v1272 = vunpack.c.0.s8 %v1204
      %v1273 = vunpack.c.1.s8 %v1201
      %v1274 = vunpack.c.1.s8 %v1202
      %v1275 = vunpack.c.1.s8 %v1203
      %v1276 = vunpack.c.1.s8 %v1204
      %v1277 = vunpack.c.2.s8 %v1201
      %v1278 = vunpack.c.2.s8 %v1202
      %v1279 = vunpack.c.2.s8 %v1203
      %v1280 = vunpack.c.2.s8 %v1204
      %v1281 = vunpack.c.3.s8 %v1201
      %v1282 = vunpack.c.3.s8 %v1202
      %v1283 = vunpack.c.3.s8 %v1203
      %v1284 = vunpack.c.3.s8 %v1204
      %v1285 = vunpack.c.0.s8 %v1205
      %v1286 = vunpack.c.0.s8 %v1206
      %v1287 = vunpack.c.0.s8 %v1207
      %v1288 = vunpack.c.0.s8 %v1208
      %v1289 = vunpack.c.1.s8 %v1205
      %v1290 = vunpack.c.1.s8 %v1206
      %v1291 = vunpack.c.1.s8 %v1207
      %v1292 = vunpack.c.1.s8 %v1208
      %v1293 = vunpack.c.2.s8 %v1205
      %v1294 = vunpack.c.2.s8 %v1206
      %v1295 = vunpack.c.2.s8 %v1207
      %v1296 = vunpack.c.2.s8 %v1208
      %v1297 = vunpack.c.3.s8 %v1205
      %v1298 = vunpack.c.3.s8 %v1206
      %v1299 = vunpack.c.3.s8 %v1207
      %v1300 = vunpack.c.3.s8 %v1208
      %v1301 = vunpack.c.0.s8 %v1209
      %v1302 = vunpack.c.0.s8 %v1210
      %v1303 = vunpack.c.0.s8 %v1211
      %v1304 = vunpack.c.0.s8 %v1212
      %v1305 = vunpack.c.1.s8 %v1209
      %v1306 = vunpack.c.1.s8 %v1210
      %v1307 = vunpack.c.1.s8 %v1211
      %v1308 = vunpack.c.1.s8 %v1212
      %v1309 = vunpack.c.2.s8 %v1209
      %v1310 = vunpack.c.2.s8 %v1210
      %v1311 = vunpack.c.2.s8 %v1211
      %v1312 = vunpack.c.2.s8 %v1212
      %v1313 = vunpack.c.3.s8 %v1209
      %v1314 = vunpack.c.3.s8 %v1210
      %v1315 = vunpack.c.3.s8 %v1211
      %v1316 = vunpack.c.3.s8 %v1212
      %v1317 = vunpack.c.0.s8 %v1213
      %v1318 = vunpack.c.0.s8 %v1214
      %v1319 = vunpack.c.0.s8 %v1215
      %v1320 = vunpack.c.0.s8 %v1216
      %v1321 = vunpack.c.1.s8 %v1213
      %v1322 = vunpack.c.1.s8 %v1214
      %v1323 = vunpack.c.1.s8 %v1215
      %v1324 = vunpack.c.1.s8 %v1216
      %v1325 = vunpack.c.2.s8 %v1213
      %v1326 = vunpack.c.2.s8 %v1214
      %v1327 = vunpack.c.2.s8 %v1215
      %v1328 = vunpack.c.2.s8 %v1216
      %v1329 = vunpack.c.3.s8 %v1213
      %v1330 = vunpack.c.3.s8 %v1214
      %v1331 = vunpack.c.3.s8 %v1215
      %v1332 = vunpack.c.3.s8 %v1216
      %v1333 = vunpack.c.0.s8 %v1217
      %v1334 = vunpack.c.0.s8 %v1218
      %v1335 = vunpack.c.0.s8 %v1219
      %v1336 = vunpack.c.0.s8 %v1220
      %v1337 = vunpack.c.1.s8 %v1217
      %v1338 = vunpack.c.1.s8 %v1218
      %v1339 = vunpack.c.1.s8 %v1219
      %v1340 = vunpack.c.1.s8 %v1220
      %v1341 = vunpack.c.2.s8 %v1217
      %v1342 = vunpack.c.2.s8 %v1218
      %v1343 = vunpack.c.2.s8 %v1219
      %v1344 = vunpack.c.2.s8 %v1220
      %v1345 = vunpack.c.3.s8 %v1217
      %v1346 = vunpack.c.3.s8 %v1218
      %v1347 = vunpack.c.3.s8 %v1219
      %v1348 = vunpack.c.3.s8 %v1220
      %v1349 = vpack.c.b16 %v1222, %v1221
      %v1350 = vpack.c.b16 %v1224, %v1223
      %v1351 = vpack.c.b8 %v1350, %v1349
      %v1352 = vpack.c.b16 %v1226, %v1225
      %v1353 = vpack.c.b16 %v1228, %v1227
      %v1354 = vpack.c.b8 %v1353, %v1352
      %v1355 = vpack.c.b16 %v1230, %v1229
      %v1356 = vpack.c.b16 %v1232, %v1231
      %v1357 = vpack.c.b8 %v1356, %v1355
      %v1358 = vpack.c.b16 %v1234, %v1233
      %v1359 = vpack.c.b16 %v1236, %v1235
      %v1360 = vpack.c.b8 %v1359, %v1358
      %v1361 = vpack.c.b16 %v1238, %v1237
      %v1362 = vpack.c.b16 %v1240, %v1239
      %v1363 = vpack.c.b8 %v1362, %v1361
      %v1364 = vpack.c.b16 %v1242, %v1241
      %v1365 = vpack.c.b16 %v1244, %v1243
      %v1366 = vpack.c.b8 %v1365, %v1364
      %v1367 = vpack.c.b16 %v1246, %v1245
      %v1368 = vpack.c.b16 %v1248, %v1247
      %v1369 = vpack.c.b8 %v1368, %v1367
      %v1370 = vpack.c.b16 %v1250, %v1249
      %v1371 = vpack.c.b16 %v1252, %v1251
      %v1372 = vpack.c.b8 %v1371, %v1370
      %v1373 = vpack.c.b16 %v1254, %v1253
      %v1374 = vpack.c.b16 %v1256, %v1255
      %v1375 = vpack.c.b8 %v1374, %v1373
      %v1376 = vpack.c.b16 %v1258, %v1257
      %v1377 = vpack.c.b16 %v1260, %v1259
      %v1378 = vpack.c.b8 %v1377, %v1376
      %v1379 = vpack.c.b16 %v1262, %v1261
      %v1380 = vpack.c.b16 %v1264, %v1263
      %v1381 = vpack.c.b8 %v1380, %v1379
      %v1382 = vpack.c.b16 %v1266, %v1265
      %v1383 = vpack.c.b16 %v1268, %v1267
      %v1384 = vpack.c.b8 %v1383, %v1382
      %v1385 = vpack.c.b16 %v1270, %v1269
      %v1386 = vpack.c.b16 %v1272, %v1271
      %v1387 = vpack.c.b8 %v1386, %v1385
      %v1388 = vpack.c.b16 %v1274, %v1273
      %v1389 = vpack.c.b16 %v1276, %v1275
      %v1390 = vpack.c.b8 %v1389, %v1388
      %v1391 = vpack.c.b16 %v1278, %v1277
      %v1392 = vpack.c.b16 %v1280, %v1279
      %v1393 = vpack.c.b8 %v1392, %v1391
      %v1394 = vpack.c.b16 %v1282, %v1281
      %v1395 = vpack.c.b16 %v1284, %v1283
      %v1396 = vpack.c.b8 %v1395, %v1394
      %v1397 = vpack.c.b16 %v1286, %v1285
      %v1398 = vpack.c.b16 %v1288, %v1287
      %v1399 = vpack.c.b8 %v1398, %v1397
      %v1400 = vpack.c.b16 %v1290, %v1289
      %v1401 = vpack.c.b16 %v1292, %v1291
      %v1402 = vpack.c.b8 %v1401, %v1400
      %v1403 = vpack.c.b16 %v1294, %v1293
      %v1404 = vpack.c.b16 %v1296, %v1295
      %v1405 = vpack.c.b8 %v1404, %v1403
      %v1406 = vpack.c.b16 %v1298, %v1297
      %v1407 = vpack.c.b16 %v1300, %v1299
      %v1408 = vpack.c.b8 %v1407, %v1406
      %v1409 = vpack.c.b16 %v1302, %v1301
      %v1410 = vpack.c.b16 %v1304, %v1303
      %v1411 = vpack.c.b8 %v1410, %v1409
      %v1412 = vpack.c.b16 %v1306, %v1305
      %v1413 = vpack.c.b16 %v1308, %v1307
      %v1414 = vpack.c.b8 %v1413, %v1412
      %v1415 = vpack.c.b16 %v1310, %v1309
      %v1416 = vpack.c.b16 %v1312, %v1311
      %v1417 = vpack.c.b8 %v1416, %v1415
      %v1418 = vpack.c.b16 %v1314, %v1313
      %v1419 = vpack.c.b16 %v1316, %v1315
      %v1420 = vpack.c.b8 %v1419, %v1418
      %v1421 = vpack.c.b16 %v1318, %v1317
      %v1422 = vpack.c.b16 %v1320, %v1319
      %v1423 = vpack.c.b8 %v1422, %v1421
      %v1424 = vpack.c.b16 %v1322, %v1321
      %v1425 = vpack.c.b16 %v1324, %v1323
      %v1426 = vpack.c.b8 %v1425, %v1424
      %v1427 = vpack.c.b16 %v1326, %v1325
      %v1428 = vpack.c.b16 %v1328, %v1327
      %v1429 = vpack.c.b8 %v1428, %v1427
      %v1430 = vpack.c.b16 %v1330, %v1329
      %v1431 = vpack.c.b16 %v1332, %v1331
      %v1432 = vpack.c.b8 %v1431, %v1430
      %v1433 = vpack.c.b16 %v1334, %v1333
      %v1434 = vpack.c.b16 %v1336, %v1335
      %v1435 = vpack.c.b8 %v1434, %v1433
      %v1436 = vpack.c.b16 %v1338, %v1337
      %v1437 = vpack.c.b16 %v1340, %v1339
      %v1438 = vpack.c.b8 %v1437, %v1436
      %v1439 = vpack.c.b16 %v1342, %v1341
      %v1440 = vpack.c.b16 %v1344, %v1343
      %v1441 = vpack.c.b8 %v1440, %v1439
      %v1442 = vpack.c.b16 %v1346, %v1345
      %v1443 = vpack.c.b16 %v1348, %v1347
      %v1444 = vpack.c.b8 %v1443, %v1442
      %vm1445 = vnez %v1351
      %vm1446 = vnez %v1354
      %vm1447 = vnez %v1357
      %vm1448 = vnez %v1360
      %vm1449 = vnez %v1363
      %vm1450 = vnez %v1366
      %vm1451 = vnez %v1369
      %vm1452 = vnez %v1372
      %vm1453 = vnez %v1375
      %vm1454 = vnez %v1378
      %vm1455 = vnez %v1381
      %vm1456 = vnez %v1384
      %vm1457 = vnez %v1387
      %vm1458 = vnez %v1390
      %vm1459 = vnez %v1393
      %vm1460 = vnez %v1396
      %vm1461 = vnez %v1399
      %vm1462 = vnez %v1402
      %vm1463 = vnez %v1405
      %vm1464 = vnez %v1408
      %vm1465 = vnez %v1411
      %vm1466 = vnez %v1414
      %vm1467 = vnez %v1417
      %vm1468 = vnez %v1420
      %vm1469 = vnez %v1423
      %vm1470 = vnez %v1426
      %vm1471 = vnez %v1429
      %vm1472 = vnez %v1432
      %vm1473 = vnez %v1435
      %vm1474 = vnez %v1438
      %vm1475 = vnez %v1441
      %vm1476 = vnez %v1444
      %v1477 = vsel %vm1445, 16843009, 0
      %v1478 = vsel %vm1446, 16843009, 0
      %v1479 = vsel %vm1447, 16843009, 0
      %v1480 = vsel %vm1448, 16843009, 0
      %v1481 = vsel %vm1449, 16843009, 0
      %v1482 = vsel %vm1450, 16843009, 0
      %v1483 = vsel %vm1451, 16843009, 0
      %v1484 = vsel %vm1452, 16843009, 0
      %v1485 = vsel %vm1453, 16843009, 0
      %v1486 = vsel %vm1454, 16843009, 0
      %v1487 = vsel %vm1455, 16843009, 0
      %v1488 = vsel %vm1456, 16843009, 0
      %v1489 = vsel %vm1457, 16843009, 0
      %v1490 = vsel %vm1458, 16843009, 0
      %v1491 = vsel %vm1459, 16843009, 0
      %v1492 = vsel %vm1460, 16843009, 0
      %v1493 = vsel %vm1461, 16843009, 0
      %v1494 = vsel %vm1462, 16843009, 0
      %v1495 = vsel %vm1463, 16843009, 0
      %v1496 = vsel %vm1464, 16843009, 0
      %v1497 = vsel %vm1465, 16843009, 0
      %v1498 = vsel %vm1466, 16843009, 0
      %v1499 = vsel %vm1467, 16843009, 0
      %v1500 = vsel %vm1468, 16843009, 0
      %v1501 = vsel %vm1469, 16843009, 0
      %v1502 = vsel %vm1470, 16843009, 0
      %v1503 = vsel %vm1471, 16843009, 0
      %v1504 = vsel %vm1472, 16843009, 0
      %v1505 = vsel %vm1473, 16843009, 0
      %v1506 = vsel %vm1474, 16843009, 0
      %v1507 = vsel %vm1475, 16843009, 0
      %v1508 = vsel %vm1476, 16843009, 0
      %v1509 = vunpack.c.0.s8 %v1477
      %v1510 = vunpack.c.1.s8 %v1477
      %v1511 = vunpack.c.2.s8 %v1477
      %v1512 = vunpack.c.3.s8 %v1477
      %v1513 = vunpack.c.0.s8 %v1478
      %v1514 = vunpack.c.1.s8 %v1478
      %v1515 = vunpack.c.2.s8 %v1478
      %v1516 = vunpack.c.3.s8 %v1478
      %v1517 = vunpack.c.0.s8 %v1479
      %v1518 = vunpack.c.1.s8 %v1479
      %v1519 = vunpack.c.2.s8 %v1479
      %v1520 = vunpack.c.3.s8 %v1479
      %v1521 = vunpack.c.0.s8 %v1480
      %v1522 = vunpack.c.1.s8 %v1480
      %v1523 = vunpack.c.2.s8 %v1480
      %v1524 = vunpack.c.3.s8 %v1480
      %v1525 = vunpack.c.0.s8 %v1481
      %v1526 = vunpack.c.1.s8 %v1481
      %v1527 = vunpack.c.2.s8 %v1481
      %v1528 = vunpack.c.3.s8 %v1481
      %v1529 = vunpack.c.0.s8 %v1482
      %v1530 = vunpack.c.1.s8 %v1482
      %v1531 = vunpack.c.2.s8 %v1482
      %v1532 = vunpack.c.3.s8 %v1482
      %v1533 = vunpack.c.0.s8 %v1483
      %v1534 = vunpack.c.1.s8 %v1483
      %v1535 = vunpack.c.2.s8 %v1483
      %v1536 = vunpack.c.3.s8 %v1483
      %v1537 = vunpack.c.0.s8 %v1484
      %v1538 = vunpack.c.1.s8 %v1484
      %v1539 = vunpack.c.2.s8 %v1484
      %v1540 = vunpack.c.3.s8 %v1484
      %v1541 = vunpack.c.0.s8 %v1485
      %v1542 = vunpack.c.1.s8 %v1485
      %v1543 = vunpack.c.2.s8 %v1485
      %v1544 = vunpack.c.3.s8 %v1485
      %v1545 = vunpack.c.0.s8 %v1486
      %v1546 = vunpack.c.1.s8 %v1486
      %v1547 = vunpack.c.2.s8 %v1486
      %v1548 = vunpack.c.3.s8 %v1486
      %v1549 = vunpack.c.0.s8 %v1487
      %v1550 = vunpack.c.1.s8 %v1487
      %v1551 = vunpack.c.2.s8 %v1487
      %v1552 = vunpack.c.3.s8 %v1487
      %v1553 = vunpack.c.0.s8 %v1488
      %v1554 = vunpack.c.1.s8 %v1488
      %v1555 = vunpack.c.2.s8 %v1488
      %v1556 = vunpack.c.3.s8 %v1488
      %v1557 = vunpack.c.0.s8 %v1489
      %v1558 = vunpack.c.1.s8 %v1489
      %v1559 = vunpack.c.2.s8 %v1489
      %v1560 = vunpack.c.3.s8 %v1489
      %v1561 = vunpack.c.0.s8 %v1490
      %v1562 = vunpack.c.1.s8 %v1490
      %v1563 = vunpack.c.2.s8 %v1490
      %v1564 = vunpack.c.3.s8 %v1490
      %v1565 = vunpack.c.0.s8 %v1491
      %v1566 = vunpack.c.1.s8 %v1491
      %v1567 = vunpack.c.2.s8 %v1491
      %v1568 = vunpack.c.3.s8 %v1491
      %v1569 = vunpack.c.0.s8 %v1492
      %v1570 = vunpack.c.1.s8 %v1492
      %v1571 = vunpack.c.2.s8 %v1492
      %v1572 = vunpack.c.3.s8 %v1492
      %v1573 = vunpack.c.0.s8 %v1493
      %v1574 = vunpack.c.1.s8 %v1493
      %v1575 = vunpack.c.2.s8 %v1493
      %v1576 = vunpack.c.3.s8 %v1493
      %v1577 = vunpack.c.0.s8 %v1494
      %v1578 = vunpack.c.1.s8 %v1494
      %v1579 = vunpack.c.2.s8 %v1494
      %v1580 = vunpack.c.3.s8 %v1494
      %v1581 = vunpack.c.0.s8 %v1495
      %v1582 = vunpack.c.1.s8 %v1495
      %v1583 = vunpack.c.2.s8 %v1495
      %v1584 = vunpack.c.3.s8 %v1495
      %v1585 = vunpack.c.0.s8 %v1496
      %v1586 = vunpack.c.1.s8 %v1496
      %v1587 = vunpack.c.2.s8 %v1496
      %v1588 = vunpack.c.3.s8 %v1496
      %v1589 = vunpack.c.0.s8 %v1497
      %v1590 = vunpack.c.1.s8 %v1497
      %v1591 = vunpack.c.2.s8 %v1497
      %v1592 = vunpack.c.3.s8 %v1497
      %v1593 = vunpack.c.0.s8 %v1498
      %v1594 = vunpack.c.1.s8 %v1498
      %v1595 = vunpack.c.2.s8 %v1498
      %v1596 = vunpack.c.3.s8 %v1498
      %v1597 = vunpack.c.0.s8 %v1499
      %v1598 = vunpack.c.1.s8 %v1499
      %v1599 = vunpack.c.2.s8 %v1499
      %v1600 = vunpack.c.3.s8 %v1499
      %v1601 = vunpack.c.0.s8 %v1500
      %v1602 = vunpack.c.1.s8 %v1500
      %v1603 = vunpack.c.2.s8 %v1500
      %v1604 = vunpack.c.3.s8 %v1500
      %v1605 = vunpack.c.0.s8 %v1501
      %v1606 = vunpack.c.1.s8 %v1501
      %v1607 = vunpack.c.2.s8 %v1501
      %v1608 = vunpack.c.3.s8 %v1501
      %v1609 = vunpack.c.0.s8 %v1502
      %v1610 = vunpack.c.1.s8 %v1502
      %v1611 = vunpack.c.2.s8 %v1502
      %v1612 = vunpack.c.3.s8 %v1502
      %v1613 = vunpack.c.0.s8 %v1503
      %v1614 = vunpack.c.1.s8 %v1503
      %v1615 = vunpack.c.2.s8 %v1503
      %v1616 = vunpack.c.3.s8 %v1503
      %v1617 = vunpack.c.0.s8 %v1504
      %v1618 = vunpack.c.1.s8 %v1504
      %v1619 = vunpack.c.2.s8 %v1504
      %v1620 = vunpack.c.3.s8 %v1504
      %v1621 = vunpack.c.0.s8 %v1505
      %v1622 = vunpack.c.1.s8 %v1505
      %v1623 = vunpack.c.2.s8 %v1505
      %v1624 = vunpack.c.3.s8 %v1505
      %v1625 = vunpack.c.0.s8 %v1506
      %v1626 = vunpack.c.1.s8 %v1506
      %v1627 = vunpack.c.2.s8 %v1506
      %v1628 = vunpack.c.3.s8 %v1506
      %v1629 = vunpack.c.0.s8 %v1507
      %v1630 = vunpack.c.1.s8 %v1507
      %v1631 = vunpack.c.2.s8 %v1507
      %v1632 = vunpack.c.3.s8 %v1507
      %v1633 = vunpack.c.0.s8 %v1508
      %v1634 = vunpack.c.1.s8 %v1508
      %v1635 = vunpack.c.2.s8 %v1508
      %v1636 = vunpack.c.3.s8 %v1508
      %vm1637 = vcmp.ne.s32.totalorder %v1509, 0
      %vm1638 = vcmp.ne.s32.totalorder %v1510, 0
      %vm1639 = vcmp.ne.s32.totalorder %v1511, 0
      %vm1640 = vcmp.ne.s32.totalorder %v1512, 0
      %vm1641 = vcmp.ne.s32.totalorder %v1513, 0
      %vm1642 = vcmp.ne.s32.totalorder %v1514, 0
      %vm1643 = vcmp.ne.s32.totalorder %v1515, 0
      %vm1644 = vcmp.ne.s32.totalorder %v1516, 0
      %vm1645 = vcmp.ne.s32.totalorder %v1517, 0
      %vm1646 = vcmp.ne.s32.totalorder %v1518, 0
      %vm1647 = vcmp.ne.s32.totalorder %v1519, 0
      %vm1648 = vcmp.ne.s32.totalorder %v1520, 0
      %vm1649 = vcmp.ne.s32.totalorder %v1521, 0
      %vm1650 = vcmp.ne.s32.totalorder %v1522, 0
      %vm1651 = vcmp.ne.s32.totalorder %v1523, 0
      %vm1652 = vcmp.ne.s32.totalorder %v1524, 0
      %vm1653 = vcmp.ne.s32.totalorder %v1525, 0
      %vm1654 = vcmp.ne.s32.totalorder %v1526, 0
      %vm1655 = vcmp.ne.s32.totalorder %v1527, 0
      %vm1656 = vcmp.ne.s32.totalorder %v1528, 0
      %vm1657 = vcmp.ne.s32.totalorder %v1529, 0
      %vm1658 = vcmp.ne.s32.totalorder %v1530, 0
      %vm1659 = vcmp.ne.s32.totalorder %v1531, 0
      %vm1660 = vcmp.ne.s32.totalorder %v1532, 0
      %vm1661 = vcmp.ne.s32.totalorder %v1533, 0
      %vm1662 = vcmp.ne.s32.totalorder %v1534, 0
      %vm1663 = vcmp.ne.s32.totalorder %v1535, 0
      %vm1664 = vcmp.ne.s32.totalorder %v1536, 0
      %vm1665 = vcmp.ne.s32.totalorder %v1537, 0
      %vm1666 = vcmp.ne.s32.totalorder %v1538, 0
      %vm1667 = vcmp.ne.s32.totalorder %v1539, 0
      %vm1668 = vcmp.ne.s32.totalorder %v1540, 0
      %vm1669 = vcmp.ne.s32.totalorder %v1541, 0
      %vm1670 = vcmp.ne.s32.totalorder %v1542, 0
      %vm1671 = vcmp.ne.s32.totalorder %v1543, 0
      %vm1672 = vcmp.ne.s32.totalorder %v1544, 0
      %vm1673 = vcmp.ne.s32.totalorder %v1545, 0
      %vm1674 = vcmp.ne.s32.totalorder %v1546, 0
      %vm1675 = vcmp.ne.s32.totalorder %v1547, 0
      %vm1676 = vcmp.ne.s32.totalorder %v1548, 0
      %vm1677 = vcmp.ne.s32.totalorder %v1549, 0
      %vm1678 = vcmp.ne.s32.totalorder %v1550, 0
      %vm1679 = vcmp.ne.s32.totalorder %v1551, 0
      %vm1680 = vcmp.ne.s32.totalorder %v1552, 0
      %vm1681 = vcmp.ne.s32.totalorder %v1553, 0
      %vm1682 = vcmp.ne.s32.totalorder %v1554, 0
      %vm1683 = vcmp.ne.s32.totalorder %v1555, 0
      %vm1684 = vcmp.ne.s32.totalorder %v1556, 0
      %vm1685 = vcmp.ne.s32.totalorder %v1557, 0
      %vm1686 = vcmp.ne.s32.totalorder %v1558, 0
      %vm1687 = vcmp.ne.s32.totalorder %v1559, 0
      %vm1688 = vcmp.ne.s32.totalorder %v1560, 0
      %vm1689 = vcmp.ne.s32.totalorder %v1561, 0
      %vm1690 = vcmp.ne.s32.totalorder %v1562, 0
      %vm1691 = vcmp.ne.s32.totalorder %v1563, 0
      %vm1692 = vcmp.ne.s32.totalorder %v1564, 0
      %vm1693 = vcmp.ne.s32.totalorder %v1565, 0
      %vm1694 = vcmp.ne.s32.totalorder %v1566, 0
      %vm1695 = vcmp.ne.s32.totalorder %v1567, 0
      %vm1696 = vcmp.ne.s32.totalorder %v1568, 0
      %vm1697 = vcmp.ne.s32.totalorder %v1569, 0
      %vm1698 = vcmp.ne.s32.totalorder %v1570, 0
      %vm1699 = vcmp.ne.s32.totalorder %v1571, 0
      %vm1700 = vcmp.ne.s32.totalorder %v1572, 0
      %vm1701 = vcmp.ne.s32.totalorder %v1573, 0
      %vm1702 = vcmp.ne.s32.totalorder %v1574, 0
      %vm1703 = vcmp.ne.s32.totalorder %v1575, 0
      %vm1704 = vcmp.ne.s32.totalorder %v1576, 0
      %vm1705 = vcmp.ne.s32.totalorder %v1577, 0
      %vm1706 = vcmp.ne.s32.totalorder %v1578, 0
      %vm1707 = vcmp.ne.s32.totalorder %v1579, 0
      %vm1708 = vcmp.ne.s32.totalorder %v1580, 0
      %vm1709 = vcmp.ne.s32.totalorder %v1581, 0
      %vm1710 = vcmp.ne.s32.totalorder %v1582, 0
      %vm1711 = vcmp.ne.s32.totalorder %v1583, 0
      %vm1712 = vcmp.ne.s32.totalorder %v1584, 0
      %vm1713 = vcmp.ne.s32.totalorder %v1585, 0
      %vm1714 = vcmp.ne.s32.totalorder %v1586, 0
      %vm1715 = vcmp.ne.s32.totalorder %v1587, 0
      %vm1716 = vcmp.ne.s32.totalorder %v1588, 0
      %vm1717 = vcmp.ne.s32.totalorder %v1589, 0
      %vm1718 = vcmp.ne.s32.totalorder %v1590, 0
      %vm1719 = vcmp.ne.s32.totalorder %v1591, 0
      %vm1720 = vcmp.ne.s32.totalorder %v1592, 0
      %vm1721 = vcmp.ne.s32.totalorder %v1593, 0
      %vm1722 = vcmp.ne.s32.totalorder %v1594, 0
      %vm1723 = vcmp.ne.s32.totalorder %v1595, 0
      %vm1724 = vcmp.ne.s32.totalorder %v1596, 0
      %vm1725 = vcmp.ne.s32.totalorder %v1597, 0
      %vm1726 = vcmp.ne.s32.totalorder %v1598, 0
      %vm1727 = vcmp.ne.s32.totalorder %v1599, 0
      %vm1728 = vcmp.ne.s32.totalorder %v1600, 0
      %vm1729 = vcmp.ne.s32.totalorder %v1601, 0
      %vm1730 = vcmp.ne.s32.totalorder %v1602, 0
      %vm1731 = vcmp.ne.s32.totalorder %v1603, 0
      %vm1732 = vcmp.ne.s32.totalorder %v1604, 0
      %vm1733 = vcmp.ne.s32.totalorder %v1605, 0
      %vm1734 = vcmp.ne.s32.totalorder %v1606, 0
      %vm1735 = vcmp.ne.s32.totalorder %v1607, 0
      %vm1736 = vcmp.ne.s32.totalorder %v1608, 0
      %vm1737 = vcmp.ne.s32.totalorder %v1609, 0
      %vm1738 = vcmp.ne.s32.totalorder %v1610, 0
      %vm1739 = vcmp.ne.s32.totalorder %v1611, 0
      %vm1740 = vcmp.ne.s32.totalorder %v1612, 0
      %vm1741 = vcmp.ne.s32.totalorder %v1613, 0
      %vm1742 = vcmp.ne.s32.totalorder %v1614, 0
      %vm1743 = vcmp.ne.s32.totalorder %v1615, 0
      %vm1744 = vcmp.ne.s32.totalorder %v1616, 0
      %vm1745 = vcmp.ne.s32.totalorder %v1617, 0
      %vm1746 = vcmp.ne.s32.totalorder %v1618, 0
      %vm1747 = vcmp.ne.s32.totalorder %v1619, 0
      %vm1748 = vcmp.ne.s32.totalorder %v1620, 0
      %vm1749 = vcmp.ne.s32.totalorder %v1621, 0
      %vm1750 = vcmp.ne.s32.totalorder %v1622, 0
      %vm1751 = vcmp.ne.s32.totalorder %v1623, 0
      %vm1752 = vcmp.ne.s32.totalorder %v1624, 0
      %vm1753 = vcmp.ne.s32.totalorder %v1625, 0
      %vm1754 = vcmp.ne.s32.totalorder %v1626, 0
      %vm1755 = vcmp.ne.s32.totalorder %v1627, 0
      %vm1756 = vcmp.ne.s32.totalorder %v1628, 0
      %vm1757 = vcmp.ne.s32.totalorder %v1629, 0
      %vm1758 = vcmp.ne.s32.totalorder %v1630, 0
      %vm1759 = vcmp.ne.s32.totalorder %v1631, 0
      %vm1760 = vcmp.ne.s32.totalorder %v1632, 0
      %vm1761 = vcmp.ne.s32.totalorder %v1633, 0
      %vm1762 = vcmp.ne.s32.totalorder %v1634, 0
      %vm1763 = vcmp.ne.s32.totalorder %v1635, 0
      %vm1764 = vcmp.ne.s32.totalorder %v1636, 0
      %v1765 = vsel %vm1637, %v997, -1e+30
      %v1766 = vsel %vm1638, %v998, -1e+30
      %v1767 = vsel %vm1639, %v999, -1e+30
      %v1768 = vsel %vm1640, %v1000, -1e+30
      %v1769 = vsel %vm1641, %v1001, -1e+30
      %v1770 = vsel %vm1642, %v1002, -1e+30
      %v1771 = vsel %vm1643, %v1003, -1e+30
      %v1772 = vsel %vm1644, %v1004, -1e+30
      %v1773 = vsel %vm1645, %v1005, -1e+30
      %v1774 = vsel %vm1646, %v1006, -1e+30
      %v1775 = vsel %vm1647, %v1007, -1e+30
      %v1776 = vsel %vm1648, %v1008, -1e+30
      %v1777 = vsel %vm1649, %v1009, -1e+30
      %v1778 = vsel %vm1650, %v1010, -1e+30
      %v1779 = vsel %vm1651, %v1011, -1e+30
      %v1780 = vsel %vm1652, %v1012, -1e+30
      %v1781 = vsel %vm1653, %v1013, -1e+30
      %v1782 = vsel %vm1654, %v1014, -1e+30
      %v1783 = vsel %vm1655, %v1015, -1e+30
      %v1784 = vsel %vm1656, %v1016, -1e+30
      %v1785 = vsel %vm1657, %v1017, -1e+30
      %v1786 = vsel %vm1658, %v1018, -1e+30
      %v1787 = vsel %vm1659, %v1019, -1e+30
      %v1788 = vsel %vm1660, %v1020, -1e+30
      %v1789 = vsel %vm1661, %v1021, -1e+30
      %v1790 = vsel %vm1662, %v1022, -1e+30
      %v1791 = vsel %vm1663, %v1023, -1e+30
      %v1792 = vsel %vm1664, %v1024, -1e+30
      %v1793 = vsel %vm1665, %v1025, -1e+30
      %v1794 = vsel %vm1666, %v1026, -1e+30
      %v1795 = vsel %vm1667, %v1027, -1e+30
      %v1796 = vsel %vm1668, %v1028, -1e+30
      %v1797 = vsel %vm1669, %v1029, -1e+30
      %v1798 = vsel %vm1670, %v1030, -1e+30
      %v1799 = vsel %vm1671, %v1031, -1e+30
      %v1800 = vsel %vm1672, %v1032, -1e+30
      %v1801 = vsel %vm1673, %v1033, -1e+30
      %v1802 = vsel %vm1674, %v1034, -1e+30
      %v1803 = vsel %vm1675, %v1035, -1e+30
      %v1804 = vsel %vm1676, %v1036, -1e+30
      %v1805 = vsel %vm1677, %v1037, -1e+30
      %v1806 = vsel %vm1678, %v1038, -1e+30
      %v1807 = vsel %vm1679, %v1039, -1e+30
      %v1808 = vsel %vm1680, %v1040, -1e+30
      %v1809 = vsel %vm1681, %v1041, -1e+30
      %v1810 = vsel %vm1682, %v1042, -1e+30
      %v1811 = vsel %vm1683, %v1043, -1e+30
      %v1812 = vsel %vm1684, %v1044, -1e+30
      %v1813 = vsel %vm1685, %v1045, -1e+30
      %v1814 = vsel %vm1686, %v1046, -1e+30
      %v1815 = vsel %vm1687, %v1047, -1e+30
      %v1816 = vsel %vm1688, %v1048, -1e+30
      %v1817 = vsel %vm1689, %v1049, -1e+30
      %v1818 = vsel %vm1690, %v1050, -1e+30
      %v1819 = vsel %vm1691, %v1051, -1e+30
      %v1820 = vsel %vm1692, %v1052, -1e+30
      %v1821 = vsel %vm1693, %v1053, -1e+30
      %v1822 = vsel %vm1694, %v1054, -1e+30
      %v1823 = vsel %vm1695, %v1055, -1e+30
      %v1824 = vsel %vm1696, %v1056, -1e+30
      %v1825 = vsel %vm1697, %v1057, -1e+30
      %v1826 = vsel %vm1698, %v1058, -1e+30
      %v1827 = vsel %vm1699, %v1059, -1e+30
      %v1828 = vsel %vm1700, %v1060, -1e+30
      %v1829 = vsel %vm1701, %v1061, -1e+30
      %v1830 = vsel %vm1702, %v1062, -1e+30
      %v1831 = vsel %vm1703, %v1063, -1e+30
      %v1832 = vsel %vm1704, %v1064, -1e+30
      %v1833 = vsel %vm1705, %v1065, -1e+30
      %v1834 = vsel %vm1706, %v1066, -1e+30
      %v1835 = vsel %vm1707, %v1067, -1e+30
      %v1836 = vsel %vm1708, %v1068, -1e+30
      %v1837 = vsel %vm1709, %v1069, -1e+30
      %v1838 = vsel %vm1710, %v1070, -1e+30
      %v1839 = vsel %vm1711, %v1071, -1e+30
      %v1840 = vsel %vm1712, %v1072, -1e+30
      %v1841 = vsel %vm1713, %v1073, -1e+30
      %v1842 = vsel %vm1714, %v1074, -1e+30
      %v1843 = vsel %vm1715, %v1075, -1e+30
      %v1844 = vsel %vm1716, %v1076, -1e+30
      %v1845 = vsel %vm1717, %v1077, -1e+30
      %v1846 = vsel %vm1718, %v1078, -1e+30
      %v1847 = vsel %vm1719, %v1079, -1e+30
      %v1848 = vsel %vm1720, %v1080, -1e+30
      %v1849 = vsel %vm1721, %v1081, -1e+30
      %v1850 = vsel %vm1722, %v1082, -1e+30
      %v1851 = vsel %vm1723, %v1083, -1e+30
      %v1852 = vsel %vm1724, %v1084, -1e+30
      %v1853 = vsel %vm1725, %v1085, -1e+30
      %v1854 = vsel %vm1726, %v1086, -1e+30
      %v1855 = vsel %vm1727, %v1087, -1e+30
      %v1856 = vsel %vm1728, %v1088, -1e+30
      %v1857 = vsel %vm1729, %v1089, -1e+30
      %v1858 = vsel %vm1730, %v1090, -1e+30
      %v1859 = vsel %vm1731, %v1091, -1e+30
      %v1860 = vsel %vm1732, %v1092, -1e+30
      %v1861 = vsel %vm1733, %v1093, -1e+30
      %v1862 = vsel %vm1734, %v1094, -1e+30
      %v1863 = vsel %vm1735, %v1095, -1e+30
      %v1864 = vsel %vm1736, %v1096, -1e+30
      %v1865 = vsel %vm1737, %v1097, -1e+30
      %v1866 = vsel %vm1738, %v1098, -1e+30
      %v1867 = vsel %vm1739, %v1099, -1e+30
      %v1868 = vsel %vm1740, %v1100, -1e+30
      %v1869 = vsel %vm1741, %v1101, -1e+30
      %v1870 = vsel %vm1742, %v1102, -1e+30
      %v1871 = vsel %vm1743, %v1103, -1e+30
      %v1872 = vsel %vm1744, %v1104, -1e+30
      %v1873 = vsel %vm1745, %v1105, -1e+30
      %v1874 = vsel %vm1746, %v1106, -1e+30
      %v1875 = vsel %vm1747, %v1107, -1e+30
      %v1876 = vsel %vm1748, %v1108, -1e+30
      %v1877 = vsel %vm1749, %v1109, -1e+30
      %v1878 = vsel %vm1750, %v1110, -1e+30
      %v1879 = vsel %vm1751, %v1111, -1e+30
      %v1880 = vsel %vm1752, %v1112, -1e+30
      %v1881 = vsel %vm1753, %v1113, -1e+30
      %v1882 = vsel %vm1754, %v1114, -1e+30
      %v1883 = vsel %vm1755, %v1115, -1e+30
      %v1884 = vsel %vm1756, %v1116, -1e+30
      %v1885 = vsel %vm1757, %v1117, -1e+30
      %v1886 = vsel %vm1758, %v1118, -1e+30
      %v1887 = vsel %vm1759, %v1119, -1e+30
      %v1888 = vsel %vm1760, %v1120, -1e+30
      %v1889 = vsel %vm1761, %v1121, -1e+30
      %v1890 = vsel %vm1762, %v1122, -1e+30
      %v1891 = vsel %vm1763, %v1123, -1e+30
      %v1892 = vsel %vm1764, %v1124, -1e+30
      %v1893 = vld [vmem:[#allocation2] sm:$0xff]
      %v1894 = vld [vmem:[#allocation2 + $0x8] sm:$0xff]
      %v1895 = vld [vmem:[#allocation2 + $0x10] sm:$0xff]
      %v1896 = vld [vmem:[#allocation2 + $0x18] sm:$0xff]
      %v1897 = vld [vmem:[#allocation2 + $0x20] sm:$0xff]
      %v1898 = vld [vmem:[#allocation2 + $0x28] sm:$0xff]
      %v1899 = vld [vmem:[#allocation2 + $0x30] sm:$0xff]
      %v1900 = vld [vmem:[#allocation2 + $0x38] sm:$0xff]
      %v1901 = vld [vmem:[#allocation2 + $0x40] sm:$0xff]
      %v1902 = vld [vmem:[#allocation2 + $0x48] sm:$0xff]
      %v1903 = vld [vmem:[#allocation2 + $0x50] sm:$0xff]
      %v1904 = vld [vmem:[#allocation2 + $0x58] sm:$0xff]
      %v1905 = vld [vmem:[#allocation2 + $0x60] sm:$0xff]
      %v1906 = vld [vmem:[#allocation2 + $0x68] sm:$0xff]
      %v1907 = vld [vmem:[#allocation2 + $0x70] sm:$0xff]
      %v1908 = vld [vmem:[#allocation2 + $0x78] sm:$0xff]
      %v1909 = vld [vmem:[#allocation2 + $0x80] sm:$0xff]
      %v1910 = vld [vmem:[#allocation2 + $0x88] sm:$0xff]
      %v1911 = vld [vmem:[#allocation2 + $0x90] sm:$0xff]
      %v1912 = vld [vmem:[#allocation2 + $0x98] sm:$0xff]
      %v1913 = vld [vmem:[#allocation2 + $0xa0] sm:$0xff]
      %v1914 = vld [vmem:[#allocation2 + $0xa8] sm:$0xff]
      %v1915 = vld [vmem:[#allocation2 + $0xb0] sm:$0xff]
      %v1916 = vld [vmem:[#allocation2 + $0xb8] sm:$0xff]
      %v1917 = vld [vmem:[#allocation2 + $0xc0] sm:$0xff]
      %v1918 = vld [vmem:[#allocation2 + $0xc8] sm:$0xff]
      %v1919 = vld [vmem:[#allocation2 + $0xd0] sm:$0xff]
      %v1920 = vld [vmem:[#allocation2 + $0xd8] sm:$0xff]
      %v1921 = vld [vmem:[#allocation2 + $0xe0] sm:$0xff]
      %v1922 = vld [vmem:[#allocation2 + $0xe8] sm:$0xff]
      %v1923 = vld [vmem:[#allocation2 + $0xf0] sm:$0xff]
      %v1924 = vld [vmem:[#allocation2 + $0xf8] sm:$0xff]
      %v1925 = vmax.f32 %v1765, %v1766
      %v1926 = vmax.f32 %v1925, %v1767
      %v1927 = vmax.f32 %v1926, %v1768
      %1928 = vmax.xlane.f32.xlu0 %v1927
      %v1929 = vpop.xlane.xlu0 %1928
      %v1930 = vmax.f32 %v1769, %v1770
      %v1931 = vmax.f32 %v1930, %v1771
      %v1932 = vmax.f32 %v1931, %v1772
      %1933 = vmax.xlane.f32.xlu0 %v1932
      %v1934 = vpop.xlane.xlu0 %1933
      %v1935 = vmax.f32 %v1773, %v1774
      %v1936 = vmax.f32 %v1935, %v1775
      %v1937 = vmax.f32 %v1936, %v1776
      %1938 = vmax.xlane.f32.xlu0 %v1937
      %v1939 = vpop.xlane.xlu0 %1938
      %v1940 = vmax.f32 %v1777, %v1778
      %v1941 = vmax.f32 %v1940, %v1779
      %v1942 = vmax.f32 %v1941, %v1780
      %1943 = vmax.xlane.f32.xlu0 %v1942
      %v1944 = vpop.xlane.xlu0 %1943
      %v1945 = vmax.f32 %v1781, %v1782
      %v1946 = vmax.f32 %v1945, %v1783
      %v1947 = vmax.f32 %v1946, %v1784
      %1948 = vmax.xlane.f32.xlu0 %v1947
      %v1949 = vpop.xlane.xlu0 %1948
      %v1950 = vmax.f32 %v1785, %v1786
      %v1951 = vmax.f32 %v1950, %v1787
      %v1952 = vmax.f32 %v1951, %v1788
      %1953 = vmax.xlane.f32.xlu0 %v1952
      %v1954 = vpop.xlane.xlu0 %1953
      %v1955 = vmax.f32 %v1789, %v1790
      %v1956 = vmax.f32 %v1955, %v1791
      %v1957 = vmax.f32 %v1956, %v1792
      %1958 = vmax.xlane.f32.xlu0 %v1957
      %v1959 = vpop.xlane.xlu0 %1958
      %v1960 = vmax.f32 %v1793, %v1794
      %v1961 = vmax.f32 %v1960, %v1795
      %v1962 = vmax.f32 %v1961, %v1796
      %1963 = vmax.xlane.f32.xlu0 %v1962
      %v1964 = vpop.xlane.xlu0 %1963
      %v1965 = vmax.f32 %v1797, %v1798
      %v1966 = vmax.f32 %v1965, %v1799
      %v1967 = vmax.f32 %v1966, %v1800
      %1968 = vmax.xlane.f32.xlu0 %v1967
      %v1969 = vpop.xlane.xlu0 %1968
      %v1970 = vmax.f32 %v1801, %v1802
      %v1971 = vmax.f32 %v1970, %v1803
      %v1972 = vmax.f32 %v1971, %v1804
      %1973 = vmax.xlane.f32.xlu0 %v1972
      %v1974 = vpop.xlane.xlu0 %1973
      %v1975 = vmax.f32 %v1805, %v1806
      %v1976 = vmax.f32 %v1975, %v1807
      %v1977 = vmax.f32 %v1976, %v1808
      %1978 = vmax.xlane.f32.xlu0 %v1977
      %v1979 = vpop.xlane.xlu0 %1978
      %v1980 = vmax.f32 %v1809, %v1810
      %v1981 = vmax.f32 %v1980, %v1811
      %v1982 = vmax.f32 %v1981, %v1812
      %1983 = vmax.xlane.f32.xlu0 %v1982
      %v1984 = vpop.xlane.xlu0 %1983
      %v1985 = vmax.f32 %v1813, %v1814
      %v1986 = vmax.f32 %v1985, %v1815
      %v1987 = vmax.f32 %v1986, %v1816
      %1988 = vmax.xlane.f32.xlu0 %v1987
      %v1989 = vpop.xlane.xlu0 %1988
      %v1990 = vmax.f32 %v1817, %v1818
      %v1991 = vmax.f32 %v1990, %v1819
      %v1992 = vmax.f32 %v1991, %v1820
      %1993 = vmax.xlane.f32.xlu0 %v1992
      %v1994 = vpop.xlane.xlu0 %1993
      %v1995 = vmax.f32 %v1821, %v1822
      %v1996 = vmax.f32 %v1995, %v1823
      %v1997 = vmax.f32 %v1996, %v1824
      %1998 = vmax.xlane.f32.xlu0 %v1997
      %v1999 = vpop.xlane.xlu0 %1998
      %v2000 = vmax.f32 %v1825, %v1826
      %v2001 = vmax.f32 %v2000, %v1827
      %v2002 = vmax.f32 %v2001, %v1828
      %2003 = vmax.xlane.f32.xlu0 %v2002
      %v2004 = vpop.xlane.xlu0 %2003
      %v2005 = vmax.f32 %v1829, %v1830
      %v2006 = vmax.f32 %v2005, %v1831
      %v2007 = vmax.f32 %v2006, %v1832
      %2008 = vmax.xlane.f32.xlu0 %v2007
      %v2009 = vpop.xlane.xlu0 %2008
      %v2010 = vmax.f32 %v1833, %v1834
      %v2011 = vmax.f32 %v2010, %v1835
      %v2012 = vmax.f32 %v2011, %v1836
      %2013 = vmax.xlane.f32.xlu0 %v2012
      %v2014 = vpop.xlane.xlu0 %2013
      %v2015 = vmax.f32 %v1837, %v1838
      %v2016 = vmax.f32 %v2015, %v1839
      %v2017 = vmax.f32 %v2016, %v1840
      %2018 = vmax.xlane.f32.xlu0 %v2017
      %v2019 = vpop.xlane.xlu0 %2018
      %v2020 = vmax.f32 %v1841, %v1842
      %v2021 = vmax.f32 %v2020, %v1843
      %v2022 = vmax.f32 %v2021, %v1844
      %2023 = vmax.xlane.f32.xlu0 %v2022
      %v2024 = vpop.xlane.xlu0 %2023
      %v2025 = vmax.f32 %v1845, %v1846
      %v2026 = vmax.f32 %v2025, %v1847
      %v2027 = vmax.f32 %v2026, %v1848
      %2028 = vmax.xlane.f32.xlu0 %v2027
      %v2029 = vpop.xlane.xlu0 %2028
      %v2030 = vmax.f32 %v1849, %v1850
      %v2031 = vmax.f32 %v2030, %v1851
      %v2032 = vmax.f32 %v2031, %v1852
      %2033 = vmax.xlane.f32.xlu0 %v2032
      %v2034 = vpop.xlane.xlu0 %2033
      %v2035 = vmax.f32 %v1853, %v1854
      %v2036 = vmax.f32 %v2035, %v1855
      %v2037 = vmax.f32 %v2036, %v1856
      %2038 = vmax.xlane.f32.xlu0 %v2037
      %v2039 = vpop.xlane.xlu0 %2038
      %v2040 = vmax.f32 %v1857, %v1858
      %v2041 = vmax.f32 %v2040, %v1859
      %v2042 = vmax.f32 %v2041, %v1860
      %2043 = vmax.xlane.f32.xlu0 %v2042
      %v2044 = vpop.xlane.xlu0 %2043
      %v2045 = vmax.f32 %v1861, %v1862
      %v2046 = vmax.f32 %v2045, %v1863
      %v2047 = vmax.f32 %v2046, %v1864
      %2048 = vmax.xlane.f32.xlu0 %v2047
      %v2049 = vpop.xlane.xlu0 %2048
      %v2050 = vmax.f32 %v1865, %v1866
      %v2051 = vmax.f32 %v2050, %v1867
      %v2052 = vmax.f32 %v2051, %v1868
      %2053 = vmax.xlane.f32.xlu0 %v2052
      %v2054 = vpop.xlane.xlu0 %2053
      %v2055 = vmax.f32 %v1869, %v1870
      %v2056 = vmax.f32 %v2055, %v1871
      %v2057 = vmax.f32 %v2056, %v1872
      %2058 = vmax.xlane.f32.xlu0 %v2057
      %v2059 = vpop.xlane.xlu0 %2058
      %v2060 = vmax.f32 %v1873, %v1874
      %v2061 = vmax.f32 %v2060, %v1875
      %v2062 = vmax.f32 %v2061, %v1876
      %2063 = vmax.xlane.f32.xlu0 %v2062
      %v2064 = vpop.xlane.xlu0 %2063
      %v2065 = vmax.f32 %v1877, %v1878
      %v2066 = vmax.f32 %v2065, %v1879
      %v2067 = vmax.f32 %v2066, %v1880
      %2068 = vmax.xlane.f32.xlu0 %v2067
      %v2069 = vpop.xlane.xlu0 %2068
      %v2070 = vmax.f32 %v1881, %v1882
      %v2071 = vmax.f32 %v2070, %v1883
      %v2072 = vmax.f32 %v2071, %v1884
      %2073 = vmax.xlane.f32.xlu0 %v2072
      %v2074 = vpop.xlane.xlu0 %2073
      %v2075 = vmax.f32 %v1885, %v1886
      %v2076 = vmax.f32 %v2075, %v1887
      %v2077 = vmax.f32 %v2076, %v1888
      %2078 = vmax.xlane.f32.xlu0 %v2077
      %v2079 = vpop.xlane.xlu0 %2078
      %v2080 = vmax.f32 %v1889, %v1890
      %v2081 = vmax.f32 %v2080, %v1891
      %v2082 = vmax.f32 %v2081, %v1892
      %2083 = vmax.xlane.f32.xlu0 %v2082
      %v2084 = vpop.xlane.xlu0 %2083
      %v2085 = vmax.f32 %v1893, %v1929
      %v2086 = vmax.f32 %v1894, %v1934
      %v2087 = vmax.f32 %v1895, %v1939
      %v2088 = vmax.f32 %v1896, %v1944
      %v2089 = vmax.f32 %v1897, %v1949
      %v2090 = vmax.f32 %v1898, %v1954
      %v2091 = vmax.f32 %v1899, %v1959
      %v2092 = vmax.f32 %v1900, %v1964
      %v2093 = vmax.f32 %v1901, %v1969
      %v2094 = vmax.f32 %v1902, %v1974
      %v2095 = vmax.f32 %v1903, %v1979
      %v2096 = vmax.f32 %v1904, %v1984
      %v2097 = vmax.f32 %v1905, %v1989
      %v2098 = vmax.f32 %v1906, %v1994
      %v2099 = vmax.f32 %v1907, %v1999
      %v2100 = vmax.f32 %v1908, %v2004
      %v2101 = vmax.f32 %v1909, %v2009
      %v2102 = vmax.f32 %v1910, %v2014
      %v2103 = vmax.f32 %v1911, %v2019
      %v2104 = vmax.f32 %v1912, %v2024
      %v2105 = vmax.f32 %v1913, %v2029
      %v2106 = vmax.f32 %v1914, %v2034
      %v2107 = vmax.f32 %v1915, %v2039
      %v2108 = vmax.f32 %v1916, %v2044
      %v2109 = vmax.f32 %v1917, %v2049
      %v2110 = vmax.f32 %v1918, %v2054
      %v2111 = vmax.f32 %v1919, %v2059
      %v2112 = vmax.f32 %v1920, %v2064
      %v2113 = vmax.f32 %v1921, %v2069
      %v2114 = vmax.f32 %v1922, %v2074
      %v2115 = vmax.f32 %v1923, %v2079
      %v2116 = vmax.f32 %v1924, %v2084
      %2118 = vset.pattern.permute.xlu0 0
      %2119 = vperm.xlu0 %2118, %v2085
      %v2120 = vpop.permute.xlu0 %2119
      %2123 = vset.pattern.permute.xlu0 0
      %2124 = vperm.xlu0 %2123, %v2086
      %v2125 = vpop.permute.xlu0 %2124
      %2128 = vset.pattern.permute.xlu0 0
      %2129 = vperm.xlu0 %2128, %v2087
      %v2130 = vpop.permute.xlu0 %2129
      %2133 = vset.pattern.permute.xlu0 0
      %2134 = vperm.xlu0 %2133, %v2088
      %v2135 = vpop.permute.xlu0 %2134
      %2138 = vset.pattern.permute.xlu0 0
      %2139 = vperm.xlu0 %2138, %v2089
      %v2140 = vpop.permute.xlu0 %2139
      %2143 = vset.pattern.permute.xlu0 0
      %2144 = vperm.xlu0 %2143, %v2090
      %v2145 = vpop.permute.xlu0 %2144
      %2148 = vset.pattern.permute.xlu0 0
      %2149 = vperm.xlu0 %2148, %v2091
      %v2150 = vpop.permute.xlu0 %2149
      %2153 = vset.pattern.permute.xlu0 0
      %2154 = vperm.xlu0 %2153, %v2092
      %v2155 = vpop.permute.xlu0 %2154
      %2158 = vset.pattern.permute.xlu0 0
      %2159 = vperm.xlu0 %2158, %v2093
      %v2160 = vpop.permute.xlu0 %2159
      %2163 = vset.pattern.permute.xlu0 0
      %2164 = vperm.xlu0 %2163, %v2094
      %v2165 = vpop.permute.xlu0 %2164
      %2168 = vset.pattern.permute.xlu0 0
      %2169 = vperm.xlu0 %2168, %v2095
      %v2170 = vpop.permute.xlu0 %2169
      %2173 = vset.pattern.permute.xlu0 0
      %2174 = vperm.xlu0 %2173, %v2096
      %v2175 = vpop.permute.xlu0 %2174
      %2178 = vset.pattern.permute.xlu0 0
      %2179 = vperm.xlu0 %2178, %v2097
      %v2180 = vpop.permute.xlu0 %2179
      %2183 = vset.pattern.permute.xlu0 0
      %2184 = vperm.xlu0 %2183, %v2098
      %v2185 = vpop.permute.xlu0 %2184
      %2188 = vset.pattern.permute.xlu0 0
      %2189 = vperm.xlu0 %2188, %v2099
      %v2190 = vpop.permute.xlu0 %2189
      %2193 = vset.pattern.permute.xlu0 0
      %2194 = vperm.xlu0 %2193, %v2100
      %v2195 = vpop.permute.xlu0 %2194
      %2198 = vset.pattern.permute.xlu0 0
      %2199 = vperm.xlu0 %2198, %v2101
      %v2200 = vpop.permute.xlu0 %2199
      %2203 = vset.pattern.permute.xlu0 0
      %2204 = vperm.xlu0 %2203, %v2102
      %v2205 = vpop.permute.xlu0 %2204
      %2208 = vset.pattern.permute.xlu0 0
      %2209 = vperm.xlu0 %2208, %v2103
      %v2210 = vpop.permute.xlu0 %2209
      %2213 = vset.pattern.permute.xlu0 0
      %2214 = vperm.xlu0 %2213, %v2104
      %v2215 = vpop.permute.xlu0 %2214
      %2218 = vset.pattern.permute.xlu0 0
      %2219 = vperm.xlu0 %2218, %v2105
      %v2220 = vpop.permute.xlu0 %2219
      %2223 = vset.pattern.permute.xlu0 0
      %2224 = vperm.xlu0 %2223, %v2106
      %v2225 = vpop.permute.xlu0 %2224
      %2228 = vset.pattern.permute.xlu0 0
      %2229 = vperm.xlu0 %2228, %v2107
      %v2230 = vpop.permute.xlu0 %2229
      %2233 = vset.pattern.permute.xlu0 0
      %2234 = vperm.xlu0 %2233, %v2108
      %v2235 = vpop.permute.xlu0 %2234
      %2238 = vset.pattern.permute.xlu0 0
      %2239 = vperm.xlu0 %2238, %v2109
      %v2240 = vpop.permute.xlu0 %2239
      %2243 = vset.pattern.permute.xlu0 0
      %2244 = vperm.xlu0 %2243, %v2110
      %v2245 = vpop.permute.xlu0 %2244
      %2248 = vset.pattern.permute.xlu0 0
      %2249 = vperm.xlu0 %2248, %v2111
      %v2250 = vpop.permute.xlu0 %2249
      %2253 = vset.pattern.permute.xlu0 0
      %2254 = vperm.xlu0 %2253, %v2112
      %v2255 = vpop.permute.xlu0 %2254
      %2258 = vset.pattern.permute.xlu0 0
      %2259 = vperm.xlu0 %2258, %v2113
      %v2260 = vpop.permute.xlu0 %2259
      %2263 = vset.pattern.permute.xlu0 0
      %2264 = vperm.xlu0 %2263, %v2114
      %v2265 = vpop.permute.xlu0 %2264
      %2268 = vset.pattern.permute.xlu0 0
      %2269 = vperm.xlu0 %2268, %v2115
      %v2270 = vpop.permute.xlu0 %2269
      %2273 = vset.pattern.permute.xlu0 0
      %2274 = vperm.xlu0 %2273, %v2116
      %v2275 = vpop.permute.xlu0 %2274
      %v2277 = vsub.f32 %v1765, %v2120
      %v2278 = vsub.f32 %v1766, %v2120
      %v2279 = vsub.f32 %v1767, %v2120
      %v2280 = vsub.f32 %v1768, %v2120
      %v2281 = vsub.f32 %v1769, %v2125
      %v2282 = vsub.f32 %v1770, %v2125
      %v2283 = vsub.f32 %v1771, %v2125
      %v2284 = vsub.f32 %v1772, %v2125
      %v2285 = vsub.f32 %v1773, %v2130
      %v2286 = vsub.f32 %v1774, %v2130
      %v2287 = vsub.f32 %v1775, %v2130
      %v2288 = vsub.f32 %v1776, %v2130
      %v2289 = vsub.f32 %v1777, %v2135
      %v2290 = vsub.f32 %v1778, %v2135
      %v2291 = vsub.f32 %v1779, %v2135
      %v2292 = vsub.f32 %v1780, %v2135
      %v2293 = vsub.f32 %v1781, %v2140
      %v2294 = vsub.f32 %v1782, %v2140
      %v2295 = vsub.f32 %v1783, %v2140
      %v2296 = vsub.f32 %v1784, %v2140
      %v2297 = vsub.f32 %v1785, %v2145
      %v2298 = vsub.f32 %v1786, %v2145
      %v2299 = vsub.f32 %v1787, %v2145
      %v2300 = vsub.f32 %v1788, %v2145
      %v2301 = vsub.f32 %v1789, %v2150
      %v2302 = vsub.f32 %v1790, %v2150
      %v2303 = vsub.f32 %v1791, %v2150
      %v2304 = vsub.f32 %v1792, %v2150
      %v2305 = vsub.f32 %v1793, %v2155
      %v2306 = vsub.f32 %v1794, %v2155
      %v2307 = vsub.f32 %v1795, %v2155
      %v2308 = vsub.f32 %v1796, %v2155
      %v2309 = vsub.f32 %v1797, %v2160
      %v2310 = vsub.f32 %v1798, %v2160
      %v2311 = vsub.f32 %v1799, %v2160
      %v2312 = vsub.f32 %v1800, %v2160
      %v2313 = vsub.f32 %v1801, %v2165
      %v2314 = vsub.f32 %v1802, %v2165
      %v2315 = vsub.f32 %v1803, %v2165
      %v2316 = vsub.f32 %v1804, %v2165
      %v2317 = vsub.f32 %v1805, %v2170
      %v2318 = vsub.f32 %v1806, %v2170
      %v2319 = vsub.f32 %v1807, %v2170
      %v2320 = vsub.f32 %v1808, %v2170
      %v2321 = vsub.f32 %v1809, %v2175
      %v2322 = vsub.f32 %v1810, %v2175
      %v2323 = vsub.f32 %v1811, %v2175
      %v2324 = vsub.f32 %v1812, %v2175
      %v2325 = vsub.f32 %v1813, %v2180
      %v2326 = vsub.f32 %v1814, %v2180
      %v2327 = vsub.f32 %v1815, %v2180
      %v2328 = vsub.f32 %v1816, %v2180
      %v2329 = vsub.f32 %v1817, %v2185
      %v2330 = vsub.f32 %v1818, %v2185
      %v2331 = vsub.f32 %v1819, %v2185
      %v2332 = vsub.f32 %v1820, %v2185
      %v2333 = vsub.f32 %v1821, %v2190
      %v2334 = vsub.f32 %v1822, %v2190
      %v2335 = vsub.f32 %v1823, %v2190
      %v2336 = vsub.f32 %v1824, %v2190
      %v2337 = vsub.f32 %v1825, %v2195
      %v2338 = vsub.f32 %v1826, %v2195
      %v2339 = vsub.f32 %v1827, %v2195
      %v2340 = vsub.f32 %v1828, %v2195
      %v2341 = vsub.f32 %v1829, %v2200
      %v2342 = vsub.f32 %v1830, %v2200
      %v2343 = vsub.f32 %v1831, %v2200
      %v2344 = vsub.f32 %v1832, %v2200
      %v2345 = vsub.f32 %v1833, %v2205
      %v2346 = vsub.f32 %v1834, %v2205
      %v2347 = vsub.f32 %v1835, %v2205
      %v2348 = vsub.f32 %v1836, %v2205
      %v2349 = vsub.f32 %v1837, %v2210
      %v2350 = vsub.f32 %v1838, %v2210
      %v2351 = vsub.f32 %v1839, %v2210
      %v2352 = vsub.f32 %v1840, %v2210
      %v2353 = vsub.f32 %v1841, %v2215
      %v2354 = vsub.f32 %v1842, %v2215
      %v2355 = vsub.f32 %v1843, %v2215
      %v2356 = vsub.f32 %v1844, %v2215
      %v2357 = vsub.f32 %v1845, %v2220
      %v2358 = vsub.f32 %v1846, %v2220
      %v2359 = vsub.f32 %v1847, %v2220
      %v2360 = vsub.f32 %v1848, %v2220
      %v2361 = vsub.f32 %v1849, %v2225
      %v2362 = vsub.f32 %v1850, %v2225
      %v2363 = vsub.f32 %v1851, %v2225
      %v2364 = vsub.f32 %v1852, %v2225
      %v2365 = vsub.f32 %v1853, %v2230
      %v2366 = vsub.f32 %v1854, %v2230
      %v2367 = vsub.f32 %v1855, %v2230
      %v2368 = vsub.f32 %v1856, %v2230
      %v2369 = vsub.f32 %v1857, %v2235
      %v2370 = vsub.f32 %v1858, %v2235
      %v2371 = vsub.f32 %v1859, %v2235
      %v2372 = vsub.f32 %v1860, %v2235
      %v2373 = vsub.f32 %v1861, %v2240
      %v2374 = vsub.f32 %v1862, %v2240
      %v2375 = vsub.f32 %v1863, %v2240
      %v2376 = vsub.f32 %v1864, %v2240
      %v2377 = vsub.f32 %v1865, %v2245
      %v2378 = vsub.f32 %v1866, %v2245
      %v2379 = vsub.f32 %v1867, %v2245
      %v2380 = vsub.f32 %v1868, %v2245
      %v2381 = vsub.f32 %v1869, %v2250
      %v2382 = vsub.f32 %v1870, %v2250
      %v2383 = vsub.f32 %v1871, %v2250
      %v2384 = vsub.f32 %v1872, %v2250
      %v2385 = vsub.f32 %v1873, %v2255
      %v2386 = vsub.f32 %v1874, %v2255
      %v2387 = vsub.f32 %v1875, %v2255
      %v2388 = vsub.f32 %v1876, %v2255
      %v2389 = vsub.f32 %v1877, %v2260
      %v2390 = vsub.f32 %v1878, %v2260
      %v2391 = vsub.f32 %v1879, %v2260
      %v2392 = vsub.f32 %v1880, %v2260
      %v2393 = vsub.f32 %v1881, %v2265
      %v2394 = vsub.f32 %v1882, %v2265
      %v2395 = vsub.f32 %v1883, %v2265
      %v2396 = vsub.f32 %v1884, %v2265
      %v2397 = vsub.f32 %v1885, %v2270
      %v2398 = vsub.f32 %v1886, %v2270
      %v2399 = vsub.f32 %v1887, %v2270
      %v2400 = vsub.f32 %v1888, %v2270
      %v2401 = vsub.f32 %v1889, %v2275
      %v2402 = vsub.f32 %v1890, %v2275
      %v2403 = vsub.f32 %v1891, %v2275
      %v2404 = vsub.f32 %v1892, %v2275
      %v2405 = vmul.f32 %v2277, 1.442695
      %v2406 = vpow.pop %v2405
      %v2407 = vmul.f32 %v2278, 1.442695
      %v2408 = vpow.pop %v2407
      %v2409 = vmul.f32 %v2279, 1.442695
      %v2410 = vpow.pop %v2409
      %v2411 = vmul.f32 %v2280, 1.442695
      %v2412 = vpow.pop %v2411
      %v2413 = vmul.f32 %v2281, 1.442695
      %v2414 = vpow.pop %v2413
      %v2415 = vmul.f32 %v2282, 1.442695
      %v2416 = vpow.pop %v2415
      %v2417 = vmul.f32 %v2283, 1.442695
      %v2418 = vpow.pop %v2417
      %v2419 = vmul.f32 %v2284, 1.442695
      %v2420 = vpow.pop %v2419
      %v2421 = vmul.f32 %v2285, 1.442695
      %v2422 = vpow.pop %v2421
      %v2423 = vmul.f32 %v2286, 1.442695
      %v2424 = vpow.pop %v2423
      %v2425 = vmul.f32 %v2287, 1.442695
      %v2426 = vpow.pop %v2425
      %v2427 = vmul.f32 %v2288, 1.442695
      %v2428 = vpow.pop %v2427
      %v2429 = vmul.f32 %v2289, 1.442695
      %v2430 = vpow.pop %v2429
      %v2431 = vmul.f32 %v2290, 1.442695
      %v2432 = vpow.pop %v2431
      %v2433 = vmul.f32 %v2291, 1.442695
      %v2434 = vpow.pop %v2433
      %v2435 = vmul.f32 %v2292, 1.442695
      %v2436 = vpow.pop %v2435
      %v2437 = vmul.f32 %v2293, 1.442695
      %v2438 = vpow.pop %v2437
      %v2439 = vmul.f32 %v2294, 1.442695
      %v2440 = vpow.pop %v2439
      %v2441 = vmul.f32 %v2295, 1.442695
      %v2442 = vpow.pop %v2441
      %v2443 = vmul.f32 %v2296, 1.442695
      %v2444 = vpow.pop %v2443
      %v2445 = vmul.f32 %v2297, 1.442695
      %v2446 = vpow.pop %v2445
      %v2447 = vmul.f32 %v2298, 1.442695
      %v2448 = vpow.pop %v2447
      %v2449 = vmul.f32 %v2299, 1.442695
      %v2450 = vpow.pop %v2449
      %v2451 = vmul.f32 %v2300, 1.442695
      %v2452 = vpow.pop %v2451
      %v2453 = vmul.f32 %v2301, 1.442695
      %v2454 = vpow.pop %v2453
      %v2455 = vmul.f32 %v2302, 1.442695
      %v2456 = vpow.pop %v2455
      %v2457 = vmul.f32 %v2303, 1.442695
      %v2458 = vpow.pop %v2457
      %v2459 = vmul.f32 %v2304, 1.442695
      %v2460 = vpow.pop %v2459
      %v2461 = vmul.f32 %v2305, 1.442695
      %v2462 = vpow.pop %v2461
      %v2463 = vmul.f32 %v2306, 1.442695
      %v2464 = vpow.pop %v2463
      %v2465 = vmul.f32 %v2307, 1.442695
      %v2466 = vpow.pop %v2465
      %v2467 = vmul.f32 %v2308, 1.442695
      %v2468 = vpow.pop %v2467
      %v2469 = vmul.f32 %v2309, 1.442695
      %v2470 = vpow.pop %v2469
      %v2471 = vmul.f32 %v2310, 1.442695
      %v2472 = vpow.pop %v2471
      %v2473 = vmul.f32 %v2311, 1.442695
      %v2474 = vpow.pop %v2473
      %v2475 = vmul.f32 %v2312, 1.442695
      %v2476 = vpow.pop %v2475
      %v2477 = vmul.f32 %v2313, 1.442695
      %v2478 = vpow.pop %v2477
      %v2479 = vmul.f32 %v2314, 1.442695
      %v2480 = vpow.pop %v2479
      %v2481 = vmul.f32 %v2315, 1.442695
      %v2482 = vpow.pop %v2481
      %v2483 = vmul.f32 %v2316, 1.442695
      %v2484 = vpow.pop %v2483
      %v2485 = vmul.f32 %v2317, 1.442695
      %v2486 = vpow.pop %v2485
      %v2487 = vmul.f32 %v2318, 1.442695
      %v2488 = vpow.pop %v2487
      %v2489 = vmul.f32 %v2319, 1.442695
      %v2490 = vpow.pop %v2489
      %v2491 = vmul.f32 %v2320, 1.442695
      %v2492 = vpow.pop %v2491
      %v2493 = vmul.f32 %v2321, 1.442695
      %v2494 = vpow.pop %v2493
      %v2495 = vmul.f32 %v2322, 1.442695
      %v2496 = vpow.pop %v2495
      %v2497 = vmul.f32 %v2323, 1.442695
      %v2498 = vpow.pop %v2497
      %v2499 = vmul.f32 %v2324, 1.442695
      %v2500 = vpow.pop %v2499
      %v2501 = vmul.f32 %v2325, 1.442695
      %v2502 = vpow.pop %v2501
      %v2503 = vmul.f32 %v2326, 1.442695
      %v2504 = vpow.pop %v2503
      %v2505 = vmul.f32 %v2327, 1.442695
      %v2506 = vpow.pop %v2505
      %v2507 = vmul.f32 %v2328, 1.442695
      %v2508 = vpow.pop %v2507
      %v2509 = vmul.f32 %v2329, 1.442695
      %v2510 = vpow.pop %v2509
      %v2511 = vmul.f32 %v2330, 1.442695
      %v2512 = vpow.pop %v2511
      %v2513 = vmul.f32 %v2331, 1.442695
      %v2514 = vpow.pop %v2513
      %v2515 = vmul.f32 %v2332, 1.442695
      %v2516 = vpow.pop %v2515
      %v2517 = vmul.f32 %v2333, 1.442695
      %v2518 = vpow.pop %v2517
      %v2519 = vmul.f32 %v2334, 1.442695
      %v2520 = vpow.pop %v2519
      %v2521 = vmul.f32 %v2335, 1.442695
      %v2522 = vpow.pop %v2521
      %v2523 = vmul.f32 %v2336, 1.442695
      %v2524 = vpow.pop %v2523
      %v2525 = vmul.f32 %v2337, 1.442695
      %v2526 = vpow.pop %v2525
      %v2527 = vmul.f32 %v2338, 1.442695
      %v2528 = vpow.pop %v2527
      %v2529 = vmul.f32 %v2339, 1.442695
      %v2530 = vpow.pop %v2529
      %v2531 = vmul.f32 %v2340, 1.442695
      %v2532 = vpow.pop %v2531
      %v2533 = vmul.f32 %v2341, 1.442695
      %v2534 = vpow.pop %v2533
      %v2535 = vmul.f32 %v2342, 1.442695
      %v2536 = vpow.pop %v2535
      %v2537 = vmul.f32 %v2343, 1.442695
      %v2538 = vpow.pop %v2537
      %v2539 = vmul.f32 %v2344, 1.442695
      %v2540 = vpow.pop %v2539
      %v2541 = vmul.f32 %v2345, 1.442695
      %v2542 = vpow.pop %v2541
      %v2543 = vmul.f32 %v2346, 1.442695
      %v2544 = vpow.pop %v2543
      %v2545 = vmul.f32 %v2347, 1.442695
      %v2546 = vpow.pop %v2545
      %v2547 = vmul.f32 %v2348, 1.442695
      %v2548 = vpow.pop %v2547
      %v2549 = vmul.f32 %v2349, 1.442695
      %v2550 = vpow.pop %v2549
      %v2551 = vmul.f32 %v2350, 1.442695
      %v2552 = vpow.pop %v2551
      %v2553 = vmul.f32 %v2351, 1.442695
      %v2554 = vpow.pop %v2553
      %v2555 = vmul.f32 %v2352, 1.442695
      %v2556 = vpow.pop %v2555
      %v2557 = vmul.f32 %v2353, 1.442695
      %v2558 = vpow.pop %v2557
      %v2559 = vmul.f32 %v2354, 1.442695
      %v2560 = vpow.pop %v2559
      %v2561 = vmul.f32 %v2355, 1.442695
      %v2562 = vpow.pop %v2561
      %v2563 = vmul.f32 %v2356, 1.442695
      %v2564 = vpow.pop %v2563
      %v2565 = vmul.f32 %v2357, 1.442695
      %v2566 = vpow.pop %v2565
      %v2567 = vmul.f32 %v2358, 1.442695
      %v2568 = vpow.pop %v2567
      %v2569 = vmul.f32 %v2359, 1.442695
      %v2570 = vpow.pop %v2569
      %v2571 = vmul.f32 %v2360, 1.442695
      %v2572 = vpow.pop %v2571
      %v2573 = vmul.f32 %v2361, 1.442695
      %v2574 = vpow.pop %v2573
      %v2575 = vmul.f32 %v2362, 1.442695
      %v2576 = vpow.pop %v2575
      %v2577 = vmul.f32 %v2363, 1.442695
      %v2578 = vpow.pop %v2577
      %v2579 = vmul.f32 %v2364, 1.442695
      %v2580 = vpow.pop %v2579
      %v2581 = vmul.f32 %v2365, 1.442695
      %v2582 = vpow.pop %v2581
      %v2583 = vmul.f32 %v2366, 1.442695
      %v2584 = vpow.pop %v2583
      %v2585 = vmul.f32 %v2367, 1.442695
      %v2586 = vpow.pop %v2585
      %v2587 = vmul.f32 %v2368, 1.442695
      %v2588 = vpow.pop %v2587
      %v2589 = vmul.f32 %v2369, 1.442695
      %v2590 = vpow.pop %v2589
      %v2591 = vmul.f32 %v2370, 1.442695
      %v2592 = vpow.pop %v2591
      %v2593 = vmul.f32 %v2371, 1.442695
      %v2594 = vpow.pop %v2593
      %v2595 = vmul.f32 %v2372, 1.442695
      %v2596 = vpow.pop %v2595
      %v2597 = vmul.f32 %v2373, 1.442695
      %v2598 = vpow.pop %v2597
      %v2599 = vmul.f32 %v2374, 1.442695
      %v2600 = vpow.pop %v2599
      %v2601 = vmul.f32 %v2375, 1.442695
      %v2602 = vpow.pop %v2601
      %v2603 = vmul.f32 %v2376, 1.442695
      %v2604 = vpow.pop %v2603
      %v2605 = vmul.f32 %v2377, 1.442695
      %v2606 = vpow.pop %v2605
      %v2607 = vmul.f32 %v2378, 1.442695
      %v2608 = vpow.pop %v2607
      %v2609 = vmul.f32 %v2379, 1.442695
      %v2610 = vpow.pop %v2609
      %v2611 = vmul.f32 %v2380, 1.442695
      %v2612 = vpow.pop %v2611
      %v2613 = vmul.f32 %v2381, 1.442695
      %v2614 = vpow.pop %v2613
      %v2615 = vmul.f32 %v2382, 1.442695
      %v2616 = vpow.pop %v2615
      %v2617 = vmul.f32 %v2383, 1.442695
      %v2618 = vpow.pop %v2617
      %v2619 = vmul.f32 %v2384, 1.442695
      %v2620 = vpow.pop %v2619
      %v2621 = vmul.f32 %v2385, 1.442695
      %v2622 = vpow.pop %v2621
      %v2623 = vmul.f32 %v2386, 1.442695
      %v2624 = vpow.pop %v2623
      %v2625 = vmul.f32 %v2387, 1.442695
      %v2626 = vpow.pop %v2625
      %v2627 = vmul.f32 %v2388, 1.442695
      %v2628 = vpow.pop %v2627
      %v2629 = vmul.f32 %v2389, 1.442695
      %v2630 = vpow.pop %v2629
      %v2631 = vmul.f32 %v2390, 1.442695
      %v2632 = vpow.pop %v2631
      %v2633 = vmul.f32 %v2391, 1.442695
      %v2634 = vpow.pop %v2633
      %v2635 = vmul.f32 %v2392, 1.442695
      %v2636 = vpow.pop %v2635
      %v2637 = vmul.f32 %v2393, 1.442695
      %v2638 = vpow.pop %v2637
      %v2639 = vmul.f32 %v2394, 1.442695
      %v2640 = vpow.pop %v2639
      %v2641 = vmul.f32 %v2395, 1.442695
      %v2642 = vpow.pop %v2641
      %v2643 = vmul.f32 %v2396, 1.442695
      %v2644 = vpow.pop %v2643
      %v2645 = vmul.f32 %v2397, 1.442695
      %v2646 = vpow.pop %v2645
      %v2647 = vmul.f32 %v2398, 1.442695
      %v2648 = vpow.pop %v2647
      %v2649 = vmul.f32 %v2399, 1.442695
      %v2650 = vpow.pop %v2649
      %v2651 = vmul.f32 %v2400, 1.442695
      %v2652 = vpow.pop %v2651
      %v2653 = vmul.f32 %v2401, 1.442695
      %v2654 = vpow.pop %v2653
      %v2655 = vmul.f32 %v2402, 1.442695
      %v2656 = vpow.pop %v2655
      %v2657 = vmul.f32 %v2403, 1.442695
      %v2658 = vpow.pop %v2657
      %v2659 = vmul.f32 %v2404, 1.442695
      %v2660 = vpow.pop %v2659
      %v2661 = vsel %vm1637, %v2406, 0.0
      %v2662 = vsel %vm1638, %v2408, 0.0
      %v2663 = vsel %vm1639, %v2410, 0.0
      %v2664 = vsel %vm1640, %v2412, 0.0
      %v2665 = vsel %vm1641, %v2414, 0.0
      %v2666 = vsel %vm1642, %v2416, 0.0
      %v2667 = vsel %vm1643, %v2418, 0.0
      %v2668 = vsel %vm1644, %v2420, 0.0
      %v2669 = vsel %vm1645, %v2422, 0.0
      %v2670 = vsel %vm1646, %v2424, 0.0
      %v2671 = vsel %vm1647, %v2426, 0.0
      %v2672 = vsel %vm1648, %v2428, 0.0
      %v2673 = vsel %vm1649, %v2430, 0.0
      %v2674 = vsel %vm1650, %v2432, 0.0
      %v2675 = vsel %vm1651, %v2434, 0.0
      %v2676 = vsel %vm1652, %v2436, 0.0
      %v2677 = vsel %vm1653, %v2438, 0.0
      %v2678 = vsel %vm1654, %v2440, 0.0
      %v2679 = vsel %vm1655, %v2442, 0.0
      %v2680 = vsel %vm1656, %v2444, 0.0
      %v2681 = vsel %vm1657, %v2446, 0.0
      %v2682 = vsel %vm1658, %v2448, 0.0
      %v2683 = vsel %vm1659, %v2450, 0.0
      %v2684 = vsel %vm1660, %v2452, 0.0
      %v2685 = vsel %vm1661, %v2454, 0.0
      %v2686 = vsel %vm1662, %v2456, 0.0
      %v2687 = vsel %vm1663, %v2458, 0.0
      %v2688 = vsel %vm1664, %v2460, 0.0
      %v2689 = vsel %vm1665, %v2462, 0.0
      %v2690 = vsel %vm1666, %v2464, 0.0
      %v2691 = vsel %vm1667, %v2466, 0.0
      %v2692 = vsel %vm1668, %v2468, 0.0
      %v2693 = vsel %vm1669, %v2470, 0.0
      %v2694 = vsel %vm1670, %v2472, 0.0
      %v2695 = vsel %vm1671, %v2474, 0.0
      %v2696 = vsel %vm1672, %v2476, 0.0
      %v2697 = vsel %vm1673, %v2478, 0.0
      %v2698 = vsel %vm1674, %v2480, 0.0
      %v2699 = vsel %vm1675, %v2482, 0.0
      %v2700 = vsel %vm1676, %v2484, 0.0
      %v2701 = vsel %vm1677, %v2486, 0.0
      %v2702 = vsel %vm1678, %v2488, 0.0
      %v2703 = vsel %vm1679, %v2490, 0.0
      %v2704 = vsel %vm1680, %v2492, 0.0
      %v2705 = vsel %vm1681, %v2494, 0.0
      %v2706 = vsel %vm1682, %v2496, 0.0
      %v2707 = vsel %vm1683, %v2498, 0.0
      %v2708 = vsel %vm1684, %v2500, 0.0
      %v2709 = vsel %vm1685, %v2502, 0.0
      %v2710 = vsel %vm1686, %v2504, 0.0
      %v2711 = vsel %vm1687, %v2506, 0.0
      %v2712 = vsel %vm1688, %v2508, 0.0
      %v2713 = vsel %vm1689, %v2510, 0.0
      %v2714 = vsel %vm1690, %v2512, 0.0
      %v2715 = vsel %vm1691, %v2514, 0.0
      %v2716 = vsel %vm1692, %v2516, 0.0
      %v2717 = vsel %vm1693, %v2518, 0.0
      %v2718 = vsel %vm1694, %v2520, 0.0
      %v2719 = vsel %vm1695, %v2522, 0.0
      %v2720 = vsel %vm1696, %v2524, 0.0
      %v2721 = vsel %vm1697, %v2526, 0.0
      %v2722 = vsel %vm1698, %v2528, 0.0
      %v2723 = vsel %vm1699, %v2530, 0.0
      %v2724 = vsel %vm1700, %v2532, 0.0
      %v2725 = vsel %vm1701, %v2534, 0.0
      %v2726 = vsel %vm1702, %v2536, 0.0
      %v2727 = vsel %vm1703, %v2538, 0.0
      %v2728 = vsel %vm1704, %v2540, 0.0
      %v2729 = vsel %vm1705, %v2542, 0.0
      %v2730 = vsel %vm1706, %v2544, 0.0
      %v2731 = vsel %vm1707, %v2546, 0.0
      %v2732 = vsel %vm1708, %v2548, 0.0
      %v2733 = vsel %vm1709, %v2550, 0.0
      %v2734 = vsel %vm1710, %v2552, 0.0
      %v2735 = vsel %vm1711, %v2554, 0.0
      %v2736 = vsel %vm1712, %v2556, 0.0
      %v2737 = vsel %vm1713, %v2558, 0.0
      %v2738 = vsel %vm1714, %v2560, 0.0
      %v2739 = vsel %vm1715, %v2562, 0.0
      %v2740 = vsel %vm1716, %v2564, 0.0
      %v2741 = vsel %vm1717, %v2566, 0.0
      %v2742 = vsel %vm1718, %v2568, 0.0
      %v2743 = vsel %vm1719, %v2570, 0.0
      %v2744 = vsel %vm1720, %v2572, 0.0
      %v2745 = vsel %vm1721, %v2574, 0.0
      %v2746 = vsel %vm1722, %v2576, 0.0
      %v2747 = vsel %vm1723, %v2578, 0.0
      %v2748 = vsel %vm1724, %v2580, 0.0
      %v2749 = vsel %vm1725, %v2582, 0.0
      %v2750 = vsel %vm1726, %v2584, 0.0
      %v2751 = vsel %vm1727, %v2586, 0.0
      %v2752 = vsel %vm1728, %v2588, 0.0
      %v2753 = vsel %vm1729, %v2590, 0.0
      %v2754 = vsel %vm1730, %v2592, 0.0
      %v2755 = vsel %vm1731, %v2594, 0.0
      %v2756 = vsel %vm1732, %v2596, 0.0
      %v2757 = vsel %vm1733, %v2598, 0.0
      %v2758 = vsel %vm1734, %v2600, 0.0
      %v2759 = vsel %vm1735, %v2602, 0.0
      %v2760 = vsel %vm1736, %v2604, 0.0
      %v2761 = vsel %vm1737, %v2606, 0.0
      %v2762 = vsel %vm1738, %v2608, 0.0
      %v2763 = vsel %vm1739, %v2610, 0.0
      %v2764 = vsel %vm1740, %v2612, 0.0
      %v2765 = vsel %vm1741, %v2614, 0.0
      %v2766 = vsel %vm1742, %v2616, 0.0
      %v2767 = vsel %vm1743, %v2618, 0.0
      %v2768 = vsel %vm1744, %v2620, 0.0
      %v2769 = vsel %vm1745, %v2622, 0.0
      %v2770 = vsel %vm1746, %v2624, 0.0
      %v2771 = vsel %vm1747, %v2626, 0.0
      %v2772 = vsel %vm1748, %v2628, 0.0
      %v2773 = vsel %vm1749, %v2630, 0.0
      %v2774 = vsel %vm1750, %v2632, 0.0
      %v2775 = vsel %vm1751, %v2634, 0.0
      %v2776 = vsel %vm1752, %v2636, 0.0
      %v2777 = vsel %vm1753, %v2638, 0.0
      %v2778 = vsel %vm1754, %v2640, 0.0
      %v2779 = vsel %vm1755, %v2642, 0.0
      %v2780 = vsel %vm1756, %v2644, 0.0
      %v2781 = vsel %vm1757, %v2646, 0.0
      %v2782 = vsel %vm1758, %v2648, 0.0
      %v2783 = vsel %vm1759, %v2650, 0.0
      %v2784 = vsel %vm1760, %v2652, 0.0
      %v2785 = vsel %vm1761, %v2654, 0.0
      %v2786 = vsel %vm1762, %v2656, 0.0
      %v2787 = vsel %vm1763, %v2658, 0.0
      %v2788 = vsel %vm1764, %v2660, 0.0
      %v2789 = vsub.f32 %v1893, %v2085
      %v2790 = vsub.f32 %v1894, %v2086
      %v2791 = vsub.f32 %v1895, %v2087
      %v2792 = vsub.f32 %v1896, %v2088
      %v2793 = vsub.f32 %v1897, %v2089
      %v2794 = vsub.f32 %v1898, %v2090
      %v2795 = vsub.f32 %v1899, %v2091
      %v2796 = vsub.f32 %v1900, %v2092
      %v2797 = vsub.f32 %v1901, %v2093
      %v2798 = vsub.f32 %v1902, %v2094
      %v2799 = vsub.f32 %v1903, %v2095
      %v2800 = vsub.f32 %v1904, %v2096
      %v2801 = vsub.f32 %v1905, %v2097
      %v2802 = vsub.f32 %v1906, %v2098
      %v2803 = vsub.f32 %v1907, %v2099
      %v2804 = vsub.f32 %v1908, %v2100
      %v2805 = vsub.f32 %v1909, %v2101
      %v2806 = vsub.f32 %v1910, %v2102
      %v2807 = vsub.f32 %v1911, %v2103
      %v2808 = vsub.f32 %v1912, %v2104
      %v2809 = vsub.f32 %v1913, %v2105
      %v2810 = vsub.f32 %v1914, %v2106
      %v2811 = vsub.f32 %v1915, %v2107
      %v2812 = vsub.f32 %v1916, %v2108
      %v2813 = vsub.f32 %v1917, %v2109
      %v2814 = vsub.f32 %v1918, %v2110
      %v2815 = vsub.f32 %v1919, %v2111
      %v2816 = vsub.f32 %v1920, %v2112
      %v2817 = vsub.f32 %v1921, %v2113
      %v2818 = vsub.f32 %v1922, %v2114
      %v2819 = vsub.f32 %v1923, %v2115
      %v2820 = vsub.f32 %v1924, %v2116
      %v2821 = vmul.f32 %v2789, 1.442695
      %v2822 = vpow.pop %v2821
      %v2823 = vmul.f32 %v2790, 1.442695
      %v2824 = vpow.pop %v2823
      %v2825 = vmul.f32 %v2791, 1.442695
      %v2826 = vpow.pop %v2825
      %v2827 = vmul.f32 %v2792, 1.442695
      %v2828 = vpow.pop %v2827
      %v2829 = vmul.f32 %v2793, 1.442695
      %v2830 = vpow.pop %v2829
      %v2831 = vmul.f32 %v2794, 1.442695
      %v2832 = vpow.pop %v2831
      %v2833 = vmul.f32 %v2795, 1.442695
      %v2834 = vpow.pop %v2833
      %v2835 = vmul.f32 %v2796, 1.442695
      %v2836 = vpow.pop %v2835
      %v2837 = vmul.f32 %v2797, 1.442695
      %v2838 = vpow.pop %v2837
      %v2839 = vmul.f32 %v2798, 1.442695
      %v2840 = vpow.pop %v2839
      %v2841 = vmul.f32 %v2799, 1.442695
      %v2842 = vpow.pop %v2841
      %v2843 = vmul.f32 %v2800, 1.442695
      %v2844 = vpow.pop %v2843
      %v2845 = vmul.f32 %v2801, 1.442695
      %v2846 = vpow.pop %v2845
      %v2847 = vmul.f32 %v2802, 1.442695
      %v2848 = vpow.pop %v2847
      %v2849 = vmul.f32 %v2803, 1.442695
      %v2850 = vpow.pop %v2849
      %v2851 = vmul.f32 %v2804, 1.442695
      %v2852 = vpow.pop %v2851
      %v2853 = vmul.f32 %v2805, 1.442695
      %v2854 = vpow.pop %v2853
      %v2855 = vmul.f32 %v2806, 1.442695
      %v2856 = vpow.pop %v2855
      %v2857 = vmul.f32 %v2807, 1.442695
      %v2858 = vpow.pop %v2857
      %v2859 = vmul.f32 %v2808, 1.442695
      %v2860 = vpow.pop %v2859
      %v2861 = vmul.f32 %v2809, 1.442695
      %v2862 = vpow.pop %v2861
      %v2863 = vmul.f32 %v2810, 1.442695
      %v2864 = vpow.pop %v2863
      %v2865 = vmul.f32 %v2811, 1.442695
      %v2866 = vpow.pop %v2865
      %v2867 = vmul.f32 %v2812, 1.442695
      %v2868 = vpow.pop %v2867
      %v2869 = vmul.f32 %v2813, 1.442695
      %v2870 = vpow.pop %v2869
      %v2871 = vmul.f32 %v2814, 1.442695
      %v2872 = vpow.pop %v2871
      %v2873 = vmul.f32 %v2815, 1.442695
      %v2874 = vpow.pop %v2873
      %v2875 = vmul.f32 %v2816, 1.442695
      %v2876 = vpow.pop %v2875
      %v2877 = vmul.f32 %v2817, 1.442695
      %v2878 = vpow.pop %v2877
      %v2879 = vmul.f32 %v2818, 1.442695
      %v2880 = vpow.pop %v2879
      %v2881 = vmul.f32 %v2819, 1.442695
      %v2882 = vpow.pop %v2881
      %v2883 = vmul.f32 %v2820, 1.442695
      %v2884 = vpow.pop %v2883
      %v2885 = vld [vmem:[#allocation3] sm:$0xff]
      %v2886 = vld [vmem:[#allocation3 + $0x8] sm:$0xff]
      %v2887 = vld [vmem:[#allocation3 + $0x10] sm:$0xff]
      %v2888 = vld [vmem:[#allocation3 + $0x18] sm:$0xff]
      %v2889 = vld [vmem:[#allocation3 + $0x20] sm:$0xff]
      %v2890 = vld [vmem:[#allocation3 + $0x28] sm:$0xff]
      %v2891 = vld [vmem:[#allocation3 + $0x30] sm:$0xff]
      %v2892 = vld [vmem:[#allocation3 + $0x38] sm:$0xff]
      %v2893 = vld [vmem:[#allocation3 + $0x40] sm:$0xff]
      %v2894 = vld [vmem:[#allocation3 + $0x48] sm:$0xff]
      %v2895 = vld [vmem:[#allocation3 + $0x50] sm:$0xff]
      %v2896 = vld [vmem:[#allocation3 + $0x58] sm:$0xff]
      %v2897 = vld [vmem:[#allocation3 + $0x60] sm:$0xff]
      %v2898 = vld [vmem:[#allocation3 + $0x68] sm:$0xff]
      %v2899 = vld [vmem:[#allocation3 + $0x70] sm:$0xff]
      %v2900 = vld [vmem:[#allocation3 + $0x78] sm:$0xff]
      %v2901 = vld [vmem:[#allocation3 + $0x80] sm:$0xff]
      %v2902 = vld [vmem:[#allocation3 + $0x88] sm:$0xff]
      %v2903 = vld [vmem:[#allocation3 + $0x90] sm:$0xff]
      %v2904 = vld [vmem:[#allocation3 + $0x98] sm:$0xff]
      %v2905 = vld [vmem:[#allocation3 + $0xa0] sm:$0xff]
      %v2906 = vld [vmem:[#allocation3 + $0xa8] sm:$0xff]
      %v2907 = vld [vmem:[#allocation3 + $0xb0] sm:$0xff]
      %v2908 = vld [vmem:[#allocation3 + $0xb8] sm:$0xff]
      %v2909 = vld [vmem:[#allocation3 + $0xc0] sm:$0xff]
      %v2910 = vld [vmem:[#allocation3 + $0xc8] sm:$0xff]
      %v2911 = vld [vmem:[#allocation3 + $0xd0] sm:$0xff]
      %v2912 = vld [vmem:[#allocation3 + $0xd8] sm:$0xff]
      %v2913 = vld [vmem:[#allocation3 + $0xe0] sm:$0xff]
      %v2914 = vld [vmem:[#allocation3 + $0xe8] sm:$0xff]
      %v2915 = vld [vmem:[#allocation3 + $0xf0] sm:$0xff]
      %v2916 = vld [vmem:[#allocation3 + $0xf8] sm:$0xff]
      %v2917 = vmul.f32 %v2885, %v2822
      %v2918 = vmul.f32 %v2886, %v2824
      %v2919 = vmul.f32 %v2887, %v2826
      %v2920 = vmul.f32 %v2888, %v2828
      %v2921 = vmul.f32 %v2889, %v2830
      %v2922 = vmul.f32 %v2890, %v2832
      %v2923 = vmul.f32 %v2891, %v2834
      %v2924 = vmul.f32 %v2892, %v2836
      %v2925 = vmul.f32 %v2893, %v2838
      %v2926 = vmul.f32 %v2894, %v2840
      %v2927 = vmul.f32 %v2895, %v2842
      %v2928 = vmul.f32 %v2896, %v2844
      %v2929 = vmul.f32 %v2897, %v2846
      %v2930 = vmul.f32 %v2898, %v2848
      %v2931 = vmul.f32 %v2899, %v2850
      %v2932 = vmul.f32 %v2900, %v2852
      %v2933 = vmul.f32 %v2901, %v2854
      %v2934 = vmul.f32 %v2902, %v2856
      %v2935 = vmul.f32 %v2903, %v2858
      %v2936 = vmul.f32 %v2904, %v2860
      %v2937 = vmul.f32 %v2905, %v2862
      %v2938 = vmul.f32 %v2906, %v2864
      %v2939 = vmul.f32 %v2907, %v2866
      %v2940 = vmul.f32 %v2908, %v2868
      %v2941 = vmul.f32 %v2909, %v2870
      %v2942 = vmul.f32 %v2910, %v2872
      %v2943 = vmul.f32 %v2911, %v2874
      %v2944 = vmul.f32 %v2912, %v2876
      %v2945 = vmul.f32 %v2913, %v2878
      %v2946 = vmul.f32 %v2914, %v2880
      %v2947 = vmul.f32 %v2915, %v2882
      %v2948 = vmul.f32 %v2916, %v2884
      %v2949 = vadd.f32 %v2661, %v2662
      %v2950 = vadd.f32 %v2949, %v2663
      %v2951 = vadd.f32 %v2950, %v2664
      %2952 = vadd.xlane.f32.xlu0 %v2951
      %v2953 = vpop.xlane.xlu0 %2952
      %v2954 = vadd.f32 %v2665, %v2666
      %v2955 = vadd.f32 %v2954, %v2667
      %v2956 = vadd.f32 %v2955, %v2668
      %2957 = vadd.xlane.f32.xlu0 %v2956
      %v2958 = vpop.xlane.xlu0 %2957
      %v2959 = vadd.f32 %v2669, %v2670
      %v2960 = vadd.f32 %v2959, %v2671
      %v2961 = vadd.f32 %v2960, %v2672
      %2962 = vadd.xlane.f32.xlu0 %v2961
      %v2963 = vpop.xlane.xlu0 %2962
      %v2964 = vadd.f32 %v2673, %v2674
      %v2965 = vadd.f32 %v2964, %v2675
      %v2966 = vadd.f32 %v2965, %v2676
      %2967 = vadd.xlane.f32.xlu0 %v2966
      %v2968 = vpop.xlane.xlu0 %2967
      %v2969 = vadd.f32 %v2677, %v2678
      %v2970 = vadd.f32 %v2969, %v2679
      %v2971 = vadd.f32 %v2970, %v2680
      %2972 = vadd.xlane.f32.xlu0 %v2971
      %v2973 = vpop.xlane.xlu0 %2972
      %v2974 = vadd.f32 %v2681, %v2682
      %v2975 = vadd.f32 %v2974, %v2683
      %v2976 = vadd.f32 %v2975, %v2684
      %2977 = vadd.xlane.f32.xlu0 %v2976
      %v2978 = vpop.xlane.xlu0 %2977
      %v2979 = vadd.f32 %v2685, %v2686
      %v2980 = vadd.f32 %v2979, %v2687
      %v2981 = vadd.f32 %v2980, %v2688
      %2982 = vadd.xlane.f32.xlu0 %v2981
      %v2983 = vpop.xlane.xlu0 %2982
      %v2984 = vadd.f32 %v2689, %v2690
      %v2985 = vadd.f32 %v2984, %v2691
      %v2986 = vadd.f32 %v2985, %v2692
      %2987 = vadd.xlane.f32.xlu0 %v2986
      %v2988 = vpop.xlane.xlu0 %2987
      %v2989 = vadd.f32 %v2693, %v2694
      %v2990 = vadd.f32 %v2989, %v2695
      %v2991 = vadd.f32 %v2990, %v2696
      %2992 = vadd.xlane.f32.xlu0 %v2991
      %v2993 = vpop.xlane.xlu0 %2992
      %v2994 = vadd.f32 %v2697, %v2698
      %v2995 = vadd.f32 %v2994, %v2699
      %v2996 = vadd.f32 %v2995, %v2700
      %2997 = vadd.xlane.f32.xlu0 %v2996
      %v2998 = vpop.xlane.xlu0 %2997
      %v2999 = vadd.f32 %v2701, %v2702
      %v3000 = vadd.f32 %v2999, %v2703
      %v3001 = vadd.f32 %v3000, %v2704
      %3002 = vadd.xlane.f32.xlu0 %v3001
      %v3003 = vpop.xlane.xlu0 %3002
      %v3004 = vadd.f32 %v2705, %v2706
      %v3005 = vadd.f32 %v3004, %v2707
      %v3006 = vadd.f32 %v3005, %v2708
      %3007 = vadd.xlane.f32.xlu0 %v3006
      %v3008 = vpop.xlane.xlu0 %3007
      %v3009 = vadd.f32 %v2709, %v2710
      %v3010 = vadd.f32 %v3009, %v2711
      %v3011 = vadd.f32 %v3010, %v2712
      %3012 = vadd.xlane.f32.xlu0 %v3011
      %v3013 = vpop.xlane.xlu0 %3012
      %v3014 = vadd.f32 %v2713, %v2714
      %v3015 = vadd.f32 %v3014, %v2715
      %v3016 = vadd.f32 %v3015, %v2716
      %3017 = vadd.xlane.f32.xlu0 %v3016
      %v3018 = vpop.xlane.xlu0 %3017
      %v3019 = vadd.f32 %v2717, %v2718
      %v3020 = vadd.f32 %v3019, %v2719
      %v3021 = vadd.f32 %v3020, %v2720
      %3022 = vadd.xlane.f32.xlu0 %v3021
      %v3023 = vpop.xlane.xlu0 %3022
      %v3024 = vadd.f32 %v2721, %v2722
      %v3025 = vadd.f32 %v3024, %v2723
      %v3026 = vadd.f32 %v3025, %v2724
      %3027 = vadd.xlane.f32.xlu0 %v3026
      %v3028 = vpop.xlane.xlu0 %3027
      %v3029 = vadd.f32 %v2725, %v2726
      %v3030 = vadd.f32 %v3029, %v2727
      %v3031 = vadd.f32 %v3030, %v2728
      %3032 = vadd.xlane.f32.xlu0 %v3031
      %v3033 = vpop.xlane.xlu0 %3032
      %v3034 = vadd.f32 %v2729, %v2730
      %v3035 = vadd.f32 %v3034, %v2731
      %v3036 = vadd.f32 %v3035, %v2732
      %3037 = vadd.xlane.f32.xlu0 %v3036
      %v3038 = vpop.xlane.xlu0 %3037
      %v3039 = vadd.f32 %v2733, %v2734
      %v3040 = vadd.f32 %v3039, %v2735
      %v3041 = vadd.f32 %v3040, %v2736
      %3042 = vadd.xlane.f32.xlu0 %v3041
      %v3043 = vpop.xlane.xlu0 %3042
      %v3044 = vadd.f32 %v2737, %v2738
      %v3045 = vadd.f32 %v3044, %v2739
      %v3046 = vadd.f32 %v3045, %v2740
      %3047 = vadd.xlane.f32.xlu0 %v3046
      %v3048 = vpop.xlane.xlu0 %3047
      %v3049 = vadd.f32 %v2741, %v2742
      %v3050 = vadd.f32 %v3049, %v2743
      %v3051 = vadd.f32 %v3050, %v2744
      %3052 = vadd.xlane.f32.xlu0 %v3051
      %v3053 = vpop.xlane.xlu0 %3052
      %v3054 = vadd.f32 %v2745, %v2746
      %v3055 = vadd.f32 %v3054, %v2747
      %v3056 = vadd.f32 %v3055, %v2748
      %3057 = vadd.xlane.f32.xlu0 %v3056
      %v3058 = vpop.xlane.xlu0 %3057
      %v3059 = vadd.f32 %v2749, %v2750
      %v3060 = vadd.f32 %v3059, %v2751
      %v3061 = vadd.f32 %v3060, %v2752
      %3062 = vadd.xlane.f32.xlu0 %v3061
      %v3063 = vpop.xlane.xlu0 %3062
      %v3064 = vadd.f32 %v2753, %v2754
      %v3065 = vadd.f32 %v3064, %v2755
      %v3066 = vadd.f32 %v3065, %v2756
      %3067 = vadd.xlane.f32.xlu0 %v3066
      %v3068 = vpop.xlane.xlu0 %3067
      %v3069 = vadd.f32 %v2757, %v2758
      %v3070 = vadd.f32 %v3069, %v2759
      %v3071 = vadd.f32 %v3070, %v2760
      %3072 = vadd.xlane.f32.xlu0 %v3071
      %v3073 = vpop.xlane.xlu0 %3072
      %v3074 = vadd.f32 %v2761, %v2762
      %v3075 = vadd.f32 %v3074, %v2763
      %v3076 = vadd.f32 %v3075, %v2764
      %3077 = vadd.xlane.f32.xlu0 %v3076
      %v3078 = vpop.xlane.xlu0 %3077
      %v3079 = vadd.f32 %v2765, %v2766
      %v3080 = vadd.f32 %v3079, %v2767
      %v3081 = vadd.f32 %v3080, %v2768
      %3082 = vadd.xlane.f32.xlu0 %v3081
      %v3083 = vpop.xlane.xlu0 %3082
      %v3084 = vadd.f32 %v2769, %v2770
      %v3085 = vadd.f32 %v3084, %v2771
      %v3086 = vadd.f32 %v3085, %v2772
      %3087 = vadd.xlane.f32.xlu0 %v3086
      %v3088 = vpop.xlane.xlu0 %3087
      %v3089 = vadd.f32 %v2773, %v2774
      %v3090 = vadd.f32 %v3089, %v2775
      %v3091 = vadd.f32 %v3090, %v2776
      %3092 = vadd.xlane.f32.xlu0 %v3091
      %v3093 = vpop.xlane.xlu0 %3092
      %v3094 = vadd.f32 %v2777, %v2778
      %v3095 = vadd.f32 %v3094, %v2779
      %v3096 = vadd.f32 %v3095, %v2780
      %3097 = vadd.xlane.f32.xlu0 %v3096
      %v3098 = vpop.xlane.xlu0 %3097
      %v3099 = vadd.f32 %v2781, %v2782
      %v3100 = vadd.f32 %v3099, %v2783
      %v3101 = vadd.f32 %v3100, %v2784
      %3102 = vadd.xlane.f32.xlu0 %v3101
      %v3103 = vpop.xlane.xlu0 %3102
      %v3104 = vadd.f32 %v2785, %v2786
      %v3105 = vadd.f32 %v3104, %v2787
      %v3106 = vadd.f32 %v3105, %v2788
      %3107 = vadd.xlane.f32.xlu0 %v3106
      %v3108 = vpop.xlane.xlu0 %3107
      %v3109 = vadd.f32 %v2917, %v2953
      %v3110 = vadd.f32 %v2918, %v2958
      %v3111 = vadd.f32 %v2919, %v2963
      %v3112 = vadd.f32 %v2920, %v2968
      %v3113 = vadd.f32 %v2921, %v2973
      %v3114 = vadd.f32 %v2922, %v2978
      %v3115 = vadd.f32 %v2923, %v2983
      %v3116 = vadd.f32 %v2924, %v2988
      %v3117 = vadd.f32 %v2925, %v2993
      %v3118 = vadd.f32 %v2926, %v2998
      %v3119 = vadd.f32 %v2927, %v3003
      %v3120 = vadd.f32 %v2928, %v3008
      %v3121 = vadd.f32 %v2929, %v3013
      %v3122 = vadd.f32 %v2930, %v3018
      %v3123 = vadd.f32 %v2931, %v3023
      %v3124 = vadd.f32 %v2932, %v3028
      %v3125 = vadd.f32 %v2933, %v3033
      %v3126 = vadd.f32 %v2934, %v3038
      %v3127 = vadd.f32 %v2935, %v3043
      %v3128 = vadd.f32 %v2936, %v3048
      %v3129 = vadd.f32 %v2937, %v3053
      %v3130 = vadd.f32 %v2938, %v3058
      %v3131 = vadd.f32 %v2939, %v3063
      %v3132 = vadd.f32 %v2940, %v3068
      %v3133 = vadd.f32 %v2941, %v3073
      %v3134 = vadd.f32 %v2942, %v3078
      %v3135 = vadd.f32 %v2943, %v3083
      %v3136 = vadd.f32 %v2944, %v3088
      %v3137 = vadd.f32 %v2945, %v3093
      %v3138 = vadd.f32 %v2946, %v3098
      %v3139 = vadd.f32 %v2947, %v3103
      %v3140 = vadd.f32 %v2948, %v3108
      %vm3141 = vcmask 7168
      %3142 = vst.msk [vmem:[#allocation3] sm:$0xff] %vm3141, %v3109
      %3143 = vst.msk [vmem:[#allocation3 + $0x8] sm:$0xff] %vm3141, %v3110
      %3144 = vst.msk [vmem:[#allocation3 + $0x10] sm:$0xff] %vm3141, %v3111
      %3145 = vst.msk [vmem:[#allocation3 + $0x18] sm:$0xff] %vm3141, %v3112
      %3146 = vst.msk [vmem:[#allocation3 + $0x20] sm:$0xff] %vm3141, %v3113
      %3147 = vst.msk [vmem:[#allocation3 + $0x28] sm:$0xff] %vm3141, %v3114
      %3148 = vst.msk [vmem:[#allocation3 + $0x30] sm:$0xff] %vm3141, %v3115
      %3149 = vst.msk [vmem:[#allocation3 + $0x38] sm:$0xff] %vm3141, %v3116
      %3150 = vst.msk [vmem:[#allocation3 + $0x40] sm:$0xff] %vm3141, %v3117
      %3151 = vst.msk [vmem:[#allocation3 + $0x48] sm:$0xff] %vm3141, %v3118
      %3152 = vst.msk [vmem:[#allocation3 + $0x50] sm:$0xff] %vm3141, %v3119
      %3153 = vst.msk [vmem:[#allocation3 + $0x58] sm:$0xff] %vm3141, %v3120
      %3154 = vst.msk [vmem:[#allocation3 + $0x60] sm:$0xff] %vm3141, %v3121
      %3155 = vst.msk [vmem:[#allocation3 + $0x68] sm:$0xff] %vm3141, %v3122
      %3156 = vst.msk [vmem:[#allocation3 + $0x70] sm:$0xff] %vm3141, %v3123
      %3157 = vst.msk [vmem:[#allocation3 + $0x78] sm:$0xff] %vm3141, %v3124
      %3158 = vst.msk [vmem:[#allocation3 + $0x80] sm:$0xff] %vm3141, %v3125
      %3159 = vst.msk [vmem:[#allocation3 + $0x88] sm:$0xff] %vm3141, %v3126
      %3160 = vst.msk [vmem:[#allocation3 + $0x90] sm:$0xff] %vm3141, %v3127
      %3161 = vst.msk [vmem:[#allocation3 + $0x98] sm:$0xff] %vm3141, %v3128
      %3162 = vst.msk [vmem:[#allocation3 + $0xa0] sm:$0xff] %vm3141, %v3129
      %3163 = vst.msk [vmem:[#allocation3 + $0xa8] sm:$0xff] %vm3141, %v3130
      %3164 = vst.msk [vmem:[#allocation3 + $0xb0] sm:$0xff] %vm3141, %v3131
      %3165 = vst.msk [vmem:[#allocation3 + $0xb8] sm:$0xff] %vm3141, %v3132
      %3166 = vst.msk [vmem:[#allocation3 + $0xc0] sm:$0xff] %vm3141, %v3133
      %3167 = vst.msk [vmem:[#allocation3 + $0xc8] sm:$0xff] %vm3141, %v3134
      %3168 = vst.msk [vmem:[#allocation3 + $0xd0] sm:$0xff] %vm3141, %v3135
      %3169 = vst.msk [vmem:[#allocation3 + $0xd8] sm:$0xff] %vm3141, %v3136
      %3170 = vst.msk [vmem:[#allocation3 + $0xe0] sm:$0xff] %vm3141, %v3137
      %3171 = vst.msk [vmem:[#allocation3 + $0xe8] sm:$0xff] %vm3141, %v3138
      %3172 = vst.msk [vmem:[#allocation3 + $0xf0] sm:$0xff] %vm3141, %v3139
      %3173 = vst.msk [vmem:[#allocation3 + $0xf8] sm:$0xff] %vm3141, %v3140
      %v3174 = vld [vmem:[#allocation4] sm:$0xff]
      %v3175 = vld [vmem:[#allocation4 + $0x8] sm:$0xff]
      %v3176 = vld [vmem:[#allocation4 + $0x10] sm:$0xff]
      %v3177 = vld [vmem:[#allocation4 + $0x18] sm:$0xff]
      %v3178 = vld [vmem:[#allocation4 + $0x20] sm:$0xff]
      %v3179 = vld [vmem:[#allocation4 + $0x28] sm:$0xff]
      %v3180 = vld [vmem:[#allocation4 + $0x30] sm:$0xff]
      %v3181 = vld [vmem:[#allocation4 + $0x38] sm:$0xff]
      %v3182 = vld [vmem:[#allocation4 + $0x40] sm:$0xff]
      %v3183 = vld [vmem:[#allocation4 + $0x48] sm:$0xff]
      %v3184 = vld [vmem:[#allocation4 + $0x50] sm:$0xff]
      %v3185 = vld [vmem:[#allocation4 + $0x58] sm:$0xff]
      %v3186 = vld [vmem:[#allocation4 + $0x60] sm:$0xff]
      %v3187 = vld [vmem:[#allocation4 + $0x68] sm:$0xff]
      %v3188 = vld [vmem:[#allocation4 + $0x70] sm:$0xff]
      %v3189 = vld [vmem:[#allocation4 + $0x78] sm:$0xff]
      %v3190 = vld [vmem:[#allocation4 + $0x80] sm:$0xff]
      %v3191 = vld [vmem:[#allocation4 + $0x88] sm:$0xff]
      %v3192 = vld [vmem:[#allocation4 + $0x90] sm:$0xff]
      %v3193 = vld [vmem:[#allocation4 + $0x98] sm:$0xff]
      %v3194 = vld [vmem:[#allocation4 + $0xa0] sm:$0xff]
      %v3195 = vld [vmem:[#allocation4 + $0xa8] sm:$0xff]
      %v3196 = vld [vmem:[#allocation4 + $0xb0] sm:$0xff]
      %v3197 = vld [vmem:[#allocation4 + $0xb8] sm:$0xff]
      %v3198 = vld [vmem:[#allocation4 + $0xc0] sm:$0xff]
      %v3199 = vld [vmem:[#allocation4 + $0xc8] sm:$0xff]
      %v3200 = vld [vmem:[#allocation4 + $0xd0] sm:$0xff]
      %v3201 = vld [vmem:[#allocation4 + $0xd8] sm:$0xff]
      %v3202 = vld [vmem:[#allocation4 + $0xe0] sm:$0xff]
      %v3203 = vld [vmem:[#allocation4 + $0xe8] sm:$0xff]
      %v3204 = vld [vmem:[#allocation4 + $0xf0] sm:$0xff]
      %v3205 = vld [vmem:[#allocation4 + $0xf8] sm:$0xff]
      %3207 = vset.pattern.permute.xlu0 0
      %3208 = vperm.xlu0 %3207, %v2822
      %v3209 = vpop.permute.xlu0 %3208
      %3212 = vset.pattern.permute.xlu0 0
      %3213 = vperm.xlu0 %3212, %v2824
      %v3214 = vpop.permute.xlu0 %3213
      %3217 = vset.pattern.permute.xlu0 0
      %3218 = vperm.xlu0 %3217, %v2826
      %v3219 = vpop.permute.xlu0 %3218
      %3222 = vset.pattern.permute.xlu0 0
      %3223 = vperm.xlu0 %3222, %v2828
      %v3224 = vpop.permute.xlu0 %3223
      %3227 = vset.pattern.permute.xlu0 0
      %3228 = vperm.xlu0 %3227, %v2830
      %v3229 = vpop.permute.xlu0 %3228
      %3232 = vset.pattern.permute.xlu0 0
      %3233 = vperm.xlu0 %3232, %v2832
      %v3234 = vpop.permute.xlu0 %3233
      %3237 = vset.pattern.permute.xlu0 0
      %3238 = vperm.xlu0 %3237, %v2834
      %v3239 = vpop.permute.xlu0 %3238
      %3242 = vset.pattern.permute.xlu0 0
      %3243 = vperm.xlu0 %3242, %v2836
      %v3244 = vpop.permute.xlu0 %3243
      %3247 = vset.pattern.permute.xlu0 0
      %3248 = vperm.xlu0 %3247, %v2838
      %v3249 = vpop.permute.xlu0 %3248
      %3252 = vset.pattern.permute.xlu0 0
      %3253 = vperm.xlu0 %3252, %v2840
      %v3254 = vpop.permute.xlu0 %3253
      %3257 = vset.pattern.permute.xlu0 0
      %3258 = vperm.xlu0 %3257, %v2842
      %v3259 = vpop.permute.xlu0 %3258
      %3262 = vset.pattern.permute.xlu0 0
      %3263 = vperm.xlu0 %3262, %v2844
      %v3264 = vpop.permute.xlu0 %3263
      %3267 = vset.pattern.permute.xlu0 0
      %3268 = vperm.xlu0 %3267, %v2846
      %v3269 = vpop.permute.xlu0 %3268
      %3272 = vset.pattern.permute.xlu0 0
      %3273 = vperm.xlu0 %3272, %v2848
      %v3274 = vpop.permute.xlu0 %3273
      %3277 = vset.pattern.permute.xlu0 0
      %3278 = vperm.xlu0 %3277, %v2850
      %v3279 = vpop.permute.xlu0 %3278
      %3282 = vset.pattern.permute.xlu0 0
      %3283 = vperm.xlu0 %3282, %v2852
      %v3284 = vpop.permute.xlu0 %3283
      %3287 = vset.pattern.permute.xlu0 0
      %3288 = vperm.xlu0 %3287, %v2854
      %v3289 = vpop.permute.xlu0 %3288
      %3292 = vset.pattern.permute.xlu0 0
      %3293 = vperm.xlu0 %3292, %v2856
      %v3294 = vpop.permute.xlu0 %3293
      %3297 = vset.pattern.permute.xlu0 0
      %3298 = vperm.xlu0 %3297, %v2858
      %v3299 = vpop.permute.xlu0 %3298
      %3302 = vset.pattern.permute.xlu0 0
      %3303 = vperm.xlu0 %3302, %v2860
      %v3304 = vpop.permute.xlu0 %3303
      %3307 = vset.pattern.permute.xlu0 0
      %3308 = vperm.xlu0 %3307, %v2862
      %v3309 = vpop.permute.xlu0 %3308
      %3312 = vset.pattern.permute.xlu0 0
      %3313 = vperm.xlu0 %3312, %v2864
      %v3314 = vpop.permute.xlu0 %3313
      %3317 = vset.pattern.permute.xlu0 0
      %3318 = vperm.xlu0 %3317, %v2866
      %v3319 = vpop.permute.xlu0 %3318
      %3322 = vset.pattern.permute.xlu0 0
      %3323 = vperm.xlu0 %3322, %v2868
      %v3324 = vpop.permute.xlu0 %3323
      %3327 = vset.pattern.permute.xlu0 0
      %3328 = vperm.xlu0 %3327, %v2870
      %v3329 = vpop.permute.xlu0 %3328
      %3332 = vset.pattern.permute.xlu0 0
      %3333 = vperm.xlu0 %3332, %v2872
      %v3334 = vpop.permute.xlu0 %3333
      %3337 = vset.pattern.permute.xlu0 0
      %3338 = vperm.xlu0 %3337, %v2874
      %v3339 = vpop.permute.xlu0 %3338
      %3342 = vset.pattern.permute.xlu0 0
      %3343 = vperm.xlu0 %3342, %v2876
      %v3344 = vpop.permute.xlu0 %3343
      %3347 = vset.pattern.permute.xlu0 0
      %3348 = vperm.xlu0 %3347, %v2878
      %v3349 = vpop.permute.xlu0 %3348
      %3352 = vset.pattern.permute.xlu0 0
      %3353 = vperm.xlu0 %3352, %v2880
      %v3354 = vpop.permute.xlu0 %3353
      %3357 = vset.pattern.permute.xlu0 0
      %3358 = vperm.xlu0 %3357, %v2882
      %v3359 = vpop.permute.xlu0 %3358
      %3362 = vset.pattern.permute.xlu0 0
      %3363 = vperm.xlu0 %3362, %v2884
      %v3364 = vpop.permute.xlu0 %3363
      %v3366 = vmul.f32 %v3174, %v3209
      %v3367 = vmul.f32 %v3175, %v3214
      %v3368 = vmul.f32 %v3176, %v3219
      %v3369 = vmul.f32 %v3177, %v3224
      %v3370 = vmul.f32 %v3178, %v3229
      %v3371 = vmul.f32 %v3179, %v3234
      %v3372 = vmul.f32 %v3180, %v3239
      %v3373 = vmul.f32 %v3181, %v3244
      %v3374 = vmul.f32 %v3182, %v3249
      %v3375 = vmul.f32 %v3183, %v3254
      %v3376 = vmul.f32 %v3184, %v3259
      %v3377 = vmul.f32 %v3185, %v3264
      %v3378 = vmul.f32 %v3186, %v3269
      %v3379 = vmul.f32 %v3187, %v3274
      %v3380 = vmul.f32 %v3188, %v3279
      %v3381 = vmul.f32 %v3189, %v3284
      %v3382 = vmul.f32 %v3190, %v3289
      %v3383 = vmul.f32 %v3191, %v3294
      %v3384 = vmul.f32 %v3192, %v3299
      %v3385 = vmul.f32 %v3193, %v3304
      %v3386 = vmul.f32 %v3194, %v3309
      %v3387 = vmul.f32 %v3195, %v3314
      %v3388 = vmul.f32 %v3196, %v3319
      %v3389 = vmul.f32 %v3197, %v3324
      %v3390 = vmul.f32 %v3198, %v3329
      %v3391 = vmul.f32 %v3199, %v3334
      %v3392 = vmul.f32 %v3200, %v3339
      %v3393 = vmul.f32 %v3201, %v3344
      %v3394 = vmul.f32 %v3202, %v3349
      %v3395 = vmul.f32 %v3203, %v3354
      %v3396 = vmul.f32 %v3204, %v3359
      %v3397 = vmul.f32 %v3205, %v3364
      %v3398 = vpack.c.bf16 %v2665, %v2661
      %v3399 = vpack.c.bf16 %v2666, %v2662
      %v3400 = vpack.c.bf16 %v2667, %v2663
      %v3401 = vpack.c.bf16 %v2668, %v2664
      %v3402 = vpack.c.bf16 %v2673, %v2669
      %v3403 = vpack.c.bf16 %v2674, %v2670
      %v3404 = vpack.c.bf16 %v2675, %v2671
      %v3405 = vpack.c.bf16 %v2676, %v2672
      %v3406 = vpack.c.bf16 %v2681, %v2677
      %v3407 = vpack.c.bf16 %v2682, %v2678
      %v3408 = vpack.c.bf16 %v2683, %v2679
      %v3409 = vpack.c.bf16 %v2684, %v2680
      %v3410 = vpack.c.bf16 %v2689, %v2685
      %v3411 = vpack.c.bf16 %v2690, %v2686
      %v3412 = vpack.c.bf16 %v2691, %v2687
      %v3413 = vpack.c.bf16 %v2692, %v2688
      %v3414 = vpack.c.bf16 %v2697, %v2693
      %v3415 = vpack.c.bf16 %v2698, %v2694
      %v3416 = vpack.c.bf16 %v2699, %v2695
      %v3417 = vpack.c.bf16 %v2700, %v2696
      %v3418 = vpack.c.bf16 %v2705, %v2701
      %v3419 = vpack.c.bf16 %v2706, %v2702
      %v3420 = vpack.c.bf16 %v2707, %v2703
      %v3421 = vpack.c.bf16 %v2708, %v2704
      %v3422 = vpack.c.bf16 %v2713, %v2709
      %v3423 = vpack.c.bf16 %v2714, %v2710
      %v3424 = vpack.c.bf16 %v2715, %v2711
      %v3425 = vpack.c.bf16 %v2716, %v2712
      %v3426 = vpack.c.bf16 %v2721, %v2717
      %v3427 = vpack.c.bf16 %v2722, %v2718
      %v3428 = vpack.c.bf16 %v2723, %v2719
      %v3429 = vpack.c.bf16 %v2724, %v2720
      %v3430 = vpack.c.bf16 %v2729, %v2725
      %v3431 = vpack.c.bf16 %v2730, %v2726
      %v3432 = vpack.c.bf16 %v2731, %v2727
      %v3433 = vpack.c.bf16 %v2732, %v2728
      %v3434 = vpack.c.bf16 %v2737, %v2733
      %v3435 = vpack.c.bf16 %v2738, %v2734
      %v3436 = vpack.c.bf16 %v2739, %v2735
      %v3437 = vpack.c.bf16 %v2740, %v2736
      %v3438 = vpack.c.bf16 %v2745, %v2741
      %v3439 = vpack.c.bf16 %v2746, %v2742
      %v3440 = vpack.c.bf16 %v2747, %v2743
      %v3441 = vpack.c.bf16 %v2748, %v2744
      %v3442 = vpack.c.bf16 %v2753, %v2749
      %v3443 = vpack.c.bf16 %v2754, %v2750
      %v3444 = vpack.c.bf16 %v2755, %v2751
      %v3445 = vpack.c.bf16 %v2756, %v2752
      %v3446 = vpack.c.bf16 %v2761, %v2757
      %v3447 = vpack.c.bf16 %v2762, %v2758
      %v3448 = vpack.c.bf16 %v2763, %v2759
      %v3449 = vpack.c.bf16 %v2764, %v2760
      %v3450 = vpack.c.bf16 %v2769, %v2765
      %v3451 = vpack.c.bf16 %v2770, %v2766
      %v3452 = vpack.c.bf16 %v2771, %v2767
      %v3453 = vpack.c.bf16 %v2772, %v2768
      %v3454 = vpack.c.bf16 %v2777, %v2773
      %v3455 = vpack.c.bf16 %v2778, %v2774
      %v3456 = vpack.c.bf16 %v2779, %v2775
      %v3457 = vpack.c.bf16 %v2780, %v2776
      %v3458 = vpack.c.bf16 %v2785, %v2781
      %v3459 = vpack.c.bf16 %v2786, %v2782
      %v3460 = vpack.c.bf16 %v2787, %v2783
      %v3461 = vpack.c.bf16 %v2788, %v2784
      %v3462 = vld [vmem:[%s276] sm:$0xf]
      %v3463 = vld [vmem:[%s276 + $0x4] sm:$0xf]
      %v3464 = vld [vmem:[%s276 + $0x8] sm:$0xf]
      %v3465 = vld [vmem:[%s276 + $0xc] sm:$0xf]
      %v3466 = vld [vmem:[%s276 + $0x10] sm:$0xf]
      %v3467 = vld [vmem:[%s276 + $0x14] sm:$0xf]
      %v3468 = vld [vmem:[%s276 + $0x18] sm:$0xf]
      %v3469 = vld [vmem:[%s276 + $0x1c] sm:$0xf]
      %v3470 = vld [vmem:[%s276 + $0x20] sm:$0xf]
      %v3471 = vld [vmem:[%s276 + $0x24] sm:$0xf]
      %v3472 = vld [vmem:[%s276 + $0x28] sm:$0xf]
      %v3473 = vld [vmem:[%s276 + $0x2c] sm:$0xf]
      %v3474 = vld [vmem:[%s276 + $0x30] sm:$0xf]
      %v3475 = vld [vmem:[%s276 + $0x34] sm:$0xf]
      %v3476 = vld [vmem:[%s276 + $0x38] sm:$0xf]
      %v3477 = vld [vmem:[%s276 + $0x3c] sm:$0xf]
      %v3478 = vld [vmem:[%s276 + $0x40] sm:$0xf]
      %v3479 = vld [vmem:[%s276 + $0x44] sm:$0xf]
      %v3480 = vld [vmem:[%s276 + $0x48] sm:$0xf]
      %v3481 = vld [vmem:[%s276 + $0x4c] sm:$0xf]
      %v3482 = vld [vmem:[%s276 + $0x50] sm:$0xf]
      %v3483 = vld [vmem:[%s276 + $0x54] sm:$0xf]
      %v3484 = vld [vmem:[%s276 + $0x58] sm:$0xf]
      %v3485 = vld [vmem:[%s276 + $0x5c] sm:$0xf]
      %v3486 = vld [vmem:[%s276 + $0x60] sm:$0xf]
      %v3487 = vld [vmem:[%s276 + $0x64] sm:$0xf]
      %v3488 = vld [vmem:[%s276 + $0x68] sm:$0xf]
      %v3489 = vld [vmem:[%s276 + $0x6c] sm:$0xf]
      %v3490 = vld [vmem:[%s276 + $0x70] sm:$0xf]
      %v3491 = vld [vmem:[%s276 + $0x74] sm:$0xf]
      %v3492 = vld [vmem:[%s276 + $0x78] sm:$0xf]
      %v3493 = vld [vmem:[%s276 + $0x7c] sm:$0xf]
      %v3494 = vld [vmem:[%s276 + $0x80] sm:$0xf]
      %v3495 = vld [vmem:[%s276 + $0x84] sm:$0xf]
      %v3496 = vld [vmem:[%s276 + $0x88] sm:$0xf]
      %v3497 = vld [vmem:[%s276 + $0x8c] sm:$0xf]
      %v3498 = vld [vmem:[%s276 + $0x90] sm:$0xf]
      %v3499 = vld [vmem:[%s276 + $0x94] sm:$0xf]
      %v3500 = vld [vmem:[%s276 + $0x98] sm:$0xf]
      %v3501 = vld [vmem:[%s276 + $0x9c] sm:$0xf]
      %v3502 = vld [vmem:[%s276 + $0xa0] sm:$0xf]
      %v3503 = vld [vmem:[%s276 + $0xa4] sm:$0xf]
      %v3504 = vld [vmem:[%s276 + $0xa8] sm:$0xf]
      %v3505 = vld [vmem:[%s276 + $0xac] sm:$0xf]
      %v3506 = vld [vmem:[%s276 + $0xb0] sm:$0xf]
      %v3507 = vld [vmem:[%s276 + $0xb4] sm:$0xf]
      %v3508 = vld [vmem:[%s276 + $0xb8] sm:$0xf]
      %v3509 = vld [vmem:[%s276 + $0xbc] sm:$0xf]
      %v3510 = vld [vmem:[%s276 + $0xc0] sm:$0xf]
      %v3511 = vld [vmem:[%s276 + $0xc4] sm:$0xf]
      %v3512 = vld [vmem:[%s276 + $0xc8] sm:$0xf]
      %v3513 = vld [vmem:[%s276 + $0xcc] sm:$0xf]
      %v3514 = vld [vmem:[%s276 + $0xd0] sm:$0xf]
      %v3515 = vld [vmem:[%s276 + $0xd4] sm:$0xf]
      %v3516 = vld [vmem:[%s276 + $0xd8] sm:$0xf]
      %v3517 = vld [vmem:[%s276 + $0xdc] sm:$0xf]
      %v3518 = vld [vmem:[%s276 + $0xe0] sm:$0xf]
      %v3519 = vld [vmem:[%s276 + $0xe4] sm:$0xf]
      %v3520 = vld [vmem:[%s276 + $0xe8] sm:$0xf]
      %v3521 = vld [vmem:[%s276 + $0xec] sm:$0xf]
      %v3522 = vld [vmem:[%s276 + $0xf0] sm:$0xf]
      %v3523 = vld [vmem:[%s276 + $0xf4] sm:$0xf]
      %v3524 = vld [vmem:[%s276 + $0xf8] sm:$0xf]
      %v3525 = vld [vmem:[%s276 + $0xfc] sm:$0xf]
      %v3590 = vunpack.c.l.b16 %v3462
      %v3591 = vunpack.c.l.b16 %v3463
      %v3592 = vunpack.c.l.b16 %v3464
      %v3593 = vunpack.c.l.b16 %v3465
      %v3594 = vunpack.c.l.b16 %v3466
      %v3595 = vunpack.c.l.b16 %v3467
      %v3596 = vunpack.c.l.b16 %v3468
      %v3597 = vunpack.c.l.b16 %v3469
      %v3598 = vunpack.c.l.b16 %v3470
      %v3599 = vunpack.c.l.b16 %v3471
      %v3600 = vunpack.c.l.b16 %v3472
      %v3601 = vunpack.c.l.b16 %v3473
      %v3602 = vunpack.c.l.b16 %v3474
      %v3603 = vunpack.c.l.b16 %v3475
      %v3604 = vunpack.c.l.b16 %v3476
      %v3605 = vunpack.c.l.b16 %v3477
      %v3606 = vunpack.c.l.b16 %v3478
      %v3607 = vunpack.c.l.b16 %v3479
      %v3608 = vunpack.c.l.b16 %v3480
      %v3609 = vunpack.c.l.b16 %v3481
      %v3610 = vunpack.c.l.b16 %v3482
      %v3611 = vunpack.c.l.b16 %v3483
      %v3612 = vunpack.c.l.b16 %v3484
      %v3613 = vunpack.c.l.b16 %v3485
      %v3614 = vunpack.c.l.b16 %v3486
      %v3615 = vunpack.c.l.b16 %v3487
      %v3616 = vunpack.c.l.b16 %v3488
      %v3617 = vunpack.c.l.b16 %v3489
      %v3618 = vunpack.c.l.b16 %v3490
      %v3619 = vunpack.c.l.b16 %v3491
      %v3620 = vunpack.c.l.b16 %v3492
      %v3621 = vunpack.c.l.b16 %v3493
      %v3622 = vunpack.c.l.b16 %v3494
      %v3623 = vunpack.c.l.b16 %v3495
      %v3624 = vunpack.c.l.b16 %v3496
      %v3625 = vunpack.c.l.b16 %v3497
      %v3626 = vunpack.c.l.b16 %v3498
      %v3627 = vunpack.c.l.b16 %v3499
      %v3628 = vunpack.c.l.b16 %v3500
      %v3629 = vunpack.c.l.b16 %v3501
      %v3630 = vunpack.c.l.b16 %v3502
      %v3631 = vunpack.c.l.b16 %v3503
      %v3632 = vunpack.c.l.b16 %v3504
      %v3633 = vunpack.c.l.b16 %v3505
      %v3634 = vunpack.c.l.b16 %v3506
      %v3635 = vunpack.c.l.b16 %v3507
      %v3636 = vunpack.c.l.b16 %v3508
      %v3637 = vunpack.c.l.b16 %v3509
      %v3638 = vunpack.c.l.b16 %v3510
      %v3639 = vunpack.c.l.b16 %v3511
      %v3640 = vunpack.c.l.b16 %v3512
      %v3641 = vunpack.c.l.b16 %v3513
      %v3642 = vunpack.c.l.b16 %v3514
      %v3643 = vunpack.c.l.b16 %v3515
      %v3644 = vunpack.c.l.b16 %v3516
      %v3645 = vunpack.c.l.b16 %v3517
      %v3646 = vunpack.c.l.b16 %v3518
      %v3647 = vunpack.c.l.b16 %v3519
      %v3648 = vunpack.c.l.b16 %v3520
      %v3649 = vunpack.c.l.b16 %v3521
      %v3650 = vunpack.c.l.b16 %v3522
      %v3651 = vunpack.c.l.b16 %v3523
      %v3652 = vunpack.c.l.b16 %v3524
      %v3653 = vunpack.c.l.b16 %v3525
      %v3654 = vpack.c.b16 %v3591, %v3590
      %v3655 = vpack.c.b16 %v3593, %v3592
      %v3656 = vpack.c.b16 %v3595, %v3594
      %v3657 = vpack.c.b16 %v3597, %v3596
      %v3658 = vpack.c.b16 %v3599, %v3598
      %v3659 = vpack.c.b16 %v3601, %v3600
      %v3660 = vpack.c.b16 %v3603, %v3602
      %v3661 = vpack.c.b16 %v3605, %v3604
      %v3662 = vpack.c.b16 %v3607, %v3606
      %v3663 = vpack.c.b16 %v3609, %v3608
      %v3664 = vpack.c.b16 %v3611, %v3610
      %v3665 = vpack.c.b16 %v3613, %v3612
      %v3666 = vpack.c.b16 %v3615, %v3614
      %v3667 = vpack.c.b16 %v3617, %v3616
      %v3668 = vpack.c.b16 %v3619, %v3618
      %v3669 = vpack.c.b16 %v3621, %v3620
      %v3670 = vpack.c.b16 %v3623, %v3622
      %v3671 = vpack.c.b16 %v3625, %v3624
      %v3672 = vpack.c.b16 %v3627, %v3626
      %v3673 = vpack.c.b16 %v3629, %v3628
      %v3674 = vpack.c.b16 %v3631, %v3630
      %v3675 = vpack.c.b16 %v3633, %v3632
      %v3676 = vpack.c.b16 %v3635, %v3634
      %v3677 = vpack.c.b16 %v3637, %v3636
      %v3678 = vpack.c.b16 %v3639, %v3638
      %v3679 = vpack.c.b16 %v3641, %v3640
      %v3680 = vpack.c.b16 %v3643, %v3642
      %v3681 = vpack.c.b16 %v3645, %v3644
      %v3682 = vpack.c.b16 %v3647, %v3646
      %v3683 = vpack.c.b16 %v3649, %v3648
      %v3684 = vpack.c.b16 %v3651, %v3650
      %v3685 = vpack.c.b16 %v3653, %v3652
      %3718 = vmatprep.subr.bf16.mxu0 0
      %3719 = vmatpush1.bf16.msra.mxu0 %v3654
      %3720 = vmatprep.subr.bf16.mxu0 0
      %3721 = vmatpush1.bf16.msra.mxu0 %v3655
      %3722 = vmatprep.subr.bf16.mxu0 0
      %3723 = vmatpush1.bf16.msra.mxu0 %v3656
      %3724 = vmatprep.subr.bf16.mxu0 0
      %3725 = vmatpush1.bf16.msra.mxu0 %v3657
      %3726 = vmatprep.subr.bf16.mxu0 0
      %3727 = vmatpush1.bf16.msra.mxu0 %v3658
      %3728 = vmatprep.subr.bf16.mxu0 0
      %3729 = vmatpush1.bf16.msra.mxu0 %v3659
      %3730 = vmatprep.subr.bf16.mxu0 0
      %3731 = vmatpush1.bf16.msra.mxu0 %v3660
      %3732 = vmatprep.subr.bf16.mxu0 0
      %3733 = vmatpush1.bf16.msra.mxu0 %v3661
      %3734 = vmatprep.subr.bf16.mxu0 0
      %3735 = vmatpush1.bf16.msra.mxu0 %v3662
      %3736 = vmatprep.subr.bf16.mxu0 0
      %3737 = vmatpush1.bf16.msra.mxu0 %v3663
      %3738 = vmatprep.subr.bf16.mxu0 0
      %3739 = vmatpush1.bf16.msra.mxu0 %v3664
      %3740 = vmatprep.subr.bf16.mxu0 0
      %3741 = vmatpush1.bf16.msra.mxu0 %v3665
      %3742 = vmatprep.subr.bf16.mxu0 0
      %3743 = vmatpush1.bf16.msra.mxu0 %v3666
      %3744 = vmatprep.subr.bf16.mxu0 0
      %3745 = vmatpush1.bf16.msra.mxu0 %v3667
      %3746 = vmatprep.subr.bf16.mxu0 0
      %3747 = vmatpush1.bf16.msra.mxu0 %v3668
      %3748 = vmatprep.subr.bf16.mxu0 0
      %3749 = vmatpush1.bf16.msra.mxu0 %v3669
      %3750 = vmatprep.mubr.bf16.mxu0 %v3399
      %3751 = vmatmul.mubr.bf16.gmra.mrb[0].mxu0 %v3398
      %v3752 = vpop.f32.mrb[0].mxu0
      %v3753 = vadd.f32 0.0, %v3752
      %v3754 = vpop.f32.mrb[0].mxu0
      %v3755 = vpop.f32.mrb[0].mxu0
      %v3756 = vadd.f32 0.0, %v3755
      %v3757 = vpop.f32.mrb[0].mxu0
      %3758 = vmatprep.mubr.bf16.mxu0 %v3403
      %3759 = vmatmul.mubr.bf16.gmra.mrb[0].mxu0 %v3402
      %v3760 = vpop.f32.mrb[0].mxu0
      %v3761 = vadd.f32 0.0, %v3760
      %v3762 = vpop.f32.mrb[0].mxu0
      %v3763 = vpop.f32.mrb[0].mxu0
      %v3764 = vadd.f32 0.0, %v3763
      %v3765 = vpop.f32.mrb[0].mxu0
      %3766 = vmatprep.mubr.bf16.mxu0 %v3407
      %3767 = vmatmul.mubr.bf16.gmra.mrb[0].mxu0 %v3406
      %v3768 = vpop.f32.mrb[0].mxu0
      %v3769 = vadd.f32 0.0, %v3768
      %v3770 = vpop.f32.mrb[0].mxu0
      %v3771 = vpop.f32.mrb[0].mxu0
      %v3772 = vadd.f32 0.0, %v3771
      %v3773 = vpop.f32.mrb[0].mxu0
      %3774 = vmatprep.mubr.bf16.mxu0 %v3411
      %3775 = vmatmul.mubr.bf16.gmra.mrb[0].mxu0 %v3410
      %v3776 = vpop.f32.mrb[0].mxu0
      %v3777 = vadd.f32 0.0, %v3776
      %v3778 = vpop.f32.mrb[0].mxu0
      %v3779 = vpop.f32.mrb[0].mxu0
      %v3780 = vadd.f32 0.0, %v3779
      %v3781 = vpop.f32.mrb[0].mxu0
      %3782 = vmatprep.mubr.bf16.mxu0 %v3415
      %3783 = vmatmul.mubr.bf16.gmra.mrb[0].mxu0 %v3414
      %v3784 = vpop.f32.mrb[0].mxu0
      %v3785 = vadd.f32 0.0, %v3784
      %v3786 = vpop.f32.mrb[0].mxu0
      %v3787 = vpop.f32.mrb[0].mxu0
      %v3788 = vadd.f32 0.0, %v3787
      %v3789 = vpop.f32.mrb[0].mxu0
      %3790 = vmatprep.mubr.bf16.mxu0 %v3419
      %3791 = vmatmul.mubr.bf16.gmra.mrb[0].mxu0 %v3418
      %v3792 = vpop.f32.mrb[0].mxu0
      %v3793 = vadd.f32 0.0, %v3792
      %v3794 = vpop.f32.mrb[0].mxu0
      %v3795 = vpop.f32.mrb[0].mxu0
      %v3796 = vadd.f32 0.0, %v3795
      %v3797 = vpop.f32.mrb[0].mxu0
      %3798 = vmatprep.mubr.bf16.mxu0 %v3423
      %3799 = vmatmul.mubr.bf16.gmra.mrb[0].mxu0 %v3422
      %v3800 = vpop.f32.mrb[0].mxu0
      %v3801 = vadd.f32 0.0, %v3800
      %v3802 = vpop.f32.mrb[0].mxu0
      %v3803 = vpop.f32.mrb[0].mxu0
      %v3804 = vadd.f32 0.0, %v3803
      %v3805 = vpop.f32.mrb[0].mxu0
      %3806 = vmatprep.mubr.bf16.mxu0 %v3427
      %3807 = vmatmul.mubr.bf16.gmra.mrb[0].mxu0 %v3426
      %v3808 = vpop.f32.mrb[0].mxu0
      %v3809 = vadd.f32 0.0, %v3808
      %v3810 = vpop.f32.mrb[0].mxu0
      %v3811 = vpop.f32.mrb[0].mxu0
      %v3812 = vadd.f32 0.0, %v3811
      %v3813 = vpop.f32.mrb[0].mxu0
      %3814 = vmatprep.mubr.bf16.mxu0 %v3431
      %3815 = vmatmul.mubr.bf16.gmra.mrb[0].mxu0 %v3430
      %v3816 = vpop.f32.mrb[0].mxu0
      %v3817 = vadd.f32 0.0, %v3816
      %v3818 = vpop.f32.mrb[0].mxu0
      %v3819 = vpop.f32.mrb[0].mxu0
      %v3820 = vadd.f32 0.0, %v3819
      %v3821 = vpop.f32.mrb[0].mxu0
      %3822 = vmatprep.mubr.bf16.mxu0 %v3435
      %3823 = vmatmul.mubr.bf16.gmra.mrb[0].mxu0 %v3434
      %v3824 = vpop.f32.mrb[0].mxu0
      %v3825 = vadd.f32 0.0, %v3824
      %v3826 = vpop.f32.mrb[0].mxu0
      %v3827 = vpop.f32.mrb[0].mxu0
      %v3828 = vadd.f32 0.0, %v3827
      %v3829 = vpop.f32.mrb[0].mxu0
      %3830 = vmatprep.mubr.bf16.mxu0 %v3439
      %3831 = vmatmul.mubr.bf16.gmra.mrb[0].mxu0 %v3438
      %v3832 = vpop.f32.mrb[0].mxu0
      %v3833 = vadd.f32 0.0, %v3832
      %v3834 = vpop.f32.mrb[0].mxu0
      %v3835 = vpop.f32.mrb[0].mxu0
      %v3836 = vadd.f32 0.0, %v3835
      %v3837 = vpop.f32.mrb[0].mxu0
      %3838 = vmatprep.mubr.bf16.mxu0 %v3443
      %3839 = vmatmul.mubr.bf16.gmra.mrb[0].mxu0 %v3442
      %v3840 = vpop.f32.mrb[0].mxu0
      %v3841 = vadd.f32 0.0, %v3840
      %v3842 = vpop.f32.mrb[0].mxu0
      %v3843 = vpop.f32.mrb[0].mxu0
      %v3844 = vadd.f32 0.0, %v3843
      %v3845 = vpop.f32.mrb[0].mxu0
      %3846 = vmatprep.mubr.bf16.mxu0 %v3447
      %3847 = vmatmul.mubr.bf16.gmra.mrb[0].mxu0 %v3446
      %v3848 = vpop.f32.mrb[0].mxu0
      %v3849 = vadd.f32 0.0, %v3848
      %v3850 = vpop.f32.mrb[0].mxu0
      %v3851 = vpop.f32.mrb[0].mxu0
      %v3852 = vadd.f32 0.0, %v3851
      %v3853 = vpop.f32.mrb[0].mxu0
      %3854 = vmatprep.mubr.bf16.mxu0 %v3451
      %3855 = vmatmul.mubr.bf16.gmra.mrb[0].mxu0 %v3450
      %v3856 = vpop.f32.mrb[0].mxu0
      %v3857 = vadd.f32 0.0, %v3856
      %v3858 = vpop.f32.mrb[0].mxu0
      %v3859 = vpop.f32.mrb[0].mxu0
      %v3860 = vadd.f32 0.0, %v3859
      %v3861 = vpop.f32.mrb[0].mxu0
      %3862 = vmatprep.mubr.bf16.mxu0 %v3455
      %3863 = vmatmul.mubr.bf16.gmra.mrb[0].mxu0 %v3454
      %v3864 = vpop.f32.mrb[0].mxu0
      %v3865 = vadd.f32 0.0, %v3864
      %v3866 = vpop.f32.mrb[0].mxu0
      %v3867 = vpop.f32.mrb[0].mxu0
      %v3868 = vadd.f32 0.0, %v3867
      %v3869 = vpop.f32.mrb[0].mxu0
      %3870 = vmatprep.mubr.bf16.mxu0 %v3459
      %3871 = vmatmul.mubr.bf16.gmra.mrb[0].mxu0 %v3458
      %v3872 = vpop.f32.mrb[0].mxu0
      %v3873 = vadd.f32 0.0, %v3872
      %v3874 = vpop.f32.mrb[0].mxu0
      %v3875 = vpop.f32.mrb[0].mxu0
      %v3876 = vadd.f32 0.0, %v3875
      %v3877 = vpop.f32.mrb[0].mxu0
      %3878 = vdwg.mxu0
      %3879 = vmatprep.subr.bf16.mxu0 0
      %3880 = vmatpush1.bf16.msra.mxu0 %v3670
      %3881 = vmatprep.subr.bf16.mxu0 0
      %3882 = vmatpush1.bf16.msra.mxu0 %v3671
      %3883 = vmatprep.subr.bf16.mxu0 0
      %3884 = vmatpush1.bf16.msra.mxu0 %v3672
      %3885 = vmatprep.subr.bf16.mxu0 0
      %3886 = vmatpush1.bf16.msra.mxu0 %v3673
      %3887 = vmatprep.subr.bf16.mxu0 0
      %3888 = vmatpush1.bf16.msra.mxu0 %v3674
      %3889 = vmatprep.subr.bf16.mxu0 0
      %3890 = vmatpush1.bf16.msra.mxu0 %v3675
      %3891 = vmatprep.subr.bf16.mxu0 0
      %3892 = vmatpush1.bf16.msra.mxu0 %v3676
      %3893 = vmatprep.subr.bf16.mxu0 0
      %3894 = vmatpush1.bf16.msra.mxu0 %v3677
      %3895 = vmatprep.subr.bf16.mxu0 0
      %3896 = vmatpush1.bf16.msra.mxu0 %v3678
      %3897 = vmatprep.subr.bf16.mxu0 0
      %3898 = vmatpush1.bf16.msra.mxu0 %v3679
      %3899 = vmatprep.subr.bf16.mxu0 0
      %3900 = vmatpush1.bf16.msra.mxu0 %v3680
      %3901 = vmatprep.subr.bf16.mxu0 0
      %3902 = vmatpush1.bf16.msra.mxu0 %v3681
      %3903 = vmatprep.subr.bf16.mxu0 0
      %3904 = vmatpush1.bf16.msra.mxu0 %v3682
      %3905 = vmatprep.subr.bf16.mxu0 0
      %3906 = vmatpush1.bf16.msra.mxu0 %v3683
      %3907 = vmatprep.subr.bf16.mxu0 0
      %3908 = vmatpush1.bf16.msra.mxu0 %v3684
      %3909 = vmatprep.subr.bf16.mxu0 0
      %3910 = vmatpush1.bf16.msra.mxu0 %v3685
      %3911 = vmatprep.mubr.bf16.mxu0 %v3401
      %3912 = vmatmul.mubr.bf16.gmra.mrb[0].mxu0 %v3400
      %v3913 = vpop.f32.mrb[0].mxu0
      %v3914 = vadd.f32 %v3753, %v3913
      %v3915 = vpop.f32.mrb[0].mxu0
      %v3916 = vpop.f32.mrb[0].mxu0
      %v3917 = vadd.f32 %v3756, %v3916
      %v3918 = vpop.f32.mrb[0].mxu0
      %3919 = vmatprep.mubr.bf16.mxu0 %v3405
      %3920 = vmatmul.mubr.bf16.gmra.mrb[0].mxu0 %v3404
      %v3921 = vpop.f32.mrb[0].mxu0
      %v3922 = vadd.f32 %v3761, %v3921
      %v3923 = vpop.f32.mrb[0].mxu0
      %v3924 = vpop.f32.mrb[0].mxu0
      %v3925 = vadd.f32 %v3764, %v3924
      %v3926 = vpop.f32.mrb[0].mxu0
      %3927 = vmatprep.mubr.bf16.mxu0 %v3409
      %3928 = vmatmul.mubr.bf16.gmra.mrb[0].mxu0 %v3408
      %v3929 = vpop.f32.mrb[0].mxu0
      %v3930 = vadd.f32 %v3769, %v3929
      %v3931 = vpop.f32.mrb[0].mxu0
      %v3932 = vpop.f32.mrb[0].mxu0
      %v3933 = vadd.f32 %v3772, %v3932
      %v3934 = vpop.f32.mrb[0].mxu0
      %3935 = vmatprep.mubr.bf16.mxu0 %v3413
      %3936 = vmatmul.mubr.bf16.gmra.mrb[0].mxu0 %v3412
      %v3937 = vpop.f32.mrb[0].mxu0
      %v3938 = vadd.f32 %v3777, %v3937
      %v3939 = vpop.f32.mrb[0].mxu0
      %v3940 = vpop.f32.mrb[0].mxu0
      %v3941 = vadd.f32 %v3780, %v3940
      %v3942 = vpop.f32.mrb[0].mxu0
      %3943 = vmatprep.mubr.bf16.mxu0 %v3417
      %3944 = vmatmul.mubr.bf16.gmra.mrb[0].mxu0 %v3416
      %v3945 = vpop.f32.mrb[0].mxu0
      %v3946 = vadd.f32 %v3785, %v3945
      %v3947 = vpop.f32.mrb[0].mxu0
      %v3948 = vpop.f32.mrb[0].mxu0
      %v3949 = vadd.f32 %v3788, %v3948
      %v3950 = vpop.f32.mrb[0].mxu0
      %3951 = vmatprep.mubr.bf16.mxu0 %v3421
      %3952 = vmatmul.mubr.bf16.gmra.mrb[0].mxu0 %v3420
      %v3953 = vpop.f32.mrb[0].mxu0
      %v3954 = vadd.f32 %v3793, %v3953
      %v3955 = vpop.f32.mrb[0].mxu0
      %v3956 = vpop.f32.mrb[0].mxu0
      %v3957 = vadd.f32 %v3796, %v3956
      %v3958 = vpop.f32.mrb[0].mxu0
      %3959 = vmatprep.mubr.bf16.mxu0 %v3425
      %3960 = vmatmul.mubr.bf16.gmra.mrb[0].mxu0 %v3424
      %v3961 = vpop.f32.mrb[0].mxu0
      %v3962 = vadd.f32 %v3801, %v3961
      %v3963 = vpop.f32.mrb[0].mxu0
      %v3964 = vpop.f32.mrb[0].mxu0
      %v3965 = vadd.f32 %v3804, %v3964
      %v3966 = vpop.f32.mrb[0].mxu0
      %3967 = vmatprep.mubr.bf16.mxu0 %v3429
      %3968 = vmatmul.mubr.bf16.gmra.mrb[0].mxu0 %v3428
      %v3969 = vpop.f32.mrb[0].mxu0
      %v3970 = vadd.f32 %v3809, %v3969
      %v3971 = vpop.f32.mrb[0].mxu0
      %v3972 = vpop.f32.mrb[0].mxu0
      %v3973 = vadd.f32 %v3812, %v3972
      %v3974 = vpop.f32.mrb[0].mxu0
      %3975 = vmatprep.mubr.bf16.mxu0 %v3433
      %3976 = vmatmul.mubr.bf16.gmra.mrb[0].mxu0 %v3432
      %v3977 = vpop.f32.mrb[0].mxu0
      %v3978 = vadd.f32 %v3817, %v3977
      %v3979 = vpop.f32.mrb[0].mxu0
      %v3980 = vpop.f32.mrb[0].mxu0
      %v3981 = vadd.f32 %v3820, %v3980
      %v3982 = vpop.f32.mrb[0].mxu0
      %3983 = vmatprep.mubr.bf16.mxu0 %v3437
      %3984 = vmatmul.mubr.bf16.gmra.mrb[0].mxu0 %v3436
      %v3985 = vpop.f32.mrb[0].mxu0
      %v3986 = vadd.f32 %v3825, %v3985
      %v3987 = vpop.f32.mrb[0].mxu0
      %v3988 = vpop.f32.mrb[0].mxu0
      %v3989 = vadd.f32 %v3828, %v3988
      %v3990 = vpop.f32.mrb[0].mxu0
      %3991 = vmatprep.mubr.bf16.mxu0 %v3441
      %3992 = vmatmul.mubr.bf16.gmra.mrb[0].mxu0 %v3440
      %v3993 = vpop.f32.mrb[0].mxu0
      %v3994 = vadd.f32 %v3833, %v3993
      %v3995 = vpop.f32.mrb[0].mxu0
      %v3996 = vpop.f32.mrb[0].mxu0
      %v3997 = vadd.f32 %v3836, %v3996
      %v3998 = vpop.f32.mrb[0].mxu0
      %3999 = vmatprep.mubr.bf16.mxu0 %v3445
      %4000 = vmatmul.mubr.bf16.gmra.mrb[0].mxu0 %v3444
      %v4001 = vpop.f32.mrb[0].mxu0
      %v4002 = vadd.f32 %v3841, %v4001
      %v4003 = vpop.f32.mrb[0].mxu0
      %v4004 = vpop.f32.mrb[0].mxu0
      %v4005 = vadd.f32 %v3844, %v4004
      %v4006 = vpop.f32.mrb[0].mxu0
      %4007 = vmatprep.mubr.bf16.mxu0 %v3449
      %4008 = vmatmul.mubr.bf16.gmra.mrb[0].mxu0 %v3448
      %v4009 = vpop.f32.mrb[0].mxu0
      %v4010 = vadd.f32 %v3849, %v4009
      %v4011 = vpop.f32.mrb[0].mxu0
      %v4012 = vpop.f32.mrb[0].mxu0
      %v4013 = vadd.f32 %v3852, %v4012
      %v4014 = vpop.f32.mrb[0].mxu0
      %4015 = vmatprep.mubr.bf16.mxu0 %v3453
      %4016 = vmatmul.mubr.bf16.gmra.mrb[0].mxu0 %v3452
      %v4017 = vpop.f32.mrb[0].mxu0
      %v4018 = vadd.f32 %v3857, %v4017
      %v4019 = vpop.f32.mrb[0].mxu0
      %v4020 = vpop.f32.mrb[0].mxu0
      %v4021 = vadd.f32 %v3860, %v4020
      %v4022 = vpop.f32.mrb[0].mxu0
      %4023 = vmatprep.mubr.bf16.mxu0 %v3457
      %4024 = vmatmul.mubr.bf16.gmra.mrb[0].mxu0 %v3456
      %v4025 = vpop.f32.mrb[0].mxu0
      %v4026 = vadd.f32 %v3865, %v4025
      %v4027 = vpop.f32.mrb[0].mxu0
      %v4028 = vpop.f32.mrb[0].mxu0
      %v4029 = vadd.f32 %v3868, %v4028
      %v4030 = vpop.f32.mrb[0].mxu0
      %4031 = vmatprep.mubr.bf16.mxu0 %v3461
      %4032 = vmatmul.mubr.bf16.gmra.mrb[0].mxu0 %v3460
      %v4033 = vpop.f32.mrb[0].mxu0
      %v4034 = vadd.f32 %v3873, %v4033
      %v4035 = vpop.f32.mrb[0].mxu0
      %v4036 = vpop.f32.mrb[0].mxu0
      %v4037 = vadd.f32 %v3876, %v4036
      %v4038 = vpop.f32.mrb[0].mxu0
      %4039 = vdwg.mxu0
      %v4040 = vadd.f32 %v3366, %v3914
      %v4041 = vadd.f32 %v3367, %v3917
      %v4042 = vadd.f32 %v3368, %v3922
      %v4043 = vadd.f32 %v3369, %v3925
      %v4044 = vadd.f32 %v3370, %v3930
      %v4045 = vadd.f32 %v3371, %v3933
      %v4046 = vadd.f32 %v3372, %v3938
      %v4047 = vadd.f32 %v3373, %v3941
      %v4048 = vadd.f32 %v3374, %v3946
      %v4049 = vadd.f32 %v3375, %v3949
      %v4050 = vadd.f32 %v3376, %v3954
      %v4051 = vadd.f32 %v3377, %v3957
      %v4052 = vadd.f32 %v3378, %v3962
      %v4053 = vadd.f32 %v3379, %v3965
      %v4054 = vadd.f32 %v3380, %v3970
      %v4055 = vadd.f32 %v3381, %v3973
      %v4056 = vadd.f32 %v3382, %v3978
      %v4057 = vadd.f32 %v3383, %v3981
      %v4058 = vadd.f32 %v3384, %v3986
      %v4059 = vadd.f32 %v3385, %v3989
      %v4060 = vadd.f32 %v3386, %v3994
      %v4061 = vadd.f32 %v3387, %v3997
      %v4062 = vadd.f32 %v3388, %v4002
      %v4063 = vadd.f32 %v3389, %v4005
      %v4064 = vadd.f32 %v3390, %v4010
      %v4065 = vadd.f32 %v3391, %v4013
      %v4066 = vadd.f32 %v3392, %v4018
      %v4067 = vadd.f32 %v3393, %v4021
      %v4068 = vadd.f32 %v3394, %v4026
      %v4069 = vadd.f32 %v3395, %v4029
      %v4070 = vadd.f32 %v3396, %v4034
      %v4071 = vadd.f32 %v3397, %v4037
      %4072 = vst [vmem:[#allocation4] sm:$0xff] %v4040
      %4073 = vst [vmem:[#allocation4 + $0x8] sm:$0xff] %v4041
      %4074 = vst [vmem:[#allocation4 + $0x10] sm:$0xff] %v4042
      %4075 = vst [vmem:[#allocation4 + $0x18] sm:$0xff] %v4043
      %4076 = vst [vmem:[#allocation4 + $0x20] sm:$0xff] %v4044
      %4077 = vst [vmem:[#allocation4 + $0x28] sm:$0xff] %v4045
      %4078 = vst [vmem:[#allocation4 + $0x30] sm:$0xff] %v4046
      %4079 = vst [vmem:[#allocation4 + $0x38] sm:$0xff] %v4047
      %4080 = vst [vmem:[#allocation4 + $0x40] sm:$0xff] %v4048
      %4081 = vst [vmem:[#allocation4 + $0x48] sm:$0xff] %v4049
      %4082 = vst [vmem:[#allocation4 + $0x50] sm:$0xff] %v4050
      %4083 = vst [vmem:[#allocation4 + $0x58] sm:$0xff] %v4051
      %4084 = vst [vmem:[#allocation4 + $0x60] sm:$0xff] %v4052
      %4085 = vst [vmem:[#allocation4 + $0x68] sm:$0xff] %v4053
      %4086 = vst [vmem:[#allocation4 + $0x70] sm:$0xff] %v4054
      %4087 = vst [vmem:[#allocation4 + $0x78] sm:$0xff] %v4055
      %4088 = vst [vmem:[#allocation4 + $0x80] sm:$0xff] %v4056
      %4089 = vst [vmem:[#allocation4 + $0x88] sm:$0xff] %v4057
      %4090 = vst [vmem:[#allocation4 + $0x90] sm:$0xff] %v4058
      %4091 = vst [vmem:[#allocation4 + $0x98] sm:$0xff] %v4059
      %4092 = vst [vmem:[#allocation4 + $0xa0] sm:$0xff] %v4060
      %4093 = vst [vmem:[#allocation4 + $0xa8] sm:$0xff] %v4061
      %4094 = vst [vmem:[#allocation4 + $0xb0] sm:$0xff] %v4062
      %4095 = vst [vmem:[#allocation4 + $0xb8] sm:$0xff] %v4063
      %4096 = vst [vmem:[#allocation4 + $0xc0] sm:$0xff] %v4064
      %4097 = vst [vmem:[#allocation4 + $0xc8] sm:$0xff] %v4065
      %4098 = vst [vmem:[#allocation4 + $0xd0] sm:$0xff] %v4066
      %4099 = vst [vmem:[#allocation4 + $0xd8] sm:$0xff] %v4067
      %4100 = vst [vmem:[#allocation4 + $0xe0] sm:$0xff] %v4068
      %4101 = vst [vmem:[#allocation4 + $0xe8] sm:$0xff] %v4069
      %4102 = vst [vmem:[#allocation4 + $0xf0] sm:$0xff] %v4070
      %4103 = vst [vmem:[#allocation4 + $0xf8] sm:$0xff] %v4071
      %4104 = vst.msk [vmem:[#allocation2] sm:$0xff] %vm3141, %v2085
      %4105 = vst.msk [vmem:[#allocation2 + $0x8] sm:$0xff] %vm3141, %v2086
      %4106 = vst.msk [vmem:[#allocation2 + $0x10] sm:$0xff] %vm3141, %v2087
      %4107 = vst.msk [vmem:[#allocation2 + $0x18] sm:$0xff] %vm3141, %v2088
      %4108 = vst.msk [vmem:[#allocation2 + $0x20] sm:$0xff] %vm3141, %v2089
      %4109 = vst.msk [vmem:[#allocation2 + $0x28] sm:$0xff] %vm3141, %v2090
      %4110 = vst.msk [vmem:[#allocation2 + $0x30] sm:$0xff] %vm3141, %v2091
      %4111 = vst.msk [vmem:[#allocation2 + $0x38] sm:$0xff] %vm3141, %v2092
      %4112 = vst.msk [vmem:[#allocation2 + $0x40] sm:$0xff] %vm3141, %v2093
      %4113 = vst.msk [vmem:[#allocation2 + $0x48] sm:$0xff] %vm3141, %v2094
      %4114 = vst.msk [vmem:[#allocation2 + $0x50] sm:$0xff] %vm3141, %v2095
      %4115 = vst.msk [vmem:[#allocation2 + $0x58] sm:$0xff] %vm3141, %v2096
      %4116 = vst.msk [vmem:[#allocation2 + $0x60] sm:$0xff] %vm3141, %v2097
      %4117 = vst.msk [vmem:[#allocation2 + $0x68] sm:$0xff] %vm3141, %v2098
      %4118 = vst.msk [vmem:[#allocation2 + $0x70] sm:$0xff] %vm3141, %v2099
      %4119 = vst.msk [vmem:[#allocation2 + $0x78] sm:$0xff] %vm3141, %v2100
      %4120 = vst.msk [vmem:[#allocation2 + $0x80] sm:$0xff] %vm3141, %v2101
      %4121 = vst.msk [vmem:[#allocation2 + $0x88] sm:$0xff] %vm3141, %v2102
      %4122 = vst.msk [vmem:[#allocation2 + $0x90] sm:$0xff] %vm3141, %v2103
      %4123 = vst.msk [vmem:[#allocation2 + $0x98] sm:$0xff] %vm3141, %v2104
      %4124 = vst.msk [vmem:[#allocation2 + $0xa0] sm:$0xff] %vm3141, %v2105
      %4125 = vst.msk [vmem:[#allocation2 + $0xa8] sm:$0xff] %vm3141, %v2106
      %4126 = vst.msk [vmem:[#allocation2 + $0xb0] sm:$0xff] %vm3141, %v2107
      %4127 = vst.msk [vmem:[#allocation2 + $0xb8] sm:$0xff] %vm3141, %v2108
      %4128 = vst.msk [vmem:[#allocation2 + $0xc0] sm:$0xff] %vm3141, %v2109
      %4129 = vst.msk [vmem:[#allocation2 + $0xc8] sm:$0xff] %vm3141, %v2110
      %4130 = vst.msk [vmem:[#allocation2 + $0xd0] sm:$0xff] %vm3141, %v2111
      %4131 = vst.msk [vmem:[#allocation2 + $0xd8] sm:$0xff] %vm3141, %v2112
      %4132 = vst.msk [vmem:[#allocation2 + $0xe0] sm:$0xff] %vm3141, %v2113
      %4133 = vst.msk [vmem:[#allocation2 + $0xe8] sm:$0xff] %vm3141, %v2114
      %4134 = vst.msk [vmem:[#allocation2 + $0xf0] sm:$0xff] %vm3141, %v2115
      %4135 = vst.msk [vmem:[#allocation2 + $0xf8] sm:$0xff] %vm3141, %v2116
      // Predicated region
      $region41: #{gat_forward.2} parent=35 // pred_check
        %p4136 = pneg %p298
      $region42: #{gat_forward.2} parent=35 // pred_check_branch
        %4138 = sbr.rel (%p4136) target = $region44
      $region43: #{gat_forward.2} parent=35 // pred_region
        %v4139 = vld [vmem:[#allocation3] sm:$0xff]
        %v4140 = vld [vmem:[#allocation3 + $0x8] sm:$0xff]
        %v4141 = vld [vmem:[#allocation3 + $0x10] sm:$0xff]
        %v4142 = vld [vmem:[#allocation3 + $0x18] sm:$0xff]
        %v4143 = vld [vmem:[#allocation3 + $0x20] sm:$0xff]
        %v4144 = vld [vmem:[#allocation3 + $0x28] sm:$0xff]
        %v4145 = vld [vmem:[#allocation3 + $0x30] sm:$0xff]
        %v4146 = vld [vmem:[#allocation3 + $0x38] sm:$0xff]
        %v4147 = vld [vmem:[#allocation3 + $0x40] sm:$0xff]
        %v4148 = vld [vmem:[#allocation3 + $0x48] sm:$0xff]
        %v4149 = vld [vmem:[#allocation3 + $0x50] sm:$0xff]
        %v4150 = vld [vmem:[#allocation3 + $0x58] sm:$0xff]
        %v4151 = vld [vmem:[#allocation3 + $0x60] sm:$0xff]
        %v4152 = vld [vmem:[#allocation3 + $0x68] sm:$0xff]
        %v4153 = vld [vmem:[#allocation3 + $0x70] sm:$0xff]
        %v4154 = vld [vmem:[#allocation3 + $0x78] sm:$0xff]
        %v4155 = vld [vmem:[#allocation3 + $0x80] sm:$0xff]
        %v4156 = vld [vmem:[#allocation3 + $0x88] sm:$0xff]
        %v4157 = vld [vmem:[#allocation3 + $0x90] sm:$0xff]
        %v4158 = vld [vmem:[#allocation3 + $0x98] sm:$0xff]
        %v4159 = vld [vmem:[#allocation3 + $0xa0] sm:$0xff]
        %v4160 = vld [vmem:[#allocation3 + $0xa8] sm:$0xff]
        %v4161 = vld [vmem:[#allocation3 + $0xb0] sm:$0xff]
        %v4162 = vld [vmem:[#allocation3 + $0xb8] sm:$0xff]
        %v4163 = vld [vmem:[#allocation3 + $0xc0] sm:$0xff]
        %v4164 = vld [vmem:[#allocation3 + $0xc8] sm:$0xff]
        %v4165 = vld [vmem:[#allocation3 + $0xd0] sm:$0xff]
        %v4166 = vld [vmem:[#allocation3 + $0xd8] sm:$0xff]
        %v4167 = vld [vmem:[#allocation3 + $0xe0] sm:$0xff]
        %v4168 = vld [vmem:[#allocation3 + $0xe8] sm:$0xff]
        %v4169 = vld [vmem:[#allocation3 + $0xf0] sm:$0xff]
        %v4170 = vld [vmem:[#allocation3 + $0xf8] sm:$0xff]
        %vm4171 = vcmp.gt.f32.partialorder %v4139, 0.0
        %vm4172 = vcmp.gt.f32.partialorder %v4140, 0.0
        %vm4173 = vcmp.gt.f32.partialorder %v4141, 0.0
        %vm4174 = vcmp.gt.f32.partialorder %v4142, 0.0
        %vm4175 = vcmp.gt.f32.partialorder %v4143, 0.0
        %vm4176 = vcmp.gt.f32.partialorder %v4144, 0.0
        %vm4177 = vcmp.gt.f32.partialorder %v4145, 0.0
        %vm4178 = vcmp.gt.f32.partialorder %v4146, 0.0
        %vm4179 = vcmp.gt.f32.partialorder %v4147, 0.0
        %vm4180 = vcmp.gt.f32.partialorder %v4148, 0.0
        %vm4181 = vcmp.gt.f32.partialorder %v4149, 0.0
        %vm4182 = vcmp.gt.f32.partialorder %v4150, 0.0
        %vm4183 = vcmp.gt.f32.partialorder %v4151, 0.0
        %vm4184 = vcmp.gt.f32.partialorder %v4152, 0.0
        %vm4185 = vcmp.gt.f32.partialorder %v4153, 0.0
        %vm4186 = vcmp.gt.f32.partialorder %v4154, 0.0
        %vm4187 = vcmp.gt.f32.partialorder %v4155, 0.0
        %vm4188 = vcmp.gt.f32.partialorder %v4156, 0.0
        %vm4189 = vcmp.gt.f32.partialorder %v4157, 0.0
        %vm4190 = vcmp.gt.f32.partialorder %v4158, 0.0
        %vm4191 = vcmp.gt.f32.partialorder %v4159, 0.0
        %vm4192 = vcmp.gt.f32.partialorder %v4160, 0.0
        %vm4193 = vcmp.gt.f32.partialorder %v4161, 0.0
        %vm4194 = vcmp.gt.f32.partialorder %v4162, 0.0
        %vm4195 = vcmp.gt.f32.partialorder %v4163, 0.0
        %vm4196 = vcmp.gt.f32.partialorder %v4164, 0.0
        %vm4197 = vcmp.gt.f32.partialorder %v4165, 0.0
        %vm4198 = vcmp.gt.f32.partialorder %v4166, 0.0
        %vm4199 = vcmp.gt.f32.partialorder %v4167, 0.0
        %vm4200 = vcmp.gt.f32.partialorder %v4168, 0.0
        %vm4201 = vcmp.gt.f32.partialorder %v4169, 0.0
        %vm4202 = vcmp.gt.f32.partialorder %v4170, 0.0
        %v4203 = vsel %vm4171, %v4139, 1.0
        %v4204 = vsel %vm4172, %v4140, 1.0
        %v4205 = vsel %vm4173, %v4141, 1.0
        %v4206 = vsel %vm4174, %v4142, 1.0
        %v4207 = vsel %vm4175, %v4143, 1.0
        %v4208 = vsel %vm4176, %v4144, 1.0
        %v4209 = vsel %vm4177, %v4145, 1.0
        %v4210 = vsel %vm4178, %v4146, 1.0
        %v4211 = vsel %vm4179, %v4147, 1.0
        %v4212 = vsel %vm4180, %v4148, 1.0
        %v4213 = vsel %vm4181, %v4149, 1.0
        %v4214 = vsel %vm4182, %v4150, 1.0
        %v4215 = vsel %vm4183, %v4151, 1.0
        %v4216 = vsel %vm4184, %v4152, 1.0
        %v4217 = vsel %vm4185, %v4153, 1.0
        %v4218 = vsel %vm4186, %v4154, 1.0
        %v4219 = vsel %vm4187, %v4155, 1.0
        %v4220 = vsel %vm4188, %v4156, 1.0
        %v4221 = vsel %vm4189, %v4157, 1.0
        %v4222 = vsel %vm4190, %v4158, 1.0
        %v4223 = vsel %vm4191, %v4159, 1.0
        %v4224 = vsel %vm4192, %v4160, 1.0
        %v4225 = vsel %vm4193, %v4161, 1.0
        %v4226 = vsel %vm4194, %v4162, 1.0
        %v4227 = vsel %vm4195, %v4163, 1.0
        %v4228 = vsel %vm4196, %v4164, 1.0
        %v4229 = vsel %vm4197, %v4165, 1.0
        %v4230 = vsel %vm4198, %v4166, 1.0
        %v4231 = vsel %vm4199, %v4167, 1.0
        %v4232 = vsel %vm4200, %v4168, 1.0
        %v4233 = vsel %vm4201, %v4169, 1.0
        %v4234 = vsel %vm4202, %v4170, 1.0
        %v4235 = vrcp.pop %v4203
        %v4236 = vrcp.pop %v4204
        %v4237 = vrcp.pop %v4205
        %v4238 = vrcp.pop %v4206
        %v4239 = vrcp.pop %v4207
        %v4240 = vrcp.pop %v4208
        %v4241 = vrcp.pop %v4209
        %v4242 = vrcp.pop %v4210
        %v4243 = vrcp.pop %v4211
        %v4244 = vrcp.pop %v4212
        %v4245 = vrcp.pop %v4213
        %v4246 = vrcp.pop %v4214
        %v4247 = vrcp.pop %v4215
        %v4248 = vrcp.pop %v4216
        %v4249 = vrcp.pop %v4217
        %v4250 = vrcp.pop %v4218
        %v4251 = vrcp.pop %v4219
        %v4252 = vrcp.pop %v4220
        %v4253 = vrcp.pop %v4221
        %v4254 = vrcp.pop %v4222
        %v4255 = vrcp.pop %v4223
        %v4256 = vrcp.pop %v4224
        %v4257 = vrcp.pop %v4225
        %v4258 = vrcp.pop %v4226
        %v4259 = vrcp.pop %v4227
        %v4260 = vrcp.pop %v4228
        %v4261 = vrcp.pop %v4229
        %v4262 = vrcp.pop %v4230
        %v4263 = vrcp.pop %v4231
        %v4264 = vrcp.pop %v4232
        %v4265 = vrcp.pop %v4233
        %v4266 = vrcp.pop %v4234
        %v4267 = vld [vmem:[#allocation4] sm:$0xff]
        %v4268 = vld [vmem:[#allocation4 + $0x8] sm:$0xff]
        %v4269 = vld [vmem:[#allocation4 + $0x10] sm:$0xff]
        %v4270 = vld [vmem:[#allocation4 + $0x18] sm:$0xff]
        %v4271 = vld [vmem:[#allocation4 + $0x20] sm:$0xff]
        %v4272 = vld [vmem:[#allocation4 + $0x28] sm:$0xff]
        %v4273 = vld [vmem:[#allocation4 + $0x30] sm:$0xff]
        %v4274 = vld [vmem:[#allocation4 + $0x38] sm:$0xff]
        %v4275 = vld [vmem:[#allocation4 + $0x40] sm:$0xff]
        %v4276 = vld [vmem:[#allocation4 + $0x48] sm:$0xff]
        %v4277 = vld [vmem:[#allocation4 + $0x50] sm:$0xff]
        %v4278 = vld [vmem:[#allocation4 + $0x58] sm:$0xff]
        %v4279 = vld [vmem:[#allocation4 + $0x60] sm:$0xff]
        %v4280 = vld [vmem:[#allocation4 + $0x68] sm:$0xff]
        %v4281 = vld [vmem:[#allocation4 + $0x70] sm:$0xff]
        %v4282 = vld [vmem:[#allocation4 + $0x78] sm:$0xff]
        %v4283 = vld [vmem:[#allocation4 + $0x80] sm:$0xff]
        %v4284 = vld [vmem:[#allocation4 + $0x88] sm:$0xff]
        %v4285 = vld [vmem:[#allocation4 + $0x90] sm:$0xff]
        %v4286 = vld [vmem:[#allocation4 + $0x98] sm:$0xff]
        %v4287 = vld [vmem:[#allocation4 + $0xa0] sm:$0xff]
        %v4288 = vld [vmem:[#allocation4 + $0xa8] sm:$0xff]
        %v4289 = vld [vmem:[#allocation4 + $0xb0] sm:$0xff]
        %v4290 = vld [vmem:[#allocation4 + $0xb8] sm:$0xff]
        %v4291 = vld [vmem:[#allocation4 + $0xc0] sm:$0xff]
        %v4292 = vld [vmem:[#allocation4 + $0xc8] sm:$0xff]
        %v4293 = vld [vmem:[#allocation4 + $0xd0] sm:$0xff]
        %v4294 = vld [vmem:[#allocation4 + $0xd8] sm:$0xff]
        %v4295 = vld [vmem:[#allocation4 + $0xe0] sm:$0xff]
        %v4296 = vld [vmem:[#allocation4 + $0xe8] sm:$0xff]
        %v4297 = vld [vmem:[#allocation4 + $0xf0] sm:$0xff]
        %v4298 = vld [vmem:[#allocation4 + $0xf8] sm:$0xff]
        %4300 = vset.pattern.permute.xlu0 0
        %4301 = vperm.xlu0 %4300, %v4235
        %v4302 = vpop.permute.xlu0 %4301
        %4305 = vset.pattern.permute.xlu0 0
        %4306 = vperm.xlu0 %4305, %v4236
        %v4307 = vpop.permute.xlu0 %4306
        %4310 = vset.pattern.permute.xlu0 0
        %4311 = vperm.xlu0 %4310, %v4237
        %v4312 = vpop.permute.xlu0 %4311
        %4315 = vset.pattern.permute.xlu0 0
        %4316 = vperm.xlu0 %4315, %v4238
        %v4317 = vpop.permute.xlu0 %4316
        %4320 = vset.pattern.permute.xlu0 0
        %4321 = vperm.xlu0 %4320, %v4239
        %v4322 = vpop.permute.xlu0 %4321
        %4325 = vset.pattern.permute.xlu0 0
        %4326 = vperm.xlu0 %4325, %v4240
        %v4327 = vpop.permute.xlu0 %4326
        %4330 = vset.pattern.permute.xlu0 0
        %4331 = vperm.xlu0 %4330, %v4241
        %v4332 = vpop.permute.xlu0 %4331
        %4335 = vset.pattern.permute.xlu0 0
        %4336 = vperm.xlu0 %4335, %v4242
        %v4337 = vpop.permute.xlu0 %4336
        %4340 = vset.pattern.permute.xlu0 0
        %4341 = vperm.xlu0 %4340, %v4243
        %v4342 = vpop.permute.xlu0 %4341
        %4345 = vset.pattern.permute.xlu0 0
        %4346 = vperm.xlu0 %4345, %v4244
        %v4347 = vpop.permute.xlu0 %4346
        %4350 = vset.pattern.permute.xlu0 0
        %4351 = vperm.xlu0 %4350, %v4245
        %v4352 = vpop.permute.xlu0 %4351
        %4355 = vset.pattern.permute.xlu0 0
        %4356 = vperm.xlu0 %4355, %v4246
        %v4357 = vpop.permute.xlu0 %4356
        %4360 = vset.pattern.permute.xlu0 0
        %4361 = vperm.xlu0 %4360, %v4247
        %v4362 = vpop.permute.xlu0 %4361
        %4365 = vset.pattern.permute.xlu0 0
        %4366 = vperm.xlu0 %4365, %v4248
        %v4367 = vpop.permute.xlu0 %4366
        %4370 = vset.pattern.permute.xlu0 0
        %4371 = vperm.xlu0 %4370, %v4249
        %v4372 = vpop.permute.xlu0 %4371
        %4375 = vset.pattern.permute.xlu0 0
        %4376 = vperm.xlu0 %4375, %v4250
        %v4377 = vpop.permute.xlu0 %4376
        %4380 = vset.pattern.permute.xlu0 0
        %4381 = vperm.xlu0 %4380, %v4251
        %v4382 = vpop.permute.xlu0 %4381
        %4385 = vset.pattern.permute.xlu0 0
        %4386 = vperm.xlu0 %4385, %v4252
        %v4387 = vpop.permute.xlu0 %4386
        %4390 = vset.pattern.permute.xlu0 0
        %4391 = vperm.xlu0 %4390, %v4253
        %v4392 = vpop.permute.xlu0 %4391
        %4395 = vset.pattern.permute.xlu0 0
        %4396 = vperm.xlu0 %4395, %v4254
        %v4397 = vpop.permute.xlu0 %4396
        %4400 = vset.pattern.permute.xlu0 0
        %4401 = vperm.xlu0 %4400, %v4255
        %v4402 = vpop.permute.xlu0 %4401
        %4405 = vset.pattern.permute.xlu0 0
        %4406 = vperm.xlu0 %4405, %v4256
        %v4407 = vpop.permute.xlu0 %4406
        %4410 = vset.pattern.permute.xlu0 0
        %4411 = vperm.xlu0 %4410, %v4257
        %v4412 = vpop.permute.xlu0 %4411
        %4415 = vset.pattern.permute.xlu0 0
        %4416 = vperm.xlu0 %4415, %v4258
        %v4417 = vpop.permute.xlu0 %4416
        %4420 = vset.pattern.permute.xlu0 0
        %4421 = vperm.xlu0 %4420, %v4259
        %v4422 = vpop.permute.xlu0 %4421
        %4425 = vset.pattern.permute.xlu0 0
        %4426 = vperm.xlu0 %4425, %v4260
        %v4427 = vpop.permute.xlu0 %4426
        %4430 = vset.pattern.permute.xlu0 0
        %4431 = vperm.xlu0 %4430, %v4261
        %v4432 = vpop.permute.xlu0 %4431
        %4435 = vset.pattern.permute.xlu0 0
        %4436 = vperm.xlu0 %4435, %v4262
        %v4437 = vpop.permute.xlu0 %4436
        %4440 = vset.pattern.permute.xlu0 0
        %4441 = vperm.xlu0 %4440, %v4263
        %v4442 = vpop.permute.xlu0 %4441
        %4445 = vset.pattern.permute.xlu0 0
        %4446 = vperm.xlu0 %4445, %v4264
        %v4447 = vpop.permute.xlu0 %4446
        %4450 = vset.pattern.permute.xlu0 0
        %4451 = vperm.xlu0 %4450, %v4265
        %v4452 = vpop.permute.xlu0 %4451
        %4455 = vset.pattern.permute.xlu0 0
        %4456 = vperm.xlu0 %4455, %v4266
        %v4457 = vpop.permute.xlu0 %4456
        %v4459 = vmul.f32 %v4267, %v4302
        %v4460 = vmul.f32 %v4268, %v4307
        %v4461 = vmul.f32 %v4269, %v4312
        %v4462 = vmul.f32 %v4270, %v4317
        %v4463 = vmul.f32 %v4271, %v4322
        %v4464 = vmul.f32 %v4272, %v4327
        %v4465 = vmul.f32 %v4273, %v4332
        %v4466 = vmul.f32 %v4274, %v4337
        %v4467 = vmul.f32 %v4275, %v4342
        %v4468 = vmul.f32 %v4276, %v4347
        %v4469 = vmul.f32 %v4277, %v4352
        %v4470 = vmul.f32 %v4278, %v4357
        %v4471 = vmul.f32 %v4279, %v4362
        %v4472 = vmul.f32 %v4280, %v4367
        %v4473 = vmul.f32 %v4281, %v4372
        %v4474 = vmul.f32 %v4282, %v4377
        %v4475 = vmul.f32 %v4283, %v4382
        %v4476 = vmul.f32 %v4284, %v4387
        %v4477 = vmul.f32 %v4285, %v4392
        %v4478 = vmul.f32 %v4286, %v4397
        %v4479 = vmul.f32 %v4287, %v4402
        %v4480 = vmul.f32 %v4288, %v4407
        %v4481 = vmul.f32 %v4289, %v4412
        %v4482 = vmul.f32 %v4290, %v4417
        %v4483 = vmul.f32 %v4291, %v4422
        %v4484 = vmul.f32 %v4292, %v4427
        %v4485 = vmul.f32 %v4293, %v4432
        %v4486 = vmul.f32 %v4294, %v4437
        %v4487 = vmul.f32 %v4295, %v4442
        %v4488 = vmul.f32 %v4296, %v4447
        %v4489 = vmul.f32 %v4297, %v4452
        %v4490 = vmul.f32 %v4298, %v4457
        %v4491 = vmin.f32 %v4459, 0.0
        %v4492 = vmin.f32 %v4460, 0.0
        %v4493 = vmin.f32 %v4461, 0.0
        %v4494 = vmin.f32 %v4462, 0.0
        %v4495 = vmin.f32 %v4463, 0.0
        %v4496 = vmin.f32 %v4464, 0.0
        %v4497 = vmin.f32 %v4465, 0.0
        %v4498 = vmin.f32 %v4466, 0.0
        %v4499 = vmin.f32 %v4467, 0.0
        %v4500 = vmin.f32 %v4468, 0.0
        %v4501 = vmin.f32 %v4469, 0.0
        %v4502 = vmin.f32 %v4470, 0.0
        %v4503 = vmin.f32 %v4471, 0.0
        %v4504 = vmin.f32 %v4472, 0.0
        %v4505 = vmin.f32 %v4473, 0.0
        %v4506 = vmin.f32 %v4474, 0.0
        %v4507 = vmin.f32 %v4475, 0.0
        %v4508 = vmin.f32 %v4476, 0.0
        %v4509 = vmin.f32 %v4477, 0.0
        %v4510 = vmin.f32 %v4478, 0.0
        %v4511 = vmin.f32 %v4479, 0.0
        %v4512 = vmin.f32 %v4480, 0.0
        %v4513 = vmin.f32 %v4481, 0.0
        %v4514 = vmin.f32 %v4482, 0.0
        %v4515 = vmin.f32 %v4483, 0.0
        %v4516 = vmin.f32 %v4484, 0.0
        %v4517 = vmin.f32 %v4485, 0.0
        %v4518 = vmin.f32 %v4486, 0.0
        %v4519 = vmin.f32 %v4487, 0.0
        %v4520 = vmin.f32 %v4488, 0.0
        %v4521 = vmin.f32 %v4489, 0.0
        %v4522 = vmin.f32 %v4490, 0.0
        %v4523 = vmul.f32 %v4491, 1.442695
        %v4524 = vpow.pop %v4523
        %v4525 = vmul.f32 %v4492, 1.442695
        %v4526 = vpow.pop %v4525
        %v4527 = vmul.f32 %v4493, 1.442695
        %v4528 = vpow.pop %v4527
        %v4529 = vmul.f32 %v4494, 1.442695
        %v4530 = vpow.pop %v4529
        %v4531 = vmul.f32 %v4495, 1.442695
        %v4532 = vpow.pop %v4531
        %v4533 = vmul.f32 %v4496, 1.442695
        %v4534 = vpow.pop %v4533
        %v4535 = vmul.f32 %v4497, 1.442695
        %v4536 = vpow.pop %v4535
        %v4537 = vmul.f32 %v4498, 1.442695
        %v4538 = vpow.pop %v4537
        %v4539 = vmul.f32 %v4499, 1.442695
        %v4540 = vpow.pop %v4539
        %v4541 = vmul.f32 %v4500, 1.442695
        %v4542 = vpow.pop %v4541
        %v4543 = vmul.f32 %v4501, 1.442695
        %v4544 = vpow.pop %v4543
        %v4545 = vmul.f32 %v4502, 1.442695
        %v4546 = vpow.pop %v4545
        %v4547 = vmul.f32 %v4503, 1.442695
        %v4548 = vpow.pop %v4547
        %v4549 = vmul.f32 %v4504, 1.442695
        %v4550 = vpow.pop %v4549
        %v4551 = vmul.f32 %v4505, 1.442695
        %v4552 = vpow.pop %v4551
        %v4553 = vmul.f32 %v4506, 1.442695
        %v4554 = vpow.pop %v4553
        %v4555 = vmul.f32 %v4507, 1.442695
        %v4556 = vpow.pop %v4555
        %v4557 = vmul.f32 %v4508, 1.442695
        %v4558 = vpow.pop %v4557
        %v4559 = vmul.f32 %v4509, 1.442695
        %v4560 = vpow.pop %v4559
        %v4561 = vmul.f32 %v4510, 1.442695
        %v4562 = vpow.pop %v4561
        %v4563 = vmul.f32 %v4511, 1.442695
        %v4564 = vpow.pop %v4563
        %v4565 = vmul.f32 %v4512, 1.442695
        %v4566 = vpow.pop %v4565
        %v4567 = vmul.f32 %v4513, 1.442695
        %v4568 = vpow.pop %v4567
        %v4569 = vmul.f32 %v4514, 1.442695
        %v4570 = vpow.pop %v4569
        %v4571 = vmul.f32 %v4515, 1.442695
        %v4572 = vpow.pop %v4571
        %v4573 = vmul.f32 %v4516, 1.442695
        %v4574 = vpow.pop %v4573
        %v4575 = vmul.f32 %v4517, 1.442695
        %v4576 = vpow.pop %v4575
        %v4577 = vmul.f32 %v4518, 1.442695
        %v4578 = vpow.pop %v4577
        %v4579 = vmul.f32 %v4519, 1.442695
        %v4580 = vpow.pop %v4579
        %v4581 = vmul.f32 %v4520, 1.442695
        %v4582 = vpow.pop %v4581
        %v4583 = vmul.f32 %v4521, 1.442695
        %v4584 = vpow.pop %v4583
        %v4585 = vmul.f32 %v4522, 1.442695
        %v4586 = vpow.pop %v4585
        %v4587 = vsub.f32 %v4524, 1.0
        %v4588 = vsub.f32 %v4526, 1.0
        %v4589 = vsub.f32 %v4528, 1.0
        %v4590 = vsub.f32 %v4530, 1.0
        %v4591 = vsub.f32 %v4532, 1.0
        %v4592 = vsub.f32 %v4534, 1.0
        %v4593 = vsub.f32 %v4536, 1.0
        %v4594 = vsub.f32 %v4538, 1.0
        %v4595 = vsub.f32 %v4540, 1.0
        %v4596 = vsub.f32 %v4542, 1.0
        %v4597 = vsub.f32 %v4544, 1.0
        %v4598 = vsub.f32 %v4546, 1.0
        %v4599 = vsub.f32 %v4548, 1.0
        %v4600 = vsub.f32 %v4550, 1.0
        %v4601 = vsub.f32 %v4552, 1.0
        %v4602 = vsub.f32 %v4554, 1.0
        %v4603 = vsub.f32 %v4556, 1.0
        %v4604 = vsub.f32 %v4558, 1.0
        %v4605 = vsub.f32 %v4560, 1.0
        %v4606 = vsub.f32 %v4562, 1.0
        %v4607 = vsub.f32 %v4564, 1.0
        %v4608 = vsub.f32 %v4566, 1.0
        %v4609 = vsub.f32 %v4568, 1.0
        %v4610 = vsub.f32 %v4570, 1.0
        %v4611 = vsub.f32 %v4572, 1.0
        %v4612 = vsub.f32 %v4574, 1.0
        %v4613 = vsub.f32 %v4576, 1.0
        %v4614 = vsub.f32 %v4578, 1.0
        %v4615 = vsub.f32 %v4580, 1.0
        %v4616 = vsub.f32 %v4582, 1.0
        %v4617 = vsub.f32 %v4584, 1.0
        %v4618 = vsub.f32 %v4586, 1.0
        %v4619 = vmul.f32 %v4587, 1.442695
        %v4620 = vpow.pop %v4619
        %v4621 = vmul.f32 %v4588, 1.442695
        %v4622 = vpow.pop %v4621
        %v4623 = vmul.f32 %v4589, 1.442695
        %v4624 = vpow.pop %v4623
        %v4625 = vmul.f32 %v4590, 1.442695
        %v4626 = vpow.pop %v4625
        %v4627 = vmul.f32 %v4591, 1.442695
        %v4628 = vpow.pop %v4627
        %v4629 = vmul.f32 %v4592, 1.442695
        %v4630 = vpow.pop %v4629
        %v4631 = vmul.f32 %v4593, 1.442695
        %v4632 = vpow.pop %v4631
        %v4633 = vmul.f32 %v4594, 1.442695
        %v4634 = vpow.pop %v4633
        %v4635 = vmul.f32 %v4595, 1.442695
        %v4636 = vpow.pop %v4635
        %v4637 = vmul.f32 %v4596, 1.442695
        %v4638 = vpow.pop %v4637
        %v4639 = vmul.f32 %v4597, 1.442695
        %v4640 = vpow.pop %v4639
        %v4641 = vmul.f32 %v4598, 1.442695
        %v4642 = vpow.pop %v4641
        %v4643 = vmul.f32 %v4599, 1.442695
        %v4644 = vpow.pop %v4643
        %v4645 = vmul.f32 %v4600, 1.442695
        %v4646 = vpow.pop %v4645
        %v4647 = vmul.f32 %v4601, 1.442695
        %v4648 = vpow.pop %v4647
        %v4649 = vmul.f32 %v4602, 1.442695
        %v4650 = vpow.pop %v4649
        %v4651 = vmul.f32 %v4603, 1.442695
        %v4652 = vpow.pop %v4651
        %v4653 = vmul.f32 %v4604, 1.442695
        %v4654 = vpow.pop %v4653
        %v4655 = vmul.f32 %v4605, 1.442695
        %v4656 = vpow.pop %v4655
        %v4657 = vmul.f32 %v4606, 1.442695
        %v4658 = vpow.pop %v4657
        %v4659 = vmul.f32 %v4607, 1.442695
        %v4660 = vpow.pop %v4659
        %v4661 = vmul.f32 %v4608, 1.442695
        %v4662 = vpow.pop %v4661
        %v4663 = vmul.f32 %v4609, 1.442695
        %v4664 = vpow.pop %v4663
        %v4665 = vmul.f32 %v4610, 1.442695
        %v4666 = vpow.pop %v4665
        %v4667 = vmul.f32 %v4611, 1.442695
        %v4668 = vpow.pop %v4667
        %v4669 = vmul.f32 %v4612, 1.442695
        %v4670 = vpow.pop %v4669
        %v4671 = vmul.f32 %v4613, 1.442695
        %v4672 = vpow.pop %v4671
        %v4673 = vmul.f32 %v4614, 1.442695
        %v4674 = vpow.pop %v4673
        %v4675 = vmul.f32 %v4615, 1.442695
        %v4676 = vpow.pop %v4675
        %v4677 = vmul.f32 %v4616, 1.442695
        %v4678 = vpow.pop %v4677
        %v4679 = vmul.f32 %v4617, 1.442695
        %v4680 = vpow.pop %v4679
        %v4681 = vmul.f32 %v4618, 1.442695
        %v4682 = vpow.pop %v4681
        %v4683 = vsub.f32 %v4620, 1.0
        %v4684 = vsub.f32 %v4622, 1.0
        %v4685 = vsub.f32 %v4624, 1.0
        %v4686 = vsub.f32 %v4626, 1.0
        %v4687 = vsub.f32 %v4628, 1.0
        %v4688 = vsub.f32 %v4630, 1.0
        %v4689 = vsub.f32 %v4632, 1.0
        %v4690 = vsub.f32 %v4634, 1.0
        %v4691 = vsub.f32 %v4636, 1.0
        %v4692 = vsub.f32 %v4638, 1.0
        %v4693 = vsub.f32 %v4640, 1.0
        %v4694 = vsub.f32 %v4642, 1.0
        %v4695 = vsub.f32 %v4644, 1.0
        %v4696 = vsub.f32 %v4646, 1.0
        %v4697 = vsub.f32 %v4648, 1.0
        %v4698 = vsub.f32 %v4650, 1.0
        %v4699 = vsub.f32 %v4652, 1.0
        %v4700 = vsub.f32 %v4654, 1.0
        %v4701 = vsub.f32 %v4656, 1.0
        %v4702 = vsub.f32 %v4658, 1.0
        %v4703 = vsub.f32 %v4660, 1.0
        %v4704 = vsub.f32 %v4662, 1.0
        %v4705 = vsub.f32 %v4664, 1.0
        %v4706 = vsub.f32 %v4666, 1.0
        %v4707 = vsub.f32 %v4668, 1.0
        %v4708 = vsub.f32 %v4670, 1.0
        %v4709 = vsub.f32 %v4672, 1.0
        %v4710 = vsub.f32 %v4674, 1.0
        %v4711 = vsub.f32 %v4676, 1.0
        %v4712 = vsub.f32 %v4678, 1.0
        %v4713 = vsub.f32 %v4680, 1.0
        %v4714 = vsub.f32 %v4682, 1.0
        %vm4715 = vcmp.gt.f32.partialorder %v4459, 0.0
        %vm4716 = vcmp.gt.f32.partialorder %v4460, 0.0
        %vm4717 = vcmp.gt.f32.partialorder %v4461, 0.0
        %vm4718 = vcmp.gt.f32.partialorder %v4462, 0.0
        %vm4719 = vcmp.gt.f32.partialorder %v4463, 0.0
        %vm4720 = vcmp.gt.f32.partialorder %v4464, 0.0
        %vm4721 = vcmp.gt.f32.partialorder %v4465, 0.0
        %vm4722 = vcmp.gt.f32.partialorder %v4466, 0.0
        %vm4723 = vcmp.gt.f32.partialorder %v4467, 0.0
        %vm4724 = vcmp.gt.f32.partialorder %v4468, 0.0
        %vm4725 = vcmp.gt.f32.partialorder %v4469, 0.0
        %vm4726 = vcmp.gt.f32.partialorder %v4470, 0.0
        %vm4727 = vcmp.gt.f32.partialorder %v4471, 0.0
        %vm4728 = vcmp.gt.f32.partialorder %v4472, 0.0
        %vm4729 = vcmp.gt.f32.partialorder %v4473, 0.0
        %vm4730 = vcmp.gt.f32.partialorder %v4474, 0.0
        %vm4731 = vcmp.gt.f32.partialorder %v4475, 0.0
        %vm4732 = vcmp.gt.f32.partialorder %v4476, 0.0
        %vm4733 = vcmp.gt.f32.partialorder %v4477, 0.0
        %vm4734 = vcmp.gt.f32.partialorder %v4478, 0.0
        %vm4735 = vcmp.gt.f32.partialorder %v4479, 0.0
        %vm4736 = vcmp.gt.f32.partialorder %v4480, 0.0
        %vm4737 = vcmp.gt.f32.partialorder %v4481, 0.0
        %vm4738 = vcmp.gt.f32.partialorder %v4482, 0.0
        %vm4739 = vcmp.gt.f32.partialorder %v4483, 0.0
        %vm4740 = vcmp.gt.f32.partialorder %v4484, 0.0
        %vm4741 = vcmp.gt.f32.partialorder %v4485, 0.0
        %vm4742 = vcmp.gt.f32.partialorder %v4486, 0.0
        %vm4743 = vcmp.gt.f32.partialorder %v4487, 0.0
        %vm4744 = vcmp.gt.f32.partialorder %v4488, 0.0
        %vm4745 = vcmp.gt.f32.partialorder %v4489, 0.0
        %vm4746 = vcmp.gt.f32.partialorder %v4490, 0.0
        %v4747 = vsel %vm4715, %v4459, %v4683
        %v4748 = vsel %vm4716, %v4460, %v4684
        %v4749 = vsel %vm4717, %v4461, %v4685
        %v4750 = vsel %vm4718, %v4462, %v4686
        %v4751 = vsel %vm4719, %v4463, %v4687
        %v4752 = vsel %vm4720, %v4464, %v4688
        %v4753 = vsel %vm4721, %v4465, %v4689
        %v4754 = vsel %vm4722, %v4466, %v4690
        %v4755 = vsel %vm4723, %v4467, %v4691
        %v4756 = vsel %vm4724, %v4468, %v4692
        %v4757 = vsel %vm4725, %v4469, %v4693
        %v4758 = vsel %vm4726, %v4470, %v4694
        %v4759 = vsel %vm4727, %v4471, %v4695
        %v4760 = vsel %vm4728, %v4472, %v4696
        %v4761 = vsel %vm4729, %v4473, %v4697
        %v4762 = vsel %vm4730, %v4474, %v4698
        %v4763 = vsel %vm4731, %v4475, %v4699
        %v4764 = vsel %vm4732, %v4476, %v4700
        %v4765 = vsel %vm4733, %v4477, %v4701
        %v4766 = vsel %vm4734, %v4478, %v4702
        %v4767 = vsel %vm4735, %v4479, %v4703
        %v4768 = vsel %vm4736, %v4480, %v4704
        %v4769 = vsel %vm4737, %v4481, %v4705
        %v4770 = vsel %vm4738, %v4482, %v4706
        %v4771 = vsel %vm4739, %v4483, %v4707
        %v4772 = vsel %vm4740, %v4484, %v4708
        %v4773 = vsel %vm4741, %v4485, %v4709
        %v4774 = vsel %vm4742, %v4486, %v4710
        %v4775 = vsel %vm4743, %v4487, %v4711
        %v4776 = vsel %vm4744, %v4488, %v4712
        %v4777 = vsel %vm4745, %v4489, %v4713
        %v4778 = vsel %vm4746, %v4490, %v4714
        %v4779 = vpack.c.bf16 %v4748, %v4747
        %v4780 = vpack.c.bf16 %v4750, %v4749
        %v4781 = vpack.c.bf16 %v4752, %v4751
        %v4782 = vpack.c.bf16 %v4754, %v4753
        %v4783 = vpack.c.bf16 %v4756, %v4755
        %v4784 = vpack.c.bf16 %v4758, %v4757
        %v4785 = vpack.c.bf16 %v4760, %v4759
        %v4786 = vpack.c.bf16 %v4762, %v4761
        %v4787 = vpack.c.bf16 %v4764, %v4763
        %v4788 = vpack.c.bf16 %v4766, %v4765
        %v4789 = vpack.c.bf16 %v4768, %v4767
        %v4790 = vpack.c.bf16 %v4770, %v4769
        %v4791 = vpack.c.bf16 %v4772, %v4771
        %v4792 = vpack.c.bf16 %v4774, %v4773
        %v4793 = vpack.c.bf16 %v4776, %v4775
        %v4794 = vpack.c.bf16 %v4778, %v4777
        %4795 = vst [vmem:[%s293] sm:$0xff] %v4779
        %4796 = vst [vmem:[%s293 + $0x8] sm:$0xff] %v4780
        %4797 = vst [vmem:[%s293 + $0x10] sm:$0xff] %v4781
        %4798 = vst [vmem:[%s293 + $0x18] sm:$0xff] %v4782
        %4799 = vst [vmem:[%s293 + $0x20] sm:$0xff] %v4783
        %4800 = vst [vmem:[%s293 + $0x28] sm:$0xff] %v4784
        %4801 = vst [vmem:[%s293 + $0x30] sm:$0xff] %v4785
        %4802 = vst [vmem:[%s293 + $0x38] sm:$0xff] %v4786
        %4803 = vst [vmem:[%s293 + $0x40] sm:$0xff] %v4787
        %4804 = vst [vmem:[%s293 + $0x48] sm:$0xff] %v4788
        %4805 = vst [vmem:[%s293 + $0x50] sm:$0xff] %v4789
        %4806 = vst [vmem:[%s293 + $0x58] sm:$0xff] %v4790
        %4807 = vst [vmem:[%s293 + $0x60] sm:$0xff] %v4791
        %4808 = vst [vmem:[%s293 + $0x68] sm:$0xff] %v4792
        %4809 = vst [vmem:[%s293 + $0x70] sm:$0xff] %v4793
        %4810 = vst [vmem:[%s293 + $0x78] sm:$0xff] %v4794
      $region44: #{gat_forward.2} parent=35 // pred_fallthru
        _
      %s4811 = smul.u32 16, %s19
      %p4812 = scmp.lt.s32.totalorder %s4811, 31
      %s4813 = scalar_select %p4812, %s4811, 31
      %s4814 = smul.addr %s4813, 8
      %s4815 = scalar_lea.vmem %s4, %s4814
      // Predicated region
      $region45: #{gat_forward.2} parent=35 // pred_check
        %p4816 = pneg %p151
      $region46: #{gat_forward.2} parent=35 // pred_check_branch
        %4818 = sbr.rel (%p4816) target = $region48
      $region47: #{gat_forward.2} parent=35 // pred_region
        %s4819 = smul.u32 16, %s19
      $region48: #{gat_forward.2} parent=35 // pred_fallthru
        _
    $region36: #{gat_forward.2} parent=5 // pred_fallthru
      _
    %p4820 = scmp.le.s32.totalorder 2, %s10
    // Predicated region
    $region49: #{gat_forward.2} parent=5 // pred_check
      %p4821 = pneg %p4820
    $region50: #{gat_forward.2} parent=5 // pred_check_branch
      %4823 = sbr.rel (%p4821) target = $region52
    $region51: #{gat_forward.2} parent=5 // pred_region
      %s4824 = ssub.s32 %s10, 2
      // Predicated region
      $region53: #{gat_forward.2} parent=51 // pred_check
        %p4825 = pneg %p157
      $region54: #{gat_forward.2} parent=51 // pred_check_branch
        %4827 = sbr.rel (%p4825) target = $region56
      $region55: #{gat_forward.2} parent=51 // pred_region
        %s4828 = smul.u32 16, %s21
        %p4829 = scmp.lt.s32.totalorder %s4828, 31
        %s4830 = scalar_select %p4829, %s4828, 31
        %s4831 = smul.addr %s4830, 8
        %s4832 = scalar_lea.vmem %s4, %s4831
      $region56: #{gat_forward.2} parent=51 // pred_fallthru
        _
    $region52: #{gat_forward.2} parent=5 // pred_fallthru
      _
  $region6: #{gat_forward.2} parent=0 // loop_footer
    %s14 = sadd.s32 1, %s10
  $region7: #{gat_forward.2} parent=0 // loop_footer_branch
    %9 = sbr.rel target = $region3
  $region8: #{gat_forward.2} parent=0 // loop_exit
    _

// kernel: gat_forward.3
$region0: #{gat_forward.3}
  #allocation0 [shape = 'u32[]', space=smem, size = 0x4, offset = 0x4, fixed_abs, tag = 'smem constant byte address 0x4 - core index']
  #allocation1 [shape = 'u32[144,128]{1,0:T(1,128)}', space=vmem, size = 0x12000, scoped, tag = 'internal scratch']
  #allocation2 [shape = 'f32[256,1]{1,0:T(8,128)}', space=vmem, size = 0x20000, scoped, tag = 'scratch operand']
  #allocation3 [shape = 'f32[256,1]{1,0:T(8,128)}', space=vmem, size = 0x20000, scoped, tag = 'scratch operand']
  #allocation4 [shape = 'f32[256,128]{1,0:T(8,128)}', space=vmem, size = 0x20000, scoped, tag = 'scratch operand']
  %s0 = inlined_call_operand.vmem [shape: s8[512,512], index: 0, kind: input, shape index: {}]
  %s1 = inlined_call_operand.vmem [shape: bf16[512,128], index: 1, kind: input, shape index: {}]
  %s2 = inlined_call_operand.vmem [shape: f32[512,1], index: 2, kind: input, shape index: {}]
  %s3 = inlined_call_operand.vmem [shape: f32[1,512], index: 3, kind: input, shape index: {}]
  %s4 = inlined_call_operand.vmem [shape: bf16[128,128], index: 4, kind: input, shape index: {}]
  %s5 = inlined_call_operand.vmem [shape: f32[1,128], index: 5, kind: input, shape index: {}]
  %s6 = inlined_call_operand.vmem [shape: bf16[512,128], index: 6, kind: output, shape index: {0}]
  %s7 = inlined_call_operand.vmem [shape: f32[512,128], index: 7, kind: output, shape index: {1}]
  %8 = xla_tuple %s6, %s7
  %s9 = sld [smem:[#allocation0]]
  $region73: #{gat_forward.3} parent=0
    _
  %s11 = ssub.s32 1, %s9
  %s12 = scalar_select 0, %s11, %s9
  loop: start=0, step=1, limit=4
  $region2: #{gat_forward.3} parent=0 // loop_pre_header
    _
  $region3: #{gat_forward.3} parent=0 // loop_header
    %s14 = sphi 0, %s18
    %p15 = scmp.ge.s32.totalorder %s14, 4
    %s21 = sphi 0, %s33
    %s22 = sphi 0, %s29
    %s23 = sphi 0, %s21
    %s24 = sphi 0, %s22
    %s25 = sphi 0, %s23
    %s26 = sphi 0, %s24
    %s38 = sphi 0, %s40
    %s41 = sphi 0, %s38
    %s42 = sphi 0, %s41
    %s58 = sphi 0, %s42
    %s64 = sphi 0, %s66
    %s67 = sphi 0, %s64
    %s68 = sphi 0, %s67
    %s84 = sphi 0, %s68
    %s90 = sphi 0, %s92
    %s93 = sphi 0, %s90
    %s94 = sphi 0, %s93
    %s110 = sphi 0, %s94
    %s116 = sphi 0, %s118
    %s119 = sphi 0, %s116
    %s120 = sphi 0, %s119
    %s136 = sphi 0, %s120
    %s140 = sphi 0, %s140
    %s142 = sphi 0, %s140
    %s143 = sphi 0, %s142
    %s157 = sphi 0, %s143
    %s161 = sphi 0, %s161
    %s163 = sphi 0, %s161
    %s164 = sphi 0, %s163
    %s178 = sphi 0, %s164
    %s184 = sphi 0, %s186
    %s187 = sphi 0, %s184
    %s188 = sphi 0, %s187
    %s204 = sphi 0, %s188
    %s210 = sphi 0, %s212
    %s213 = sphi 0, %s210
    %s214 = sphi 0, %s213
    %s230 = sphi 0, %s214
  $region4: #{gat_forward.3} parent=0 // loop_header_branch
    %17 = sbr.rel (%p15) target = $region8
  $region5: #{gat_forward.3} parent=0 // loop_body
    %s19 = ssub.s32 %s14, 1
    %s20 = ssub.s32 %s14, 2
    %s27 = sadd.s32 1, %s22
    %p28 = scmp.ge.s32.totalorder %s27, 1
    %s29 = scalar_select %p28, 0, %s27
    %s30 = sadd.s32 1, %s21
    %s31 = scalar_select %p28, %s30, %s21
    %p32 = scmp.ge.s32.totalorder %s31, 2
    %s33 = scalar_select %p32, 0, %s31
    %s34 = ssub.s32 %s21, %s33
    %s35 = ssub.s32 %s22, %s29
    %s36 = sor.u32 %s34, %s35
    %p37 = scmp.eq.s32.totalorder %s36, 0
    %s39 = sadd.s32 %s38, 1
    %s40 = scalar_select %p37, %s38, %s39
    %p43 = pneg %p37
    %p44 = scmp.eq.s32.totalorder %s14, 1
    %p45 = por %p43, %p44
    %p46 = scmp.ne.s32.totalorder %s38, %s41
    %p47 = scmp.eq.s32.totalorder %s14, 0
    %p48 = por %p46, %p47
    %p49 = scmp.ne.s32.totalorder %s38, %s41
    %p50 = scmp.eq.s32.totalorder %s19, 1
    %p51 = por %p49, %p50
    %p52 = scmp.ne.s32.totalorder %s41, %s42
    %p53 = scmp.eq.s32.totalorder %s19, 0
    %p54 = por %p52, %p53
    %p55 = scmp.ne.s32.totalorder %s41, %s42
    %p56 = scmp.eq.s32.totalorder %s20, 1
    %p57 = por %p55, %p56
    %p59 = scmp.ne.s32.totalorder %s42, %s58
    %p60 = scmp.eq.s32.totalorder %s20, 0
    %p61 = por %p59, %p60
    %s62 = ssub.s32 %s22, %s29
    %p63 = scmp.eq.s32.totalorder %s62, 0
    %s65 = sadd.s32 %s64, 1
    %s66 = scalar_select %p63, %s64, %s65
    %p69 = pneg %p63
    %p70 = scmp.eq.s32.totalorder %s14, 1
    %p71 = por %p69, %p70
    %p72 = scmp.ne.s32.totalorder %s64, %s67
    %p73 = scmp.eq.s32.totalorder %s14, 0
    %p74 = por %p72, %p73
    %p75 = scmp.ne.s32.totalorder %s64, %s67
    %p76 = scmp.eq.s32.totalorder %s19, 1
    %p77 = por %p75, %p76
    %p78 = scmp.ne.s32.totalorder %s67, %s68
    %p79 = scmp.eq.s32.totalorder %s19, 0
    %p80 = por %p78, %p79
    %p81 = scmp.ne.s32.totalorder %s67, %s68
    %p82 = scmp.eq.s32.totalorder %s20, 1
    %p83 = por %p81, %p82
    %p85 = scmp.ne.s32.totalorder %s68, %s84
    %p86 = scmp.eq.s32.totalorder %s20, 0
    %p87 = por %p85, %p86
    %s88 = ssub.s32 %s21, %s33
    %p89 = scmp.eq.s32.totalorder %s88, 0
    %s91 = sadd.s32 %s90, 1
    %s92 = scalar_select %p89, %s90, %s91
    %p95 = pneg %p89
    %p96 = scmp.eq.s32.totalorder %s14, 1
    %p97 = por %p95, %p96
    %p98 = scmp.ne.s32.totalorder %s90, %s93
    %p99 = scmp.eq.s32.totalorder %s14, 0
    %p100 = por %p98, %p99
    %p101 = scmp.ne.s32.totalorder %s90, %s93
    %p102 = scmp.eq.s32.totalorder %s19, 1
    %p103 = por %p101, %p102
    %p104 = scmp.ne.s32.totalorder %s93, %s94
    %p105 = scmp.eq.s32.totalorder %s19, 0
    %p106 = por %p104, %p105
    %p107 = scmp.ne.s32.totalorder %s93, %s94
    %p108 = scmp.eq.s32.totalorder %s20, 1
    %p109 = por %p107, %p108
    %p111 = scmp.ne.s32.totalorder %s94, %s110
    %p112 = scmp.eq.s32.totalorder %s20, 0
    %p113 = por %p111, %p112
    %s114 = ssub.s32 %s22, %s29
    %p115 = scmp.eq.s32.totalorder %s114, 0
    %s117 = sadd.s32 %s116, 1
    %s118 = scalar_select %p115, %s116, %s117
    %p121 = pneg %p115
    %p122 = scmp.eq.s32.totalorder %s14, 1
    %p123 = por %p121, %p122
    %p124 = scmp.ne.s32.totalorder %s116, %s119
    %p125 = scmp.eq.s32.totalorder %s14, 0
    %p126 = por %p124, %p125
    %p127 = scmp.ne.s32.totalorder %s116, %s119
    %p128 = scmp.eq.s32.totalorder %s19, 1
    %p129 = por %p127, %p128
    %p130 = scmp.ne.s32.totalorder %s119, %s120
    %p131 = scmp.eq.s32.totalorder %s19, 0
    %p132 = por %p130, %p131
    %p133 = scmp.ne.s32.totalorder %s119, %s120
    %p134 = scmp.eq.s32.totalorder %s20, 1
    %p135 = por %p133, %p134
    %p137 = scmp.ne.s32.totalorder %s120, %s136
    %p138 = scmp.eq.s32.totalorder %s20, 0
    %p139 = por %p137, %p138
    %s141 = sadd.s32 %s140, 1
    %p144 = scmp.eq.s32.totalorder %s14, 1
    %p145 = scmp.ne.s32.totalorder %s140, %s142
    %p146 = scmp.eq.s32.totalorder %s14, 0
    %p147 = por %p145, %p146
    %p148 = scmp.ne.s32.totalorder %s140, %s142
    %p149 = scmp.eq.s32.totalorder %s19, 1
    %p150 = por %p148, %p149
    %p151 = scmp.ne.s32.totalorder %s142, %s143
    %p152 = scmp.eq.s32.totalorder %s19, 0
    %p153 = por %p151, %p152
    %p154 = scmp.ne.s32.totalorder %s142, %s143
    %p155 = scmp.eq.s32.totalorder %s20, 1
    %p156 = por %p154, %p155
    %p158 = scmp.ne.s32.totalorder %s143, %s157
    %p159 = scmp.eq.s32.totalorder %s20, 0
    %p160 = por %p158, %p159
    %s162 = sadd.s32 %s161, 1
    %p165 = scmp.eq.s32.totalorder %s14, 1
    %p166 = scmp.ne.s32.totalorder %s161, %s163
    %p167 = scmp.eq.s32.totalorder %s14, 0
    %p168 = por %p166, %p167
    %p169 = scmp.ne.s32.totalorder %s161, %s163
    %p170 = scmp.eq.s32.totalorder %s19, 1
    %p171 = por %p169, %p170
    %p172 = scmp.ne.s32.totalorder %s163, %s164
    %p173 = scmp.eq.s32.totalorder %s19, 0
    %p174 = por %p172, %p173
    %p175 = scmp.ne.s32.totalorder %s163, %s164
    %p176 = scmp.eq.s32.totalorder %s20, 1
    %p177 = por %p175, %p176
    %p179 = scmp.ne.s32.totalorder %s164, %s178
    %p180 = scmp.eq.s32.totalorder %s20, 0
    %p181 = por %p179, %p180
    %s182 = ssub.s32 %s21, %s33
    %p183 = scmp.eq.s32.totalorder %s182, 0
    %s185 = sadd.s32 %s184, 1
    %s186 = scalar_select %p183, %s184, %s185
    %p189 = pneg %p183
    %p190 = scmp.eq.s32.totalorder %s14, 1
    %p191 = por %p189, %p190
    %p192 = scmp.ne.s32.totalorder %s184, %s187
    %p193 = scmp.eq.s32.totalorder %s14, 0
    %p194 = por %p192, %p193
    %p195 = scmp.ne.s32.totalorder %s184, %s187
    %p196 = scmp.eq.s32.totalorder %s19, 1
    %p197 = por %p195, %p196
    %p198 = scmp.ne.s32.totalorder %s187, %s188
    %p199 = scmp.eq.s32.totalorder %s19, 0
    %p200 = por %p198, %p199
    %p201 = scmp.ne.s32.totalorder %s187, %s188
    %p202 = scmp.eq.s32.totalorder %s20, 1
    %p203 = por %p201, %p202
    %p205 = scmp.ne.s32.totalorder %s188, %s204
    %p206 = scmp.eq.s32.totalorder %s20, 0
    %p207 = por %p205, %p206
    %s208 = ssub.s32 %s21, %s33
    %p209 = scmp.eq.s32.totalorder %s208, 0
    %s211 = sadd.s32 %s210, 1
    %s212 = scalar_select %p209, %s210, %s211
    %p215 = pneg %p209
    %p216 = scmp.eq.s32.totalorder %s14, 1
    %p217 = por %p215, %p216
    %p218 = scmp.ne.s32.totalorder %s210, %s213
    %p219 = scmp.eq.s32.totalorder %s14, 0
    %p220 = por %p218, %p219
    %p221 = scmp.ne.s32.totalorder %s210, %s213
    %p222 = scmp.eq.s32.totalorder %s19, 1
    %p223 = por %p221, %p222
    %p224 = scmp.ne.s32.totalorder %s213, %s214
    %p225 = scmp.eq.s32.totalorder %s19, 0
    %p226 = por %p224, %p225
    %p227 = scmp.ne.s32.totalorder %s213, %s214
    %p228 = scmp.eq.s32.totalorder %s20, 1
    %p229 = por %p227, %p228
    %p231 = scmp.ne.s32.totalorder %s214, %s230
    %p232 = scmp.eq.s32.totalorder %s20, 0
    %p233 = por %p231, %p232
    %p234 = scmp.le.s32.totalorder 1, %s14
    %p235 = scmp.lt.s32.totalorder %s14, 3
    %p236 = pnand %p234, %p235
    %p237 = pneg %p236
    // Predicated region
    $region9: #{gat_forward.3} parent=5 // pred_check
      _
    $region10: #{gat_forward.3} parent=5 // pred_check_branch
      %239 = sbr.rel (%p236) target = $region12
    $region11: #{gat_forward.3} parent=5 // pred_region
      %s240 = ssub.s32 %s14, 1
      // Predicated region
      $region13: #{gat_forward.3} parent=11 // pred_check
        %p241 = pneg %p80
      $region14: #{gat_forward.3} parent=11 // pred_check_branch
        %243 = sbr.rel (%p241) target = $region16
      $region15: #{gat_forward.3} parent=11 // pred_region
        %s244 = smul.u32 64, %s24
        %p245 = scmp.lt.s32.totalorder %s244, 63
        %s246 = scalar_select %p245, %s244, 63
        %s247 = smul.addr %s246, 4
        %s248 = scalar_lea.vmem %s1, %s247
        %s249 = smul.u32 64, %s24
      $region16: #{gat_forward.3} parent=11 // pred_fallthru
        _
      // Predicated region
      $region17: #{gat_forward.3} parent=11 // pred_check
        %p250 = pneg %p132
      $region18: #{gat_forward.3} parent=11 // pred_check_branch
        %252 = sbr.rel (%p250) target = $region20
      $region19: #{gat_forward.3} parent=11 // pred_region
        %s253 = smul.u32 4, %s24
        %p254 = scmp.lt.s32.totalorder %s253, 3
        %s255 = scalar_select %p254, %s253, 3
        %s256 = scalar_lea.vmem %s3, %s255
        %s257 = smul.u32 4, %s24
      $region20: #{gat_forward.3} parent=11 // pred_fallthru
        _
      // Predicated region
      $region21: #{gat_forward.3} parent=11 // pred_check
        %p258 = pneg %p153
      $region22: #{gat_forward.3} parent=11 // pred_check_branch
        %260 = sbr.rel (%p258) target = $region24
      $region23: #{gat_forward.3} parent=11 // pred_region
        _
      $region24: #{gat_forward.3} parent=11 // pred_fallthru
        _
      // Predicated region
      $region25: #{gat_forward.3} parent=11 // pred_check
        %p261 = pneg %p174
      $region26: #{gat_forward.3} parent=11 // pred_check_branch
        %263 = sbr.rel (%p261) target = $region28
      $region27: #{gat_forward.3} parent=11 // pred_region
        _
      $region28: #{gat_forward.3} parent=11 // pred_fallthru
        _
    $region12: #{gat_forward.3} parent=5 // pred_fallthru
      _
    %p264 = scmp.lt.s32.totalorder %s14, 2
    // Predicated region
    $region29: #{gat_forward.3} parent=5 // pred_check
      %p265 = pneg %p264
    $region30: #{gat_forward.3} parent=5 // pred_check_branch
      %267 = sbr.rel (%p265) target = $region32
    $region31: #{gat_forward.3} parent=5 // pred_region
      // Predicated region
      $region33: #{gat_forward.3} parent=31 // pred_check
        %p268 = pneg %p48
      $region34: #{gat_forward.3} parent=31 // pred_check_branch
        %270 = sbr.rel (%p268) target = $region36
      $region35: #{gat_forward.3} parent=31 // pred_region
        %s271 = smul.u32 8, %s21
        %s272 = smul.u32 4, %s22
        %p273 = scmp.lt.s32.totalorder %s271, 15
        %s274 = scalar_select %p273, %s271, 15
        %p275 = scmp.lt.s32.totalorder %s272, 3
        %s276 = scalar_select %p275, %s272, 3
        %s277 = smul.addr %s274, 4
        %s278 = sadd.s32 %s276, %s277
        %s279 = smul.addr %s278, 8
        %s280 = scalar_lea.vmem %s0, %s279
        %s281 = smul.u32 8, %s21
        %s282 = smul.u32 4, %s22
      $region36: #{gat_forward.3} parent=31 // pred_fallthru
        _
      // Predicated region
      $region37: #{gat_forward.3} parent=31 // pred_check
        %p283 = pneg %p100
      $region38: #{gat_forward.3} parent=31 // pred_check_branch
        %285 = sbr.rel (%p283) target = $region40
      $region39: #{gat_forward.3} parent=31 // pred_region
        %s286 = smul.u32 32, %s21
        %p287 = scmp.lt.s32.totalorder %s286, 63
        %s288 = scalar_select %p287, %s286, 63
        %s289 = smul.addr %s288, 8
        %s290 = scalar_lea.vmem %s2, %s289
        %s291 = smul.u32 32, %s21
      $region40: #{gat_forward.3} parent=31 // pred_fallthru
        _
    $region32: #{gat_forward.3} parent=5 // pred_fallthru
      _
    %p292 = scmp.le.s32.totalorder 1, %s14
    %p293 = scmp.lt.s32.totalorder %s14, 3
    %p294 = pnand %p292, %p293
    %p295 = pneg %p294
    // Predicated region
    $region41: #{gat_forward.3} parent=5 // pred_check
      _
    $region42: #{gat_forward.3} parent=5 // pred_check_branch
      %297 = sbr.rel (%p294) target = $region44
    $region43: #{gat_forward.3} parent=5 // pred_region
      %s298 = ssub.s32 %s14, 1
      %s299 = smul.u32 8, %s23
      %s300 = smul.u32 4, %s24
      %p301 = scmp.lt.s32.totalorder %s299, 15
      %s302 = scalar_select %p301, %s299, 15
      %p303 = scmp.lt.s32.totalorder %s300, 3
      %s304 = scalar_select %p303, %s300, 3
      %s305 = smul.addr %s302, 4
      %s306 = sadd.s32 %s304, %s305
      %s307 = smul.addr %s306, 8
      %s308 = scalar_lea.vmem %s0, %s307
      %p309 = pneg %p54
      %p310 = pneg %p51
      %s311 = smul.u32 64, %s24
      %p312 = scmp.lt.s32.totalorder %s311, 63
      %s313 = scalar_select %p312, %s311, 63
      %s314 = smul.addr %s313, 4
      %s315 = scalar_lea.vmem %s1, %s314
      %p316 = pneg %p80
      %p317 = pneg %p77
      %s318 = smul.u32 32, %s23
      %p319 = scmp.lt.s32.totalorder %s318, 63
      %s320 = scalar_select %p319, %s318, 63
      %s321 = smul.addr %s320, 8
      %s322 = scalar_lea.vmem %s2, %s321
      %p323 = pneg %p106
      %p324 = pneg %p103
      %s325 = smul.u32 4, %s24
      %p326 = scmp.lt.s32.totalorder %s325, 3
      %s327 = scalar_select %p326, %s325, 3
      %s328 = scalar_lea.vmem %s3, %s327
      %p329 = pneg %p132
      %p330 = pneg %p129
      %p331 = pneg %p153
      %p332 = pneg %p150
      %p333 = pneg %p174
      %p334 = pneg %p171
      %p335 = pneg %p200
      %p336 = pneg %p197
      %s337 = smul.u32 32, %s23
      %p338 = scmp.lt.s32.totalorder %s337, 63
      %s339 = scalar_select %p338, %s337, 63
      %s340 = smul.addr %s339, 4
      %s341 = scalar_lea.vmem %s6, %s340
      %p342 = pneg %p226
      %p343 = pneg %p223
      %s344 = smul.u32 32, %s23
      %p345 = scmp.lt.s32.totalorder %s344, 63
      %s346 = scalar_select %p345, %s344, 63
      %s347 = smul.addr %s346, 8
      %s348 = scalar_lea.vmem %s7, %s347
      %s349 = smul.u32 8, %s23
      %s350 = smul.u32 4, %s24
      %p351 = scmp.lt.s32.totalorder %s349, 15
      %s352 = scalar_select %p351, %s349, 15
      %p353 = scmp.lt.s32.totalorder %s350, 3
      %s354 = scalar_select %p353, %s350, 3
      %s355 = smul.addr %s352, 4
      %s356 = sadd.s32 %s354, %s355
      %s357 = smul.addr %s356, 8
      %s358 = scalar_lea.vmem %s0, %s357
      %s359 = smul.u32 8, %s23
      %s360 = smul.u32 4, %s24
      %s361 = smul.u32 64, %s24
      %p362 = scmp.lt.s32.totalorder %s361, 63
      %s363 = scalar_select %p362, %s361, 63
      %s364 = smul.addr %s363, 4
      %s365 = scalar_lea.vmem %s1, %s364
      %s366 = smul.u32 64, %s24
      %s367 = smul.u32 32, %s23
      %p368 = scmp.lt.s32.totalorder %s367, 63
      %s369 = scalar_select %p368, %s367, 63
      %s370 = smul.addr %s369, 8
      %s371 = scalar_lea.vmem %s2, %s370
      %s372 = smul.u32 32, %s23
      %s373 = smul.u32 4, %s24
      %p374 = scmp.lt.s32.totalorder %s373, 3
      %s375 = scalar_select %p374, %s373, 3
      %s376 = scalar_lea.vmem %s3, %s375
      %s377 = smul.u32 4, %s24
      %s378 = smul.u32 32, %s23
      %p379 = scmp.lt.s32.totalorder %s378, 63
      %s380 = scalar_select %p379, %s378, 63
      %s381 = smul.addr %s380, 4
      %s382 = scalar_lea.vmem %s6, %s381
      %s383 = smul.u32 32, %s23
      %s384 = smul.u32 32, %s23
      %p385 = scmp.lt.s32.totalorder %s384, 63
      %s386 = scalar_select %p385, %s384, 63
      %s387 = smul.addr %s386, 8
      %s388 = scalar_lea.vmem %s7, %s387
      %s389 = smul.u32 32, %s23
      %p393 = scmp.eq.s32.totalorder %s24, 0
      // Predicated region
      $region45: #{gat_forward.3} parent=43 // pred_check
        %p394 = pneg %p393
      $region46: #{gat_forward.3} parent=43 // pred_check_branch
        %396 = sbr.rel (%p394) target = $region48
      $region47: #{gat_forward.3} parent=43 // pred_region
        %vm397 = vcmask 7168
        %398 = vst.msk [vmem:[#allocation2] sm:$0xff] %vm397, -1e+30
        %399 = vst.msk [vmem:[#allocation2 + $0x8] sm:$0xff] %vm397, -1e+30
        %400 = vst.msk [vmem:[#allocation2 + $0x10] sm:$0xff] %vm397, -1e+30
        %401 = vst.msk [vmem:[#allocation2 + $0x18] sm:$0xff] %vm397, -1e+30
        %402 = vst.msk [vmem:[#allocation2 + $0x20] sm:$0xff] %vm397, -1e+30
        %403 = vst.msk [vmem:[#allocation2 + $0x28] sm:$0xff] %vm397, -1e+30
        %404 = vst.msk [vmem:[#allocation2 + $0x30] sm:$0xff] %vm397, -1e+30
        %405 = vst.msk [vmem:[#allocation2 + $0x38] sm:$0xff] %vm397, -1e+30
        %406 = vst.msk [vmem:[#allocation2 + $0x40] sm:$0xff] %vm397, -1e+30
        %407 = vst.msk [vmem:[#allocation2 + $0x48] sm:$0xff] %vm397, -1e+30
        %408 = vst.msk [vmem:[#allocation2 + $0x50] sm:$0xff] %vm397, -1e+30
        %409 = vst.msk [vmem:[#allocation2 + $0x58] sm:$0xff] %vm397, -1e+30
        %410 = vst.msk [vmem:[#allocation2 + $0x60] sm:$0xff] %vm397, -1e+30
        %411 = vst.msk [vmem:[#allocation2 + $0x68] sm:$0xff] %vm397, -1e+30
        %412 = vst.msk [vmem:[#allocation2 + $0x70] sm:$0xff] %vm397, -1e+30
        %413 = vst.msk [vmem:[#allocation2 + $0x78] sm:$0xff] %vm397, -1e+30
        %414 = vst.msk [vmem:[#allocation2 + $0x80] sm:$0xff] %vm397, -1e+30
        %415 = vst.msk [vmem:[#allocation2 + $0x88] sm:$0xff] %vm397, -1e+30
        %416 = vst.msk [vmem:[#allocation2 + $0x90] sm:$0xff] %vm397, -1e+30
        %417 = vst.msk [vmem:[#allocation2 + $0x98] sm:$0xff] %vm397, -1e+30
        %418 = vst.msk [vmem:[#allocation2 + $0xa0] sm:$0xff] %vm397, -1e+30
        %419 = vst.msk [vmem:[#allocation2 + $0xa8] sm:$0xff] %vm397, -1e+30
        %420 = vst.msk [vmem:[#allocation2 + $0xb0] sm:$0xff] %vm397, -1e+30
        %421 = vst.msk [vmem:[#allocation2 + $0xb8] sm:$0xff] %vm397, -1e+30
        %422 = vst.msk [vmem:[#allocation2 + $0xc0] sm:$0xff] %vm397, -1e+30
        %423 = vst.msk [vmem:[#allocation2 + $0xc8] sm:$0xff] %vm397, -1e+30
        %424 = vst.msk [vmem:[#allocation2 + $0xd0] sm:$0xff] %vm397, -1e+30
        %425 = vst.msk [vmem:[#allocation2 + $0xd8] sm:$0xff] %vm397, -1e+30
        %426 = vst.msk [vmem:[#allocation2 + $0xe0] sm:$0xff] %vm397, -1e+30
        %427 = vst.msk [vmem:[#allocation2 + $0xe8] sm:$0xff] %vm397, -1e+30
        %428 = vst.msk [vmem:[#allocation2 + $0xf0] sm:$0xff] %vm397, -1e+30
        %429 = vst.msk [vmem:[#allocation2 + $0xf8] sm:$0xff] %vm397, -1e+30
        %430 = vst.msk [vmem:[#allocation3] sm:$0xff] %vm397, 0.0
        %431 = vst.msk [vmem:[#allocation3 + $0x8] sm:$0xff] %vm397, 0.0
        %432 = vst.msk [vmem:[#allocation3 + $0x10] sm:$0xff] %vm397, 0.0
        %433 = vst.msk [vmem:[#allocation3 + $0x18] sm:$0xff] %vm397, 0.0
        %434 = vst.msk [vmem:[#allocation3 + $0x20] sm:$0xff] %vm397, 0.0
        %435 = vst.msk [vmem:[#allocation3 + $0x28] sm:$0xff] %vm397, 0.0
        %436 = vst.msk [vmem:[#allocation3 + $0x30] sm:$0xff] %vm397, 0.0
        %437 = vst.msk [vmem:[#allocation3 + $0x38] sm:$0xff] %vm397, 0.0
        %438 = vst.msk [vmem:[#allocation3 + $0x40] sm:$0xff] %vm397, 0.0
        %439 = vst.msk [vmem:[#allocation3 + $0x48] sm:$0xff] %vm397, 0.0
        %440 = vst.msk [vmem:[#allocation3 + $0x50] sm:$0xff] %vm397, 0.0
        %441 = vst.msk [vmem:[#allocation3 + $0x58] sm:$0xff] %vm397, 0.0
        %442 = vst.msk [vmem:[#allocation3 + $0x60] sm:$0xff] %vm397, 0.0
        %443 = vst.msk [vmem:[#allocation3 + $0x68] sm:$0xff] %vm397, 0.0
        %444 = vst.msk [vmem:[#allocation3 + $0x70] sm:$0xff] %vm397, 0.0
        %445 = vst.msk [vmem:[#allocation3 + $0x78] sm:$0xff] %vm397, 0.0
        %446 = vst.msk [vmem:[#allocation3 + $0x80] sm:$0xff] %vm397, 0.0
        %447 = vst.msk [vmem:[#allocation3 + $0x88] sm:$0xff] %vm397, 0.0
        %448 = vst.msk [vmem:[#allocation3 + $0x90] sm:$0xff] %vm397, 0.0
        %449 = vst.msk [vmem:[#allocation3 + $0x98] sm:$0xff] %vm397, 0.0
        %450 = vst.msk [vmem:[#allocation3 + $0xa0] sm:$0xff] %vm397, 0.0
        %451 = vst.msk [vmem:[#allocation3 + $0xa8] sm:$0xff] %vm397, 0.0
        %452 = vst.msk [vmem:[#allocation3 + $0xb0] sm:$0xff] %vm397, 0.0
        %453 = vst.msk [vmem:[#allocation3 + $0xb8] sm:$0xff] %vm397, 0.0
        %454 = vst.msk [vmem:[#allocation3 + $0xc0] sm:$0xff] %vm397, 0.0
        %455 = vst.msk [vmem:[#allocation3 + $0xc8] sm:$0xff] %vm397, 0.0
        %456 = vst.msk [vmem:[#allocation3 + $0xd0] sm:$0xff] %vm397, 0.0
        %457 = vst.msk [vmem:[#allocation3 + $0xd8] sm:$0xff] %vm397, 0.0
        %458 = vst.msk [vmem:[#allocation3 + $0xe0] sm:$0xff] %vm397, 0.0
        %459 = vst.msk [vmem:[#allocation3 + $0xe8] sm:$0xff] %vm397, 0.0
        %460 = vst.msk [vmem:[#allocation3 + $0xf0] sm:$0xff] %vm397, 0.0
        %461 = vst.msk [vmem:[#allocation3 + $0xf8] sm:$0xff] %vm397, 0.0
        %462 = vst [vmem:[#allocation4] sm:$0xff] 0.0
        %463 = vst [vmem:[#allocation4 + $0x8] sm:$0xff] 0.0
        %464 = vst [vmem:[#allocation4 + $0x10] sm:$0xff] 0.0
        %465 = vst [vmem:[#allocation4 + $0x18] sm:$0xff] 0.0
        %466 = vst [vmem:[#allocation4 + $0x20] sm:$0xff] 0.0
        %467 = vst [vmem:[#allocation4 + $0x28] sm:$0xff] 0.0
        %468 = vst [vmem:[#allocation4 + $0x30] sm:$0xff] 0.0
        %469 = vst [vmem:[#allocation4 + $0x38] sm:$0xff] 0.0
        %470 = vst [vmem:[#allocation4 + $0x40] sm:$0xff] 0.0
        %471 = vst [vmem:[#allocation4 + $0x48] sm:$0xff] 0.0
        %472 = vst [vmem:[#allocation4 + $0x50] sm:$0xff] 0.0
        %473 = vst [vmem:[#allocation4 + $0x58] sm:$0xff] 0.0
        %474 = vst [vmem:[#allocation4 + $0x60] sm:$0xff] 0.0
        %475 = vst [vmem:[#allocation4 + $0x68] sm:$0xff] 0.0
        %476 = vst [vmem:[#allocation4 + $0x70] sm:$0xff] 0.0
        %477 = vst [vmem:[#allocation4 + $0x78] sm:$0xff] 0.0
        %478 = vst [vmem:[#allocation4 + $0x80] sm:$0xff] 0.0
        %479 = vst [vmem:[#allocation4 + $0x88] sm:$0xff] 0.0
        %480 = vst [vmem:[#allocation4 + $0x90] sm:$0xff] 0.0
        %481 = vst [vmem:[#allocation4 + $0x98] sm:$0xff] 0.0
        %482 = vst [vmem:[#allocation4 + $0xa0] sm:$0xff] 0.0
        %483 = vst [vmem:[#allocation4 + $0xa8] sm:$0xff] 0.0
        %484 = vst [vmem:[#allocation4 + $0xb0] sm:$0xff] 0.0
        %485 = vst [vmem:[#allocation4 + $0xb8] sm:$0xff] 0.0
        %486 = vst [vmem:[#allocation4 + $0xc0] sm:$0xff] 0.0
        %487 = vst [vmem:[#allocation4 + $0xc8] sm:$0xff] 0.0
        %488 = vst [vmem:[#allocation4 + $0xd0] sm:$0xff] 0.0
        %489 = vst [vmem:[#allocation4 + $0xd8] sm:$0xff] 0.0
        %490 = vst [vmem:[#allocation4 + $0xe0] sm:$0xff] 0.0
        %491 = vst [vmem:[#allocation4 + $0xe8] sm:$0xff] 0.0
        %492 = vst [vmem:[#allocation4 + $0xf0] sm:$0xff] 0.0
        %493 = vst [vmem:[#allocation4 + $0xf8] sm:$0xff] 0.0
      $region48: #{gat_forward.3} parent=43 // pred_fallthru
        _
      %v494 = vld [vmem:[%s371] sm:$0xff]
      %v495 = vld [vmem:[%s371 + $0x8] sm:$0xff]
      %v496 = vld [vmem:[%s371 + $0x10] sm:$0xff]
      %v497 = vld [vmem:[%s371 + $0x18] sm:$0xff]
      %v498 = vld [vmem:[%s371 + $0x20] sm:$0xff]
      %v499 = vld [vmem:[%s371 + $0x28] sm:$0xff]
      %v500 = vld [vmem:[%s371 + $0x30] sm:$0xff]
      %v501 = vld [vmem:[%s371 + $0x38] sm:$0xff]
      %v502 = vld [vmem:[%s371 + $0x40] sm:$0xff]
      %v503 = vld [vmem:[%s371 + $0x48] sm:$0xff]
      %v504 = vld [vmem:[%s371 + $0x50] sm:$0xff]
      %v505 = vld [vmem:[%s371 + $0x58] sm:$0xff]
      %v506 = vld [vmem:[%s371 + $0x60] sm:$0xff]
      %v507 = vld [vmem:[%s371 + $0x68] sm:$0xff]
      %v508 = vld [vmem:[%s371 + $0x70] sm:$0xff]
      %v509 = vld [vmem:[%s371 + $0x78] sm:$0xff]
      %v510 = vld [vmem:[%s371 + $0x80] sm:$0xff]
      %v511 = vld [vmem:[%s371 + $0x88] sm:$0xff]
      %v512 = vld [vmem:[%s371 + $0x90] sm:$0xff]
      %v513 = vld [vmem:[%s371 + $0x98] sm:$0xff]
      %v514 = vld [vmem:[%s371 + $0xa0] sm:$0xff]
      %v515 = vld [vmem:[%s371 + $0xa8] sm:$0xff]
      %v516 = vld [vmem:[%s371 + $0xb0] sm:$0xff]
      %v517 = vld [vmem:[%s371 + $0xb8] sm:$0xff]
      %v518 = vld [vmem:[%s371 + $0xc0] sm:$0xff]
      %v519 = vld [vmem:[%s371 + $0xc8] sm:$0xff]
      %v520 = vld [vmem:[%s371 + $0xd0] sm:$0xff]
      %v521 = vld [vmem:[%s371 + $0xd8] sm:$0xff]
      %v522 = vld [vmem:[%s371 + $0xe0] sm:$0xff]
      %v523 = vld [vmem:[%s371 + $0xe8] sm:$0xff]
      %v524 = vld [vmem:[%s371 + $0xf0] sm:$0xff]
      %v525 = vld [vmem:[%s371 + $0xf8] sm:$0xff]
      %v526 = vld [vmem:[%s376] sm:$0xf]
      %528 = vset.pattern.permute.xlu0 0
      %529 = vperm.xlu0 %528, %v494
      %v530 = vpop.permute.xlu0 %529
      %533 = vset.pattern.permute.xlu0 0
      %534 = vperm.xlu0 %533, %v495
      %v535 = vpop.permute.xlu0 %534
      %538 = vset.pattern.permute.xlu0 0
      %539 = vperm.xlu0 %538, %v496
      %v540 = vpop.permute.xlu0 %539
      %543 = vset.pattern.permute.xlu0 0
      %544 = vperm.xlu0 %543, %v497
      %v545 = vpop.permute.xlu0 %544
      %548 = vset.pattern.permute.xlu0 0
      %549 = vperm.xlu0 %548, %v498
      %v550 = vpop.permute.xlu0 %549
      %553 = vset.pattern.permute.xlu0 0
      %554 = vperm.xlu0 %553, %v499
      %v555 = vpop.permute.xlu0 %554
      %558 = vset.pattern.permute.xlu0 0
      %559 = vperm.xlu0 %558, %v500
      %v560 = vpop.permute.xlu0 %559
      %563 = vset.pattern.permute.xlu0 0
      %564 = vperm.xlu0 %563, %v501
      %v565 = vpop.permute.xlu0 %564
      %568 = vset.pattern.permute.xlu0 0
      %569 = vperm.xlu0 %568, %v502
      %v570 = vpop.permute.xlu0 %569
      %573 = vset.pattern.permute.xlu0 0
      %574 = vperm.xlu0 %573, %v503
      %v575 = vpop.permute.xlu0 %574
      %578 = vset.pattern.permute.xlu0 0
      %579 = vperm.xlu0 %578, %v504
      %v580 = vpop.permute.xlu0 %579
      %583 = vset.pattern.permute.xlu0 0
      %584 = vperm.xlu0 %583, %v505
      %v585 = vpop.permute.xlu0 %584
      %588 = vset.pattern.permute.xlu0 0
      %589 = vperm.xlu0 %588, %v506
      %v590 = vpop.permute.xlu0 %589
      %593 = vset.pattern.permute.xlu0 0
      %594 = vperm.xlu0 %593, %v507
      %v595 = vpop.permute.xlu0 %594
      %598 = vset.pattern.permute.xlu0 0
      %599 = vperm.xlu0 %598, %v508
      %v600 = vpop.permute.xlu0 %599
      %603 = vset.pattern.permute.xlu0 0
      %604 = vperm.xlu0 %603, %v509
      %v605 = vpop.permute.xlu0 %604
      %608 = vset.pattern.permute.xlu0 0
      %609 = vperm.xlu0 %608, %v510
      %v610 = vpop.permute.xlu0 %609
      %613 = vset.pattern.permute.xlu0 0
      %614 = vperm.xlu0 %613, %v511
      %v615 = vpop.permute.xlu0 %614
      %618 = vset.pattern.permute.xlu0 0
      %619 = vperm.xlu0 %618, %v512
      %v620 = vpop.permute.xlu0 %619
      %623 = vset.pattern.permute.xlu0 0
      %624 = vperm.xlu0 %623, %v513
      %v625 = vpop.permute.xlu0 %624
      %628 = vset.pattern.permute.xlu0 0
      %629 = vperm.xlu0 %628, %v514
      %v630 = vpop.permute.xlu0 %629
      %633 = vset.pattern.permute.xlu0 0
      %634 = vperm.xlu0 %633, %v515
      %v635 = vpop.permute.xlu0 %634
      %638 = vset.pattern.permute.xlu0 0
      %639 = vperm.xlu0 %638, %v516
      %v640 = vpop.permute.xlu0 %639
      %643 = vset.pattern.permute.xlu0 0
      %644 = vperm.xlu0 %643, %v517
      %v645 = vpop.permute.xlu0 %644
      %648 = vset.pattern.permute.xlu0 0
      %649 = vperm.xlu0 %648, %v518
      %v650 = vpop.permute.xlu0 %649
      %653 = vset.pattern.permute.xlu0 0
      %654 = vperm.xlu0 %653, %v519
      %v655 = vpop.permute.xlu0 %654
      %658 = vset.pattern.permute.xlu0 0
      %659 = vperm.xlu0 %658, %v520
      %v660 = vpop.permute.xlu0 %659
      %663 = vset.pattern.permute.xlu0 0
      %664 = vperm.xlu0 %663, %v521
      %v665 = vpop.permute.xlu0 %664
      %668 = vset.pattern.permute.xlu0 0
      %669 = vperm.xlu0 %668, %v522
      %v670 = vpop.permute.xlu0 %669
      %673 = vset.pattern.permute.xlu0 0
      %674 = vperm.xlu0 %673, %v523
      %v675 = vpop.permute.xlu0 %674
      %678 = vset.pattern.permute.xlu0 0
      %679 = vperm.xlu0 %678, %v524
      %v680 = vpop.permute.xlu0 %679
      %683 = vset.pattern.permute.xlu0 0
      %684 = vperm.xlu0 %683, %v525
      %v685 = vpop.permute.xlu0 %684
      %v688 = vlaneseq
      %v689 = vshrl.u32 %v688, 7
      %v690 = vsub.s32 0, %v689
      %v691 = vrot.slane %v526, %v690
      %v692 = vlaneseq
      %v693 = vshrl.u32 %v692, 7
      %v694 = vsub.s32 1, %v693
      %v695 = vrot.slane %v526, %v694
      %v696 = vlaneseq
      %v697 = vshrl.u32 %v696, 7
      %v698 = vsub.s32 2, %v697
      %v699 = vrot.slane %v526, %v698
      %v700 = vlaneseq
      %v701 = vshrl.u32 %v700, 7
      %v702 = vsub.s32 3, %v701
      %v703 = vrot.slane %v526, %v702
      %v708 = vadd.f32 %v530, %v691
      %v709 = vadd.f32 %v530, %v695
      %v710 = vadd.f32 %v530, %v699
      %v711 = vadd.f32 %v530, %v703
      %v712 = vadd.f32 %v535, %v691
      %v713 = vadd.f32 %v535, %v695
      %v714 = vadd.f32 %v535, %v699
      %v715 = vadd.f32 %v535, %v703
      %v716 = vadd.f32 %v540, %v691
      %v717 = vadd.f32 %v540, %v695
      %v718 = vadd.f32 %v540, %v699
      %v719 = vadd.f32 %v540, %v703
      %v720 = vadd.f32 %v545, %v691
      %v721 = vadd.f32 %v545, %v695
      %v722 = vadd.f32 %v545, %v699
      %v723 = vadd.f32 %v545, %v703
      %v724 = vadd.f32 %v550, %v691
      %v725 = vadd.f32 %v550, %v695
      %v726 = vadd.f32 %v550, %v699
      %v727 = vadd.f32 %v550, %v703
      %v728 = vadd.f32 %v555, %v691
      %v729 = vadd.f32 %v555, %v695
      %v730 = vadd.f32 %v555, %v699
      %v731 = vadd.f32 %v555, %v703
      %v732 = vadd.f32 %v560, %v691
      %v733 = vadd.f32 %v560, %v695
      %v734 = vadd.f32 %v560, %v699
      %v735 = vadd.f32 %v560, %v703
      %v736 = vadd.f32 %v565, %v691
      %v737 = vadd.f32 %v565, %v695
      %v738 = vadd.f32 %v565, %v699
      %v739 = vadd.f32 %v565, %v703
      %v740 = vadd.f32 %v570, %v691
      %v741 = vadd.f32 %v570, %v695
      %v742 = vadd.f32 %v570, %v699
      %v743 = vadd.f32 %v570, %v703
      %v744 = vadd.f32 %v575, %v691
      %v745 = vadd.f32 %v575, %v695
      %v746 = vadd.f32 %v575, %v699
      %v747 = vadd.f32 %v575, %v703
      %v748 = vadd.f32 %v580, %v691
      %v749 = vadd.f32 %v580, %v695
      %v750 = vadd.f32 %v580, %v699
      %v751 = vadd.f32 %v580, %v703
      %v752 = vadd.f32 %v585, %v691
      %v753 = vadd.f32 %v585, %v695
      %v754 = vadd.f32 %v585, %v699
      %v755 = vadd.f32 %v585, %v703
      %v756 = vadd.f32 %v590, %v691
      %v757 = vadd.f32 %v590, %v695
      %v758 = vadd.f32 %v590, %v699
      %v759 = vadd.f32 %v590, %v703
      %v760 = vadd.f32 %v595, %v691
      %v761 = vadd.f32 %v595, %v695
      %v762 = vadd.f32 %v595, %v699
      %v763 = vadd.f32 %v595, %v703
      %v764 = vadd.f32 %v600, %v691
      %v765 = vadd.f32 %v600, %v695
      %v766 = vadd.f32 %v600, %v699
      %v767 = vadd.f32 %v600, %v703
      %v768 = vadd.f32 %v605, %v691
      %v769 = vadd.f32 %v605, %v695
      %v770 = vadd.f32 %v605, %v699
      %v771 = vadd.f32 %v605, %v703
      %v772 = vadd.f32 %v610, %v691
      %v773 = vadd.f32 %v610, %v695
      %v774 = vadd.f32 %v610, %v699
      %v775 = vadd.f32 %v610, %v703
      %v776 = vadd.f32 %v615, %v691
      %v777 = vadd.f32 %v615, %v695
      %v778 = vadd.f32 %v615, %v699
      %v779 = vadd.f32 %v615, %v703
      %v780 = vadd.f32 %v620, %v691
      %v781 = vadd.f32 %v620, %v695
      %v782 = vadd.f32 %v620, %v699
      %v783 = vadd.f32 %v620, %v703
      %v784 = vadd.f32 %v625, %v691
      %v785 = vadd.f32 %v625, %v695
      %v786 = vadd.f32 %v625, %v699
      %v787 = vadd.f32 %v625, %v703
      %v788 = vadd.f32 %v630, %v691
      %v789 = vadd.f32 %v630, %v695
      %v790 = vadd.f32 %v630, %v699
      %v791 = vadd.f32 %v630, %v703
      %v792 = vadd.f32 %v635, %v691
      %v793 = vadd.f32 %v635, %v695
      %v794 = vadd.f32 %v635, %v699
      %v795 = vadd.f32 %v635, %v703
      %v796 = vadd.f32 %v640, %v691
      %v797 = vadd.f32 %v640, %v695
      %v798 = vadd.f32 %v640, %v699
      %v799 = vadd.f32 %v640, %v703
      %v800 = vadd.f32 %v645, %v691
      %v801 = vadd.f32 %v645, %v695
      %v802 = vadd.f32 %v645, %v699
      %v803 = vadd.f32 %v645, %v703
      %v804 = vadd.f32 %v650, %v691
      %v805 = vadd.f32 %v650, %v695
      %v806 = vadd.f32 %v650, %v699
      %v807 = vadd.f32 %v650, %v703
      %v808 = vadd.f32 %v655, %v691
      %v809 = vadd.f32 %v655, %v695
      %v810 = vadd.f32 %v655, %v699
      %v811 = vadd.f32 %v655, %v703
      %v812 = vadd.f32 %v660, %v691
      %v813 = vadd.f32 %v660, %v695
      %v814 = vadd.f32 %v660, %v699
      %v815 = vadd.f32 %v660, %v703
      %v816 = vadd.f32 %v665, %v691
      %v817 = vadd.f32 %v665, %v695
      %v818 = vadd.f32 %v665, %v699
      %v819 = vadd.f32 %v665, %v703
      %v820 = vadd.f32 %v670, %v691
      %v821 = vadd.f32 %v670, %v695
      %v822 = vadd.f32 %v670, %v699
      %v823 = vadd.f32 %v670, %v703
      %v824 = vadd.f32 %v675, %v691
      %v825 = vadd.f32 %v675, %v695
      %v826 = vadd.f32 %v675, %v699
      %v827 = vadd.f32 %v675, %v703
      %v828 = vadd.f32 %v680, %v691
      %v829 = vadd.f32 %v680, %v695
      %v830 = vadd.f32 %v680, %v699
      %v831 = vadd.f32 %v680, %v703
      %v832 = vadd.f32 %v685, %v691
      %v833 = vadd.f32 %v685, %v695
      %v834 = vadd.f32 %v685, %v699
      %v835 = vadd.f32 %v685, %v703
      %vm836 = vcmp.gt.f32.partialorder %v708, 0.0
      %vm837 = vcmp.gt.f32.partialorder %v709, 0.0
      %vm838 = vcmp.gt.f32.partialorder %v710, 0.0
      %vm839 = vcmp.gt.f32.partialorder %v711, 0.0
      %vm840 = vcmp.gt.f32.partialorder %v712, 0.0
      %vm841 = vcmp.gt.f32.partialorder %v713, 0.0
      %vm842 = vcmp.gt.f32.partialorder %v714, 0.0
      %vm843 = vcmp.gt.f32.partialorder %v715, 0.0
      %vm844 = vcmp.gt.f32.partialorder %v716, 0.0
      %vm845 = vcmp.gt.f32.partialorder %v717, 0.0
      %vm846 = vcmp.gt.f32.partialorder %v718, 0.0
      %vm847 = vcmp.gt.f32.partialorder %v719, 0.0
      %vm848 = vcmp.gt.f32.partialorder %v720, 0.0
      %vm849 = vcmp.gt.f32.partialorder %v721, 0.0
      %vm850 = vcmp.gt.f32.partialorder %v722, 0.0
      %vm851 = vcmp.gt.f32.partialorder %v723, 0.0
      %vm852 = vcmp.gt.f32.partialorder %v724, 0.0
      %vm853 = vcmp.gt.f32.partialorder %v725, 0.0
      %vm854 = vcmp.gt.f32.partialorder %v726, 0.0
      %vm855 = vcmp.gt.f32.partialorder %v727, 0.0
      %vm856 = vcmp.gt.f32.partialorder %v728, 0.0
      %vm857 = vcmp.gt.f32.partialorder %v729, 0.0
      %vm858 = vcmp.gt.f32.partialorder %v730, 0.0
      %vm859 = vcmp.gt.f32.partialorder %v731, 0.0
      %vm860 = vcmp.gt.f32.partialorder %v732, 0.0
      %vm861 = vcmp.gt.f32.partialorder %v733, 0.0
      %vm862 = vcmp.gt.f32.partialorder %v734, 0.0
      %vm863 = vcmp.gt.f32.partialorder %v735, 0.0
      %vm864 = vcmp.gt.f32.partialorder %v736, 0.0
      %vm865 = vcmp.gt.f32.partialorder %v737, 0.0
      %vm866 = vcmp.gt.f32.partialorder %v738, 0.0
      %vm867 = vcmp.gt.f32.partialorder %v739, 0.0
      %vm868 = vcmp.gt.f32.partialorder %v740, 0.0
      %vm869 = vcmp.gt.f32.partialorder %v741, 0.0
      %vm870 = vcmp.gt.f32.partialorder %v742, 0.0
      %vm871 = vcmp.gt.f32.partialorder %v743, 0.0
      %vm872 = vcmp.gt.f32.partialorder %v744, 0.0
      %vm873 = vcmp.gt.f32.partialorder %v745, 0.0
      %vm874 = vcmp.gt.f32.partialorder %v746, 0.0
      %vm875 = vcmp.gt.f32.partialorder %v747, 0.0
      %vm876 = vcmp.gt.f32.partialorder %v748, 0.0
      %vm877 = vcmp.gt.f32.partialorder %v749, 0.0
      %vm878 = vcmp.gt.f32.partialorder %v750, 0.0
      %vm879 = vcmp.gt.f32.partialorder %v751, 0.0
      %vm880 = vcmp.gt.f32.partialorder %v752, 0.0
      %vm881 = vcmp.gt.f32.partialorder %v753, 0.0
      %vm882 = vcmp.gt.f32.partialorder %v754, 0.0
      %vm883 = vcmp.gt.f32.partialorder %v755, 0.0
      %vm884 = vcmp.gt.f32.partialorder %v756, 0.0
      %vm885 = vcmp.gt.f32.partialorder %v757, 0.0
      %vm886 = vcmp.gt.f32.partialorder %v758, 0.0
      %vm887 = vcmp.gt.f32.partialorder %v759, 0.0
      %vm888 = vcmp.gt.f32.partialorder %v760, 0.0
      %vm889 = vcmp.gt.f32.partialorder %v761, 0.0
      %vm890 = vcmp.gt.f32.partialorder %v762, 0.0
      %vm891 = vcmp.gt.f32.partialorder %v763, 0.0
      %vm892 = vcmp.gt.f32.partialorder %v764, 0.0
      %vm893 = vcmp.gt.f32.partialorder %v765, 0.0
      %vm894 = vcmp.gt.f32.partialorder %v766, 0.0
      %vm895 = vcmp.gt.f32.partialorder %v767, 0.0
      %vm896 = vcmp.gt.f32.partialorder %v768, 0.0
      %vm897 = vcmp.gt.f32.partialorder %v769, 0.0
      %vm898 = vcmp.gt.f32.partialorder %v770, 0.0
      %vm899 = vcmp.gt.f32.partialorder %v771, 0.0
      %vm900 = vcmp.gt.f32.partialorder %v772, 0.0
      %vm901 = vcmp.gt.f32.partialorder %v773, 0.0
      %vm902 = vcmp.gt.f32.partialorder %v774, 0.0
      %vm903 = vcmp.gt.f32.partialorder %v775, 0.0
      %vm904 = vcmp.gt.f32.partialorder %v776, 0.0
      %vm905 = vcmp.gt.f32.partialorder %v777, 0.0
      %vm906 = vcmp.gt.f32.partialorder %v778, 0.0
      %vm907 = vcmp.gt.f32.partialorder %v779, 0.0
      %vm908 = vcmp.gt.f32.partialorder %v780, 0.0
      %vm909 = vcmp.gt.f32.partialorder %v781, 0.0
      %vm910 = vcmp.gt.f32.partialorder %v782, 0.0
      %vm911 = vcmp.gt.f32.partialorder %v783, 0.0
      %vm912 = vcmp.gt.f32.partialorder %v784, 0.0
      %vm913 = vcmp.gt.f32.partialorder %v785, 0.0
      %vm914 = vcmp.gt.f32.partialorder %v786, 0.0
      %vm915 = vcmp.gt.f32.partialorder %v787, 0.0
      %vm916 = vcmp.gt.f32.partialorder %v788, 0.0
      %vm917 = vcmp.gt.f32.partialorder %v789, 0.0
      %vm918 = vcmp.gt.f32.partialorder %v790, 0.0
      %vm919 = vcmp.gt.f32.partialorder %v791, 0.0
      %vm920 = vcmp.gt.f32.partialorder %v792, 0.0
      %vm921 = vcmp.gt.f32.partialorder %v793, 0.0
      %vm922 = vcmp.gt.f32.partialorder %v794, 0.0
      %vm923 = vcmp.gt.f32.partialorder %v795, 0.0
      %vm924 = vcmp.gt.f32.partialorder %v796, 0.0
      %vm925 = vcmp.gt.f32.partialorder %v797, 0.0
      %vm926 = vcmp.gt.f32.partialorder %v798, 0.0
      %vm927 = vcmp.gt.f32.partialorder %v799, 0.0
      %vm928 = vcmp.gt.f32.partialorder %v800, 0.0
      %vm929 = vcmp.gt.f32.partialorder %v801, 0.0
      %vm930 = vcmp.gt.f32.partialorder %v802, 0.0
      %vm931 = vcmp.gt.f32.partialorder %v803, 0.0
      %vm932 = vcmp.gt.f32.partialorder %v804, 0.0
      %vm933 = vcmp.gt.f32.partialorder %v805, 0.0
      %vm934 = vcmp.gt.f32.partialorder %v806, 0.0
      %vm935 = vcmp.gt.f32.partialorder %v807, 0.0
      %vm936 = vcmp.gt.f32.partialorder %v808, 0.0
      %vm937 = vcmp.gt.f32.partialorder %v809, 0.0
      %vm938 = vcmp.gt.f32.partialorder %v810, 0.0
      %vm939 = vcmp.gt.f32.partialorder %v811, 0.0
      %vm940 = vcmp.gt.f32.partialorder %v812, 0.0
      %vm941 = vcmp.gt.f32.partialorder %v813, 0.0
      %vm942 = vcmp.gt.f32.partialorder %v814, 0.0
      %vm943 = vcmp.gt.f32.partialorder %v815, 0.0
      %vm944 = vcmp.gt.f32.partialorder %v816, 0.0
      %vm945 = vcmp.gt.f32.partialorder %v817, 0.0
      %vm946 = vcmp.gt.f32.partialorder %v818, 0.0
      %vm947 = vcmp.gt.f32.partialorder %v819, 0.0
      %vm948 = vcmp.gt.f32.partialorder %v820, 0.0
      %vm949 = vcmp.gt.f32.partialorder %v821, 0.0
      %vm950 = vcmp.gt.f32.partialorder %v822, 0.0
      %vm951 = vcmp.gt.f32.partialorder %v823, 0.0
      %vm952 = vcmp.gt.f32.partialorder %v824, 0.0
      %vm953 = vcmp.gt.f32.partialorder %v825, 0.0
      %vm954 = vcmp.gt.f32.partialorder %v826, 0.0
      %vm955 = vcmp.gt.f32.partialorder %v827, 0.0
      %vm956 = vcmp.gt.f32.partialorder %v828, 0.0
      %vm957 = vcmp.gt.f32.partialorder %v829, 0.0
      %vm958 = vcmp.gt.f32.partialorder %v830, 0.0
      %vm959 = vcmp.gt.f32.partialorder %v831, 0.0
      %vm960 = vcmp.gt.f32.partialorder %v832, 0.0
      %vm961 = vcmp.gt.f32.partialorder %v833, 0.0
      %vm962 = vcmp.gt.f32.partialorder %v834, 0.0
      %vm963 = vcmp.gt.f32.partialorder %v835, 0.0
      %v964 = vmul.f32 %v708, 0.2
      %v965 = vmul.f32 %v709, 0.2
      %v966 = vmul.f32 %v710, 0.2
      %v967 = vmul.f32 %v711, 0.2
      %v968 = vmul.f32 %v712, 0.2
      %v969 = vmul.f32 %v713, 0.2
      %v970 = vmul.f32 %v714, 0.2
      %v971 = vmul.f32 %v715, 0.2
      %v972 = vmul.f32 %v716, 0.2
      %v973 = vmul.f32 %v717, 0.2
      %v974 = vmul.f32 %v718, 0.2
      %v975 = vmul.f32 %v719, 0.2
      %v976 = vmul.f32 %v720, 0.2
      %v977 = vmul.f32 %v721, 0.2
      %v978 = vmul.f32 %v722, 0.2
      %v979 = vmul.f32 %v723, 0.2
      %v980 = vmul.f32 %v724, 0.2
      %v981 = vmul.f32 %v725, 0.2
      %v982 = vmul.f32 %v726, 0.2
      %v983 = vmul.f32 %v727, 0.2
      %v984 = vmul.f32 %v728, 0.2
      %v985 = vmul.f32 %v729, 0.2
      %v986 = vmul.f32 %v730, 0.2
      %v987 = vmul.f32 %v731, 0.2
      %v988 = vmul.f32 %v732, 0.2
      %v989 = vmul.f32 %v733, 0.2
      %v990 = vmul.f32 %v734, 0.2
      %v991 = vmul.f32 %v735, 0.2
      %v992 = vmul.f32 %v736, 0.2
      %v993 = vmul.f32 %v737, 0.2
      %v994 = vmul.f32 %v738, 0.2
      %v995 = vmul.f32 %v739, 0.2
      %v996 = vmul.f32 %v740, 0.2
      %v997 = vmul.f32 %v741, 0.2
      %v998 = vmul.f32 %v742, 0.2
      %v999 = vmul.f32 %v743, 0.2
      %v1000 = vmul.f32 %v744, 0.2
      %v1001 = vmul.f32 %v745, 0.2
      %v1002 = vmul.f32 %v746, 0.2
      %v1003 = vmul.f32 %v747, 0.2
      %v1004 = vmul.f32 %v748, 0.2
      %v1005 = vmul.f32 %v749, 0.2
      %v1006 = vmul.f32 %v750, 0.2
      %v1007 = vmul.f32 %v751, 0.2
      %v1008 = vmul.f32 %v752, 0.2
      %v1009 = vmul.f32 %v753, 0.2
      %v1010 = vmul.f32 %v754, 0.2
      %v1011 = vmul.f32 %v755, 0.2
      %v1012 = vmul.f32 %v756, 0.2
      %v1013 = vmul.f32 %v757, 0.2
      %v1014 = vmul.f32 %v758, 0.2
      %v1015 = vmul.f32 %v759, 0.2
      %v1016 = vmul.f32 %v760, 0.2
      %v1017 = vmul.f32 %v761, 0.2
      %v1018 = vmul.f32 %v762, 0.2
      %v1019 = vmul.f32 %v763, 0.2
      %v1020 = vmul.f32 %v764, 0.2
      %v1021 = vmul.f32 %v765, 0.2
      %v1022 = vmul.f32 %v766, 0.2
      %v1023 = vmul.f32 %v767, 0.2
      %v1024 = vmul.f32 %v768, 0.2
      %v1025 = vmul.f32 %v769, 0.2
      %v1026 = vmul.f32 %v770, 0.2
      %v1027 = vmul.f32 %v771, 0.2
      %v1028 = vmul.f32 %v772, 0.2
      %v1029 = vmul.f32 %v773, 0.2
      %v1030 = vmul.f32 %v774, 0.2
      %v1031 = vmul.f32 %v775, 0.2
      %v1032 = vmul.f32 %v776, 0.2
      %v1033 = vmul.f32 %v777, 0.2
      %v1034 = vmul.f32 %v778, 0.2
      %v1035 = vmul.f32 %v779, 0.2
      %v1036 = vmul.f32 %v780, 0.2
      %v1037 = vmul.f32 %v781, 0.2
      %v1038 = vmul.f32 %v782, 0.2
      %v1039 = vmul.f32 %v783, 0.2
      %v1040 = vmul.f32 %v784, 0.2
      %v1041 = vmul.f32 %v785, 0.2
      %v1042 = vmul.f32 %v786, 0.2
      %v1043 = vmul.f32 %v787, 0.2
      %v1044 = vmul.f32 %v788, 0.2
      %v1045 = vmul.f32 %v789, 0.2
      %v1046 = vmul.f32 %v790, 0.2
      %v1047 = vmul.f32 %v791, 0.2
      %v1048 = vmul.f32 %v792, 0.2
      %v1049 = vmul.f32 %v793, 0.2
      %v1050 = vmul.f32 %v794, 0.2
      %v1051 = vmul.f32 %v795, 0.2
      %v1052 = vmul.f32 %v796, 0.2
      %v1053 = vmul.f32 %v797, 0.2
      %v1054 = vmul.f32 %v798, 0.2
      %v1055 = vmul.f32 %v799, 0.2
      %v1056 = vmul.f32 %v800, 0.2
      %v1057 = vmul.f32 %v801, 0.2
      %v1058 = vmul.f32 %v802, 0.2
      %v1059 = vmul.f32 %v803, 0.2
      %v1060 = vmul.f32 %v804, 0.2
      %v1061 = vmul.f32 %v805, 0.2
      %v1062 = vmul.f32 %v806, 0.2
      %v1063 = vmul.f32 %v807, 0.2
      %v1064 = vmul.f32 %v808, 0.2
      %v1065 = vmul.f32 %v809, 0.2
      %v1066 = vmul.f32 %v810, 0.2
      %v1067 = vmul.f32 %v811, 0.2
      %v1068 = vmul.f32 %v812, 0.2
      %v1069 = vmul.f32 %v813, 0.2
      %v1070 = vmul.f32 %v814, 0.2
      %v1071 = vmul.f32 %v815, 0.2
      %v1072 = vmul.f32 %v816, 0.2
      %v1073 = vmul.f32 %v817, 0.2
      %v1074 = vmul.f32 %v818, 0.2
      %v1075 = vmul.f32 %v819, 0.2
      %v1076 = vmul.f32 %v820, 0.2
      %v1077 = vmul.f32 %v821, 0.2
      %v1078 = vmul.f32 %v822, 0.2
      %v1079 = vmul.f32 %v823, 0.2
      %v1080 = vmul.f32 %v824, 0.2
      %v1081 = vmul.f32 %v825, 0.2
      %v1082 = vmul.f32 %v826, 0.2
      %v1083 = vmul.f32 %v827, 0.2
      %v1084 = vmul.f32 %v828, 0.2
      %v1085 = vmul.f32 %v829, 0.2
      %v1086 = vmul.f32 %v830, 0.2
      %v1087 = vmul.f32 %v831, 0.2
      %v1088 = vmul.f32 %v832, 0.2
      %v1089 = vmul.f32 %v833, 0.2
      %v1090 = vmul.f32 %v834, 0.2
      %v1091 = vmul.f32 %v835, 0.2
      %v1092 = vsel %vm836, %v708, %v964
      %v1093 = vsel %vm837, %v709, %v965
      %v1094 = vsel %vm838, %v710, %v966
      %v1095 = vsel %vm839, %v711, %v967
      %v1096 = vsel %vm840, %v712, %v968
      %v1097 = vsel %vm841, %v713, %v969
      %v1098 = vsel %vm842, %v714, %v970
      %v1099 = vsel %vm843, %v715, %v971
      %v1100 = vsel %vm844, %v716, %v972
      %v1101 = vsel %vm845, %v717, %v973
      %v1102 = vsel %vm846, %v718, %v974
      %v1103 = vsel %vm847, %v719, %v975
      %v1104 = vsel %vm848, %v720, %v976
      %v1105 = vsel %vm849, %v721, %v977
      %v1106 = vsel %vm850, %v722, %v978
      %v1107 = vsel %vm851, %v723, %v979
      %v1108 = vsel %vm852, %v724, %v980
      %v1109 = vsel %vm853, %v725, %v981
      %v1110 = vsel %vm854, %v726, %v982
      %v1111 = vsel %vm855, %v727, %v983
      %v1112 = vsel %vm856, %v728, %v984
      %v1113 = vsel %vm857, %v729, %v985
      %v1114 = vsel %vm858, %v730, %v986
      %v1115 = vsel %vm859, %v731, %v987
      %v1116 = vsel %vm860, %v732, %v988
      %v1117 = vsel %vm861, %v733, %v989
      %v1118 = vsel %vm862, %v734, %v990
      %v1119 = vsel %vm863, %v735, %v991
      %v1120 = vsel %vm864, %v736, %v992
      %v1121 = vsel %vm865, %v737, %v993
      %v1122 = vsel %vm866, %v738, %v994
      %v1123 = vsel %vm867, %v739, %v995
      %v1124 = vsel %vm868, %v740, %v996
      %v1125 = vsel %vm869, %v741, %v997
      %v1126 = vsel %vm870, %v742, %v998
      %v1127 = vsel %vm871, %v743, %v999
      %v1128 = vsel %vm872, %v744, %v1000
      %v1129 = vsel %vm873, %v745, %v1001
      %v1130 = vsel %vm874, %v746, %v1002
      %v1131 = vsel %vm875, %v747, %v1003
      %v1132 = vsel %vm876, %v748, %v1004
      %v1133 = vsel %vm877, %v749, %v1005
      %v1134 = vsel %vm878, %v750, %v1006
      %v1135 = vsel %vm879, %v751, %v1007
      %v1136 = vsel %vm880, %v752, %v1008
      %v1137 = vsel %vm881, %v753, %v1009
      %v1138 = vsel %vm882, %v754, %v1010
      %v1139 = vsel %vm883, %v755, %v1011
      %v1140 = vsel %vm884, %v756, %v1012
      %v1141 = vsel %vm885, %v757, %v1013
      %v1142 = vsel %vm886, %v758, %v1014
      %v1143 = vsel %vm887, %v759, %v1015
      %v1144 = vsel %vm888, %v760, %v1016
      %v1145 = vsel %vm889, %v761, %v1017
      %v1146 = vsel %vm890, %v762, %v1018
      %v1147 = vsel %vm891, %v763, %v1019
      %v1148 = vsel %vm892, %v764, %v1020
      %v1149 = vsel %vm893, %v765, %v1021
      %v1150 = vsel %vm894, %v766, %v1022
      %v1151 = vsel %vm895, %v767, %v1023
      %v1152 = vsel %vm896, %v768, %v1024
      %v1153 = vsel %vm897, %v769, %v1025
      %v1154 = vsel %vm898, %v770, %v1026
      %v1155 = vsel %vm899, %v771, %v1027
      %v1156 = vsel %vm900, %v772, %v1028
      %v1157 = vsel %vm901, %v773, %v1029
      %v1158 = vsel %vm902, %v774, %v1030
      %v1159 = vsel %vm903, %v775, %v1031
      %v1160 = vsel %vm904, %v776, %v1032
      %v1161 = vsel %vm905, %v777, %v1033
      %v1162 = vsel %vm906, %v778, %v1034
      %v1163 = vsel %vm907, %v779, %v1035
      %v1164 = vsel %vm908, %v780, %v1036
      %v1165 = vsel %vm909, %v781, %v1037
      %v1166 = vsel %vm910, %v782, %v1038
      %v1167 = vsel %vm911, %v783, %v1039
      %v1168 = vsel %vm912, %v784, %v1040
      %v1169 = vsel %vm913, %v785, %v1041
      %v1170 = vsel %vm914, %v786, %v1042
      %v1171 = vsel %vm915, %v787, %v1043
      %v1172 = vsel %vm916, %v788, %v1044
      %v1173 = vsel %vm917, %v789, %v1045
      %v1174 = vsel %vm918, %v790, %v1046
      %v1175 = vsel %vm919, %v791, %v1047
      %v1176 = vsel %vm920, %v792, %v1048
      %v1177 = vsel %vm921, %v793, %v1049
      %v1178 = vsel %vm922, %v794, %v1050
      %v1179 = vsel %vm923, %v795, %v1051
      %v1180 = vsel %vm924, %v796, %v1052
      %v1181 = vsel %vm925, %v797, %v1053
      %v1182 = vsel %vm926, %v798, %v1054
      %v1183 = vsel %vm927, %v799, %v1055
      %v1184 = vsel %vm928, %v800, %v1056
      %v1185 = vsel %vm929, %v801, %v1057
      %v1186 = vsel %vm930, %v802, %v1058
      %v1187 = vsel %vm931, %v803, %v1059
      %v1188 = vsel %vm932, %v804, %v1060
      %v1189 = vsel %vm933, %v805, %v1061
      %v1190 = vsel %vm934, %v806, %v1062
      %v1191 = vsel %vm935, %v807, %v1063
      %v1192 = vsel %vm936, %v808, %v1064
      %v1193 = vsel %vm937, %v809, %v1065
      %v1194 = vsel %vm938, %v810, %v1066
      %v1195 = vsel %vm939, %v811, %v1067
      %v1196 = vsel %vm940, %v812, %v1068
      %v1197 = vsel %vm941, %v813, %v1069
      %v1198 = vsel %vm942, %v814, %v1070
      %v1199 = vsel %vm943, %v815, %v1071
      %v1200 = vsel %vm944, %v816, %v1072
      %v1201 = vsel %vm945, %v817, %v1073
      %v1202 = vsel %vm946, %v818, %v1074
      %v1203 = vsel %vm947, %v819, %v1075
      %v1204 = vsel %vm948, %v820, %v1076
      %v1205 = vsel %vm949, %v821, %v1077
      %v1206 = vsel %vm950, %v822, %v1078
      %v1207 = vsel %vm951, %v823, %v1079
      %v1208 = vsel %vm952, %v824, %v1080
      %v1209 = vsel %vm953, %v825, %v1081
      %v1210 = vsel %vm954, %v826, %v1082
      %v1211 = vsel %vm955, %v827, %v1083
      %v1212 = vsel %vm956, %v828, %v1084
      %v1213 = vsel %vm957, %v829, %v1085
      %v1214 = vsel %vm958, %v830, %v1086
      %v1215 = vsel %vm959, %v831, %v1087
      %v1216 = vsel %vm960, %v832, %v1088
      %v1217 = vsel %vm961, %v833, %v1089
      %v1218 = vsel %vm962, %v834, %v1090
      %v1219 = vsel %vm963, %v835, %v1091
      %v1220 = vld [vmem:[%s358] sm:$0xff]
      %v1221 = vld [vmem:[%s358 + $0x8] sm:$0xff]
      %v1222 = vld [vmem:[%s358 + $0x10] sm:$0xff]
      %v1223 = vld [vmem:[%s358 + $0x18] sm:$0xff]
      %v1224 = vld [vmem:[%s358 + $0x20] sm:$0xff]
      %v1225 = vld [vmem:[%s358 + $0x28] sm:$0xff]
      %v1226 = vld [vmem:[%s358 + $0x30] sm:$0xff]
      %v1227 = vld [vmem:[%s358 + $0x38] sm:$0xff]
      %v1228 = vld [vmem:[%s358 + $0x40] sm:$0xff]
      %v1229 = vld [vmem:[%s358 + $0x48] sm:$0xff]
      %v1230 = vld [vmem:[%s358 + $0x50] sm:$0xff]
      %v1231 = vld [vmem:[%s358 + $0x58] sm:$0xff]
      %v1232 = vld [vmem:[%s358 + $0x60] sm:$0xff]
      %v1233 = vld [vmem:[%s358 + $0x68] sm:$0xff]
      %v1234 = vld [vmem:[%s358 + $0x70] sm:$0xff]
      %v1235 = vld [vmem:[%s358 + $0x78] sm:$0xff]
      %v1236 = vld [vmem:[%s358 + $0x80] sm:$0xff]
      %v1237 = vld [vmem:[%s358 + $0x88] sm:$0xff]
      %v1238 = vld [vmem:[%s358 + $0x90] sm:$0xff]
      %v1239 = vld [vmem:[%s358 + $0x98] sm:$0xff]
      %v1240 = vld [vmem:[%s358 + $0xa0] sm:$0xff]
      %v1241 = vld [vmem:[%s358 + $0xa8] sm:$0xff]
      %v1242 = vld [vmem:[%s358 + $0xb0] sm:$0xff]
      %v1243 = vld [vmem:[%s358 + $0xb8] sm:$0xff]
      %v1244 = vld [vmem:[%s358 + $0xc0] sm:$0xff]
      %v1245 = vld [vmem:[%s358 + $0xc8] sm:$0xff]
      %v1246 = vld [vmem:[%s358 + $0xd0] sm:$0xff]
      %v1247 = vld [vmem:[%s358 + $0xd8] sm:$0xff]
      %v1248 = vld [vmem:[%s358 + $0xe0] sm:$0xff]
      %v1249 = vld [vmem:[%s358 + $0xe8] sm:$0xff]
      %v1250 = vld [vmem:[%s358 + $0xf0] sm:$0xff]
      %v1251 = vld [vmem:[%s358 + $0xf8] sm:$0xff]
      %vm1252 = vnez %v1220
      %vm1253 = vnez %v1221
      %vm1254 = vnez %v1222
      %vm1255 = vnez %v1223
      %vm1256 = vnez %v1224
      %vm1257 = vnez %v1225
      %vm1258 = vnez %v1226
      %vm1259 = vnez %v1227
      %vm1260 = vnez %v1228
      %vm1261 = vnez %v1229
      %vm1262 = vnez %v1230
      %vm1263 = vnez %v1231
      %vm1264 = vnez %v1232
      %vm1265 = vnez %v1233
      %vm1266 = vnez %v1234
      %vm1267 = vnez %v1235
      %vm1268 = vnez %v1236
      %vm1269 = vnez %v1237
      %vm1270 = vnez %v1238
      %vm1271 = vnez %v1239
      %vm1272 = vnez %v1240
      %vm1273 = vnez %v1241
      %vm1274 = vnez %v1242
      %vm1275 = vnez %v1243
      %vm1276 = vnez %v1244
      %vm1277 = vnez %v1245
      %vm1278 = vnez %v1246
      %vm1279 = vnez %v1247
      %vm1280 = vnez %v1248
      %vm1281 = vnez %v1249
      %vm1282 = vnez %v1250
      %vm1283 = vnez %v1251
      %v1284 = vsel %vm1252, 16843009, 0
      %v1285 = vsel %vm1253, 16843009, 0
      %v1286 = vsel %vm1254, 16843009, 0
      %v1287 = vsel %vm1255, 16843009, 0
      %v1288 = vsel %vm1256, 16843009, 0
      %v1289 = vsel %vm1257, 16843009, 0
      %v1290 = vsel %vm1258, 16843009, 0
      %v1291 = vsel %vm1259, 16843009, 0
      %v1292 = vsel %vm1260, 16843009, 0
      %v1293 = vsel %vm1261, 16843009, 0
      %v1294 = vsel %vm1262, 16843009, 0
      %v1295 = vsel %vm1263, 16843009, 0
      %v1296 = vsel %vm1264, 16843009, 0
      %v1297 = vsel %vm1265, 16843009, 0
      %v1298 = vsel %vm1266, 16843009, 0
      %v1299 = vsel %vm1267, 16843009, 0
      %v1300 = vsel %vm1268, 16843009, 0
      %v1301 = vsel %vm1269, 16843009, 0
      %v1302 = vsel %vm1270, 16843009, 0
      %v1303 = vsel %vm1271, 16843009, 0
      %v1304 = vsel %vm1272, 16843009, 0
      %v1305 = vsel %vm1273, 16843009, 0
      %v1306 = vsel %vm1274, 16843009, 0
      %v1307 = vsel %vm1275, 16843009, 0
      %v1308 = vsel %vm1276, 16843009, 0
      %v1309 = vsel %vm1277, 16843009, 0
      %v1310 = vsel %vm1278, 16843009, 0
      %v1311 = vsel %vm1279, 16843009, 0
      %v1312 = vsel %vm1280, 16843009, 0
      %v1313 = vsel %vm1281, 16843009, 0
      %v1314 = vsel %vm1282, 16843009, 0
      %v1315 = vsel %vm1283, 16843009, 0
      %v1316 = vunpack.c.0.s8 %v1284
      %v1317 = vunpack.c.0.s8 %v1285
      %v1318 = vunpack.c.0.s8 %v1286
      %v1319 = vunpack.c.0.s8 %v1287
      %v1320 = vunpack.c.1.s8 %v1284
      %v1321 = vunpack.c.1.s8 %v1285
      %v1322 = vunpack.c.1.s8 %v1286
      %v1323 = vunpack.c.1.s8 %v1287
      %v1324 = vunpack.c.2.s8 %v1284
      %v1325 = vunpack.c.2.s8 %v1285
      %v1326 = vunpack.c.2.s8 %v1286
      %v1327 = vunpack.c.2.s8 %v1287
      %v1328 = vunpack.c.3.s8 %v1284
      %v1329 = vunpack.c.3.s8 %v1285
      %v1330 = vunpack.c.3.s8 %v1286
      %v1331 = vunpack.c.3.s8 %v1287
      %v1332 = vunpack.c.0.s8 %v1288
      %v1333 = vunpack.c.0.s8 %v1289
      %v1334 = vunpack.c.0.s8 %v1290
      %v1335 = vunpack.c.0.s8 %v1291
      %v1336 = vunpack.c.1.s8 %v1288
      %v1337 = vunpack.c.1.s8 %v1289
      %v1338 = vunpack.c.1.s8 %v1290
      %v1339 = vunpack.c.1.s8 %v1291
      %v1340 = vunpack.c.2.s8 %v1288
      %v1341 = vunpack.c.2.s8 %v1289
      %v1342 = vunpack.c.2.s8 %v1290
      %v1343 = vunpack.c.2.s8 %v1291
      %v1344 = vunpack.c.3.s8 %v1288
      %v1345 = vunpack.c.3.s8 %v1289
      %v1346 = vunpack.c.3.s8 %v1290
      %v1347 = vunpack.c.3.s8 %v1291
      %v1348 = vunpack.c.0.s8 %v1292
      %v1349 = vunpack.c.0.s8 %v1293
      %v1350 = vunpack.c.0.s8 %v1294
      %v1351 = vunpack.c.0.s8 %v1295
      %v1352 = vunpack.c.1.s8 %v1292
      %v1353 = vunpack.c.1.s8 %v1293
      %v1354 = vunpack.c.1.s8 %v1294
      %v1355 = vunpack.c.1.s8 %v1295
      %v1356 = vunpack.c.2.s8 %v1292
      %v1357 = vunpack.c.2.s8 %v1293
      %v1358 = vunpack.c.2.s8 %v1294
      %v1359 = vunpack.c.2.s8 %v1295
      %v1360 = vunpack.c.3.s8 %v1292
      %v1361 = vunpack.c.3.s8 %v1293
      %v1362 = vunpack.c.3.s8 %v1294
      %v1363 = vunpack.c.3.s8 %v1295
      %v1364 = vunpack.c.0.s8 %v1296
      %v1365 = vunpack.c.0.s8 %v1297
      %v1366 = vunpack.c.0.s8 %v1298
      %v1367 = vunpack.c.0.s8 %v1299
      %v1368 = vunpack.c.1.s8 %v1296
      %v1369 = vunpack.c.1.s8 %v1297
      %v1370 = vunpack.c.1.s8 %v1298
      %v1371 = vunpack.c.1.s8 %v1299
      %v1372 = vunpack.c.2.s8 %v1296
      %v1373 = vunpack.c.2.s8 %v1297
      %v1374 = vunpack.c.2.s8 %v1298
      %v1375 = vunpack.c.2.s8 %v1299
      %v1376 = vunpack.c.3.s8 %v1296
      %v1377 = vunpack.c.3.s8 %v1297
      %v1378 = vunpack.c.3.s8 %v1298
      %v1379 = vunpack.c.3.s8 %v1299
      %v1380 = vunpack.c.0.s8 %v1300
      %v1381 = vunpack.c.0.s8 %v1301
      %v1382 = vunpack.c.0.s8 %v1302
      %v1383 = vunpack.c.0.s8 %v1303
      %v1384 = vunpack.c.1.s8 %v1300
      %v1385 = vunpack.c.1.s8 %v1301
      %v1386 = vunpack.c.1.s8 %v1302
      %v1387 = vunpack.c.1.s8 %v1303
      %v1388 = vunpack.c.2.s8 %v1300
      %v1389 = vunpack.c.2.s8 %v1301
      %v1390 = vunpack.c.2.s8 %v1302
      %v1391 = vunpack.c.2.s8 %v1303
      %v1392 = vunpack.c.3.s8 %v1300
      %v1393 = vunpack.c.3.s8 %v1301
      %v1394 = vunpack.c.3.s8 %v1302
      %v1395 = vunpack.c.3.s8 %v1303
      %v1396 = vunpack.c.0.s8 %v1304
      %v1397 = vunpack.c.0.s8 %v1305
      %v1398 = vunpack.c.0.s8 %v1306
      %v1399 = vunpack.c.0.s8 %v1307
      %v1400 = vunpack.c.1.s8 %v1304
      %v1401 = vunpack.c.1.s8 %v1305
      %v1402 = vunpack.c.1.s8 %v1306
      %v1403 = vunpack.c.1.s8 %v1307
      %v1404 = vunpack.c.2.s8 %v1304
      %v1405 = vunpack.c.2.s8 %v1305
      %v1406 = vunpack.c.2.s8 %v1306
      %v1407 = vunpack.c.2.s8 %v1307
      %v1408 = vunpack.c.3.s8 %v1304
      %v1409 = vunpack.c.3.s8 %v1305
      %v1410 = vunpack.c.3.s8 %v1306
      %v1411 = vunpack.c.3.s8 %v1307
      %v1412 = vunpack.c.0.s8 %v1308
      %v1413 = vunpack.c.0.s8 %v1309
      %v1414 = vunpack.c.0.s8 %v1310
      %v1415 = vunpack.c.0.s8 %v1311
      %v1416 = vunpack.c.1.s8 %v1308
      %v1417 = vunpack.c.1.s8 %v1309
      %v1418 = vunpack.c.1.s8 %v1310
      %v1419 = vunpack.c.1.s8 %v1311
      %v1420 = vunpack.c.2.s8 %v1308
      %v1421 = vunpack.c.2.s8 %v1309
      %v1422 = vunpack.c.2.s8 %v1310
      %v1423 = vunpack.c.2.s8 %v1311
      %v1424 = vunpack.c.3.s8 %v1308
      %v1425 = vunpack.c.3.s8 %v1309
      %v1426 = vunpack.c.3.s8 %v1310
      %v1427 = vunpack.c.3.s8 %v1311
      %v1428 = vunpack.c.0.s8 %v1312
      %v1429 = vunpack.c.0.s8 %v1313
      %v1430 = vunpack.c.0.s8 %v1314
      %v1431 = vunpack.c.0.s8 %v1315
      %v1432 = vunpack.c.1.s8 %v1312
      %v1433 = vunpack.c.1.s8 %v1313
      %v1434 = vunpack.c.1.s8 %v1314
      %v1435 = vunpack.c.1.s8 %v1315
      %v1436 = vunpack.c.2.s8 %v1312
      %v1437 = vunpack.c.2.s8 %v1313
      %v1438 = vunpack.c.2.s8 %v1314
      %v1439 = vunpack.c.2.s8 %v1315
      %v1440 = vunpack.c.3.s8 %v1312
      %v1441 = vunpack.c.3.s8 %v1313
      %v1442 = vunpack.c.3.s8 %v1314
      %v1443 = vunpack.c.3.s8 %v1315
      %v1444 = vpack.c.b16 %v1317, %v1316
      %v1445 = vpack.c.b16 %v1319, %v1318
      %v1446 = vpack.c.b8 %v1445, %v1444
      %v1447 = vpack.c.b16 %v1321, %v1320
      %v1448 = vpack.c.b16 %v1323, %v1322
      %v1449 = vpack.c.b8 %v1448, %v1447
      %v1450 = vpack.c.b16 %v1325, %v1324
      %v1451 = vpack.c.b16 %v1327, %v1326
      %v1452 = vpack.c.b8 %v1451, %v1450
      %v1453 = vpack.c.b16 %v1329, %v1328
      %v1454 = vpack.c.b16 %v1331, %v1330
      %v1455 = vpack.c.b8 %v1454, %v1453
      %v1456 = vpack.c.b16 %v1333, %v1332
      %v1457 = vpack.c.b16 %v1335, %v1334
      %v1458 = vpack.c.b8 %v1457, %v1456
      %v1459 = vpack.c.b16 %v1337, %v1336
      %v1460 = vpack.c.b16 %v1339, %v1338
      %v1461 = vpack.c.b8 %v1460, %v1459
      %v1462 = vpack.c.b16 %v1341, %v1340
      %v1463 = vpack.c.b16 %v1343, %v1342
      %v1464 = vpack.c.b8 %v1463, %v1462
      %v1465 = vpack.c.b16 %v1345, %v1344
      %v1466 = vpack.c.b16 %v1347, %v1346
      %v1467 = vpack.c.b8 %v1466, %v1465
      %v1468 = vpack.c.b16 %v1349, %v1348
      %v1469 = vpack.c.b16 %v1351, %v1350
      %v1470 = vpack.c.b8 %v1469, %v1468
      %v1471 = vpack.c.b16 %v1353, %v1352
      %v1472 = vpack.c.b16 %v1355, %v1354
      %v1473 = vpack.c.b8 %v1472, %v1471
      %v1474 = vpack.c.b16 %v1357, %v1356
      %v1475 = vpack.c.b16 %v1359, %v1358
      %v1476 = vpack.c.b8 %v1475, %v1474
      %v1477 = vpack.c.b16 %v1361, %v1360
      %v1478 = vpack.c.b16 %v1363, %v1362
      %v1479 = vpack.c.b8 %v1478, %v1477
      %v1480 = vpack.c.b16 %v1365, %v1364
      %v1481 = vpack.c.b16 %v1367, %v1366
      %v1482 = vpack.c.b8 %v1481, %v1480
      %v1483 = vpack.c.b16 %v1369, %v1368
      %v1484 = vpack.c.b16 %v1371, %v1370
      %v1485 = vpack.c.b8 %v1484, %v1483
      %v1486 = vpack.c.b16 %v1373, %v1372
      %v1487 = vpack.c.b16 %v1375, %v1374
      %v1488 = vpack.c.b8 %v1487, %v1486
      %v1489 = vpack.c.b16 %v1377, %v1376
      %v1490 = vpack.c.b16 %v1379, %v1378
      %v1491 = vpack.c.b8 %v1490, %v1489
      %v1492 = vpack.c.b16 %v1381, %v1380
      %v1493 = vpack.c.b16 %v1383, %v1382
      %v1494 = vpack.c.b8 %v1493, %v1492
      %v1495 = vpack.c.b16 %v1385, %v1384
      %v1496 = vpack.c.b16 %v1387, %v1386
      %v1497 = vpack.c.b8 %v1496, %v1495
      %v1498 = vpack.c.b16 %v1389, %v1388
      %v1499 = vpack.c.b16 %v1391, %v1390
      %v1500 = vpack.c.b8 %v1499, %v1498
      %v1501 = vpack.c.b16 %v1393, %v1392
      %v1502 = vpack.c.b16 %v1395, %v1394
      %v1503 = vpack.c.b8 %v1502, %v1501
      %v1504 = vpack.c.b16 %v1397, %v1396
      %v1505 = vpack.c.b16 %v1399, %v1398
      %v1506 = vpack.c.b8 %v1505, %v1504
      %v1507 = vpack.c.b16 %v1401, %v1400
      %v1508 = vpack.c.b16 %v1403, %v1402
      %v1509 = vpack.c.b8 %v1508, %v1507
      %v1510 = vpack.c.b16 %v1405, %v1404
      %v1511 = vpack.c.b16 %v1407, %v1406
      %v1512 = vpack.c.b8 %v1511, %v1510
      %v1513 = vpack.c.b16 %v1409, %v1408
      %v1514 = vpack.c.b16 %v1411, %v1410
      %v1515 = vpack.c.b8 %v1514, %v1513
      %v1516 = vpack.c.b16 %v1413, %v1412
      %v1517 = vpack.c.b16 %v1415, %v1414
      %v1518 = vpack.c.b8 %v1517, %v1516
      %v1519 = vpack.c.b16 %v1417, %v1416
      %v1520 = vpack.c.b16 %v1419, %v1418
      %v1521 = vpack.c.b8 %v1520, %v1519
      %v1522 = vpack.c.b16 %v1421, %v1420
      %v1523 = vpack.c.b16 %v1423, %v1422
      %v1524 = vpack.c.b8 %v1523, %v1522
      %v1525 = vpack.c.b16 %v1425, %v1424
      %v1526 = vpack.c.b16 %v1427, %v1426
      %v1527 = vpack.c.b8 %v1526, %v1525
      %v1528 = vpack.c.b16 %v1429, %v1428
      %v1529 = vpack.c.b16 %v1431, %v1430
      %v1530 = vpack.c.b8 %v1529, %v1528
      %v1531 = vpack.c.b16 %v1433, %v1432
      %v1532 = vpack.c.b16 %v1435, %v1434
      %v1533 = vpack.c.b8 %v1532, %v1531
      %v1534 = vpack.c.b16 %v1437, %v1436
      %v1535 = vpack.c.b16 %v1439, %v1438
      %v1536 = vpack.c.b8 %v1535, %v1534
      %v1537 = vpack.c.b16 %v1441, %v1440
      %v1538 = vpack.c.b16 %v1443, %v1442
      %v1539 = vpack.c.b8 %v1538, %v1537
      %vm1540 = vnez %v1446
      %vm1541 = vnez %v1449
      %vm1542 = vnez %v1452
      %vm1543 = vnez %v1455
      %vm1544 = vnez %v1458
      %vm1545 = vnez %v1461
      %vm1546 = vnez %v1464
      %vm1547 = vnez %v1467
      %vm1548 = vnez %v1470
      %vm1549 = vnez %v1473
      %vm1550 = vnez %v1476
      %vm1551 = vnez %v1479
      %vm1552 = vnez %v1482
      %vm1553 = vnez %v1485
      %vm1554 = vnez %v1488
      %vm1555 = vnez %v1491
      %vm1556 = vnez %v1494
      %vm1557 = vnez %v1497
      %vm1558 = vnez %v1500
      %vm1559 = vnez %v1503
      %vm1560 = vnez %v1506
      %vm1561 = vnez %v1509
      %vm1562 = vnez %v1512
      %vm1563 = vnez %v1515
      %vm1564 = vnez %v1518
      %vm1565 = vnez %v1521
      %vm1566 = vnez %v1524
      %vm1567 = vnez %v1527
      %vm1568 = vnez %v1530
      %vm1569 = vnez %v1533
      %vm1570 = vnez %v1536
      %vm1571 = vnez %v1539
      %v1572 = vsel %vm1540, 16843009, 0
      %v1573 = vsel %vm1541, 16843009, 0
      %v1574 = vsel %vm1542, 16843009, 0
      %v1575 = vsel %vm1543, 16843009, 0
      %v1576 = vsel %vm1544, 16843009, 0
      %v1577 = vsel %vm1545, 16843009, 0
      %v1578 = vsel %vm1546, 16843009, 0
      %v1579 = vsel %vm1547, 16843009, 0
      %v1580 = vsel %vm1548, 16843009, 0
      %v1581 = vsel %vm1549, 16843009, 0
      %v1582 = vsel %vm1550, 16843009, 0
      %v1583 = vsel %vm1551, 16843009, 0
      %v1584 = vsel %vm1552, 16843009, 0
      %v1585 = vsel %vm1553, 16843009, 0
      %v1586 = vsel %vm1554, 16843009, 0
      %v1587 = vsel %vm1555, 16843009, 0
      %v1588 = vsel %vm1556, 16843009, 0
      %v1589 = vsel %vm1557, 16843009, 0
      %v1590 = vsel %vm1558, 16843009, 0
      %v1591 = vsel %vm1559, 16843009, 0
      %v1592 = vsel %vm1560, 16843009, 0
      %v1593 = vsel %vm1561, 16843009, 0
      %v1594 = vsel %vm1562, 16843009, 0
      %v1595 = vsel %vm1563, 16843009, 0
      %v1596 = vsel %vm1564, 16843009, 0
      %v1597 = vsel %vm1565, 16843009, 0
      %v1598 = vsel %vm1566, 16843009, 0
      %v1599 = vsel %vm1567, 16843009, 0
      %v1600 = vsel %vm1568, 16843009, 0
      %v1601 = vsel %vm1569, 16843009, 0
      %v1602 = vsel %vm1570, 16843009, 0
      %v1603 = vsel %vm1571, 16843009, 0
      %v1604 = vunpack.c.0.s8 %v1572
      %v1605 = vunpack.c.1.s8 %v1572
      %v1606 = vunpack.c.2.s8 %v1572
      %v1607 = vunpack.c.3.s8 %v1572
      %v1608 = vunpack.c.0.s8 %v1573
      %v1609 = vunpack.c.1.s8 %v1573
      %v1610 = vunpack.c.2.s8 %v1573
      %v1611 = vunpack.c.3.s8 %v1573
      %v1612 = vunpack.c.0.s8 %v1574
      %v1613 = vunpack.c.1.s8 %v1574
      %v1614 = vunpack.c.2.s8 %v1574
      %v1615 = vunpack.c.3.s8 %v1574
      %v1616 = vunpack.c.0.s8 %v1575
      %v1617 = vunpack.c.1.s8 %v1575
      %v1618 = vunpack.c.2.s8 %v1575
      %v1619 = vunpack.c.3.s8 %v1575
      %v1620 = vunpack.c.0.s8 %v1576
      %v1621 = vunpack.c.1.s8 %v1576
      %v1622 = vunpack.c.2.s8 %v1576
      %v1623 = vunpack.c.3.s8 %v1576
      %v1624 = vunpack.c.0.s8 %v1577
      %v1625 = vunpack.c.1.s8 %v1577
      %v1626 = vunpack.c.2.s8 %v1577
      %v1627 = vunpack.c.3.s8 %v1577
      %v1628 = vunpack.c.0.s8 %v1578
      %v1629 = vunpack.c.1.s8 %v1578
      %v1630 = vunpack.c.2.s8 %v1578
      %v1631 = vunpack.c.3.s8 %v1578
      %v1632 = vunpack.c.0.s8 %v1579
      %v1633 = vunpack.c.1.s8 %v1579
      %v1634 = vunpack.c.2.s8 %v1579
      %v1635 = vunpack.c.3.s8 %v1579
      %v1636 = vunpack.c.0.s8 %v1580
      %v1637 = vunpack.c.1.s8 %v1580
      %v1638 = vunpack.c.2.s8 %v1580
      %v1639 = vunpack.c.3.s8 %v1580
      %v1640 = vunpack.c.0.s8 %v1581
      %v1641 = vunpack.c.1.s8 %v1581
      %v1642 = vunpack.c.2.s8 %v1581
      %v1643 = vunpack.c.3.s8 %v1581
      %v1644 = vunpack.c.0.s8 %v1582
      %v1645 = vunpack.c.1.s8 %v1582
      %v1646 = vunpack.c.2.s8 %v1582
      %v1647 = vunpack.c.3.s8 %v1582
      %v1648 = vunpack.c.0.s8 %v1583
      %v1649 = vunpack.c.1.s8 %v1583
      %v1650 = vunpack.c.2.s8 %v1583
      %v1651 = vunpack.c.3.s8 %v1583
      %v1652 = vunpack.c.0.s8 %v1584
      %v1653 = vunpack.c.1.s8 %v1584
      %v1654 = vunpack.c.2.s8 %v1584
      %v1655 = vunpack.c.3.s8 %v1584
      %v1656 = vunpack.c.0.s8 %v1585
      %v1657 = vunpack.c.1.s8 %v1585
      %v1658 = vunpack.c.2.s8 %v1585
      %v1659 = vunpack.c.3.s8 %v1585
      %v1660 = vunpack.c.0.s8 %v1586
      %v1661 = vunpack.c.1.s8 %v1586
      %v1662 = vunpack.c.2.s8 %v1586
      %v1663 = vunpack.c.3.s8 %v1586
      %v1664 = vunpack.c.0.s8 %v1587
      %v1665 = vunpack.c.1.s8 %v1587
      %v1666 = vunpack.c.2.s8 %v1587
      %v1667 = vunpack.c.3.s8 %v1587
      %v1668 = vunpack.c.0.s8 %v1588
      %v1669 = vunpack.c.1.s8 %v1588
      %v1670 = vunpack.c.2.s8 %v1588
      %v1671 = vunpack.c.3.s8 %v1588
      %v1672 = vunpack.c.0.s8 %v1589
      %v1673 = vunpack.c.1.s8 %v1589
      %v1674 = vunpack.c.2.s8 %v1589
      %v1675 = vunpack.c.3.s8 %v1589
      %v1676 = vunpack.c.0.s8 %v1590
      %v1677 = vunpack.c.1.s8 %v1590
      %v1678 = vunpack.c.2.s8 %v1590
      %v1679 = vunpack.c.3.s8 %v1590
      %v1680 = vunpack.c.0.s8 %v1591
      %v1681 = vunpack.c.1.s8 %v1591
      %v1682 = vunpack.c.2.s8 %v1591
      %v1683 = vunpack.c.3.s8 %v1591
      %v1684 = vunpack.c.0.s8 %v1592
      %v1685 = vunpack.c.1.s8 %v1592
      %v1686 = vunpack.c.2.s8 %v1592
      %v1687 = vunpack.c.3.s8 %v1592
      %v1688 = vunpack.c.0.s8 %v1593
      %v1689 = vunpack.c.1.s8 %v1593
      %v1690 = vunpack.c.2.s8 %v1593
      %v1691 = vunpack.c.3.s8 %v1593
      %v1692 = vunpack.c.0.s8 %v1594
      %v1693 = vunpack.c.1.s8 %v1594
      %v1694 = vunpack.c.2.s8 %v1594
      %v1695 = vunpack.c.3.s8 %v1594
      %v1696 = vunpack.c.0.s8 %v1595
      %v1697 = vunpack.c.1.s8 %v1595
      %v1698 = vunpack.c.2.s8 %v1595
      %v1699 = vunpack.c.3.s8 %v1595
      %v1700 = vunpack.c.0.s8 %v1596
      %v1701 = vunpack.c.1.s8 %v1596
      %v1702 = vunpack.c.2.s8 %v1596
      %v1703 = vunpack.c.3.s8 %v1596
      %v1704 = vunpack.c.0.s8 %v1597
      %v1705 = vunpack.c.1.s8 %v1597
      %v1706 = vunpack.c.2.s8 %v1597
      %v1707 = vunpack.c.3.s8 %v1597
      %v1708 = vunpack.c.0.s8 %v1598
      %v1709 = vunpack.c.1.s8 %v1598
      %v1710 = vunpack.c.2.s8 %v1598
      %v1711 = vunpack.c.3.s8 %v1598
      %v1712 = vunpack.c.0.s8 %v1599
      %v1713 = vunpack.c.1.s8 %v1599
      %v1714 = vunpack.c.2.s8 %v1599
      %v1715 = vunpack.c.3.s8 %v1599
      %v1716 = vunpack.c.0.s8 %v1600
      %v1717 = vunpack.c.1.s8 %v1600
      %v1718 = vunpack.c.2.s8 %v1600
      %v1719 = vunpack.c.3.s8 %v1600
      %v1720 = vunpack.c.0.s8 %v1601
      %v1721 = vunpack.c.1.s8 %v1601
      %v1722 = vunpack.c.2.s8 %v1601
      %v1723 = vunpack.c.3.s8 %v1601
      %v1724 = vunpack.c.0.s8 %v1602
      %v1725 = vunpack.c.1.s8 %v1602
      %v1726 = vunpack.c.2.s8 %v1602
      %v1727 = vunpack.c.3.s8 %v1602
      %v1728 = vunpack.c.0.s8 %v1603
      %v1729 = vunpack.c.1.s8 %v1603
      %v1730 = vunpack.c.2.s8 %v1603
      %v1731 = vunpack.c.3.s8 %v1603
      %vm1732 = vcmp.ne.s32.totalorder %v1604, 0
      %vm1733 = vcmp.ne.s32.totalorder %v1605, 0
      %vm1734 = vcmp.ne.s32.totalorder %v1606, 0
      %vm1735 = vcmp.ne.s32.totalorder %v1607, 0
      %vm1736 = vcmp.ne.s32.totalorder %v1608, 0
      %vm1737 = vcmp.ne.s32.totalorder %v1609, 0
      %vm1738 = vcmp.ne.s32.totalorder %v1610, 0
      %vm1739 = vcmp.ne.s32.totalorder %v1611, 0
      %vm1740 = vcmp.ne.s32.totalorder %v1612, 0
      %vm1741 = vcmp.ne.s32.totalorder %v1613, 0
      %vm1742 = vcmp.ne.s32.totalorder %v1614, 0
      %vm1743 = vcmp.ne.s32.totalorder %v1615, 0
      %vm1744 = vcmp.ne.s32.totalorder %v1616, 0
      %vm1745 = vcmp.ne.s32.totalorder %v1617, 0
      %vm1746 = vcmp.ne.s32.totalorder %v1618, 0
      %vm1747 = vcmp.ne.s32.totalorder %v1619, 0
      %vm1748 = vcmp.ne.s32.totalorder %v1620, 0
      %vm1749 = vcmp.ne.s32.totalorder %v1621, 0
      %vm1750 = vcmp.ne.s32.totalorder %v1622, 0
      %vm1751 = vcmp.ne.s32.totalorder %v1623, 0
      %vm1752 = vcmp.ne.s32.totalorder %v1624, 0
      %vm1753 = vcmp.ne.s32.totalorder %v1625, 0
      %vm1754 = vcmp.ne.s32.totalorder %v1626, 0
      %vm1755 = vcmp.ne.s32.totalorder %v1627, 0
      %vm1756 = vcmp.ne.s32.totalorder %v1628, 0
      %vm1757 = vcmp.ne.s32.totalorder %v1629, 0
      %vm1758 = vcmp.ne.s32.totalorder %v1630, 0
      %vm1759 = vcmp.ne.s32.totalorder %v1631, 0
      %vm1760 = vcmp.ne.s32.totalorder %v1632, 0
      %vm1761 = vcmp.ne.s32.totalorder %v1633, 0
      %vm1762 = vcmp.ne.s32.totalorder %v1634, 0
      %vm1763 = vcmp.ne.s32.totalorder %v1635, 0
      %vm1764 = vcmp.ne.s32.totalorder %v1636, 0
      %vm1765 = vcmp.ne.s32.totalorder %v1637, 0
      %vm1766 = vcmp.ne.s32.totalorder %v1638, 0
      %vm1767 = vcmp.ne.s32.totalorder %v1639, 0
      %vm1768 = vcmp.ne.s32.totalorder %v1640, 0
      %vm1769 = vcmp.ne.s32.totalorder %v1641, 0
      %vm1770 = vcmp.ne.s32.totalorder %v1642, 0
      %vm1771 = vcmp.ne.s32.totalorder %v1643, 0
      %vm1772 = vcmp.ne.s32.totalorder %v1644, 0
      %vm1773 = vcmp.ne.s32.totalorder %v1645, 0
      %vm1774 = vcmp.ne.s32.totalorder %v1646, 0
      %vm1775 = vcmp.ne.s32.totalorder %v1647, 0
      %vm1776 = vcmp.ne.s32.totalorder %v1648, 0
      %vm1777 = vcmp.ne.s32.totalorder %v1649, 0
      %vm1778 = vcmp.ne.s32.totalorder %v1650, 0
      %vm1779 = vcmp.ne.s32.totalorder %v1651, 0
      %vm1780 = vcmp.ne.s32.totalorder %v1652, 0
      %vm1781 = vcmp.ne.s32.totalorder %v1653, 0
      %vm1782 = vcmp.ne.s32.totalorder %v1654, 0
      %vm1783 = vcmp.ne.s32.totalorder %v1655, 0
      %vm1784 = vcmp.ne.s32.totalorder %v1656, 0
      %vm1785 = vcmp.ne.s32.totalorder %v1657, 0
      %vm1786 = vcmp.ne.s32.totalorder %v1658, 0
      %vm1787 = vcmp.ne.s32.totalorder %v1659, 0
      %vm1788 = vcmp.ne.s32.totalorder %v1660, 0
      %vm1789 = vcmp.ne.s32.totalorder %v1661, 0
      %vm1790 = vcmp.ne.s32.totalorder %v1662, 0
      %vm1791 = vcmp.ne.s32.totalorder %v1663, 0
      %vm1792 = vcmp.ne.s32.totalorder %v1664, 0
      %vm1793 = vcmp.ne.s32.totalorder %v1665, 0
      %vm1794 = vcmp.ne.s32.totalorder %v1666, 0
      %vm1795 = vcmp.ne.s32.totalorder %v1667, 0
      %vm1796 = vcmp.ne.s32.totalorder %v1668, 0
      %vm1797 = vcmp.ne.s32.totalorder %v1669, 0
      %vm1798 = vcmp.ne.s32.totalorder %v1670, 0
      %vm1799 = vcmp.ne.s32.totalorder %v1671, 0
      %vm1800 = vcmp.ne.s32.totalorder %v1672, 0
      %vm1801 = vcmp.ne.s32.totalorder %v1673, 0
      %vm1802 = vcmp.ne.s32.totalorder %v1674, 0
      %vm1803 = vcmp.ne.s32.totalorder %v1675, 0
      %vm1804 = vcmp.ne.s32.totalorder %v1676, 0
      %vm1805 = vcmp.ne.s32.totalorder %v1677, 0
      %vm1806 = vcmp.ne.s32.totalorder %v1678, 0
      %vm1807 = vcmp.ne.s32.totalorder %v1679, 0
      %vm1808 = vcmp.ne.s32.totalorder %v1680, 0
      %vm1809 = vcmp.ne.s32.totalorder %v1681, 0
      %vm1810 = vcmp.ne.s32.totalorder %v1682, 0
      %vm1811 = vcmp.ne.s32.totalorder %v1683, 0
      %vm1812 = vcmp.ne.s32.totalorder %v1684, 0
      %vm1813 = vcmp.ne.s32.totalorder %v1685, 0
      %vm1814 = vcmp.ne.s32.totalorder %v1686, 0
      %vm1815 = vcmp.ne.s32.totalorder %v1687, 0
      %vm1816 = vcmp.ne.s32.totalorder %v1688, 0
      %vm1817 = vcmp.ne.s32.totalorder %v1689, 0
      %vm1818 = vcmp.ne.s32.totalorder %v1690, 0
      %vm1819 = vcmp.ne.s32.totalorder %v1691, 0
      %vm1820 = vcmp.ne.s32.totalorder %v1692, 0
      %vm1821 = vcmp.ne.s32.totalorder %v1693, 0
      %vm1822 = vcmp.ne.s32.totalorder %v1694, 0
      %vm1823 = vcmp.ne.s32.totalorder %v1695, 0
      %vm1824 = vcmp.ne.s32.totalorder %v1696, 0
      %vm1825 = vcmp.ne.s32.totalorder %v1697, 0
      %vm1826 = vcmp.ne.s32.totalorder %v1698, 0
      %vm1827 = vcmp.ne.s32.totalorder %v1699, 0
      %vm1828 = vcmp.ne.s32.totalorder %v1700, 0
      %vm1829 = vcmp.ne.s32.totalorder %v1701, 0
      %vm1830 = vcmp.ne.s32.totalorder %v1702, 0
      %vm1831 = vcmp.ne.s32.totalorder %v1703, 0
      %vm1832 = vcmp.ne.s32.totalorder %v1704, 0
      %vm1833 = vcmp.ne.s32.totalorder %v1705, 0
      %vm1834 = vcmp.ne.s32.totalorder %v1706, 0
      %vm1835 = vcmp.ne.s32.totalorder %v1707, 0
      %vm1836 = vcmp.ne.s32.totalorder %v1708, 0
      %vm1837 = vcmp.ne.s32.totalorder %v1709, 0
      %vm1838 = vcmp.ne.s32.totalorder %v1710, 0
      %vm1839 = vcmp.ne.s32.totalorder %v1711, 0
      %vm1840 = vcmp.ne.s32.totalorder %v1712, 0
      %vm1841 = vcmp.ne.s32.totalorder %v1713, 0
      %vm1842 = vcmp.ne.s32.totalorder %v1714, 0
      %vm1843 = vcmp.ne.s32.totalorder %v1715, 0
      %vm1844 = vcmp.ne.s32.totalorder %v1716, 0
      %vm1845 = vcmp.ne.s32.totalorder %v1717, 0
      %vm1846 = vcmp.ne.s32.totalorder %v1718, 0
      %vm1847 = vcmp.ne.s32.totalorder %v1719, 0
      %vm1848 = vcmp.ne.s32.totalorder %v1720, 0
      %vm1849 = vcmp.ne.s32.totalorder %v1721, 0
      %vm1850 = vcmp.ne.s32.totalorder %v1722, 0
      %vm1851 = vcmp.ne.s32.totalorder %v1723, 0
      %vm1852 = vcmp.ne.s32.totalorder %v1724, 0
      %vm1853 = vcmp.ne.s32.totalorder %v1725, 0
      %vm1854 = vcmp.ne.s32.totalorder %v1726, 0
      %vm1855 = vcmp.ne.s32.totalorder %v1727, 0
      %vm1856 = vcmp.ne.s32.totalorder %v1728, 0
      %vm1857 = vcmp.ne.s32.totalorder %v1729, 0
      %vm1858 = vcmp.ne.s32.totalorder %v1730, 0
      %vm1859 = vcmp.ne.s32.totalorder %v1731, 0
      %v1860 = vsel %vm1732, %v1092, -1e+30
      %v1861 = vsel %vm1733, %v1093, -1e+30
      %v1862 = vsel %vm1734, %v1094, -1e+30
      %v1863 = vsel %vm1735, %v1095, -1e+30
      %v1864 = vsel %vm1736, %v1096, -1e+30
      %v1865 = vsel %vm1737, %v1097, -1e+30
      %v1866 = vsel %vm1738, %v1098, -1e+30
      %v1867 = vsel %vm1739, %v1099, -1e+30
      %v1868 = vsel %vm1740, %v1100, -1e+30
      %v1869 = vsel %vm1741, %v1101, -1e+30
      %v1870 = vsel %vm1742, %v1102, -1e+30
      %v1871 = vsel %vm1743, %v1103, -1e+30
      %v1872 = vsel %vm1744, %v1104, -1e+30
      %v1873 = vsel %vm1745, %v1105, -1e+30
      %v1874 = vsel %vm1746, %v1106, -1e+30
      %v1875 = vsel %vm1747, %v1107, -1e+30
      %v1876 = vsel %vm1748, %v1108, -1e+30
      %v1877 = vsel %vm1749, %v1109, -1e+30
      %v1878 = vsel %vm1750, %v1110, -1e+30
      %v1879 = vsel %vm1751, %v1111, -1e+30
      %v1880 = vsel %vm1752, %v1112, -1e+30
      %v1881 = vsel %vm1753, %v1113, -1e+30
      %v1882 = vsel %vm1754, %v1114, -1e+30
      %v1883 = vsel %vm1755, %v1115, -1e+30
      %v1884 = vsel %vm1756, %v1116, -1e+30
      %v1885 = vsel %vm1757, %v1117, -1e+30
      %v1886 = vsel %vm1758, %v1118, -1e+30
      %v1887 = vsel %vm1759, %v1119, -1e+30
      %v1888 = vsel %vm1760, %v1120, -1e+30
      %v1889 = vsel %vm1761, %v1121, -1e+30
      %v1890 = vsel %vm1762, %v1122, -1e+30
      %v1891 = vsel %vm1763, %v1123, -1e+30
      %v1892 = vsel %vm1764, %v1124, -1e+30
      %v1893 = vsel %vm1765, %v1125, -1e+30
      %v1894 = vsel %vm1766, %v1126, -1e+30
      %v1895 = vsel %vm1767, %v1127, -1e+30
      %v1896 = vsel %vm1768, %v1128, -1e+30
      %v1897 = vsel %vm1769, %v1129, -1e+30
      %v1898 = vsel %vm1770, %v1130, -1e+30
      %v1899 = vsel %vm1771, %v1131, -1e+30
      %v1900 = vsel %vm1772, %v1132, -1e+30
      %v1901 = vsel %vm1773, %v1133, -1e+30
      %v1902 = vsel %vm1774, %v1134, -1e+30
      %v1903 = vsel %vm1775, %v1135, -1e+30
      %v1904 = vsel %vm1776, %v1136, -1e+30
      %v1905 = vsel %vm1777, %v1137, -1e+30
      %v1906 = vsel %vm1778, %v1138, -1e+30
      %v1907 = vsel %vm1779, %v1139, -1e+30
      %v1908 = vsel %vm1780, %v1140, -1e+30
      %v1909 = vsel %vm1781, %v1141, -1e+30
      %v1910 = vsel %vm1782, %v1142, -1e+30
      %v1911 = vsel %vm1783, %v1143, -1e+30
      %v1912 = vsel %vm1784, %v1144, -1e+30
      %v1913 = vsel %vm1785, %v1145, -1e+30
      %v1914 = vsel %vm1786, %v1146, -1e+30
      %v1915 = vsel %vm1787, %v1147, -1e+30
      %v1916 = vsel %vm1788, %v1148, -1e+30
      %v1917 = vsel %vm1789, %v1149, -1e+30
      %v1918 = vsel %vm1790, %v1150, -1e+30
      %v1919 = vsel %vm1791, %v1151, -1e+30
      %v1920 = vsel %vm1792, %v1152, -1e+30
      %v1921 = vsel %vm1793, %v1153, -1e+30
      %v1922 = vsel %vm1794, %v1154, -1e+30
      %v1923 = vsel %vm1795, %v1155, -1e+30
      %v1924 = vsel %vm1796, %v1156, -1e+30
      %v1925 = vsel %vm1797, %v1157, -1e+30
      %v1926 = vsel %vm1798, %v1158, -1e+30
      %v1927 = vsel %vm1799, %v1159, -1e+30
      %v1928 = vsel %vm1800, %v1160, -1e+30
      %v1929 = vsel %vm1801, %v1161, -1e+30
      %v1930 = vsel %vm1802, %v1162, -1e+30
      %v1931 = vsel %vm1803, %v1163, -1e+30
      %v1932 = vsel %vm1804, %v1164, -1e+30
      %v1933 = vsel %vm1805, %v1165, -1e+30
      %v1934 = vsel %vm1806, %v1166, -1e+30
      %v1935 = vsel %vm1807, %v1167, -1e+30
      %v1936 = vsel %vm1808, %v1168, -1e+30
      %v1937 = vsel %vm1809, %v1169, -1e+30
      %v1938 = vsel %vm1810, %v1170, -1e+30
      %v1939 = vsel %vm1811, %v1171, -1e+30
      %v1940 = vsel %vm1812, %v1172, -1e+30
      %v1941 = vsel %vm1813, %v1173, -1e+30
      %v1942 = vsel %vm1814, %v1174, -1e+30
      %v1943 = vsel %vm1815, %v1175, -1e+30
      %v1944 = vsel %vm1816, %v1176, -1e+30
      %v1945 = vsel %vm1817, %v1177, -1e+30
      %v1946 = vsel %vm1818, %v1178, -1e+30
      %v1947 = vsel %vm1819, %v1179, -1e+30
      %v1948 = vsel %vm1820, %v1180, -1e+30
      %v1949 = vsel %vm1821, %v1181, -1e+30
      %v1950 = vsel %vm1822, %v1182, -1e+30
      %v1951 = vsel %vm1823, %v1183, -1e+30
      %v1952 = vsel %vm1824, %v1184, -1e+30
      %v1953 = vsel %vm1825, %v1185, -1e+30
      %v1954 = vsel %vm1826, %v1186, -1e+30
      %v1955 = vsel %vm1827, %v1187, -1e+30
      %v1956 = vsel %vm1828, %v1188, -1e+30
      %v1957 = vsel %vm1829, %v1189, -1e+30
      %v1958 = vsel %vm1830, %v1190, -1e+30
      %v1959 = vsel %vm1831, %v1191, -1e+30
      %v1960 = vsel %vm1832, %v1192, -1e+30
      %v1961 = vsel %vm1833, %v1193, -1e+30
      %v1962 = vsel %vm1834, %v1194, -1e+30
      %v1963 = vsel %vm1835, %v1195, -1e+30
      %v1964 = vsel %vm1836, %v1196, -1e+30
      %v1965 = vsel %vm1837, %v1197, -1e+30
      %v1966 = vsel %vm1838, %v1198, -1e+30
      %v1967 = vsel %vm1839, %v1199, -1e+30
      %v1968 = vsel %vm1840, %v1200, -1e+30
      %v1969 = vsel %vm1841, %v1201, -1e+30
      %v1970 = vsel %vm1842, %v1202, -1e+30
      %v1971 = vsel %vm1843, %v1203, -1e+30
      %v1972 = vsel %vm1844, %v1204, -1e+30
      %v1973 = vsel %vm1845, %v1205, -1e+30
      %v1974 = vsel %vm1846, %v1206, -1e+30
      %v1975 = vsel %vm1847, %v1207, -1e+30
      %v1976 = vsel %vm1848, %v1208, -1e+30
      %v1977 = vsel %vm1849, %v1209, -1e+30
      %v1978 = vsel %vm1850, %v1210, -1e+30
      %v1979 = vsel %vm1851, %v1211, -1e+30
      %v1980 = vsel %vm1852, %v1212, -1e+30
      %v1981 = vsel %vm1853, %v1213, -1e+30
      %v1982 = vsel %vm1854, %v1214, -1e+30
      %v1983 = vsel %vm1855, %v1215, -1e+30
      %v1984 = vsel %vm1856, %v1216, -1e+30
      %v1985 = vsel %vm1857, %v1217, -1e+30
      %v1986 = vsel %vm1858, %v1218, -1e+30
      %v1987 = vsel %vm1859, %v1219, -1e+30
      %v1988 = vld [vmem:[#allocation2] sm:$0xff]
      %v1989 = vld [vmem:[#allocation2 + $0x8] sm:$0xff]
      %v1990 = vld [vmem:[#allocation2 + $0x10] sm:$0xff]
      %v1991 = vld [vmem:[#allocation2 + $0x18] sm:$0xff]
      %v1992 = vld [vmem:[#allocation2 + $0x20] sm:$0xff]
      %v1993 = vld [vmem:[#allocation2 + $0x28] sm:$0xff]
      %v1994 = vld [vmem:[#allocation2 + $0x30] sm:$0xff]
      %v1995 = vld [vmem:[#allocation2 + $0x38] sm:$0xff]
      %v1996 = vld [vmem:[#allocation2 + $0x40] sm:$0xff]
      %v1997 = vld [vmem:[#allocation2 + $0x48] sm:$0xff]
      %v1998 = vld [vmem:[#allocation2 + $0x50] sm:$0xff]
      %v1999 = vld [vmem:[#allocation2 + $0x58] sm:$0xff]
      %v2000 = vld [vmem:[#allocation2 + $0x60] sm:$0xff]
      %v2001 = vld [vmem:[#allocation2 + $0x68] sm:$0xff]
      %v2002 = vld [vmem:[#allocation2 + $0x70] sm:$0xff]
      %v2003 = vld [vmem:[#allocation2 + $0x78] sm:$0xff]
      %v2004 = vld [vmem:[#allocation2 + $0x80] sm:$0xff]
      %v2005 = vld [vmem:[#allocation2 + $0x88] sm:$0xff]
      %v2006 = vld [vmem:[#allocation2 + $0x90] sm:$0xff]
      %v2007 = vld [vmem:[#allocation2 + $0x98] sm:$0xff]
      %v2008 = vld [vmem:[#allocation2 + $0xa0] sm:$0xff]
      %v2009 = vld [vmem:[#allocation2 + $0xa8] sm:$0xff]
      %v2010 = vld [vmem:[#allocation2 + $0xb0] sm:$0xff]
      %v2011 = vld [vmem:[#allocation2 + $0xb8] sm:$0xff]
      %v2012 = vld [vmem:[#allocation2 + $0xc0] sm:$0xff]
      %v2013 = vld [vmem:[#allocation2 + $0xc8] sm:$0xff]
      %v2014 = vld [vmem:[#allocation2 + $0xd0] sm:$0xff]
      %v2015 = vld [vmem:[#allocation2 + $0xd8] sm:$0xff]
      %v2016 = vld [vmem:[#allocation2 + $0xe0] sm:$0xff]
      %v2017 = vld [vmem:[#allocation2 + $0xe8] sm:$0xff]
      %v2018 = vld [vmem:[#allocation2 + $0xf0] sm:$0xff]
      %v2019 = vld [vmem:[#allocation2 + $0xf8] sm:$0xff]
      %v2020 = vmax.f32 %v1860, %v1861
      %v2021 = vmax.f32 %v2020, %v1862
      %v2022 = vmax.f32 %v2021, %v1863
      %2023 = vmax.xlane.f32.xlu0 %v2022
      %v2024 = vpop.xlane.xlu0 %2023
      %v2025 = vmax.f32 %v1864, %v1865
      %v2026 = vmax.f32 %v2025, %v1866
      %v2027 = vmax.f32 %v2026, %v1867
      %2028 = vmax.xlane.f32.xlu0 %v2027
      %v2029 = vpop.xlane.xlu0 %2028
      %v2030 = vmax.f32 %v1868, %v1869
      %v2031 = vmax.f32 %v2030, %v1870
      %v2032 = vmax.f32 %v2031, %v1871
      %2033 = vmax.xlane.f32.xlu0 %v2032
      %v2034 = vpop.xlane.xlu0 %2033
      %v2035 = vmax.f32 %v1872, %v1873
      %v2036 = vmax.f32 %v2035, %v1874
      %v2037 = vmax.f32 %v2036, %v1875
      %2038 = vmax.xlane.f32.xlu0 %v2037
      %v2039 = vpop.xlane.xlu0 %2038
      %v2040 = vmax.f32 %v1876, %v1877
      %v2041 = vmax.f32 %v2040, %v1878
      %v2042 = vmax.f32 %v2041, %v1879
      %2043 = vmax.xlane.f32.xlu0 %v2042
      %v2044 = vpop.xlane.xlu0 %2043
      %v2045 = vmax.f32 %v1880, %v1881
      %v2046 = vmax.f32 %v2045, %v1882
      %v2047 = vmax.f32 %v2046, %v1883
      %2048 = vmax.xlane.f32.xlu0 %v2047
      %v2049 = vpop.xlane.xlu0 %2048
      %v2050 = vmax.f32 %v1884, %v1885
      %v2051 = vmax.f32 %v2050, %v1886
      %v2052 = vmax.f32 %v2051, %v1887
      %2053 = vmax.xlane.f32.xlu0 %v2052
      %v2054 = vpop.xlane.xlu0 %2053
      %v2055 = vmax.f32 %v1888, %v1889
      %v2056 = vmax.f32 %v2055, %v1890
      %v2057 = vmax.f32 %v2056, %v1891
      %2058 = vmax.xlane.f32.xlu0 %v2057
      %v2059 = vpop.xlane.xlu0 %2058
      %v2060 = vmax.f32 %v1892, %v1893
      %v2061 = vmax.f32 %v2060, %v1894
      %v2062 = vmax.f32 %v2061, %v1895
      %2063 = vmax.xlane.f32.xlu0 %v2062
      %v2064 = vpop.xlane.xlu0 %2063
      %v2065 = vmax.f32 %v1896, %v1897
      %v2066 = vmax.f32 %v2065, %v1898
      %v2067 = vmax.f32 %v2066, %v1899
      %2068 = vmax.xlane.f32.xlu0 %v2067
      %v2069 = vpop.xlane.xlu0 %2068
      %v2070 = vmax.f32 %v1900, %v1901
      %v2071 = vmax.f32 %v2070, %v1902
      %v2072 = vmax.f32 %v2071, %v1903
      %2073 = vmax.xlane.f32.xlu0 %v2072
      %v2074 = vpop.xlane.xlu0 %2073
      %v2075 = vmax.f32 %v1904, %v1905
      %v2076 = vmax.f32 %v2075, %v1906
      %v2077 = vmax.f32 %v2076, %v1907
      %2078 = vmax.xlane.f32.xlu0 %v2077
      %v2079 = vpop.xlane.xlu0 %2078
      %v2080 = vmax.f32 %v1908, %v1909
      %v2081 = vmax.f32 %v2080, %v1910
      %v2082 = vmax.f32 %v2081, %v1911
      %2083 = vmax.xlane.f32.xlu0 %v2082
      %v2084 = vpop.xlane.xlu0 %2083
      %v2085 = vmax.f32 %v1912, %v1913
      %v2086 = vmax.f32 %v2085, %v1914
      %v2087 = vmax.f32 %v2086, %v1915
      %2088 = vmax.xlane.f32.xlu0 %v2087
      %v2089 = vpop.xlane.xlu0 %2088
      %v2090 = vmax.f32 %v1916, %v1917
      %v2091 = vmax.f32 %v2090, %v1918
      %v2092 = vmax.f32 %v2091, %v1919
      %2093 = vmax.xlane.f32.xlu0 %v2092
      %v2094 = vpop.xlane.xlu0 %2093
      %v2095 = vmax.f32 %v1920, %v1921
      %v2096 = vmax.f32 %v2095, %v1922
      %v2097 = vmax.f32 %v2096, %v1923
      %2098 = vmax.xlane.f32.xlu0 %v2097
      %v2099 = vpop.xlane.xlu0 %2098
      %v2100 = vmax.f32 %v1924, %v1925
      %v2101 = vmax.f32 %v2100, %v1926
      %v2102 = vmax.f32 %v2101, %v1927
      %2103 = vmax.xlane.f32.xlu0 %v2102
      %v2104 = vpop.xlane.xlu0 %2103
      %v2105 = vmax.f32 %v1928, %v1929
      %v2106 = vmax.f32 %v2105, %v1930
      %v2107 = vmax.f32 %v2106, %v1931
      %2108 = vmax.xlane.f32.xlu0 %v2107
      %v2109 = vpop.xlane.xlu0 %2108
      %v2110 = vmax.f32 %v1932, %v1933
      %v2111 = vmax.f32 %v2110, %v1934
      %v2112 = vmax.f32 %v2111, %v1935
      %2113 = vmax.xlane.f32.xlu0 %v2112
      %v2114 = vpop.xlane.xlu0 %2113
      %v2115 = vmax.f32 %v1936, %v1937
      %v2116 = vmax.f32 %v2115, %v1938
      %v2117 = vmax.f32 %v2116, %v1939
      %2118 = vmax.xlane.f32.xlu0 %v2117
      %v2119 = vpop.xlane.xlu0 %2118
      %v2120 = vmax.f32 %v1940, %v1941
      %v2121 = vmax.f32 %v2120, %v1942
      %v2122 = vmax.f32 %v2121, %v1943
      %2123 = vmax.xlane.f32.xlu0 %v2122
      %v2124 = vpop.xlane.xlu0 %2123
      %v2125 = vmax.f32 %v1944, %v1945
      %v2126 = vmax.f32 %v2125, %v1946
      %v2127 = vmax.f32 %v2126, %v1947
      %2128 = vmax.xlane.f32.xlu0 %v2127
      %v2129 = vpop.xlane.xlu0 %2128
      %v2130 = vmax.f32 %v1948, %v1949
      %v2131 = vmax.f32 %v2130, %v1950
      %v2132 = vmax.f32 %v2131, %v1951
      %2133 = vmax.xlane.f32.xlu0 %v2132
      %v2134 = vpop.xlane.xlu0 %2133
      %v2135 = vmax.f32 %v1952, %v1953
      %v2136 = vmax.f32 %v2135, %v1954
      %v2137 = vmax.f32 %v2136, %v1955
      %2138 = vmax.xlane.f32.xlu0 %v2137
      %v2139 = vpop.xlane.xlu0 %2138
      %v2140 = vmax.f32 %v1956, %v1957
      %v2141 = vmax.f32 %v2140, %v1958
      %v2142 = vmax.f32 %v2141, %v1959
      %2143 = vmax.xlane.f32.xlu0 %v2142
      %v2144 = vpop.xlane.xlu0 %2143
      %v2145 = vmax.f32 %v1960, %v1961
      %v2146 = vmax.f32 %v2145, %v1962
      %v2147 = vmax.f32 %v2146, %v1963
      %2148 = vmax.xlane.f32.xlu0 %v2147
      %v2149 = vpop.xlane.xlu0 %2148
      %v2150 = vmax.f32 %v1964, %v1965
      %v2151 = vmax.f32 %v2150, %v1966
      %v2152 = vmax.f32 %v2151, %v1967
      %2153 = vmax.xlane.f32.xlu0 %v2152
      %v2154 = vpop.xlane.xlu0 %2153
      %v2155 = vmax.f32 %v1968, %v1969
      %v2156 = vmax.f32 %v2155, %v1970
      %v2157 = vmax.f32 %v2156, %v1971
      %2158 = vmax.xlane.f32.xlu0 %v2157
      %v2159 = vpop.xlane.xlu0 %2158
      %v2160 = vmax.f32 %v1972, %v1973
      %v2161 = vmax.f32 %v2160, %v1974
      %v2162 = vmax.f32 %v2161, %v1975
      %2163 = vmax.xlane.f32.xlu0 %v2162
      %v2164 = vpop.xlane.xlu0 %2163
      %v2165 = vmax.f32 %v1976, %v1977
      %v2166 = vmax.f32 %v2165, %v1978
      %v2167 = vmax.f32 %v2166, %v1979
      %2168 = vmax.xlane.f32.xlu0 %v2167
      %v2169 = vpop.xlane.xlu0 %2168
      %v2170 = vmax.f32 %v1980, %v1981
      %v2171 = vmax.f32 %v2170, %v1982
      %v2172 = vmax.f32 %v2171, %v1983
      %2173 = vmax.xlane.f32.xlu0 %v2172
      %v2174 = vpop.xlane.xlu0 %2173
      %v2175 = vmax.f32 %v1984, %v1985
      %v2176 = vmax.f32 %v2175, %v1986
      %v2177 = vmax.f32 %v2176, %v1987
      %2178 = vmax.xlane.f32.xlu0 %v2177
      %v2179 = vpop.xlane.xlu0 %2178
      %v2180 = vmax.f32 %v1988, %v2024
      %v2181 = vmax.f32 %v1989, %v2029
      %v2182 = vmax.f32 %v1990, %v2034
      %v2183 = vmax.f32 %v1991, %v2039
      %v2184 = vmax.f32 %v1992, %v2044
      %v2185 = vmax.f32 %v1993, %v2049
      %v2186 = vmax.f32 %v1994, %v2054
      %v2187 = vmax.f32 %v1995, %v2059
      %v2188 = vmax.f32 %v1996, %v2064
      %v2189 = vmax.f32 %v1997, %v2069
      %v2190 = vmax.f32 %v1998, %v2074
      %v2191 = vmax.f32 %v1999, %v2079
      %v2192 = vmax.f32 %v2000, %v2084
      %v2193 = vmax.f32 %v2001, %v2089
      %v2194 = vmax.f32 %v2002, %v2094
      %v2195 = vmax.f32 %v2003, %v2099
      %v2196 = vmax.f32 %v2004, %v2104
      %v2197 = vmax.f32 %v2005, %v2109
      %v2198 = vmax.f32 %v2006, %v2114
      %v2199 = vmax.f32 %v2007, %v2119
      %v2200 = vmax.f32 %v2008, %v2124
      %v2201 = vmax.f32 %v2009, %v2129
      %v2202 = vmax.f32 %v2010, %v2134
      %v2203 = vmax.f32 %v2011, %v2139
      %v2204 = vmax.f32 %v2012, %v2144
      %v2205 = vmax.f32 %v2013, %v2149
      %v2206 = vmax.f32 %v2014, %v2154
      %v2207 = vmax.f32 %v2015, %v2159
      %v2208 = vmax.f32 %v2016, %v2164
      %v2209 = vmax.f32 %v2017, %v2169
      %v2210 = vmax.f32 %v2018, %v2174
      %v2211 = vmax.f32 %v2019, %v2179
      %2213 = vset.pattern.permute.xlu0 0
      %2214 = vperm.xlu0 %2213, %v2180
      %v2215 = vpop.permute.xlu0 %2214
      %2218 = vset.pattern.permute.xlu0 0
      %2219 = vperm.xlu0 %2218, %v2181
      %v2220 = vpop.permute.xlu0 %2219
      %2223 = vset.pattern.permute.xlu0 0
      %2224 = vperm.xlu0 %2223, %v2182
      %v2225 = vpop.permute.xlu0 %2224
      %2228 = vset.pattern.permute.xlu0 0
      %2229 = vperm.xlu0 %2228, %v2183
      %v2230 = vpop.permute.xlu0 %2229
      %2233 = vset.pattern.permute.xlu0 0
      %2234 = vperm.xlu0 %2233, %v2184
      %v2235 = vpop.permute.xlu0 %2234
      %2238 = vset.pattern.permute.xlu0 0
      %2239 = vperm.xlu0 %2238, %v2185
      %v2240 = vpop.permute.xlu0 %2239
      %2243 = vset.pattern.permute.xlu0 0
      %2244 = vperm.xlu0 %2243, %v2186
      %v2245 = vpop.permute.xlu0 %2244
      %2248 = vset.pattern.permute.xlu0 0
      %2249 = vperm.xlu0 %2248, %v2187
      %v2250 = vpop.permute.xlu0 %2249
      %2253 = vset.pattern.permute.xlu0 0
      %2254 = vperm.xlu0 %2253, %v2188
      %v2255 = vpop.permute.xlu0 %2254
      %2258 = vset.pattern.permute.xlu0 0
      %2259 = vperm.xlu0 %2258, %v2189
      %v2260 = vpop.permute.xlu0 %2259
      %2263 = vset.pattern.permute.xlu0 0
      %2264 = vperm.xlu0 %2263, %v2190
      %v2265 = vpop.permute.xlu0 %2264
      %2268 = vset.pattern.permute.xlu0 0
      %2269 = vperm.xlu0 %2268, %v2191
      %v2270 = vpop.permute.xlu0 %2269
      %2273 = vset.pattern.permute.xlu0 0
      %2274 = vperm.xlu0 %2273, %v2192
      %v2275 = vpop.permute.xlu0 %2274
      %2278 = vset.pattern.permute.xlu0 0
      %2279 = vperm.xlu0 %2278, %v2193
      %v2280 = vpop.permute.xlu0 %2279
      %2283 = vset.pattern.permute.xlu0 0
      %2284 = vperm.xlu0 %2283, %v2194
      %v2285 = vpop.permute.xlu0 %2284
      %2288 = vset.pattern.permute.xlu0 0
      %2289 = vperm.xlu0 %2288, %v2195
      %v2290 = vpop.permute.xlu0 %2289
      %2293 = vset.pattern.permute.xlu0 0
      %2294 = vperm.xlu0 %2293, %v2196
      %v2295 = vpop.permute.xlu0 %2294
      %2298 = vset.pattern.permute.xlu0 0
      %2299 = vperm.xlu0 %2298, %v2197
      %v2300 = vpop.permute.xlu0 %2299
      %2303 = vset.pattern.permute.xlu0 0
      %2304 = vperm.xlu0 %2303, %v2198
      %v2305 = vpop.permute.xlu0 %2304
      %2308 = vset.pattern.permute.xlu0 0
      %2309 = vperm.xlu0 %2308, %v2199
      %v2310 = vpop.permute.xlu0 %2309
      %2313 = vset.pattern.permute.xlu0 0
      %2314 = vperm.xlu0 %2313, %v2200
      %v2315 = vpop.permute.xlu0 %2314
      %2318 = vset.pattern.permute.xlu0 0
      %2319 = vperm.xlu0 %2318, %v2201
      %v2320 = vpop.permute.xlu0 %2319
      %2323 = vset.pattern.permute.xlu0 0
      %2324 = vperm.xlu0 %2323, %v2202
      %v2325 = vpop.permute.xlu0 %2324
      %2328 = vset.pattern.permute.xlu0 0
      %2329 = vperm.xlu0 %2328, %v2203
      %v2330 = vpop.permute.xlu0 %2329
      %2333 = vset.pattern.permute.xlu0 0
      %2334 = vperm.xlu0 %2333, %v2204
      %v2335 = vpop.permute.xlu0 %2334
      %2338 = vset.pattern.permute.xlu0 0
      %2339 = vperm.xlu0 %2338, %v2205
      %v2340 = vpop.permute.xlu0 %2339
      %2343 = vset.pattern.permute.xlu0 0
      %2344 = vperm.xlu0 %2343, %v2206
      %v2345 = vpop.permute.xlu0 %2344
      %2348 = vset.pattern.permute.xlu0 0
      %2349 = vperm.xlu0 %2348, %v2207
      %v2350 = vpop.permute.xlu0 %2349
      %2353 = vset.pattern.permute.xlu0 0
      %2354 = vperm.xlu0 %2353, %v2208
      %v2355 = vpop.permute.xlu0 %2354
      %2358 = vset.pattern.permute.xlu0 0
      %2359 = vperm.xlu0 %2358, %v2209
      %v2360 = vpop.permute.xlu0 %2359
      %2363 = vset.pattern.permute.xlu0 0
      %2364 = vperm.xlu0 %2363, %v2210
      %v2365 = vpop.permute.xlu0 %2364
      %2368 = vset.pattern.permute.xlu0 0
      %2369 = vperm.xlu0 %2368, %v2211
      %v2370 = vpop.permute.xlu0 %2369
      %v2372 = vsub.f32 %v1860, %v2215
      %v2373 = vsub.f32 %v1861, %v2215
      %v2374 = vsub.f32 %v1862, %v2215
      %v2375 = vsub.f32 %v1863, %v2215
      %v2376 = vsub.f32 %v1864, %v2220
      %v2377 = vsub.f32 %v1865, %v2220
      %v2378 = vsub.f32 %v1866, %v2220
      %v2379 = vsub.f32 %v1867, %v2220
      %v2380 = vsub.f32 %v1868, %v2225
      %v2381 = vsub.f32 %v1869, %v2225
      %v2382 = vsub.f32 %v1870, %v2225
      %v2383 = vsub.f32 %v1871, %v2225
      %v2384 = vsub.f32 %v1872, %v2230
      %v2385 = vsub.f32 %v1873, %v2230
      %v2386 = vsub.f32 %v1874, %v2230
      %v2387 = vsub.f32 %v1875, %v2230
      %v2388 = vsub.f32 %v1876, %v2235
      %v2389 = vsub.f32 %v1877, %v2235
      %v2390 = vsub.f32 %v1878, %v2235
      %v2391 = vsub.f32 %v1879, %v2235
      %v2392 = vsub.f32 %v1880, %v2240
      %v2393 = vsub.f32 %v1881, %v2240
      %v2394 = vsub.f32 %v1882, %v2240
      %v2395 = vsub.f32 %v1883, %v2240
      %v2396 = vsub.f32 %v1884, %v2245
      %v2397 = vsub.f32 %v1885, %v2245
      %v2398 = vsub.f32 %v1886, %v2245
      %v2399 = vsub.f32 %v1887, %v2245
      %v2400 = vsub.f32 %v1888, %v2250
      %v2401 = vsub.f32 %v1889, %v2250
      %v2402 = vsub.f32 %v1890, %v2250
      %v2403 = vsub.f32 %v1891, %v2250
      %v2404 = vsub.f32 %v1892, %v2255
      %v2405 = vsub.f32 %v1893, %v2255
      %v2406 = vsub.f32 %v1894, %v2255
      %v2407 = vsub.f32 %v1895, %v2255
      %v2408 = vsub.f32 %v1896, %v2260
      %v2409 = vsub.f32 %v1897, %v2260
      %v2410 = vsub.f32 %v1898, %v2260
      %v2411 = vsub.f32 %v1899, %v2260
      %v2412 = vsub.f32 %v1900, %v2265
      %v2413 = vsub.f32 %v1901, %v2265
      %v2414 = vsub.f32 %v1902, %v2265
      %v2415 = vsub.f32 %v1903, %v2265
      %v2416 = vsub.f32 %v1904, %v2270
      %v2417 = vsub.f32 %v1905, %v2270
      %v2418 = vsub.f32 %v1906, %v2270
      %v2419 = vsub.f32 %v1907, %v2270
      %v2420 = vsub.f32 %v1908, %v2275
      %v2421 = vsub.f32 %v1909, %v2275
      %v2422 = vsub.f32 %v1910, %v2275
      %v2423 = vsub.f32 %v1911, %v2275
      %v2424 = vsub.f32 %v1912, %v2280
      %v2425 = vsub.f32 %v1913, %v2280
      %v2426 = vsub.f32 %v1914, %v2280
      %v2427 = vsub.f32 %v1915, %v2280
      %v2428 = vsub.f32 %v1916, %v2285
      %v2429 = vsub.f32 %v1917, %v2285
      %v2430 = vsub.f32 %v1918, %v2285
      %v2431 = vsub.f32 %v1919, %v2285
      %v2432 = vsub.f32 %v1920, %v2290
      %v2433 = vsub.f32 %v1921, %v2290
      %v2434 = vsub.f32 %v1922, %v2290
      %v2435 = vsub.f32 %v1923, %v2290
      %v2436 = vsub.f32 %v1924, %v2295
      %v2437 = vsub.f32 %v1925, %v2295
      %v2438 = vsub.f32 %v1926, %v2295
      %v2439 = vsub.f32 %v1927, %v2295
      %v2440 = vsub.f32 %v1928, %v2300
      %v2441 = vsub.f32 %v1929, %v2300
      %v2442 = vsub.f32 %v1930, %v2300
      %v2443 = vsub.f32 %v1931, %v2300
      %v2444 = vsub.f32 %v1932, %v2305
      %v2445 = vsub.f32 %v1933, %v2305
      %v2446 = vsub.f32 %v1934, %v2305
      %v2447 = vsub.f32 %v1935, %v2305
      %v2448 = vsub.f32 %v1936, %v2310
      %v2449 = vsub.f32 %v1937, %v2310
      %v2450 = vsub.f32 %v1938, %v2310
      %v2451 = vsub.f32 %v1939, %v2310
      %v2452 = vsub.f32 %v1940, %v2315
      %v2453 = vsub.f32 %v1941, %v2315
      %v2454 = vsub.f32 %v1942, %v2315
      %v2455 = vsub.f32 %v1943, %v2315
      %v2456 = vsub.f32 %v1944, %v2320
      %v2457 = vsub.f32 %v1945, %v2320
      %v2458 = vsub.f32 %v1946, %v2320
      %v2459 = vsub.f32 %v1947, %v2320
      %v2460 = vsub.f32 %v1948, %v2325
      %v2461 = vsub.f32 %v1949, %v2325
      %v2462 = vsub.f32 %v1950, %v2325
      %v2463 = vsub.f32 %v1951, %v2325
      %v2464 = vsub.f32 %v1952, %v2330
      %v2465 = vsub.f32 %v1953, %v2330
      %v2466 = vsub.f32 %v1954, %v2330
      %v2467 = vsub.f32 %v1955, %v2330
      %v2468 = vsub.f32 %v1956, %v2335
      %v2469 = vsub.f32 %v1957, %v2335
      %v2470 = vsub.f32 %v1958, %v2335
      %v2471 = vsub.f32 %v1959, %v2335
      %v2472 = vsub.f32 %v1960, %v2340
      %v2473 = vsub.f32 %v1961, %v2340
      %v2474 = vsub.f32 %v1962, %v2340
      %v2475 = vsub.f32 %v1963, %v2340
      %v2476 = vsub.f32 %v1964, %v2345
      %v2477 = vsub.f32 %v1965, %v2345
      %v2478 = vsub.f32 %v1966, %v2345
      %v2479 = vsub.f32 %v1967, %v2345
      %v2480 = vsub.f32 %v1968, %v2350
      %v2481 = vsub.f32 %v1969, %v2350
      %v2482 = vsub.f32 %v1970, %v2350
      %v2483 = vsub.f32 %v1971, %v2350
      %v2484 = vsub.f32 %v1972, %v2355
      %v2485 = vsub.f32 %v1973, %v2355
      %v2486 = vsub.f32 %v1974, %v2355
      %v2487 = vsub.f32 %v1975, %v2355
      %v2488 = vsub.f32 %v1976, %v2360
      %v2489 = vsub.f32 %v1977, %v2360
      %v2490 = vsub.f32 %v1978, %v2360
      %v2491 = vsub.f32 %v1979, %v2360
      %v2492 = vsub.f32 %v1980, %v2365
      %v2493 = vsub.f32 %v1981, %v2365
      %v2494 = vsub.f32 %v1982, %v2365
      %v2495 = vsub.f32 %v1983, %v2365
      %v2496 = vsub.f32 %v1984, %v2370
      %v2497 = vsub.f32 %v1985, %v2370
      %v2498 = vsub.f32 %v1986, %v2370
      %v2499 = vsub.f32 %v1987, %v2370
      %v2500 = vmul.f32 %v2372, 1.442695
      %v2501 = vpow.pop %v2500
      %v2502 = vmul.f32 %v2373, 1.442695
      %v2503 = vpow.pop %v2502
      %v2504 = vmul.f32 %v2374, 1.442695
      %v2505 = vpow.pop %v2504
      %v2506 = vmul.f32 %v2375, 1.442695
      %v2507 = vpow.pop %v2506
      %v2508 = vmul.f32 %v2376, 1.442695
      %v2509 = vpow.pop %v2508
      %v2510 = vmul.f32 %v2377, 1.442695
      %v2511 = vpow.pop %v2510
      %v2512 = vmul.f32 %v2378, 1.442695
      %v2513 = vpow.pop %v2512
      %v2514 = vmul.f32 %v2379, 1.442695
      %v2515 = vpow.pop %v2514
      %v2516 = vmul.f32 %v2380, 1.442695
      %v2517 = vpow.pop %v2516
      %v2518 = vmul.f32 %v2381, 1.442695
      %v2519 = vpow.pop %v2518
      %v2520 = vmul.f32 %v2382, 1.442695
      %v2521 = vpow.pop %v2520
      %v2522 = vmul.f32 %v2383, 1.442695
      %v2523 = vpow.pop %v2522
      %v2524 = vmul.f32 %v2384, 1.442695
      %v2525 = vpow.pop %v2524
      %v2526 = vmul.f32 %v2385, 1.442695
      %v2527 = vpow.pop %v2526
      %v2528 = vmul.f32 %v2386, 1.442695
      %v2529 = vpow.pop %v2528
      %v2530 = vmul.f32 %v2387, 1.442695
      %v2531 = vpow.pop %v2530
      %v2532 = vmul.f32 %v2388, 1.442695
      %v2533 = vpow.pop %v2532
      %v2534 = vmul.f32 %v2389, 1.442695
      %v2535 = vpow.pop %v2534
      %v2536 = vmul.f32 %v2390, 1.442695
      %v2537 = vpow.pop %v2536
      %v2538 = vmul.f32 %v2391, 1.442695
      %v2539 = vpow.pop %v2538
      %v2540 = vmul.f32 %v2392, 1.442695
      %v2541 = vpow.pop %v2540
      %v2542 = vmul.f32 %v2393, 1.442695
      %v2543 = vpow.pop %v2542
      %v2544 = vmul.f32 %v2394, 1.442695
      %v2545 = vpow.pop %v2544
      %v2546 = vmul.f32 %v2395, 1.442695
      %v2547 = vpow.pop %v2546
      %v2548 = vmul.f32 %v2396, 1.442695
      %v2549 = vpow.pop %v2548
      %v2550 = vmul.f32 %v2397, 1.442695
      %v2551 = vpow.pop %v2550
      %v2552 = vmul.f32 %v2398, 1.442695
      %v2553 = vpow.pop %v2552
      %v2554 = vmul.f32 %v2399, 1.442695
      %v2555 = vpow.pop %v2554
      %v2556 = vmul.f32 %v2400, 1.442695
      %v2557 = vpow.pop %v2556
      %v2558 = vmul.f32 %v2401, 1.442695
      %v2559 = vpow.pop %v2558
      %v2560 = vmul.f32 %v2402, 1.442695
      %v2561 = vpow.pop %v2560
      %v2562 = vmul.f32 %v2403, 1.442695
      %v2563 = vpow.pop %v2562
      %v2564 = vmul.f32 %v2404, 1.442695
      %v2565 = vpow.pop %v2564
      %v2566 = vmul.f32 %v2405, 1.442695
      %v2567 = vpow.pop %v2566
      %v2568 = vmul.f32 %v2406, 1.442695
      %v2569 = vpow.pop %v2568
      %v2570 = vmul.f32 %v2407, 1.442695
      %v2571 = vpow.pop %v2570
      %v2572 = vmul.f32 %v2408, 1.442695
      %v2573 = vpow.pop %v2572
      %v2574 = vmul.f32 %v2409, 1.442695
      %v2575 = vpow.pop %v2574
      %v2576 = vmul.f32 %v2410, 1.442695
      %v2577 = vpow.pop %v2576
      %v2578 = vmul.f32 %v2411, 1.442695
      %v2579 = vpow.pop %v2578
      %v2580 = vmul.f32 %v2412, 1.442695
      %v2581 = vpow.pop %v2580
      %v2582 = vmul.f32 %v2413, 1.442695
      %v2583 = vpow.pop %v2582
      %v2584 = vmul.f32 %v2414, 1.442695
      %v2585 = vpow.pop %v2584
      %v2586 = vmul.f32 %v2415, 1.442695
      %v2587 = vpow.pop %v2586
      %v2588 = vmul.f32 %v2416, 1.442695
      %v2589 = vpow.pop %v2588
      %v2590 = vmul.f32 %v2417, 1.442695
      %v2591 = vpow.pop %v2590
      %v2592 = vmul.f32 %v2418, 1.442695
      %v2593 = vpow.pop %v2592
      %v2594 = vmul.f32 %v2419, 1.442695
      %v2595 = vpow.pop %v2594
      %v2596 = vmul.f32 %v2420, 1.442695
      %v2597 = vpow.pop %v2596
      %v2598 = vmul.f32 %v2421, 1.442695
      %v2599 = vpow.pop %v2598
      %v2600 = vmul.f32 %v2422, 1.442695
      %v2601 = vpow.pop %v2600
      %v2602 = vmul.f32 %v2423, 1.442695
      %v2603 = vpow.pop %v2602
      %v2604 = vmul.f32 %v2424, 1.442695
      %v2605 = vpow.pop %v2604
      %v2606 = vmul.f32 %v2425, 1.442695
      %v2607 = vpow.pop %v2606
      %v2608 = vmul.f32 %v2426, 1.442695
      %v2609 = vpow.pop %v2608
      %v2610 = vmul.f32 %v2427, 1.442695
      %v2611 = vpow.pop %v2610
      %v2612 = vmul.f32 %v2428, 1.442695
      %v2613 = vpow.pop %v2612
      %v2614 = vmul.f32 %v2429, 1.442695
      %v2615 = vpow.pop %v2614
      %v2616 = vmul.f32 %v2430, 1.442695
      %v2617 = vpow.pop %v2616
      %v2618 = vmul.f32 %v2431, 1.442695
      %v2619 = vpow.pop %v2618
      %v2620 = vmul.f32 %v2432, 1.442695
      %v2621 = vpow.pop %v2620
      %v2622 = vmul.f32 %v2433, 1.442695
      %v2623 = vpow.pop %v2622
      %v2624 = vmul.f32 %v2434, 1.442695
      %v2625 = vpow.pop %v2624
      %v2626 = vmul.f32 %v2435, 1.442695
      %v2627 = vpow.pop %v2626
      %v2628 = vmul.f32 %v2436, 1.442695
      %v2629 = vpow.pop %v2628
      %v2630 = vmul.f32 %v2437, 1.442695
      %v2631 = vpow.pop %v2630
      %v2632 = vmul.f32 %v2438, 1.442695
      %v2633 = vpow.pop %v2632
      %v2634 = vmul.f32 %v2439, 1.442695
      %v2635 = vpow.pop %v2634
      %v2636 = vmul.f32 %v2440, 1.442695
      %v2637 = vpow.pop %v2636
      %v2638 = vmul.f32 %v2441, 1.442695
      %v2639 = vpow.pop %v2638
      %v2640 = vmul.f32 %v2442, 1.442695
      %v2641 = vpow.pop %v2640
      %v2642 = vmul.f32 %v2443, 1.442695
      %v2643 = vpow.pop %v2642
      %v2644 = vmul.f32 %v2444, 1.442695
      %v2645 = vpow.pop %v2644
      %v2646 = vmul.f32 %v2445, 1.442695
      %v2647 = vpow.pop %v2646
      %v2648 = vmul.f32 %v2446, 1.442695
      %v2649 = vpow.pop %v2648
      %v2650 = vmul.f32 %v2447, 1.442695
      %v2651 = vpow.pop %v2650
      %v2652 = vmul.f32 %v2448, 1.442695
      %v2653 = vpow.pop %v2652
      %v2654 = vmul.f32 %v2449, 1.442695
      %v2655 = vpow.pop %v2654
      %v2656 = vmul.f32 %v2450, 1.442695
      %v2657 = vpow.pop %v2656
      %v2658 = vmul.f32 %v2451, 1.442695
      %v2659 = vpow.pop %v2658
      %v2660 = vmul.f32 %v2452, 1.442695
      %v2661 = vpow.pop %v2660
      %v2662 = vmul.f32 %v2453, 1.442695
      %v2663 = vpow.pop %v2662
      %v2664 = vmul.f32 %v2454, 1.442695
      %v2665 = vpow.pop %v2664
      %v2666 = vmul.f32 %v2455, 1.442695
      %v2667 = vpow.pop %v2666
      %v2668 = vmul.f32 %v2456, 1.442695
      %v2669 = vpow.pop %v2668
      %v2670 = vmul.f32 %v2457, 1.442695
      %v2671 = vpow.pop %v2670
      %v2672 = vmul.f32 %v2458, 1.442695
      %v2673 = vpow.pop %v2672
      %v2674 = vmul.f32 %v2459, 1.442695
      %v2675 = vpow.pop %v2674
      %v2676 = vmul.f32 %v2460, 1.442695
      %v2677 = vpow.pop %v2676
      %v2678 = vmul.f32 %v2461, 1.442695
      %v2679 = vpow.pop %v2678
      %v2680 = vmul.f32 %v2462, 1.442695
      %v2681 = vpow.pop %v2680
      %v2682 = vmul.f32 %v2463, 1.442695
      %v2683 = vpow.pop %v2682
      %v2684 = vmul.f32 %v2464, 1.442695
      %v2685 = vpow.pop %v2684
      %v2686 = vmul.f32 %v2465, 1.442695
      %v2687 = vpow.pop %v2686
      %v2688 = vmul.f32 %v2466, 1.442695
      %v2689 = vpow.pop %v2688
      %v2690 = vmul.f32 %v2467, 1.442695
      %v2691 = vpow.pop %v2690
      %v2692 = vmul.f32 %v2468, 1.442695
      %v2693 = vpow.pop %v2692
      %v2694 = vmul.f32 %v2469, 1.442695
      %v2695 = vpow.pop %v2694
      %v2696 = vmul.f32 %v2470, 1.442695
      %v2697 = vpow.pop %v2696
      %v2698 = vmul.f32 %v2471, 1.442695
      %v2699 = vpow.pop %v2698
      %v2700 = vmul.f32 %v2472, 1.442695
      %v2701 = vpow.pop %v2700
      %v2702 = vmul.f32 %v2473, 1.442695
      %v2703 = vpow.pop %v2702
      %v2704 = vmul.f32 %v2474, 1.442695
      %v2705 = vpow.pop %v2704
      %v2706 = vmul.f32 %v2475, 1.442695
      %v2707 = vpow.pop %v2706
      %v2708 = vmul.f32 %v2476, 1.442695
      %v2709 = vpow.pop %v2708
      %v2710 = vmul.f32 %v2477, 1.442695
      %v2711 = vpow.pop %v2710
      %v2712 = vmul.f32 %v2478, 1.442695
      %v2713 = vpow.pop %v2712
      %v2714 = vmul.f32 %v2479, 1.442695
      %v2715 = vpow.pop %v2714
      %v2716 = vmul.f32 %v2480, 1.442695
      %v2717 = vpow.pop %v2716
      %v2718 = vmul.f32 %v2481, 1.442695
      %v2719 = vpow.pop %v2718
      %v2720 = vmul.f32 %v2482, 1.442695
      %v2721 = vpow.pop %v2720
      %v2722 = vmul.f32 %v2483, 1.442695
      %v2723 = vpow.pop %v2722
      %v2724 = vmul.f32 %v2484, 1.442695
      %v2725 = vpow.pop %v2724
      %v2726 = vmul.f32 %v2485, 1.442695
      %v2727 = vpow.pop %v2726
      %v2728 = vmul.f32 %v2486, 1.442695
      %v2729 = vpow.pop %v2728
      %v2730 = vmul.f32 %v2487, 1.442695
      %v2731 = vpow.pop %v2730
      %v2732 = vmul.f32 %v2488, 1.442695
      %v2733 = vpow.pop %v2732
      %v2734 = vmul.f32 %v2489, 1.442695
      %v2735 = vpow.pop %v2734
      %v2736 = vmul.f32 %v2490, 1.442695
      %v2737 = vpow.pop %v2736
      %v2738 = vmul.f32 %v2491, 1.442695
      %v2739 = vpow.pop %v2738
      %v2740 = vmul.f32 %v2492, 1.442695
      %v2741 = vpow.pop %v2740
      %v2742 = vmul.f32 %v2493, 1.442695
      %v2743 = vpow.pop %v2742
      %v2744 = vmul.f32 %v2494, 1.442695
      %v2745 = vpow.pop %v2744
      %v2746 = vmul.f32 %v2495, 1.442695
      %v2747 = vpow.pop %v2746
      %v2748 = vmul.f32 %v2496, 1.442695
      %v2749 = vpow.pop %v2748
      %v2750 = vmul.f32 %v2497, 1.442695
      %v2751 = vpow.pop %v2750
      %v2752 = vmul.f32 %v2498, 1.442695
      %v2753 = vpow.pop %v2752
      %v2754 = vmul.f32 %v2499, 1.442695
      %v2755 = vpow.pop %v2754
      %v2756 = vsel %vm1732, %v2501, 0.0
      %v2757 = vsel %vm1733, %v2503, 0.0
      %v2758 = vsel %vm1734, %v2505, 0.0
      %v2759 = vsel %vm1735, %v2507, 0.0
      %v2760 = vsel %vm1736, %v2509, 0.0
      %v2761 = vsel %vm1737, %v2511, 0.0
      %v2762 = vsel %vm1738, %v2513, 0.0
      %v2763 = vsel %vm1739, %v2515, 0.0
      %v2764 = vsel %vm1740, %v2517, 0.0
      %v2765 = vsel %vm1741, %v2519, 0.0
      %v2766 = vsel %vm1742, %v2521, 0.0
      %v2767 = vsel %vm1743, %v2523, 0.0
      %v2768 = vsel %vm1744, %v2525, 0.0
      %v2769 = vsel %vm1745, %v2527, 0.0
      %v2770 = vsel %vm1746, %v2529, 0.0
      %v2771 = vsel %vm1747, %v2531, 0.0
      %v2772 = vsel %vm1748, %v2533, 0.0
      %v2773 = vsel %vm1749, %v2535, 0.0
      %v2774 = vsel %vm1750, %v2537, 0.0
      %v2775 = vsel %vm1751, %v2539, 0.0
      %v2776 = vsel %vm1752, %v2541, 0.0
      %v2777 = vsel %vm1753, %v2543, 0.0
      %v2778 = vsel %vm1754, %v2545, 0.0
      %v2779 = vsel %vm1755, %v2547, 0.0
      %v2780 = vsel %vm1756, %v2549, 0.0
      %v2781 = vsel %vm1757, %v2551, 0.0
      %v2782 = vsel %vm1758, %v2553, 0.0
      %v2783 = vsel %vm1759, %v2555, 0.0
      %v2784 = vsel %vm1760, %v2557, 0.0
      %v2785 = vsel %vm1761, %v2559, 0.0
      %v2786 = vsel %vm1762, %v2561, 0.0
      %v2787 = vsel %vm1763, %v2563, 0.0
      %v2788 = vsel %vm1764, %v2565, 0.0
      %v2789 = vsel %vm1765, %v2567, 0.0
      %v2790 = vsel %vm1766, %v2569, 0.0
      %v2791 = vsel %vm1767, %v2571, 0.0
      %v2792 = vsel %vm1768, %v2573, 0.0
      %v2793 = vsel %vm1769, %v2575, 0.0
      %v2794 = vsel %vm1770, %v2577, 0.0
      %v2795 = vsel %vm1771, %v2579, 0.0
      %v2796 = vsel %vm1772, %v2581, 0.0
      %v2797 = vsel %vm1773, %v2583, 0.0
      %v2798 = vsel %vm1774, %v2585, 0.0
      %v2799 = vsel %vm1775, %v2587, 0.0
      %v2800 = vsel %vm1776, %v2589, 0.0
      %v2801 = vsel %vm1777, %v2591, 0.0
      %v2802 = vsel %vm1778, %v2593, 0.0
      %v2803 = vsel %vm1779, %v2595, 0.0
      %v2804 = vsel %vm1780, %v2597, 0.0
      %v2805 = vsel %vm1781, %v2599, 0.0
      %v2806 = vsel %vm1782, %v2601, 0.0
      %v2807 = vsel %vm1783, %v2603, 0.0
      %v2808 = vsel %vm1784, %v2605, 0.0
      %v2809 = vsel %vm1785, %v2607, 0.0
      %v2810 = vsel %vm1786, %v2609, 0.0
      %v2811 = vsel %vm1787, %v2611, 0.0
      %v2812 = vsel %vm1788, %v2613, 0.0
      %v2813 = vsel %vm1789, %v2615, 0.0
      %v2814 = vsel %vm1790, %v2617, 0.0
      %v2815 = vsel %vm1791, %v2619, 0.0
      %v2816 = vsel %vm1792, %v2621, 0.0
      %v2817 = vsel %vm1793, %v2623, 0.0
      %v2818 = vsel %vm1794, %v2625, 0.0
      %v2819 = vsel %vm1795, %v2627, 0.0
      %v2820 = vsel %vm1796, %v2629, 0.0
      %v2821 = vsel %vm1797, %v2631, 0.0
      %v2822 = vsel %vm1798, %v2633, 0.0
      %v2823 = vsel %vm1799, %v2635, 0.0
      %v2824 = vsel %vm1800, %v2637, 0.0
      %v2825 = vsel %vm1801, %v2639, 0.0
      %v2826 = vsel %vm1802, %v2641, 0.0
      %v2827 = vsel %vm1803, %v2643, 0.0
      %v2828 = vsel %vm1804, %v2645, 0.0
      %v2829 = vsel %vm1805, %v2647, 0.0
      %v2830 = vsel %vm1806, %v2649, 0.0
      %v2831 = vsel %vm1807, %v2651, 0.0
      %v2832 = vsel %vm1808, %v2653, 0.0
      %v2833 = vsel %vm1809, %v2655, 0.0
      %v2834 = vsel %vm1810, %v2657, 0.0
      %v2835 = vsel %vm1811, %v2659, 0.0
      %v2836 = vsel %vm1812, %v2661, 0.0
      %v2837 = vsel %vm1813, %v2663, 0.0
      %v2838 = vsel %vm1814, %v2665, 0.0
      %v2839 = vsel %vm1815, %v2667, 0.0
      %v2840 = vsel %vm1816, %v2669, 0.0
      %v2841 = vsel %vm1817, %v2671, 0.0
      %v2842 = vsel %vm1818, %v2673, 0.0
      %v2843 = vsel %vm1819, %v2675, 0.0
      %v2844 = vsel %vm1820, %v2677, 0.0
      %v2845 = vsel %vm1821, %v2679, 0.0
      %v2846 = vsel %vm1822, %v2681, 0.0
      %v2847 = vsel %vm1823, %v2683, 0.0
      %v2848 = vsel %vm1824, %v2685, 0.0
      %v2849 = vsel %vm1825, %v2687, 0.0
      %v2850 = vsel %vm1826, %v2689, 0.0
      %v2851 = vsel %vm1827, %v2691, 0.0
      %v2852 = vsel %vm1828, %v2693, 0.0
      %v2853 = vsel %vm1829, %v2695, 0.0
      %v2854 = vsel %vm1830, %v2697, 0.0
      %v2855 = vsel %vm1831, %v2699, 0.0
      %v2856 = vsel %vm1832, %v2701, 0.0
      %v2857 = vsel %vm1833, %v2703, 0.0
      %v2858 = vsel %vm1834, %v2705, 0.0
      %v2859 = vsel %vm1835, %v2707, 0.0
      %v2860 = vsel %vm1836, %v2709, 0.0
      %v2861 = vsel %vm1837, %v2711, 0.0
      %v2862 = vsel %vm1838, %v2713, 0.0
      %v2863 = vsel %vm1839, %v2715, 0.0
      %v2864 = vsel %vm1840, %v2717, 0.0
      %v2865 = vsel %vm1841, %v2719, 0.0
      %v2866 = vsel %vm1842, %v2721, 0.0
      %v2867 = vsel %vm1843, %v2723, 0.0
      %v2868 = vsel %vm1844, %v2725, 0.0
      %v2869 = vsel %vm1845, %v2727, 0.0
      %v2870 = vsel %vm1846, %v2729, 0.0
      %v2871 = vsel %vm1847, %v2731, 0.0
      %v2872 = vsel %vm1848, %v2733, 0.0
      %v2873 = vsel %vm1849, %v2735, 0.0
      %v2874 = vsel %vm1850, %v2737, 0.0
      %v2875 = vsel %vm1851, %v2739, 0.0
      %v2876 = vsel %vm1852, %v2741, 0.0
      %v2877 = vsel %vm1853, %v2743, 0.0
      %v2878 = vsel %vm1854, %v2745, 0.0
      %v2879 = vsel %vm1855, %v2747, 0.0
      %v2880 = vsel %vm1856, %v2749, 0.0
      %v2881 = vsel %vm1857, %v2751, 0.0
      %v2882 = vsel %vm1858, %v2753, 0.0
      %v2883 = vsel %vm1859, %v2755, 0.0
      %v2884 = vsub.f32 %v1988, %v2180
      %v2885 = vsub.f32 %v1989, %v2181
      %v2886 = vsub.f32 %v1990, %v2182
      %v2887 = vsub.f32 %v1991, %v2183
      %v2888 = vsub.f32 %v1992, %v2184
      %v2889 = vsub.f32 %v1993, %v2185
      %v2890 = vsub.f32 %v1994, %v2186
      %v2891 = vsub.f32 %v1995, %v2187
      %v2892 = vsub.f32 %v1996, %v2188
      %v2893 = vsub.f32 %v1997, %v2189
      %v2894 = vsub.f32 %v1998, %v2190
      %v2895 = vsub.f32 %v1999, %v2191
      %v2896 = vsub.f32 %v2000, %v2192
      %v2897 = vsub.f32 %v2001, %v2193
      %v2898 = vsub.f32 %v2002, %v2194
      %v2899 = vsub.f32 %v2003, %v2195
      %v2900 = vsub.f32 %v2004, %v2196
      %v2901 = vsub.f32 %v2005, %v2197
      %v2902 = vsub.f32 %v2006, %v2198
      %v2903 = vsub.f32 %v2007, %v2199
      %v2904 = vsub.f32 %v2008, %v2200
      %v2905 = vsub.f32 %v2009, %v2201
      %v2906 = vsub.f32 %v2010, %v2202
      %v2907 = vsub.f32 %v2011, %v2203
      %v2908 = vsub.f32 %v2012, %v2204
      %v2909 = vsub.f32 %v2013, %v2205
      %v2910 = vsub.f32 %v2014, %v2206
      %v2911 = vsub.f32 %v2015, %v2207
      %v2912 = vsub.f32 %v2016, %v2208
      %v2913 = vsub.f32 %v2017, %v2209
      %v2914 = vsub.f32 %v2018, %v2210
      %v2915 = vsub.f32 %v2019, %v2211
      %v2916 = vmul.f32 %v2884, 1.442695
      %v2917 = vpow.pop %v2916
      %v2918 = vmul.f32 %v2885, 1.442695
      %v2919 = vpow.pop %v2918
      %v2920 = vmul.f32 %v2886, 1.442695
      %v2921 = vpow.pop %v2920
      %v2922 = vmul.f32 %v2887, 1.442695
      %v2923 = vpow.pop %v2922
      %v2924 = vmul.f32 %v2888, 1.442695
      %v2925 = vpow.pop %v2924
      %v2926 = vmul.f32 %v2889, 1.442695
      %v2927 = vpow.pop %v2926
      %v2928 = vmul.f32 %v2890, 1.442695
      %v2929 = vpow.pop %v2928
      %v2930 = vmul.f32 %v2891, 1.442695
      %v2931 = vpow.pop %v2930
      %v2932 = vmul.f32 %v2892, 1.442695
      %v2933 = vpow.pop %v2932
      %v2934 = vmul.f32 %v2893, 1.442695
      %v2935 = vpow.pop %v2934
      %v2936 = vmul.f32 %v2894, 1.442695
      %v2937 = vpow.pop %v2936
      %v2938 = vmul.f32 %v2895, 1.442695
      %v2939 = vpow.pop %v2938
      %v2940 = vmul.f32 %v2896, 1.442695
      %v2941 = vpow.pop %v2940
      %v2942 = vmul.f32 %v2897, 1.442695
      %v2943 = vpow.pop %v2942
      %v2944 = vmul.f32 %v2898, 1.442695
      %v2945 = vpow.pop %v2944
      %v2946 = vmul.f32 %v2899, 1.442695
      %v2947 = vpow.pop %v2946
      %v2948 = vmul.f32 %v2900, 1.442695
      %v2949 = vpow.pop %v2948
      %v2950 = vmul.f32 %v2901, 1.442695
      %v2951 = vpow.pop %v2950
      %v2952 = vmul.f32 %v2902, 1.442695
      %v2953 = vpow.pop %v2952
      %v2954 = vmul.f32 %v2903, 1.442695
      %v2955 = vpow.pop %v2954
      %v2956 = vmul.f32 %v2904, 1.442695
      %v2957 = vpow.pop %v2956
      %v2958 = vmul.f32 %v2905, 1.442695
      %v2959 = vpow.pop %v2958
      %v2960 = vmul.f32 %v2906, 1.442695
      %v2961 = vpow.pop %v2960
      %v2962 = vmul.f32 %v2907, 1.442695
      %v2963 = vpow.pop %v2962
      %v2964 = vmul.f32 %v2908, 1.442695
      %v2965 = vpow.pop %v2964
      %v2966 = vmul.f32 %v2909, 1.442695
      %v2967 = vpow.pop %v2966
      %v2968 = vmul.f32 %v2910, 1.442695
      %v2969 = vpow.pop %v2968
      %v2970 = vmul.f32 %v2911, 1.442695
      %v2971 = vpow.pop %v2970
      %v2972 = vmul.f32 %v2912, 1.442695
      %v2973 = vpow.pop %v2972
      %v2974 = vmul.f32 %v2913, 1.442695
      %v2975 = vpow.pop %v2974
      %v2976 = vmul.f32 %v2914, 1.442695
      %v2977 = vpow.pop %v2976
      %v2978 = vmul.f32 %v2915, 1.442695
      %v2979 = vpow.pop %v2978
      %v2980 = vld [vmem:[#allocation3] sm:$0xff]
      %v2981 = vld [vmem:[#allocation3 + $0x8] sm:$0xff]
      %v2982 = vld [vmem:[#allocation3 + $0x10] sm:$0xff]
      %v2983 = vld [vmem:[#allocation3 + $0x18] sm:$0xff]
      %v2984 = vld [vmem:[#allocation3 + $0x20] sm:$0xff]
      %v2985 = vld [vmem:[#allocation3 + $0x28] sm:$0xff]
      %v2986 = vld [vmem:[#allocation3 + $0x30] sm:$0xff]
      %v2987 = vld [vmem:[#allocation3 + $0x38] sm:$0xff]
      %v2988 = vld [vmem:[#allocation3 + $0x40] sm:$0xff]
      %v2989 = vld [vmem:[#allocation3 + $0x48] sm:$0xff]
      %v2990 = vld [vmem:[#allocation3 + $0x50] sm:$0xff]
      %v2991 = vld [vmem:[#allocation3 + $0x58] sm:$0xff]
      %v2992 = vld [vmem:[#allocation3 + $0x60] sm:$0xff]
      %v2993 = vld [vmem:[#allocation3 + $0x68] sm:$0xff]
      %v2994 = vld [vmem:[#allocation3 + $0x70] sm:$0xff]
      %v2995 = vld [vmem:[#allocation3 + $0x78] sm:$0xff]
      %v2996 = vld [vmem:[#allocation3 + $0x80] sm:$0xff]
      %v2997 = vld [vmem:[#allocation3 + $0x88] sm:$0xff]
      %v2998 = vld [vmem:[#allocation3 + $0x90] sm:$0xff]
      %v2999 = vld [vmem:[#allocation3 + $0x98] sm:$0xff]
      %v3000 = vld [vmem:[#allocation3 + $0xa0] sm:$0xff]
      %v3001 = vld [vmem:[#allocation3 + $0xa8] sm:$0xff]
      %v3002 = vld [vmem:[#allocation3 + $0xb0] sm:$0xff]
      %v3003 = vld [vmem:[#allocation3 + $0xb8] sm:$0xff]
      %v3004 = vld [vmem:[#allocation3 + $0xc0] sm:$0xff]
      %v3005 = vld [vmem:[#allocation3 + $0xc8] sm:$0xff]
      %v3006 = vld [vmem:[#allocation3 + $0xd0] sm:$0xff]
      %v3007 = vld [vmem:[#allocation3 + $0xd8] sm:$0xff]
      %v3008 = vld [vmem:[#allocation3 + $0xe0] sm:$0xff]
      %v3009 = vld [vmem:[#allocation3 + $0xe8] sm:$0xff]
      %v3010 = vld [vmem:[#allocation3 + $0xf0] sm:$0xff]
      %v3011 = vld [vmem:[#allocation3 + $0xf8] sm:$0xff]
      %v3012 = vmul.f32 %v2980, %v2917
      %v3013 = vmul.f32 %v2981, %v2919
      %v3014 = vmul.f32 %v2982, %v2921
      %v3015 = vmul.f32 %v2983, %v2923
      %v3016 = vmul.f32 %v2984, %v2925
      %v3017 = vmul.f32 %v2985, %v2927
      %v3018 = vmul.f32 %v2986, %v2929
      %v3019 = vmul.f32 %v2987, %v2931
      %v3020 = vmul.f32 %v2988, %v2933
      %v3021 = vmul.f32 %v2989, %v2935
      %v3022 = vmul.f32 %v2990, %v2937
      %v3023 = vmul.f32 %v2991, %v2939
      %v3024 = vmul.f32 %v2992, %v2941
      %v3025 = vmul.f32 %v2993, %v2943
      %v3026 = vmul.f32 %v2994, %v2945
      %v3027 = vmul.f32 %v2995, %v2947
      %v3028 = vmul.f32 %v2996, %v2949
      %v3029 = vmul.f32 %v2997, %v2951
      %v3030 = vmul.f32 %v2998, %v2953
      %v3031 = vmul.f32 %v2999, %v2955
      %v3032 = vmul.f32 %v3000, %v2957
      %v3033 = vmul.f32 %v3001, %v2959
      %v3034 = vmul.f32 %v3002, %v2961
      %v3035 = vmul.f32 %v3003, %v2963
      %v3036 = vmul.f32 %v3004, %v2965
      %v3037 = vmul.f32 %v3005, %v2967
      %v3038 = vmul.f32 %v3006, %v2969
      %v3039 = vmul.f32 %v3007, %v2971
      %v3040 = vmul.f32 %v3008, %v2973
      %v3041 = vmul.f32 %v3009, %v2975
      %v3042 = vmul.f32 %v3010, %v2977
      %v3043 = vmul.f32 %v3011, %v2979
      %v3044 = vadd.f32 %v2756, %v2757
      %v3045 = vadd.f32 %v3044, %v2758
      %v3046 = vadd.f32 %v3045, %v2759
      %3047 = vadd.xlane.f32.xlu0 %v3046
      %v3048 = vpop.xlane.xlu0 %3047
      %v3049 = vadd.f32 %v2760, %v2761
      %v3050 = vadd.f32 %v3049, %v2762
      %v3051 = vadd.f32 %v3050, %v2763
      %3052 = vadd.xlane.f32.xlu0 %v3051
      %v3053 = vpop.xlane.xlu0 %3052
      %v3054 = vadd.f32 %v2764, %v2765
      %v3055 = vadd.f32 %v3054, %v2766
      %v3056 = vadd.f32 %v3055, %v2767
      %3057 = vadd.xlane.f32.xlu0 %v3056
      %v3058 = vpop.xlane.xlu0 %3057
      %v3059 = vadd.f32 %v2768, %v2769
      %v3060 = vadd.f32 %v3059, %v2770
      %v3061 = vadd.f32 %v3060, %v2771
      %3062 = vadd.xlane.f32.xlu0 %v3061
      %v3063 = vpop.xlane.xlu0 %3062
      %v3064 = vadd.f32 %v2772, %v2773
      %v3065 = vadd.f32 %v3064, %v2774
      %v3066 = vadd.f32 %v3065, %v2775
      %3067 = vadd.xlane.f32.xlu0 %v3066
      %v3068 = vpop.xlane.xlu0 %3067
      %v3069 = vadd.f32 %v2776, %v2777
      %v3070 = vadd.f32 %v3069, %v2778
      %v3071 = vadd.f32 %v3070, %v2779
      %3072 = vadd.xlane.f32.xlu0 %v3071
      %v3073 = vpop.xlane.xlu0 %3072
      %v3074 = vadd.f32 %v2780, %v2781
      %v3075 = vadd.f32 %v3074, %v2782
      %v3076 = vadd.f32 %v3075, %v2783
      %3077 = vadd.xlane.f32.xlu0 %v3076
      %v3078 = vpop.xlane.xlu0 %3077
      %v3079 = vadd.f32 %v2784, %v2785
      %v3080 = vadd.f32 %v3079, %v2786
      %v3081 = vadd.f32 %v3080, %v2787
      %3082 = vadd.xlane.f32.xlu0 %v3081
      %v3083 = vpop.xlane.xlu0 %3082
      %v3084 = vadd.f32 %v2788, %v2789
      %v3085 = vadd.f32 %v3084, %v2790
      %v3086 = vadd.f32 %v3085, %v2791
      %3087 = vadd.xlane.f32.xlu0 %v3086
      %v3088 = vpop.xlane.xlu0 %3087
      %v3089 = vadd.f32 %v2792, %v2793
      %v3090 = vadd.f32 %v3089, %v2794
      %v3091 = vadd.f32 %v3090, %v2795
      %3092 = vadd.xlane.f32.xlu0 %v3091
      %v3093 = vpop.xlane.xlu0 %3092
      %v3094 = vadd.f32 %v2796, %v2797
      %v3095 = vadd.f32 %v3094, %v2798
      %v3096 = vadd.f32 %v3095, %v2799
      %3097 = vadd.xlane.f32.xlu0 %v3096
      %v3098 = vpop.xlane.xlu0 %3097
      %v3099 = vadd.f32 %v2800, %v2801
      %v3100 = vadd.f32 %v3099, %v2802
      %v3101 = vadd.f32 %v3100, %v2803
      %3102 = vadd.xlane.f32.xlu0 %v3101
      %v3103 = vpop.xlane.xlu0 %3102
      %v3104 = vadd.f32 %v2804, %v2805
      %v3105 = vadd.f32 %v3104, %v2806
      %v3106 = vadd.f32 %v3105, %v2807
      %3107 = vadd.xlane.f32.xlu0 %v3106
      %v3108 = vpop.xlane.xlu0 %3107
      %v3109 = vadd.f32 %v2808, %v2809
      %v3110 = vadd.f32 %v3109, %v2810
      %v3111 = vadd.f32 %v3110, %v2811
      %3112 = vadd.xlane.f32.xlu0 %v3111
      %v3113 = vpop.xlane.xlu0 %3112
      %v3114 = vadd.f32 %v2812, %v2813
      %v3115 = vadd.f32 %v3114, %v2814
      %v3116 = vadd.f32 %v3115, %v2815
      %3117 = vadd.xlane.f32.xlu0 %v3116
      %v3118 = vpop.xlane.xlu0 %3117
      %v3119 = vadd.f32 %v2816, %v2817
      %v3120 = vadd.f32 %v3119, %v2818
      %v3121 = vadd.f32 %v3120, %v2819
      %3122 = vadd.xlane.f32.xlu0 %v3121
      %v3123 = vpop.xlane.xlu0 %3122
      %v3124 = vadd.f32 %v2820, %v2821
      %v3125 = vadd.f32 %v3124, %v2822
      %v3126 = vadd.f32 %v3125, %v2823
      %3127 = vadd.xlane.f32.xlu0 %v3126
      %v3128 = vpop.xlane.xlu0 %3127
      %v3129 = vadd.f32 %v2824, %v2825
      %v3130 = vadd.f32 %v3129, %v2826
      %v3131 = vadd.f32 %v3130, %v2827
      %3132 = vadd.xlane.f32.xlu0 %v3131
      %v3133 = vpop.xlane.xlu0 %3132
      %v3134 = vadd.f32 %v2828, %v2829
      %v3135 = vadd.f32 %v3134, %v2830
      %v3136 = vadd.f32 %v3135, %v2831
      %3137 = vadd.xlane.f32.xlu0 %v3136
      %v3138 = vpop.xlane.xlu0 %3137
      %v3139 = vadd.f32 %v2832, %v2833
      %v3140 = vadd.f32 %v3139, %v2834
      %v3141 = vadd.f32 %v3140, %v2835
      %3142 = vadd.xlane.f32.xlu0 %v3141
      %v3143 = vpop.xlane.xlu0 %3142
      %v3144 = vadd.f32 %v2836, %v2837
      %v3145 = vadd.f32 %v3144, %v2838
      %v3146 = vadd.f32 %v3145, %v2839
      %3147 = vadd.xlane.f32.xlu0 %v3146
      %v3148 = vpop.xlane.xlu0 %3147
      %v3149 = vadd.f32 %v2840, %v2841
      %v3150 = vadd.f32 %v3149, %v2842
      %v3151 = vadd.f32 %v3150, %v2843
      %3152 = vadd.xlane.f32.xlu0 %v3151
      %v3153 = vpop.xlane.xlu0 %3152
      %v3154 = vadd.f32 %v2844, %v2845
      %v3155 = vadd.f32 %v3154, %v2846
      %v3156 = vadd.f32 %v3155, %v2847
      %3157 = vadd.xlane.f32.xlu0 %v3156
      %v3158 = vpop.xlane.xlu0 %3157
      %v3159 = vadd.f32 %v2848, %v2849
      %v3160 = vadd.f32 %v3159, %v2850
      %v3161 = vadd.f32 %v3160, %v2851
      %3162 = vadd.xlane.f32.xlu0 %v3161
      %v3163 = vpop.xlane.xlu0 %3162
      %v3164 = vadd.f32 %v2852, %v2853
      %v3165 = vadd.f32 %v3164, %v2854
      %v3166 = vadd.f32 %v3165, %v2855
      %3167 = vadd.xlane.f32.xlu0 %v3166
      %v3168 = vpop.xlane.xlu0 %3167
      %v3169 = vadd.f32 %v2856, %v2857
      %v3170 = vadd.f32 %v3169, %v2858
      %v3171 = vadd.f32 %v3170, %v2859
      %3172 = vadd.xlane.f32.xlu0 %v3171
      %v3173 = vpop.xlane.xlu0 %3172
      %v3174 = vadd.f32 %v2860, %v2861
      %v3175 = vadd.f32 %v3174, %v2862
      %v3176 = vadd.f32 %v3175, %v2863
      %3177 = vadd.xlane.f32.xlu0 %v3176
      %v3178 = vpop.xlane.xlu0 %3177
      %v3179 = vadd.f32 %v2864, %v2865
      %v3180 = vadd.f32 %v3179, %v2866
      %v3181 = vadd.f32 %v3180, %v2867
      %3182 = vadd.xlane.f32.xlu0 %v3181
      %v3183 = vpop.xlane.xlu0 %3182
      %v3184 = vadd.f32 %v2868, %v2869
      %v3185 = vadd.f32 %v3184, %v2870
      %v3186 = vadd.f32 %v3185, %v2871
      %3187 = vadd.xlane.f32.xlu0 %v3186
      %v3188 = vpop.xlane.xlu0 %3187
      %v3189 = vadd.f32 %v2872, %v2873
      %v3190 = vadd.f32 %v3189, %v2874
      %v3191 = vadd.f32 %v3190, %v2875
      %3192 = vadd.xlane.f32.xlu0 %v3191
      %v3193 = vpop.xlane.xlu0 %3192
      %v3194 = vadd.f32 %v2876, %v2877
      %v3195 = vadd.f32 %v3194, %v2878
      %v3196 = vadd.f32 %v3195, %v2879
      %3197 = vadd.xlane.f32.xlu0 %v3196
      %v3198 = vpop.xlane.xlu0 %3197
      %v3199 = vadd.f32 %v2880, %v2881
      %v3200 = vadd.f32 %v3199, %v2882
      %v3201 = vadd.f32 %v3200, %v2883
      %3202 = vadd.xlane.f32.xlu0 %v3201
      %v3203 = vpop.xlane.xlu0 %3202
      %v3204 = vadd.f32 %v3012, %v3048
      %v3205 = vadd.f32 %v3013, %v3053
      %v3206 = vadd.f32 %v3014, %v3058
      %v3207 = vadd.f32 %v3015, %v3063
      %v3208 = vadd.f32 %v3016, %v3068
      %v3209 = vadd.f32 %v3017, %v3073
      %v3210 = vadd.f32 %v3018, %v3078
      %v3211 = vadd.f32 %v3019, %v3083
      %v3212 = vadd.f32 %v3020, %v3088
      %v3213 = vadd.f32 %v3021, %v3093
      %v3214 = vadd.f32 %v3022, %v3098
      %v3215 = vadd.f32 %v3023, %v3103
      %v3216 = vadd.f32 %v3024, %v3108
      %v3217 = vadd.f32 %v3025, %v3113
      %v3218 = vadd.f32 %v3026, %v3118
      %v3219 = vadd.f32 %v3027, %v3123
      %v3220 = vadd.f32 %v3028, %v3128
      %v3221 = vadd.f32 %v3029, %v3133
      %v3222 = vadd.f32 %v3030, %v3138
      %v3223 = vadd.f32 %v3031, %v3143
      %v3224 = vadd.f32 %v3032, %v3148
      %v3225 = vadd.f32 %v3033, %v3153
      %v3226 = vadd.f32 %v3034, %v3158
      %v3227 = vadd.f32 %v3035, %v3163
      %v3228 = vadd.f32 %v3036, %v3168
      %v3229 = vadd.f32 %v3037, %v3173
      %v3230 = vadd.f32 %v3038, %v3178
      %v3231 = vadd.f32 %v3039, %v3183
      %v3232 = vadd.f32 %v3040, %v3188
      %v3233 = vadd.f32 %v3041, %v3193
      %v3234 = vadd.f32 %v3042, %v3198
      %v3235 = vadd.f32 %v3043, %v3203
      %vm3236 = vcmask 7168
      %3237 = vst.msk [vmem:[#allocation3] sm:$0xff] %vm3236, %v3204
      %3238 = vst.msk [vmem:[#allocation3 + $0x8] sm:$0xff] %vm3236, %v3205
      %3239 = vst.msk [vmem:[#allocation3 + $0x10] sm:$0xff] %vm3236, %v3206
      %3240 = vst.msk [vmem:[#allocation3 + $0x18] sm:$0xff] %vm3236, %v3207
      %3241 = vst.msk [vmem:[#allocation3 + $0x20] sm:$0xff] %vm3236, %v3208
      %3242 = vst.msk [vmem:[#allocation3 + $0x28] sm:$0xff] %vm3236, %v3209
      %3243 = vst.msk [vmem:[#allocation3 + $0x30] sm:$0xff] %vm3236, %v3210
      %3244 = vst.msk [vmem:[#allocation3 + $0x38] sm:$0xff] %vm3236, %v3211
      %3245 = vst.msk [vmem:[#allocation3 + $0x40] sm:$0xff] %vm3236, %v3212
      %3246 = vst.msk [vmem:[#allocation3 + $0x48] sm:$0xff] %vm3236, %v3213
      %3247 = vst.msk [vmem:[#allocation3 + $0x50] sm:$0xff] %vm3236, %v3214
      %3248 = vst.msk [vmem:[#allocation3 + $0x58] sm:$0xff] %vm3236, %v3215
      %3249 = vst.msk [vmem:[#allocation3 + $0x60] sm:$0xff] %vm3236, %v3216
      %3250 = vst.msk [vmem:[#allocation3 + $0x68] sm:$0xff] %vm3236, %v3217
      %3251 = vst.msk [vmem:[#allocation3 + $0x70] sm:$0xff] %vm3236, %v3218
      %3252 = vst.msk [vmem:[#allocation3 + $0x78] sm:$0xff] %vm3236, %v3219
      %3253 = vst.msk [vmem:[#allocation3 + $0x80] sm:$0xff] %vm3236, %v3220
      %3254 = vst.msk [vmem:[#allocation3 + $0x88] sm:$0xff] %vm3236, %v3221
      %3255 = vst.msk [vmem:[#allocation3 + $0x90] sm:$0xff] %vm3236, %v3222
      %3256 = vst.msk [vmem:[#allocation3 + $0x98] sm:$0xff] %vm3236, %v3223
      %3257 = vst.msk [vmem:[#allocation3 + $0xa0] sm:$0xff] %vm3236, %v3224
      %3258 = vst.msk [vmem:[#allocation3 + $0xa8] sm:$0xff] %vm3236, %v3225
      %3259 = vst.msk [vmem:[#allocation3 + $0xb0] sm:$0xff] %vm3236, %v3226
      %3260 = vst.msk [vmem:[#allocation3 + $0xb8] sm:$0xff] %vm3236, %v3227
      %3261 = vst.msk [vmem:[#allocation3 + $0xc0] sm:$0xff] %vm3236, %v3228
      %3262 = vst.msk [vmem:[#allocation3 + $0xc8] sm:$0xff] %vm3236, %v3229
      %3263 = vst.msk [vmem:[#allocation3 + $0xd0] sm:$0xff] %vm3236, %v3230
      %3264 = vst.msk [vmem:[#allocation3 + $0xd8] sm:$0xff] %vm3236, %v3231
      %3265 = vst.msk [vmem:[#allocation3 + $0xe0] sm:$0xff] %vm3236, %v3232
      %3266 = vst.msk [vmem:[#allocation3 + $0xe8] sm:$0xff] %vm3236, %v3233
      %3267 = vst.msk [vmem:[#allocation3 + $0xf0] sm:$0xff] %vm3236, %v3234
      %3268 = vst.msk [vmem:[#allocation3 + $0xf8] sm:$0xff] %vm3236, %v3235
      %v3269 = vld [vmem:[#allocation4] sm:$0xff]
      %v3270 = vld [vmem:[#allocation4 + $0x8] sm:$0xff]
      %v3271 = vld [vmem:[#allocation4 + $0x10] sm:$0xff]
      %v3272 = vld [vmem:[#allocation4 + $0x18] sm:$0xff]
      %v3273 = vld [vmem:[#allocation4 + $0x20] sm:$0xff]
      %v3274 = vld [vmem:[#allocation4 + $0x28] sm:$0xff]
      %v3275 = vld [vmem:[#allocation4 + $0x30] sm:$0xff]
      %v3276 = vld [vmem:[#allocation4 + $0x38] sm:$0xff]
      %v3277 = vld [vmem:[#allocation4 + $0x40] sm:$0xff]
      %v3278 = vld [vmem:[#allocation4 + $0x48] sm:$0xff]
      %v3279 = vld [vmem:[#allocation4 + $0x50] sm:$0xff]
      %v3280 = vld [vmem:[#allocation4 + $0x58] sm:$0xff]
      %v3281 = vld [vmem:[#allocation4 + $0x60] sm:$0xff]
      %v3282 = vld [vmem:[#allocation4 + $0x68] sm:$0xff]
      %v3283 = vld [vmem:[#allocation4 + $0x70] sm:$0xff]
      %v3284 = vld [vmem:[#allocation4 + $0x78] sm:$0xff]
      %v3285 = vld [vmem:[#allocation4 + $0x80] sm:$0xff]
      %v3286 = vld [vmem:[#allocation4 + $0x88] sm:$0xff]
      %v3287 = vld [vmem:[#allocation4 + $0x90] sm:$0xff]
      %v3288 = vld [vmem:[#allocation4 + $0x98] sm:$0xff]
      %v3289 = vld [vmem:[#allocation4 + $0xa0] sm:$0xff]
      %v3290 = vld [vmem:[#allocation4 + $0xa8] sm:$0xff]
      %v3291 = vld [vmem:[#allocation4 + $0xb0] sm:$0xff]
      %v3292 = vld [vmem:[#allocation4 + $0xb8] sm:$0xff]
      %v3293 = vld [vmem:[#allocation4 + $0xc0] sm:$0xff]
      %v3294 = vld [vmem:[#allocation4 + $0xc8] sm:$0xff]
      %v3295 = vld [vmem:[#allocation4 + $0xd0] sm:$0xff]
      %v3296 = vld [vmem:[#allocation4 + $0xd8] sm:$0xff]
      %v3297 = vld [vmem:[#allocation4 + $0xe0] sm:$0xff]
      %v3298 = vld [vmem:[#allocation4 + $0xe8] sm:$0xff]
      %v3299 = vld [vmem:[#allocation4 + $0xf0] sm:$0xff]
      %v3300 = vld [vmem:[#allocation4 + $0xf8] sm:$0xff]
      %3302 = vset.pattern.permute.xlu0 0
      %3303 = vperm.xlu0 %3302, %v2917
      %v3304 = vpop.permute.xlu0 %3303
      %3307 = vset.pattern.permute.xlu0 0
      %3308 = vperm.xlu0 %3307, %v2919
      %v3309 = vpop.permute.xlu0 %3308
      %3312 = vset.pattern.permute.xlu0 0
      %3313 = vperm.xlu0 %3312, %v2921
      %v3314 = vpop.permute.xlu0 %3313
      %3317 = vset.pattern.permute.xlu0 0
      %3318 = vperm.xlu0 %3317, %v2923
      %v3319 = vpop.permute.xlu0 %3318
      %3322 = vset.pattern.permute.xlu0 0
      %3323 = vperm.xlu0 %3322, %v2925
      %v3324 = vpop.permute.xlu0 %3323
      %3327 = vset.pattern.permute.xlu0 0
      %3328 = vperm.xlu0 %3327, %v2927
      %v3329 = vpop.permute.xlu0 %3328
      %3332 = vset.pattern.permute.xlu0 0
      %3333 = vperm.xlu0 %3332, %v2929
      %v3334 = vpop.permute.xlu0 %3333
      %3337 = vset.pattern.permute.xlu0 0
      %3338 = vperm.xlu0 %3337, %v2931
      %v3339 = vpop.permute.xlu0 %3338
      %3342 = vset.pattern.permute.xlu0 0
      %3343 = vperm.xlu0 %3342, %v2933
      %v3344 = vpop.permute.xlu0 %3343
      %3347 = vset.pattern.permute.xlu0 0
      %3348 = vperm.xlu0 %3347, %v2935
      %v3349 = vpop.permute.xlu0 %3348
      %3352 = vset.pattern.permute.xlu0 0
      %3353 = vperm.xlu0 %3352, %v2937
      %v3354 = vpop.permute.xlu0 %3353
      %3357 = vset.pattern.permute.xlu0 0
      %3358 = vperm.xlu0 %3357, %v2939
      %v3359 = vpop.permute.xlu0 %3358
      %3362 = vset.pattern.permute.xlu0 0
      %3363 = vperm.xlu0 %3362, %v2941
      %v3364 = vpop.permute.xlu0 %3363
      %3367 = vset.pattern.permute.xlu0 0
      %3368 = vperm.xlu0 %3367, %v2943
      %v3369 = vpop.permute.xlu0 %3368
      %3372 = vset.pattern.permute.xlu0 0
      %3373 = vperm.xlu0 %3372, %v2945
      %v3374 = vpop.permute.xlu0 %3373
      %3377 = vset.pattern.permute.xlu0 0
      %3378 = vperm.xlu0 %3377, %v2947
      %v3379 = vpop.permute.xlu0 %3378
      %3382 = vset.pattern.permute.xlu0 0
      %3383 = vperm.xlu0 %3382, %v2949
      %v3384 = vpop.permute.xlu0 %3383
      %3387 = vset.pattern.permute.xlu0 0
      %3388 = vperm.xlu0 %3387, %v2951
      %v3389 = vpop.permute.xlu0 %3388
      %3392 = vset.pattern.permute.xlu0 0
      %3393 = vperm.xlu0 %3392, %v2953
      %v3394 = vpop.permute.xlu0 %3393
      %3397 = vset.pattern.permute.xlu0 0
      %3398 = vperm.xlu0 %3397, %v2955
      %v3399 = vpop.permute.xlu0 %3398
      %3402 = vset.pattern.permute.xlu0 0
      %3403 = vperm.xlu0 %3402, %v2957
      %v3404 = vpop.permute.xlu0 %3403
      %3407 = vset.pattern.permute.xlu0 0
      %3408 = vperm.xlu0 %3407, %v2959
      %v3409 = vpop.permute.xlu0 %3408
      %3412 = vset.pattern.permute.xlu0 0
      %3413 = vperm.xlu0 %3412, %v2961
      %v3414 = vpop.permute.xlu0 %3413
      %3417 = vset.pattern.permute.xlu0 0
      %3418 = vperm.xlu0 %3417, %v2963
      %v3419 = vpop.permute.xlu0 %3418
      %3422 = vset.pattern.permute.xlu0 0
      %3423 = vperm.xlu0 %3422, %v2965
      %v3424 = vpop.permute.xlu0 %3423
      %3427 = vset.pattern.permute.xlu0 0
      %3428 = vperm.xlu0 %3427, %v2967
      %v3429 = vpop.permute.xlu0 %3428
      %3432 = vset.pattern.permute.xlu0 0
      %3433 = vperm.xlu0 %3432, %v2969
      %v3434 = vpop.permute.xlu0 %3433
      %3437 = vset.pattern.permute.xlu0 0
      %3438 = vperm.xlu0 %3437, %v2971
      %v3439 = vpop.permute.xlu0 %3438
      %3442 = vset.pattern.permute.xlu0 0
      %3443 = vperm.xlu0 %3442, %v2973
      %v3444 = vpop.permute.xlu0 %3443
      %3447 = vset.pattern.permute.xlu0 0
      %3448 = vperm.xlu0 %3447, %v2975
      %v3449 = vpop.permute.xlu0 %3448
      %3452 = vset.pattern.permute.xlu0 0
      %3453 = vperm.xlu0 %3452, %v2977
      %v3454 = vpop.permute.xlu0 %3453
      %3457 = vset.pattern.permute.xlu0 0
      %3458 = vperm.xlu0 %3457, %v2979
      %v3459 = vpop.permute.xlu0 %3458
      %v3461 = vmul.f32 %v3269, %v3304
      %v3462 = vmul.f32 %v3270, %v3309
      %v3463 = vmul.f32 %v3271, %v3314
      %v3464 = vmul.f32 %v3272, %v3319
      %v3465 = vmul.f32 %v3273, %v3324
      %v3466 = vmul.f32 %v3274, %v3329
      %v3467 = vmul.f32 %v3275, %v3334
      %v3468 = vmul.f32 %v3276, %v3339
      %v3469 = vmul.f32 %v3277, %v3344
      %v3470 = vmul.f32 %v3278, %v3349
      %v3471 = vmul.f32 %v3279, %v3354
      %v3472 = vmul.f32 %v3280, %v3359
      %v3473 = vmul.f32 %v3281, %v3364
      %v3474 = vmul.f32 %v3282, %v3369
      %v3475 = vmul.f32 %v3283, %v3374
      %v3476 = vmul.f32 %v3284, %v3379
      %v3477 = vmul.f32 %v3285, %v3384
      %v3478 = vmul.f32 %v3286, %v3389
      %v3479 = vmul.f32 %v3287, %v3394
      %v3480 = vmul.f32 %v3288, %v3399
      %v3481 = vmul.f32 %v3289, %v3404
      %v3482 = vmul.f32 %v3290, %v3409
      %v3483 = vmul.f32 %v3291, %v3414
      %v3484 = vmul.f32 %v3292, %v3419
      %v3485 = vmul.f32 %v3293, %v3424
      %v3486 = vmul.f32 %v3294, %v3429
      %v3487 = vmul.f32 %v3295, %v3434
      %v3488 = vmul.f32 %v3296, %v3439
      %v3489 = vmul.f32 %v3297, %v3444
      %v3490 = vmul.f32 %v3298, %v3449
      %v3491 = vmul.f32 %v3299, %v3454
      %v3492 = vmul.f32 %v3300, %v3459
      %v3493 = vpack.c.bf16 %v2760, %v2756
      %v3494 = vpack.c.bf16 %v2761, %v2757
      %v3495 = vpack.c.bf16 %v2762, %v2758
      %v3496 = vpack.c.bf16 %v2763, %v2759
      %v3497 = vpack.c.bf16 %v2768, %v2764
      %v3498 = vpack.c.bf16 %v2769, %v2765
      %v3499 = vpack.c.bf16 %v2770, %v2766
      %v3500 = vpack.c.bf16 %v2771, %v2767
      %v3501 = vpack.c.bf16 %v2776, %v2772
      %v3502 = vpack.c.bf16 %v2777, %v2773
      %v3503 = vpack.c.bf16 %v2778, %v2774
      %v3504 = vpack.c.bf16 %v2779, %v2775
      %v3505 = vpack.c.bf16 %v2784, %v2780
      %v3506 = vpack.c.bf16 %v2785, %v2781
      %v3507 = vpack.c.bf16 %v2786, %v2782
      %v3508 = vpack.c.bf16 %v2787, %v2783
      %v3509 = vpack.c.bf16 %v2792, %v2788
      %v3510 = vpack.c.bf16 %v2793, %v2789
      %v3511 = vpack.c.bf16 %v2794, %v2790
      %v3512 = vpack.c.bf16 %v2795, %v2791
      %v3513 = vpack.c.bf16 %v2800, %v2796
      %v3514 = vpack.c.bf16 %v2801, %v2797
      %v3515 = vpack.c.bf16 %v2802, %v2798
      %v3516 = vpack.c.bf16 %v2803, %v2799
      %v3517 = vpack.c.bf16 %v2808, %v2804
      %v3518 = vpack.c.bf16 %v2809, %v2805
      %v3519 = vpack.c.bf16 %v2810, %v2806
      %v3520 = vpack.c.bf16 %v2811, %v2807
      %v3521 = vpack.c.bf16 %v2816, %v2812
      %v3522 = vpack.c.bf16 %v2817, %v2813
      %v3523 = vpack.c.bf16 %v2818, %v2814
      %v3524 = vpack.c.bf16 %v2819, %v2815
      %v3525 = vpack.c.bf16 %v2824, %v2820
      %v3526 = vpack.c.bf16 %v2825, %v2821
      %v3527 = vpack.c.bf16 %v2826, %v2822
      %v3528 = vpack.c.bf16 %v2827, %v2823
      %v3529 = vpack.c.bf16 %v2832, %v2828
      %v3530 = vpack.c.bf16 %v2833, %v2829
      %v3531 = vpack.c.bf16 %v2834, %v2830
      %v3532 = vpack.c.bf16 %v2835, %v2831
      %v3533 = vpack.c.bf16 %v2840, %v2836
      %v3534 = vpack.c.bf16 %v2841, %v2837
      %v3535 = vpack.c.bf16 %v2842, %v2838
      %v3536 = vpack.c.bf16 %v2843, %v2839
      %v3537 = vpack.c.bf16 %v2848, %v2844
      %v3538 = vpack.c.bf16 %v2849, %v2845
      %v3539 = vpack.c.bf16 %v2850, %v2846
      %v3540 = vpack.c.bf16 %v2851, %v2847
      %v3541 = vpack.c.bf16 %v2856, %v2852
      %v3542 = vpack.c.bf16 %v2857, %v2853
      %v3543 = vpack.c.bf16 %v2858, %v2854
      %v3544 = vpack.c.bf16 %v2859, %v2855
      %v3545 = vpack.c.bf16 %v2864, %v2860
      %v3546 = vpack.c.bf16 %v2865, %v2861
      %v3547 = vpack.c.bf16 %v2866, %v2862
      %v3548 = vpack.c.bf16 %v2867, %v2863
      %v3549 = vpack.c.bf16 %v2872, %v2868
      %v3550 = vpack.c.bf16 %v2873, %v2869
      %v3551 = vpack.c.bf16 %v2874, %v2870
      %v3552 = vpack.c.bf16 %v2875, %v2871
      %v3553 = vpack.c.bf16 %v2880, %v2876
      %v3554 = vpack.c.bf16 %v2881, %v2877
      %v3555 = vpack.c.bf16 %v2882, %v2878
      %v3556 = vpack.c.bf16 %v2883, %v2879
      %v3557 = vld [vmem:[%s365] sm:$0xf]
      %v3558 = vld [vmem:[%s365 + $0x4] sm:$0xf]
      %v3559 = vld [vmem:[%s365 + $0x8] sm:$0xf]
      %v3560 = vld [vmem:[%s365 + $0xc] sm:$0xf]
      %v3561 = vld [vmem:[%s365 + $0x10] sm:$0xf]
      %v3562 = vld [vmem:[%s365 + $0x14] sm:$0xf]
      %v3563 = vld [vmem:[%s365 + $0x18] sm:$0xf]
      %v3564 = vld [vmem:[%s365 + $0x1c] sm:$0xf]
      %v3565 = vld [vmem:[%s365 + $0x20] sm:$0xf]
      %v3566 = vld [vmem:[%s365 + $0x24] sm:$0xf]
      %v3567 = vld [vmem:[%s365 + $0x28] sm:$0xf]
      %v3568 = vld [vmem:[%s365 + $0x2c] sm:$0xf]
      %v3569 = vld [vmem:[%s365 + $0x30] sm:$0xf]
      %v3570 = vld [vmem:[%s365 + $0x34] sm:$0xf]
      %v3571 = vld [vmem:[%s365 + $0x38] sm:$0xf]
      %v3572 = vld [vmem:[%s365 + $0x3c] sm:$0xf]
      %v3573 = vld [vmem:[%s365 + $0x40] sm:$0xf]
      %v3574 = vld [vmem:[%s365 + $0x44] sm:$0xf]
      %v3575 = vld [vmem:[%s365 + $0x48] sm:$0xf]
      %v3576 = vld [vmem:[%s365 + $0x4c] sm:$0xf]
      %v3577 = vld [vmem:[%s365 + $0x50] sm:$0xf]
      %v3578 = vld [vmem:[%s365 + $0x54] sm:$0xf]
      %v3579 = vld [vmem:[%s365 + $0x58] sm:$0xf]
      %v3580 = vld [vmem:[%s365 + $0x5c] sm:$0xf]
      %v3581 = vld [vmem:[%s365 + $0x60] sm:$0xf]
      %v3582 = vld [vmem:[%s365 + $0x64] sm:$0xf]
      %v3583 = vld [vmem:[%s365 + $0x68] sm:$0xf]
      %v3584 = vld [vmem:[%s365 + $0x6c] sm:$0xf]
      %v3585 = vld [vmem:[%s365 + $0x70] sm:$0xf]
      %v3586 = vld [vmem:[%s365 + $0x74] sm:$0xf]
      %v3587 = vld [vmem:[%s365 + $0x78] sm:$0xf]
      %v3588 = vld [vmem:[%s365 + $0x7c] sm:$0xf]
      %v3589 = vld [vmem:[%s365 + $0x80] sm:$0xf]
      %v3590 = vld [vmem:[%s365 + $0x84] sm:$0xf]
      %v3591 = vld [vmem:[%s365 + $0x88] sm:$0xf]
      %v3592 = vld [vmem:[%s365 + $0x8c] sm:$0xf]
      %v3593 = vld [vmem:[%s365 + $0x90] sm:$0xf]
      %v3594 = vld [vmem:[%s365 + $0x94] sm:$0xf]
      %v3595 = vld [vmem:[%s365 + $0x98] sm:$0xf]
      %v3596 = vld [vmem:[%s365 + $0x9c] sm:$0xf]
      %v3597 = vld [vmem:[%s365 + $0xa0] sm:$0xf]
      %v3598 = vld [vmem:[%s365 + $0xa4] sm:$0xf]
      %v3599 = vld [vmem:[%s365 + $0xa8] sm:$0xf]
      %v3600 = vld [vmem:[%s365 + $0xac] sm:$0xf]
      %v3601 = vld [vmem:[%s365 + $0xb0] sm:$0xf]
      %v3602 = vld [vmem:[%s365 + $0xb4] sm:$0xf]
      %v3603 = vld [vmem:[%s365 + $0xb8] sm:$0xf]
      %v3604 = vld [vmem:[%s365 + $0xbc] sm:$0xf]
      %v3605 = vld [vmem:[%s365 + $0xc0] sm:$0xf]
      %v3606 = vld [vmem:[%s365 + $0xc4] sm:$0xf]
      %v3607 = vld [vmem:[%s365 + $0xc8] sm:$0xf]
      %v3608 = vld [vmem:[%s365 + $0xcc] sm:$0xf]
      %v3609 = vld [vmem:[%s365 + $0xd0] sm:$0xf]
      %v3610 = vld [vmem:[%s365 + $0xd4] sm:$0xf]
      %v3611 = vld [vmem:[%s365 + $0xd8] sm:$0xf]
      %v3612 = vld [vmem:[%s365 + $0xdc] sm:$0xf]
      %v3613 = vld [vmem:[%s365 + $0xe0] sm:$0xf]
      %v3614 = vld [vmem:[%s365 + $0xe4] sm:$0xf]
      %v3615 = vld [vmem:[%s365 + $0xe8] sm:$0xf]
      %v3616 = vld [vmem:[%s365 + $0xec] sm:$0xf]
      %v3617 = vld [vmem:[%s365 + $0xf0] sm:$0xf]
      %v3618 = vld [vmem:[%s365 + $0xf4] sm:$0xf]
      %v3619 = vld [vmem:[%s365 + $0xf8] sm:$0xf]
      %v3620 = vld [vmem:[%s365 + $0xfc] sm:$0xf]
      %v3685 = vunpack.c.l.b16 %v3557
      %v3686 = vunpack.c.l.b16 %v3558
      %v3687 = vunpack.c.l.b16 %v3559
      %v3688 = vunpack.c.l.b16 %v3560
      %v3689 = vunpack.c.l.b16 %v3561
      %v3690 = vunpack.c.l.b16 %v3562
      %v3691 = vunpack.c.l.b16 %v3563
      %v3692 = vunpack.c.l.b16 %v3564
      %v3693 = vunpack.c.l.b16 %v3565
      %v3694 = vunpack.c.l.b16 %v3566
      %v3695 = vunpack.c.l.b16 %v3567
      %v3696 = vunpack.c.l.b16 %v3568
      %v3697 = vunpack.c.l.b16 %v3569
      %v3698 = vunpack.c.l.b16 %v3570
      %v3699 = vunpack.c.l.b16 %v3571
      %v3700 = vunpack.c.l.b16 %v3572
      %v3701 = vunpack.c.l.b16 %v3573
      %v3702 = vunpack.c.l.b16 %v3574
      %v3703 = vunpack.c.l.b16 %v3575
      %v3704 = vunpack.c.l.b16 %v3576
      %v3705 = vunpack.c.l.b16 %v3577
      %v3706 = vunpack.c.l.b16 %v3578
      %v3707 = vunpack.c.l.b16 %v3579
      %v3708 = vunpack.c.l.b16 %v3580
      %v3709 = vunpack.c.l.b16 %v3581
      %v3710 = vunpack.c.l.b16 %v3582
      %v3711 = vunpack.c.l.b16 %v3583
      %v3712 = vunpack.c.l.b16 %v3584
      %v3713 = vunpack.c.l.b16 %v3585
      %v3714 = vunpack.c.l.b16 %v3586
      %v3715 = vunpack.c.l.b16 %v3587
      %v3716 = vunpack.c.l.b16 %v3588
      %v3717 = vunpack.c.l.b16 %v3589
      %v3718 = vunpack.c.l.b16 %v3590
      %v3719 = vunpack.c.l.b16 %v3591
      %v3720 = vunpack.c.l.b16 %v3592
      %v3721 = vunpack.c.l.b16 %v3593
      %v3722 = vunpack.c.l.b16 %v3594
      %v3723 = vunpack.c.l.b16 %v3595
      %v3724 = vunpack.c.l.b16 %v3596
      %v3725 = vunpack.c.l.b16 %v3597
      %v3726 = vunpack.c.l.b16 %v3598
      %v3727 = vunpack.c.l.b16 %v3599
      %v3728 = vunpack.c.l.b16 %v3600
      %v3729 = vunpack.c.l.b16 %v3601
      %v3730 = vunpack.c.l.b16 %v3602
      %v3731 = vunpack.c.l.b16 %v3603
      %v3732 = vunpack.c.l.b16 %v3604
      %v3733 = vunpack.c.l.b16 %v3605
      %v3734 = vunpack.c.l.b16 %v3606
      %v3735 = vunpack.c.l.b16 %v3607
      %v3736 = vunpack.c.l.b16 %v3608
      %v3737 = vunpack.c.l.b16 %v3609
      %v3738 = vunpack.c.l.b16 %v3610
      %v3739 = vunpack.c.l.b16 %v3611
      %v3740 = vunpack.c.l.b16 %v3612
      %v3741 = vunpack.c.l.b16 %v3613
      %v3742 = vunpack.c.l.b16 %v3614
      %v3743 = vunpack.c.l.b16 %v3615
      %v3744 = vunpack.c.l.b16 %v3616
      %v3745 = vunpack.c.l.b16 %v3617
      %v3746 = vunpack.c.l.b16 %v3618
      %v3747 = vunpack.c.l.b16 %v3619
      %v3748 = vunpack.c.l.b16 %v3620
      %v3749 = vpack.c.b16 %v3686, %v3685
      %v3750 = vpack.c.b16 %v3688, %v3687
      %v3751 = vpack.c.b16 %v3690, %v3689
      %v3752 = vpack.c.b16 %v3692, %v3691
      %v3753 = vpack.c.b16 %v3694, %v3693
      %v3754 = vpack.c.b16 %v3696, %v3695
      %v3755 = vpack.c.b16 %v3698, %v3697
      %v3756 = vpack.c.b16 %v3700, %v3699
      %v3757 = vpack.c.b16 %v3702, %v3701
      %v3758 = vpack.c.b16 %v3704, %v3703
      %v3759 = vpack.c.b16 %v3706, %v3705
      %v3760 = vpack.c.b16 %v3708, %v3707
      %v3761 = vpack.c.b16 %v3710, %v3709
      %v3762 = vpack.c.b16 %v3712, %v3711
      %v3763 = vpack.c.b16 %v3714, %v3713
      %v3764 = vpack.c.b16 %v3716, %v3715
      %v3765 = vpack.c.b16 %v3718, %v3717
      %v3766 = vpack.c.b16 %v3720, %v3719
      %v3767 = vpack.c.b16 %v3722, %v3721
      %v3768 = vpack.c.b16 %v3724, %v3723
      %v3769 = vpack.c.b16 %v3726, %v3725
      %v3770 = vpack.c.b16 %v3728, %v3727
      %v3771 = vpack.c.b16 %v3730, %v3729
      %v3772 = vpack.c.b16 %v3732, %v3731
      %v3773 = vpack.c.b16 %v3734, %v3733
      %v3774 = vpack.c.b16 %v3736, %v3735
      %v3775 = vpack.c.b16 %v3738, %v3737
      %v3776 = vpack.c.b16 %v3740, %v3739
      %v3777 = vpack.c.b16 %v3742, %v3741
      %v3778 = vpack.c.b16 %v3744, %v3743
      %v3779 = vpack.c.b16 %v3746, %v3745
      %v3780 = vpack.c.b16 %v3748, %v3747
      %3813 = vmatprep.subr.bf16.mxu0 0
      %3814 = vmatpush1.bf16.msra.mxu0 %v3749
      %3815 = vmatprep.subr.bf16.mxu0 0
      %3816 = vmatpush1.bf16.msra.mxu0 %v3750
      %3817 = vmatprep.subr.bf16.mxu0 0
      %3818 = vmatpush1.bf16.msra.mxu0 %v3751
      %3819 = vmatprep.subr.bf16.mxu0 0
      %3820 = vmatpush1.bf16.msra.mxu0 %v3752
      %3821 = vmatprep.subr.bf16.mxu0 0
      %3822 = vmatpush1.bf16.msra.mxu0 %v3753
      %3823 = vmatprep.subr.bf16.mxu0 0
      %3824 = vmatpush1.bf16.msra.mxu0 %v3754
      %3825 = vmatprep.subr.bf16.mxu0 0
      %3826 = vmatpush1.bf16.msra.mxu0 %v3755
      %3827 = vmatprep.subr.bf16.mxu0 0
      %3828 = vmatpush1.bf16.msra.mxu0 %v3756
      %3829 = vmatprep.subr.bf16.mxu0 0
      %3830 = vmatpush1.bf16.msra.mxu0 %v3757
      %3831 = vmatprep.subr.bf16.mxu0 0
      %3832 = vmatpush1.bf16.msra.mxu0 %v3758
      %3833 = vmatprep.subr.bf16.mxu0 0
      %3834 = vmatpush1.bf16.msra.mxu0 %v3759
      %3835 = vmatprep.subr.bf16.mxu0 0
      %3836 = vmatpush1.bf16.msra.mxu0 %v3760
      %3837 = vmatprep.subr.bf16.mxu0 0
      %3838 = vmatpush1.bf16.msra.mxu0 %v3761
      %3839 = vmatprep.subr.bf16.mxu0 0
      %3840 = vmatpush1.bf16.msra.mxu0 %v3762
      %3841 = vmatprep.subr.bf16.mxu0 0
      %3842 = vmatpush1.bf16.msra.mxu0 %v3763
      %3843 = vmatprep.subr.bf16.mxu0 0
      %3844 = vmatpush1.bf16.msra.mxu0 %v3764
      %3845 = vmatprep.mubr.bf16.mxu0 %v3494
      %3846 = vmatmul.mubr.bf16.gmra.mrb[0].mxu0 %v3493
      %v3847 = vpop.f32.mrb[0].mxu0
      %v3848 = vadd.f32 0.0, %v3847
      %v3849 = vpop.f32.mrb[0].mxu0
      %v3850 = vpop.f32.mrb[0].mxu0
      %v3851 = vadd.f32 0.0, %v3850
      %v3852 = vpop.f32.mrb[0].mxu0
      %3853 = vmatprep.mubr.bf16.mxu0 %v3498
      %3854 = vmatmul.mubr.bf16.gmra.mrb[0].mxu0 %v3497
      %v3855 = vpop.f32.mrb[0].mxu0
      %v3856 = vadd.f32 0.0, %v3855
      %v3857 = vpop.f32.mrb[0].mxu0
      %v3858 = vpop.f32.mrb[0].mxu0
      %v3859 = vadd.f32 0.0, %v3858
      %v3860 = vpop.f32.mrb[0].mxu0
      %3861 = vmatprep.mubr.bf16.mxu0 %v3502
      %3862 = vmatmul.mubr.bf16.gmra.mrb[0].mxu0 %v3501
      %v3863 = vpop.f32.mrb[0].mxu0
      %v3864 = vadd.f32 0.0, %v3863
      %v3865 = vpop.f32.mrb[0].mxu0
      %v3866 = vpop.f32.mrb[0].mxu0
      %v3867 = vadd.f32 0.0, %v3866
      %v3868 = vpop.f32.mrb[0].mxu0
      %3869 = vmatprep.mubr.bf16.mxu0 %v3506
      %3870 = vmatmul.mubr.bf16.gmra.mrb[0].mxu0 %v3505
      %v3871 = vpop.f32.mrb[0].mxu0
      %v3872 = vadd.f32 0.0, %v3871
      %v3873 = vpop.f32.mrb[0].mxu0
      %v3874 = vpop.f32.mrb[0].mxu0
      %v3875 = vadd.f32 0.0, %v3874
      %v3876 = vpop.f32.mrb[0].mxu0
      %3877 = vmatprep.mubr.bf16.mxu0 %v3510
      %3878 = vmatmul.mubr.bf16.gmra.mrb[0].mxu0 %v3509
      %v3879 = vpop.f32.mrb[0].mxu0
      %v3880 = vadd.f32 0.0, %v3879
      %v3881 = vpop.f32.mrb[0].mxu0
      %v3882 = vpop.f32.mrb[0].mxu0
      %v3883 = vadd.f32 0.0, %v3882
      %v3884 = vpop.f32.mrb[0].mxu0
      %3885 = vmatprep.mubr.bf16.mxu0 %v3514
      %3886 = vmatmul.mubr.bf16.gmra.mrb[0].mxu0 %v3513
      %v3887 = vpop.f32.mrb[0].mxu0
      %v3888 = vadd.f32 0.0, %v3887
      %v3889 = vpop.f32.mrb[0].mxu0
      %v3890 = vpop.f32.mrb[0].mxu0
      %v3891 = vadd.f32 0.0, %v3890
      %v3892 = vpop.f32.mrb[0].mxu0
      %3893 = vmatprep.mubr.bf16.mxu0 %v3518
      %3894 = vmatmul.mubr.bf16.gmra.mrb[0].mxu0 %v3517
      %v3895 = vpop.f32.mrb[0].mxu0
      %v3896 = vadd.f32 0.0, %v3895
      %v3897 = vpop.f32.mrb[0].mxu0
      %v3898 = vpop.f32.mrb[0].mxu0
      %v3899 = vadd.f32 0.0, %v3898
      %v3900 = vpop.f32.mrb[0].mxu0
      %3901 = vmatprep.mubr.bf16.mxu0 %v3522
      %3902 = vmatmul.mubr.bf16.gmra.mrb[0].mxu0 %v3521
      %v3903 = vpop.f32.mrb[0].mxu0
      %v3904 = vadd.f32 0.0, %v3903
      %v3905 = vpop.f32.mrb[0].mxu0
      %v3906 = vpop.f32.mrb[0].mxu0
      %v3907 = vadd.f32 0.0, %v3906
      %v3908 = vpop.f32.mrb[0].mxu0
      %3909 = vmatprep.mubr.bf16.mxu0 %v3526
      %3910 = vmatmul.mubr.bf16.gmra.mrb[0].mxu0 %v3525
      %v3911 = vpop.f32.mrb[0].mxu0
      %v3912 = vadd.f32 0.0, %v3911
      %v3913 = vpop.f32.mrb[0].mxu0
      %v3914 = vpop.f32.mrb[0].mxu0
      %v3915 = vadd.f32 0.0, %v3914
      %v3916 = vpop.f32.mrb[0].mxu0
      %3917 = vmatprep.mubr.bf16.mxu0 %v3530
      %3918 = vmatmul.mubr.bf16.gmra.mrb[0].mxu0 %v3529
      %v3919 = vpop.f32.mrb[0].mxu0
      %v3920 = vadd.f32 0.0, %v3919
      %v3921 = vpop.f32.mrb[0].mxu0
      %v3922 = vpop.f32.mrb[0].mxu0
      %v3923 = vadd.f32 0.0, %v3922
      %v3924 = vpop.f32.mrb[0].mxu0
      %3925 = vmatprep.mubr.bf16.mxu0 %v3534
      %3926 = vmatmul.mubr.bf16.gmra.mrb[0].mxu0 %v3533
      %v3927 = vpop.f32.mrb[0].mxu0
      %v3928 = vadd.f32 0.0, %v3927
      %v3929 = vpop.f32.mrb[0].mxu0
      %v3930 = vpop.f32.mrb[0].mxu0
      %v3931 = vadd.f32 0.0, %v3930
      %v3932 = vpop.f32.mrb[0].mxu0
      %3933 = vmatprep.mubr.bf16.mxu0 %v3538
      %3934 = vmatmul.mubr.bf16.gmra.mrb[0].mxu0 %v3537
      %v3935 = vpop.f32.mrb[0].mxu0
      %v3936 = vadd.f32 0.0, %v3935
      %v3937 = vpop.f32.mrb[0].mxu0
      %v3938 = vpop.f32.mrb[0].mxu0
      %v3939 = vadd.f32 0.0, %v3938
      %v3940 = vpop.f32.mrb[0].mxu0
      %3941 = vmatprep.mubr.bf16.mxu0 %v3542
      %3942 = vmatmul.mubr.bf16.gmra.mrb[0].mxu0 %v3541
      %v3943 = vpop.f32.mrb[0].mxu0
      %v3944 = vadd.f32 0.0, %v3943
      %v3945 = vpop.f32.mrb[0].mxu0
      %v3946 = vpop.f32.mrb[0].mxu0
      %v3947 = vadd.f32 0.0, %v3946
      %v3948 = vpop.f32.mrb[0].mxu0
      %3949 = vmatprep.mubr.bf16.mxu0 %v3546
      %3950 = vmatmul.mubr.bf16.gmra.mrb[0].mxu0 %v3545
      %v3951 = vpop.f32.mrb[0].mxu0
      %v3952 = vadd.f32 0.0, %v3951
      %v3953 = vpop.f32.mrb[0].mxu0
      %v3954 = vpop.f32.mrb[0].mxu0
      %v3955 = vadd.f32 0.0, %v3954
      %v3956 = vpop.f32.mrb[0].mxu0
      %3957 = vmatprep.mubr.bf16.mxu0 %v3550
      %3958 = vmatmul.mubr.bf16.gmra.mrb[0].mxu0 %v3549
      %v3959 = vpop.f32.mrb[0].mxu0
      %v3960 = vadd.f32 0.0, %v3959
      %v3961 = vpop.f32.mrb[0].mxu0
      %v3962 = vpop.f32.mrb[0].mxu0
      %v3963 = vadd.f32 0.0, %v3962
      %v3964 = vpop.f32.mrb[0].mxu0
      %3965 = vmatprep.mubr.bf16.mxu0 %v3554
      %3966 = vmatmul.mubr.bf16.gmra.mrb[0].mxu0 %v3553
      %v3967 = vpop.f32.mrb[0].mxu0
      %v3968 = vadd.f32 0.0, %v3967
      %v3969 = vpop.f32.mrb[0].mxu0
      %v3970 = vpop.f32.mrb[0].mxu0
      %v3971 = vadd.f32 0.0, %v3970
      %v3972 = vpop.f32.mrb[0].mxu0
      %3973 = vdwg.mxu0
      %3974 = vmatprep.subr.bf16.mxu0 0
      %3975 = vmatpush1.bf16.msra.mxu0 %v3765
      %3976 = vmatprep.subr.bf16.mxu0 0
      %3977 = vmatpush1.bf16.msra.mxu0 %v3766
      %3978 = vmatprep.subr.bf16.mxu0 0
      %3979 = vmatpush1.bf16.msra.mxu0 %v3767
      %3980 = vmatprep.subr.bf16.mxu0 0
      %3981 = vmatpush1.bf16.msra.mxu0 %v3768
      %3982 = vmatprep.subr.bf16.mxu0 0
      %3983 = vmatpush1.bf16.msra.mxu0 %v3769
      %3984 = vmatprep.subr.bf16.mxu0 0
      %3985 = vmatpush1.bf16.msra.mxu0 %v3770
      %3986 = vmatprep.subr.bf16.mxu0 0
      %3987 = vmatpush1.bf16.msra.mxu0 %v3771
      %3988 = vmatprep.subr.bf16.mxu0 0
      %3989 = vmatpush1.bf16.msra.mxu0 %v3772
      %3990 = vmatprep.subr.bf16.mxu0 0
      %3991 = vmatpush1.bf16.msra.mxu0 %v3773
      %3992 = vmatprep.subr.bf16.mxu0 0
      %3993 = vmatpush1.bf16.msra.mxu0 %v3774
      %3994 = vmatprep.subr.bf16.mxu0 0
      %3995 = vmatpush1.bf16.msra.mxu0 %v3775
      %3996 = vmatprep.subr.bf16.mxu0 0
      %3997 = vmatpush1.bf16.msra.mxu0 %v3776
      %3998 = vmatprep.subr.bf16.mxu0 0
      %3999 = vmatpush1.bf16.msra.mxu0 %v3777
      %4000 = vmatprep.subr.bf16.mxu0 0
      %4001 = vmatpush1.bf16.msra.mxu0 %v3778
      %4002 = vmatprep.subr.bf16.mxu0 0
      %4003 = vmatpush1.bf16.msra.mxu0 %v3779
      %4004 = vmatprep.subr.bf16.mxu0 0
      %4005 = vmatpush1.bf16.msra.mxu0 %v3780
      %4006 = vmatprep.mubr.bf16.mxu0 %v3496
      %4007 = vmatmul.mubr.bf16.gmra.mrb[0].mxu0 %v3495
      %v4008 = vpop.f32.mrb[0].mxu0
      %v4009 = vadd.f32 %v3848, %v4008
      %v4010 = vpop.f32.mrb[0].mxu0
      %v4011 = vpop.f32.mrb[0].mxu0
      %v4012 = vadd.f32 %v3851, %v4011
      %v4013 = vpop.f32.mrb[0].mxu0
      %4014 = vmatprep.mubr.bf16.mxu0 %v3500
      %4015 = vmatmul.mubr.bf16.gmra.mrb[0].mxu0 %v3499
      %v4016 = vpop.f32.mrb[0].mxu0
      %v4017 = vadd.f32 %v3856, %v4016
      %v4018 = vpop.f32.mrb[0].mxu0
      %v4019 = vpop.f32.mrb[0].mxu0
      %v4020 = vadd.f32 %v3859, %v4019
      %v4021 = vpop.f32.mrb[0].mxu0
      %4022 = vmatprep.mubr.bf16.mxu0 %v3504
      %4023 = vmatmul.mubr.bf16.gmra.mrb[0].mxu0 %v3503
      %v4024 = vpop.f32.mrb[0].mxu0
      %v4025 = vadd.f32 %v3864, %v4024
      %v4026 = vpop.f32.mrb[0].mxu0
      %v4027 = vpop.f32.mrb[0].mxu0
      %v4028 = vadd.f32 %v3867, %v4027
      %v4029 = vpop.f32.mrb[0].mxu0
      %4030 = vmatprep.mubr.bf16.mxu0 %v3508
      %4031 = vmatmul.mubr.bf16.gmra.mrb[0].mxu0 %v3507
      %v4032 = vpop.f32.mrb[0].mxu0
      %v4033 = vadd.f32 %v3872, %v4032
      %v4034 = vpop.f32.mrb[0].mxu0
      %v4035 = vpop.f32.mrb[0].mxu0
      %v4036 = vadd.f32 %v3875, %v4035
      %v4037 = vpop.f32.mrb[0].mxu0
      %4038 = vmatprep.mubr.bf16.mxu0 %v3512
      %4039 = vmatmul.mubr.bf16.gmra.mrb[0].mxu0 %v3511
      %v4040 = vpop.f32.mrb[0].mxu0
      %v4041 = vadd.f32 %v3880, %v4040
      %v4042 = vpop.f32.mrb[0].mxu0
      %v4043 = vpop.f32.mrb[0].mxu0
      %v4044 = vadd.f32 %v3883, %v4043
      %v4045 = vpop.f32.mrb[0].mxu0
      %4046 = vmatprep.mubr.bf16.mxu0 %v3516
      %4047 = vmatmul.mubr.bf16.gmra.mrb[0].mxu0 %v3515
      %v4048 = vpop.f32.mrb[0].mxu0
      %v4049 = vadd.f32 %v3888, %v4048
      %v4050 = vpop.f32.mrb[0].mxu0
      %v4051 = vpop.f32.mrb[0].mxu0
      %v4052 = vadd.f32 %v3891, %v4051
      %v4053 = vpop.f32.mrb[0].mxu0
      %4054 = vmatprep.mubr.bf16.mxu0 %v3520
      %4055 = vmatmul.mubr.bf16.gmra.mrb[0].mxu0 %v3519
      %v4056 = vpop.f32.mrb[0].mxu0
      %v4057 = vadd.f32 %v3896, %v4056
      %v4058 = vpop.f32.mrb[0].mxu0
      %v4059 = vpop.f32.mrb[0].mxu0
      %v4060 = vadd.f32 %v3899, %v4059
      %v4061 = vpop.f32.mrb[0].mxu0
      %4062 = vmatprep.mubr.bf16.mxu0 %v3524
      %4063 = vmatmul.mubr.bf16.gmra.mrb[0].mxu0 %v3523
      %v4064 = vpop.f32.mrb[0].mxu0
      %v4065 = vadd.f32 %v3904, %v4064
      %v4066 = vpop.f32.mrb[0].mxu0
      %v4067 = vpop.f32.mrb[0].mxu0
      %v4068 = vadd.f32 %v3907, %v4067
      %v4069 = vpop.f32.mrb[0].mxu0
      %4070 = vmatprep.mubr.bf16.mxu0 %v3528
      %4071 = vmatmul.mubr.bf16.gmra.mrb[0].mxu0 %v3527
      %v4072 = vpop.f32.mrb[0].mxu0
      %v4073 = vadd.f32 %v3912, %v4072
      %v4074 = vpop.f32.mrb[0].mxu0
      %v4075 = vpop.f32.mrb[0].mxu0
      %v4076 = vadd.f32 %v3915, %v4075
      %v4077 = vpop.f32.mrb[0].mxu0
      %4078 = vmatprep.mubr.bf16.mxu0 %v3532
      %4079 = vmatmul.mubr.bf16.gmra.mrb[0].mxu0 %v3531
      %v4080 = vpop.f32.mrb[0].mxu0
      %v4081 = vadd.f32 %v3920, %v4080
      %v4082 = vpop.f32.mrb[0].mxu0
      %v4083 = vpop.f32.mrb[0].mxu0
      %v4084 = vadd.f32 %v3923, %v4083
      %v4085 = vpop.f32.mrb[0].mxu0
      %4086 = vmatprep.mubr.bf16.mxu0 %v3536
      %4087 = vmatmul.mubr.bf16.gmra.mrb[0].mxu0 %v3535
      %v4088 = vpop.f32.mrb[0].mxu0
      %v4089 = vadd.f32 %v3928, %v4088
      %v4090 = vpop.f32.mrb[0].mxu0
      %v4091 = vpop.f32.mrb[0].mxu0
      %v4092 = vadd.f32 %v3931, %v4091
      %v4093 = vpop.f32.mrb[0].mxu0
      %4094 = vmatprep.mubr.bf16.mxu0 %v3540
      %4095 = vmatmul.mubr.bf16.gmra.mrb[0].mxu0 %v3539
      %v4096 = vpop.f32.mrb[0].mxu0
      %v4097 = vadd.f32 %v3936, %v4096
      %v4098 = vpop.f32.mrb[0].mxu0
      %v4099 = vpop.f32.mrb[0].mxu0
      %v4100 = vadd.f32 %v3939, %v4099
      %v4101 = vpop.f32.mrb[0].mxu0
      %4102 = vmatprep.mubr.bf16.mxu0 %v3544
      %4103 = vmatmul.mubr.bf16.gmra.mrb[0].mxu0 %v3543
      %v4104 = vpop.f32.mrb[0].mxu0
      %v4105 = vadd.f32 %v3944, %v4104
      %v4106 = vpop.f32.mrb[0].mxu0
      %v4107 = vpop.f32.mrb[0].mxu0
      %v4108 = vadd.f32 %v3947, %v4107
      %v4109 = vpop.f32.mrb[0].mxu0
      %4110 = vmatprep.mubr.bf16.mxu0 %v3548
      %4111 = vmatmul.mubr.bf16.gmra.mrb[0].mxu0 %v3547
      %v4112 = vpop.f32.mrb[0].mxu0
      %v4113 = vadd.f32 %v3952, %v4112
      %v4114 = vpop.f32.mrb[0].mxu0
      %v4115 = vpop.f32.mrb[0].mxu0
      %v4116 = vadd.f32 %v3955, %v4115
      %v4117 = vpop.f32.mrb[0].mxu0
      %4118 = vmatprep.mubr.bf16.mxu0 %v3552
      %4119 = vmatmul.mubr.bf16.gmra.mrb[0].mxu0 %v3551
      %v4120 = vpop.f32.mrb[0].mxu0
      %v4121 = vadd.f32 %v3960, %v4120
      %v4122 = vpop.f32.mrb[0].mxu0
      %v4123 = vpop.f32.mrb[0].mxu0
      %v4124 = vadd.f32 %v3963, %v4123
      %v4125 = vpop.f32.mrb[0].mxu0
      %4126 = vmatprep.mubr.bf16.mxu0 %v3556
      %4127 = vmatmul.mubr.bf16.gmra.mrb[0].mxu0 %v3555
      %v4128 = vpop.f32.mrb[0].mxu0
      %v4129 = vadd.f32 %v3968, %v4128
      %v4130 = vpop.f32.mrb[0].mxu0
      %v4131 = vpop.f32.mrb[0].mxu0
      %v4132 = vadd.f32 %v3971, %v4131
      %v4133 = vpop.f32.mrb[0].mxu0
      %4134 = vdwg.mxu0
      %v4135 = vadd.f32 %v3461, %v4009
      %v4136 = vadd.f32 %v3462, %v4012
      %v4137 = vadd.f32 %v3463, %v4017
      %v4138 = vadd.f32 %v3464, %v4020
      %v4139 = vadd.f32 %v3465, %v4025
      %v4140 = vadd.f32 %v3466, %v4028
      %v4141 = vadd.f32 %v3467, %v4033
      %v4142 = vadd.f32 %v3468, %v4036
      %v4143 = vadd.f32 %v3469, %v4041
      %v4144 = vadd.f32 %v3470, %v4044
      %v4145 = vadd.f32 %v3471, %v4049
      %v4146 = vadd.f32 %v3472, %v4052
      %v4147 = vadd.f32 %v3473, %v4057
      %v4148 = vadd.f32 %v3474, %v4060
      %v4149 = vadd.f32 %v3475, %v4065
      %v4150 = vadd.f32 %v3476, %v4068
      %v4151 = vadd.f32 %v3477, %v4073
      %v4152 = vadd.f32 %v3478, %v4076
      %v4153 = vadd.f32 %v3479, %v4081
      %v4154 = vadd.f32 %v3480, %v4084
      %v4155 = vadd.f32 %v3481, %v4089
      %v4156 = vadd.f32 %v3482, %v4092
      %v4157 = vadd.f32 %v3483, %v4097
      %v4158 = vadd.f32 %v3484, %v4100
      %v4159 = vadd.f32 %v3485, %v4105
      %v4160 = vadd.f32 %v3486, %v4108
      %v4161 = vadd.f32 %v3487, %v4113
      %v4162 = vadd.f32 %v3488, %v4116
      %v4163 = vadd.f32 %v3489, %v4121
      %v4164 = vadd.f32 %v3490, %v4124
      %v4165 = vadd.f32 %v3491, %v4129
      %v4166 = vadd.f32 %v3492, %v4132
      %4167 = vst [vmem:[#allocation4] sm:$0xff] %v4135
      %4168 = vst [vmem:[#allocation4 + $0x8] sm:$0xff] %v4136
      %4169 = vst [vmem:[#allocation4 + $0x10] sm:$0xff] %v4137
      %4170 = vst [vmem:[#allocation4 + $0x18] sm:$0xff] %v4138
      %4171 = vst [vmem:[#allocation4 + $0x20] sm:$0xff] %v4139
      %4172 = vst [vmem:[#allocation4 + $0x28] sm:$0xff] %v4140
      %4173 = vst [vmem:[#allocation4 + $0x30] sm:$0xff] %v4141
      %4174 = vst [vmem:[#allocation4 + $0x38] sm:$0xff] %v4142
      %4175 = vst [vmem:[#allocation4 + $0x40] sm:$0xff] %v4143
      %4176 = vst [vmem:[#allocation4 + $0x48] sm:$0xff] %v4144
      %4177 = vst [vmem:[#allocation4 + $0x50] sm:$0xff] %v4145
      %4178 = vst [vmem:[#allocation4 + $0x58] sm:$0xff] %v4146
      %4179 = vst [vmem:[#allocation4 + $0x60] sm:$0xff] %v4147
      %4180 = vst [vmem:[#allocation4 + $0x68] sm:$0xff] %v4148
      %4181 = vst [vmem:[#allocation4 + $0x70] sm:$0xff] %v4149
      %4182 = vst [vmem:[#allocation4 + $0x78] sm:$0xff] %v4150
      %4183 = vst [vmem:[#allocation4 + $0x80] sm:$0xff] %v4151
      %4184 = vst [vmem:[#allocation4 + $0x88] sm:$0xff] %v4152
      %4185 = vst [vmem:[#allocation4 + $0x90] sm:$0xff] %v4153
      %4186 = vst [vmem:[#allocation4 + $0x98] sm:$0xff] %v4154
      %4187 = vst [vmem:[#allocation4 + $0xa0] sm:$0xff] %v4155
      %4188 = vst [vmem:[#allocation4 + $0xa8] sm:$0xff] %v4156
      %4189 = vst [vmem:[#allocation4 + $0xb0] sm:$0xff] %v4157
      %4190 = vst [vmem:[#allocation4 + $0xb8] sm:$0xff] %v4158
      %4191 = vst [vmem:[#allocation4 + $0xc0] sm:$0xff] %v4159
      %4192 = vst [vmem:[#allocation4 + $0xc8] sm:$0xff] %v4160
      %4193 = vst [vmem:[#allocation4 + $0xd0] sm:$0xff] %v4161
      %4194 = vst [vmem:[#allocation4 + $0xd8] sm:$0xff] %v4162
      %4195 = vst [vmem:[#allocation4 + $0xe0] sm:$0xff] %v4163
      %4196 = vst [vmem:[#allocation4 + $0xe8] sm:$0xff] %v4164
      %4197 = vst [vmem:[#allocation4 + $0xf0] sm:$0xff] %v4165
      %4198 = vst [vmem:[#allocation4 + $0xf8] sm:$0xff] %v4166
      %4199 = vst.msk [vmem:[#allocation2] sm:$0xff] %vm3236, %v2180
      %4200 = vst.msk [vmem:[#allocation2 + $0x8] sm:$0xff] %vm3236, %v2181
      %4201 = vst.msk [vmem:[#allocation2 + $0x10] sm:$0xff] %vm3236, %v2182
      %4202 = vst.msk [vmem:[#allocation2 + $0x18] sm:$0xff] %vm3236, %v2183
      %4203 = vst.msk [vmem:[#allocation2 + $0x20] sm:$0xff] %vm3236, %v2184
      %4204 = vst.msk [vmem:[#allocation2 + $0x28] sm:$0xff] %vm3236, %v2185
      %4205 = vst.msk [vmem:[#allocation2 + $0x30] sm:$0xff] %vm3236, %v2186
      %4206 = vst.msk [vmem:[#allocation2 + $0x38] sm:$0xff] %vm3236, %v2187
      %4207 = vst.msk [vmem:[#allocation2 + $0x40] sm:$0xff] %vm3236, %v2188
      %4208 = vst.msk [vmem:[#allocation2 + $0x48] sm:$0xff] %vm3236, %v2189
      %4209 = vst.msk [vmem:[#allocation2 + $0x50] sm:$0xff] %vm3236, %v2190
      %4210 = vst.msk [vmem:[#allocation2 + $0x58] sm:$0xff] %vm3236, %v2191
      %4211 = vst.msk [vmem:[#allocation2 + $0x60] sm:$0xff] %vm3236, %v2192
      %4212 = vst.msk [vmem:[#allocation2 + $0x68] sm:$0xff] %vm3236, %v2193
      %4213 = vst.msk [vmem:[#allocation2 + $0x70] sm:$0xff] %vm3236, %v2194
      %4214 = vst.msk [vmem:[#allocation2 + $0x78] sm:$0xff] %vm3236, %v2195
      %4215 = vst.msk [vmem:[#allocation2 + $0x80] sm:$0xff] %vm3236, %v2196
      %4216 = vst.msk [vmem:[#allocation2 + $0x88] sm:$0xff] %vm3236, %v2197
      %4217 = vst.msk [vmem:[#allocation2 + $0x90] sm:$0xff] %vm3236, %v2198
      %4218 = vst.msk [vmem:[#allocation2 + $0x98] sm:$0xff] %vm3236, %v2199
      %4219 = vst.msk [vmem:[#allocation2 + $0xa0] sm:$0xff] %vm3236, %v2200
      %4220 = vst.msk [vmem:[#allocation2 + $0xa8] sm:$0xff] %vm3236, %v2201
      %4221 = vst.msk [vmem:[#allocation2 + $0xb0] sm:$0xff] %vm3236, %v2202
      %4222 = vst.msk [vmem:[#allocation2 + $0xb8] sm:$0xff] %vm3236, %v2203
      %4223 = vst.msk [vmem:[#allocation2 + $0xc0] sm:$0xff] %vm3236, %v2204
      %4224 = vst.msk [vmem:[#allocation2 + $0xc8] sm:$0xff] %vm3236, %v2205
      %4225 = vst.msk [vmem:[#allocation2 + $0xd0] sm:$0xff] %vm3236, %v2206
      %4226 = vst.msk [vmem:[#allocation2 + $0xd8] sm:$0xff] %vm3236, %v2207
      %4227 = vst.msk [vmem:[#allocation2 + $0xe0] sm:$0xff] %vm3236, %v2208
      %4228 = vst.msk [vmem:[#allocation2 + $0xe8] sm:$0xff] %vm3236, %v2209
      %4229 = vst.msk [vmem:[#allocation2 + $0xf0] sm:$0xff] %vm3236, %v2210
      %4230 = vst.msk [vmem:[#allocation2 + $0xf8] sm:$0xff] %vm3236, %v2211
      // Predicated region
      $region49: #{gat_forward.3} parent=43 // pred_check
        %p4231 = pneg %p393
      $region50: #{gat_forward.3} parent=43 // pred_check_branch
        %4233 = sbr.rel (%p4231) target = $region52
      $region51: #{gat_forward.3} parent=43 // pred_region
        %v4234 = vld [vmem:[#allocation3] sm:$0xff]
        %v4235 = vld [vmem:[#allocation3 + $0x8] sm:$0xff]
        %v4236 = vld [vmem:[#allocation3 + $0x10] sm:$0xff]
        %v4237 = vld [vmem:[#allocation3 + $0x18] sm:$0xff]
        %v4238 = vld [vmem:[#allocation3 + $0x20] sm:$0xff]
        %v4239 = vld [vmem:[#allocation3 + $0x28] sm:$0xff]
        %v4240 = vld [vmem:[#allocation3 + $0x30] sm:$0xff]
        %v4241 = vld [vmem:[#allocation3 + $0x38] sm:$0xff]
        %v4242 = vld [vmem:[#allocation3 + $0x40] sm:$0xff]
        %v4243 = vld [vmem:[#allocation3 + $0x48] sm:$0xff]
        %v4244 = vld [vmem:[#allocation3 + $0x50] sm:$0xff]
        %v4245 = vld [vmem:[#allocation3 + $0x58] sm:$0xff]
        %v4246 = vld [vmem:[#allocation3 + $0x60] sm:$0xff]
        %v4247 = vld [vmem:[#allocation3 + $0x68] sm:$0xff]
        %v4248 = vld [vmem:[#allocation3 + $0x70] sm:$0xff]
        %v4249 = vld [vmem:[#allocation3 + $0x78] sm:$0xff]
        %v4250 = vld [vmem:[#allocation3 + $0x80] sm:$0xff]
        %v4251 = vld [vmem:[#allocation3 + $0x88] sm:$0xff]
        %v4252 = vld [vmem:[#allocation3 + $0x90] sm:$0xff]
        %v4253 = vld [vmem:[#allocation3 + $0x98] sm:$0xff]
        %v4254 = vld [vmem:[#allocation3 + $0xa0] sm:$0xff]
        %v4255 = vld [vmem:[#allocation3 + $0xa8] sm:$0xff]
        %v4256 = vld [vmem:[#allocation3 + $0xb0] sm:$0xff]
        %v4257 = vld [vmem:[#allocation3 + $0xb8] sm:$0xff]
        %v4258 = vld [vmem:[#allocation3 + $0xc0] sm:$0xff]
        %v4259 = vld [vmem:[#allocation3 + $0xc8] sm:$0xff]
        %v4260 = vld [vmem:[#allocation3 + $0xd0] sm:$0xff]
        %v4261 = vld [vmem:[#allocation3 + $0xd8] sm:$0xff]
        %v4262 = vld [vmem:[#allocation3 + $0xe0] sm:$0xff]
        %v4263 = vld [vmem:[#allocation3 + $0xe8] sm:$0xff]
        %v4264 = vld [vmem:[#allocation3 + $0xf0] sm:$0xff]
        %v4265 = vld [vmem:[#allocation3 + $0xf8] sm:$0xff]
        %vm4266 = vcmp.gt.f32.partialorder %v4234, 0.0
        %vm4267 = vcmp.gt.f32.partialorder %v4235, 0.0
        %vm4268 = vcmp.gt.f32.partialorder %v4236, 0.0
        %vm4269 = vcmp.gt.f32.partialorder %v4237, 0.0
        %vm4270 = vcmp.gt.f32.partialorder %v4238, 0.0
        %vm4271 = vcmp.gt.f32.partialorder %v4239, 0.0
        %vm4272 = vcmp.gt.f32.partialorder %v4240, 0.0
        %vm4273 = vcmp.gt.f32.partialorder %v4241, 0.0
        %vm4274 = vcmp.gt.f32.partialorder %v4242, 0.0
        %vm4275 = vcmp.gt.f32.partialorder %v4243, 0.0
        %vm4276 = vcmp.gt.f32.partialorder %v4244, 0.0
        %vm4277 = vcmp.gt.f32.partialorder %v4245, 0.0
        %vm4278 = vcmp.gt.f32.partialorder %v4246, 0.0
        %vm4279 = vcmp.gt.f32.partialorder %v4247, 0.0
        %vm4280 = vcmp.gt.f32.partialorder %v4248, 0.0
        %vm4281 = vcmp.gt.f32.partialorder %v4249, 0.0
        %vm4282 = vcmp.gt.f32.partialorder %v4250, 0.0
        %vm4283 = vcmp.gt.f32.partialorder %v4251, 0.0
        %vm4284 = vcmp.gt.f32.partialorder %v4252, 0.0
        %vm4285 = vcmp.gt.f32.partialorder %v4253, 0.0
        %vm4286 = vcmp.gt.f32.partialorder %v4254, 0.0
        %vm4287 = vcmp.gt.f32.partialorder %v4255, 0.0
        %vm4288 = vcmp.gt.f32.partialorder %v4256, 0.0
        %vm4289 = vcmp.gt.f32.partialorder %v4257, 0.0
        %vm4290 = vcmp.gt.f32.partialorder %v4258, 0.0
        %vm4291 = vcmp.gt.f32.partialorder %v4259, 0.0
        %vm4292 = vcmp.gt.f32.partialorder %v4260, 0.0
        %vm4293 = vcmp.gt.f32.partialorder %v4261, 0.0
        %vm4294 = vcmp.gt.f32.partialorder %v4262, 0.0
        %vm4295 = vcmp.gt.f32.partialorder %v4263, 0.0
        %vm4296 = vcmp.gt.f32.partialorder %v4264, 0.0
        %vm4297 = vcmp.gt.f32.partialorder %v4265, 0.0
        %v4298 = vsel %vm4266, %v4234, 1.0
        %v4299 = vsel %vm4267, %v4235, 1.0
        %v4300 = vsel %vm4268, %v4236, 1.0
        %v4301 = vsel %vm4269, %v4237, 1.0
        %v4302 = vsel %vm4270, %v4238, 1.0
        %v4303 = vsel %vm4271, %v4239, 1.0
        %v4304 = vsel %vm4272, %v4240, 1.0
        %v4305 = vsel %vm4273, %v4241, 1.0
        %v4306 = vsel %vm4274, %v4242, 1.0
        %v4307 = vsel %vm4275, %v4243, 1.0
        %v4308 = vsel %vm4276, %v4244, 1.0
        %v4309 = vsel %vm4277, %v4245, 1.0
        %v4310 = vsel %vm4278, %v4246, 1.0
        %v4311 = vsel %vm4279, %v4247, 1.0
        %v4312 = vsel %vm4280, %v4248, 1.0
        %v4313 = vsel %vm4281, %v4249, 1.0
        %v4314 = vsel %vm4282, %v4250, 1.0
        %v4315 = vsel %vm4283, %v4251, 1.0
        %v4316 = vsel %vm4284, %v4252, 1.0
        %v4317 = vsel %vm4285, %v4253, 1.0
        %v4318 = vsel %vm4286, %v4254, 1.0
        %v4319 = vsel %vm4287, %v4255, 1.0
        %v4320 = vsel %vm4288, %v4256, 1.0
        %v4321 = vsel %vm4289, %v4257, 1.0
        %v4322 = vsel %vm4290, %v4258, 1.0
        %v4323 = vsel %vm4291, %v4259, 1.0
        %v4324 = vsel %vm4292, %v4260, 1.0
        %v4325 = vsel %vm4293, %v4261, 1.0
        %v4326 = vsel %vm4294, %v4262, 1.0
        %v4327 = vsel %vm4295, %v4263, 1.0
        %v4328 = vsel %vm4296, %v4264, 1.0
        %v4329 = vsel %vm4297, %v4265, 1.0
        %v4330 = vrcp.pop %v4298
        %v4331 = vrcp.pop %v4299
        %v4332 = vrcp.pop %v4300
        %v4333 = vrcp.pop %v4301
        %v4334 = vrcp.pop %v4302
        %v4335 = vrcp.pop %v4303
        %v4336 = vrcp.pop %v4304
        %v4337 = vrcp.pop %v4305
        %v4338 = vrcp.pop %v4306
        %v4339 = vrcp.pop %v4307
        %v4340 = vrcp.pop %v4308
        %v4341 = vrcp.pop %v4309
        %v4342 = vrcp.pop %v4310
        %v4343 = vrcp.pop %v4311
        %v4344 = vrcp.pop %v4312
        %v4345 = vrcp.pop %v4313
        %v4346 = vrcp.pop %v4314
        %v4347 = vrcp.pop %v4315
        %v4348 = vrcp.pop %v4316
        %v4349 = vrcp.pop %v4317
        %v4350 = vrcp.pop %v4318
        %v4351 = vrcp.pop %v4319
        %v4352 = vrcp.pop %v4320
        %v4353 = vrcp.pop %v4321
        %v4354 = vrcp.pop %v4322
        %v4355 = vrcp.pop %v4323
        %v4356 = vrcp.pop %v4324
        %v4357 = vrcp.pop %v4325
        %v4358 = vrcp.pop %v4326
        %v4359 = vrcp.pop %v4327
        %v4360 = vrcp.pop %v4328
        %v4361 = vrcp.pop %v4329
        %v4362 = vld [vmem:[#allocation4] sm:$0xff]
        %v4363 = vld [vmem:[#allocation4 + $0x8] sm:$0xff]
        %v4364 = vld [vmem:[#allocation4 + $0x10] sm:$0xff]
        %v4365 = vld [vmem:[#allocation4 + $0x18] sm:$0xff]
        %v4366 = vld [vmem:[#allocation4 + $0x20] sm:$0xff]
        %v4367 = vld [vmem:[#allocation4 + $0x28] sm:$0xff]
        %v4368 = vld [vmem:[#allocation4 + $0x30] sm:$0xff]
        %v4369 = vld [vmem:[#allocation4 + $0x38] sm:$0xff]
        %v4370 = vld [vmem:[#allocation4 + $0x40] sm:$0xff]
        %v4371 = vld [vmem:[#allocation4 + $0x48] sm:$0xff]
        %v4372 = vld [vmem:[#allocation4 + $0x50] sm:$0xff]
        %v4373 = vld [vmem:[#allocation4 + $0x58] sm:$0xff]
        %v4374 = vld [vmem:[#allocation4 + $0x60] sm:$0xff]
        %v4375 = vld [vmem:[#allocation4 + $0x68] sm:$0xff]
        %v4376 = vld [vmem:[#allocation4 + $0x70] sm:$0xff]
        %v4377 = vld [vmem:[#allocation4 + $0x78] sm:$0xff]
        %v4378 = vld [vmem:[#allocation4 + $0x80] sm:$0xff]
        %v4379 = vld [vmem:[#allocation4 + $0x88] sm:$0xff]
        %v4380 = vld [vmem:[#allocation4 + $0x90] sm:$0xff]
        %v4381 = vld [vmem:[#allocation4 + $0x98] sm:$0xff]
        %v4382 = vld [vmem:[#allocation4 + $0xa0] sm:$0xff]
        %v4383 = vld [vmem:[#allocation4 + $0xa8] sm:$0xff]
        %v4384 = vld [vmem:[#allocation4 + $0xb0] sm:$0xff]
        %v4385 = vld [vmem:[#allocation4 + $0xb8] sm:$0xff]
        %v4386 = vld [vmem:[#allocation4 + $0xc0] sm:$0xff]
        %v4387 = vld [vmem:[#allocation4 + $0xc8] sm:$0xff]
        %v4388 = vld [vmem:[#allocation4 + $0xd0] sm:$0xff]
        %v4389 = vld [vmem:[#allocation4 + $0xd8] sm:$0xff]
        %v4390 = vld [vmem:[#allocation4 + $0xe0] sm:$0xff]
        %v4391 = vld [vmem:[#allocation4 + $0xe8] sm:$0xff]
        %v4392 = vld [vmem:[#allocation4 + $0xf0] sm:$0xff]
        %v4393 = vld [vmem:[#allocation4 + $0xf8] sm:$0xff]
        %4395 = vset.pattern.permute.xlu0 0
        %4396 = vperm.xlu0 %4395, %v4330
        %v4397 = vpop.permute.xlu0 %4396
        %4400 = vset.pattern.permute.xlu0 0
        %4401 = vperm.xlu0 %4400, %v4331
        %v4402 = vpop.permute.xlu0 %4401
        %4405 = vset.pattern.permute.xlu0 0
        %4406 = vperm.xlu0 %4405, %v4332
        %v4407 = vpop.permute.xlu0 %4406
        %4410 = vset.pattern.permute.xlu0 0
        %4411 = vperm.xlu0 %4410, %v4333
        %v4412 = vpop.permute.xlu0 %4411
        %4415 = vset.pattern.permute.xlu0 0
        %4416 = vperm.xlu0 %4415, %v4334
        %v4417 = vpop.permute.xlu0 %4416
        %4420 = vset.pattern.permute.xlu0 0
        %4421 = vperm.xlu0 %4420, %v4335
        %v4422 = vpop.permute.xlu0 %4421
        %4425 = vset.pattern.permute.xlu0 0
        %4426 = vperm.xlu0 %4425, %v4336
        %v4427 = vpop.permute.xlu0 %4426
        %4430 = vset.pattern.permute.xlu0 0
        %4431 = vperm.xlu0 %4430, %v4337
        %v4432 = vpop.permute.xlu0 %4431
        %4435 = vset.pattern.permute.xlu0 0
        %4436 = vperm.xlu0 %4435, %v4338
        %v4437 = vpop.permute.xlu0 %4436
        %4440 = vset.pattern.permute.xlu0 0
        %4441 = vperm.xlu0 %4440, %v4339
        %v4442 = vpop.permute.xlu0 %4441
        %4445 = vset.pattern.permute.xlu0 0
        %4446 = vperm.xlu0 %4445, %v4340
        %v4447 = vpop.permute.xlu0 %4446
        %4450 = vset.pattern.permute.xlu0 0
        %4451 = vperm.xlu0 %4450, %v4341
        %v4452 = vpop.permute.xlu0 %4451
        %4455 = vset.pattern.permute.xlu0 0
        %4456 = vperm.xlu0 %4455, %v4342
        %v4457 = vpop.permute.xlu0 %4456
        %4460 = vset.pattern.permute.xlu0 0
        %4461 = vperm.xlu0 %4460, %v4343
        %v4462 = vpop.permute.xlu0 %4461
        %4465 = vset.pattern.permute.xlu0 0
        %4466 = vperm.xlu0 %4465, %v4344
        %v4467 = vpop.permute.xlu0 %4466
        %4470 = vset.pattern.permute.xlu0 0
        %4471 = vperm.xlu0 %4470, %v4345
        %v4472 = vpop.permute.xlu0 %4471
        %4475 = vset.pattern.permute.xlu0 0
        %4476 = vperm.xlu0 %4475, %v4346
        %v4477 = vpop.permute.xlu0 %4476
        %4480 = vset.pattern.permute.xlu0 0
        %4481 = vperm.xlu0 %4480, %v4347
        %v4482 = vpop.permute.xlu0 %4481
        %4485 = vset.pattern.permute.xlu0 0
        %4486 = vperm.xlu0 %4485, %v4348
        %v4487 = vpop.permute.xlu0 %4486
        %4490 = vset.pattern.permute.xlu0 0
        %4491 = vperm.xlu0 %4490, %v4349
        %v4492 = vpop.permute.xlu0 %4491
        %4495 = vset.pattern.permute.xlu0 0
        %4496 = vperm.xlu0 %4495, %v4350
        %v4497 = vpop.permute.xlu0 %4496
        %4500 = vset.pattern.permute.xlu0 0
        %4501 = vperm.xlu0 %4500, %v4351
        %v4502 = vpop.permute.xlu0 %4501
        %4505 = vset.pattern.permute.xlu0 0
        %4506 = vperm.xlu0 %4505, %v4352
        %v4507 = vpop.permute.xlu0 %4506
        %4510 = vset.pattern.permute.xlu0 0
        %4511 = vperm.xlu0 %4510, %v4353
        %v4512 = vpop.permute.xlu0 %4511
        %4515 = vset.pattern.permute.xlu0 0
        %4516 = vperm.xlu0 %4515, %v4354
        %v4517 = vpop.permute.xlu0 %4516
        %4520 = vset.pattern.permute.xlu0 0
        %4521 = vperm.xlu0 %4520, %v4355
        %v4522 = vpop.permute.xlu0 %4521
        %4525 = vset.pattern.permute.xlu0 0
        %4526 = vperm.xlu0 %4525, %v4356
        %v4527 = vpop.permute.xlu0 %4526
        %4530 = vset.pattern.permute.xlu0 0
        %4531 = vperm.xlu0 %4530, %v4357
        %v4532 = vpop.permute.xlu0 %4531
        %4535 = vset.pattern.permute.xlu0 0
        %4536 = vperm.xlu0 %4535, %v4358
        %v4537 = vpop.permute.xlu0 %4536
        %4540 = vset.pattern.permute.xlu0 0
        %4541 = vperm.xlu0 %4540, %v4359
        %v4542 = vpop.permute.xlu0 %4541
        %4545 = vset.pattern.permute.xlu0 0
        %4546 = vperm.xlu0 %4545, %v4360
        %v4547 = vpop.permute.xlu0 %4546
        %4550 = vset.pattern.permute.xlu0 0
        %4551 = vperm.xlu0 %4550, %v4361
        %v4552 = vpop.permute.xlu0 %4551
        %v4554 = vmul.f32 %v4362, %v4397
        %v4555 = vmul.f32 %v4363, %v4402
        %v4556 = vmul.f32 %v4364, %v4407
        %v4557 = vmul.f32 %v4365, %v4412
        %v4558 = vmul.f32 %v4366, %v4417
        %v4559 = vmul.f32 %v4367, %v4422
        %v4560 = vmul.f32 %v4368, %v4427
        %v4561 = vmul.f32 %v4369, %v4432
        %v4562 = vmul.f32 %v4370, %v4437
        %v4563 = vmul.f32 %v4371, %v4442
        %v4564 = vmul.f32 %v4372, %v4447
        %v4565 = vmul.f32 %v4373, %v4452
        %v4566 = vmul.f32 %v4374, %v4457
        %v4567 = vmul.f32 %v4375, %v4462
        %v4568 = vmul.f32 %v4376, %v4467
        %v4569 = vmul.f32 %v4377, %v4472
        %v4570 = vmul.f32 %v4378, %v4477
        %v4571 = vmul.f32 %v4379, %v4482
        %v4572 = vmul.f32 %v4380, %v4487
        %v4573 = vmul.f32 %v4381, %v4492
        %v4574 = vmul.f32 %v4382, %v4497
        %v4575 = vmul.f32 %v4383, %v4502
        %v4576 = vmul.f32 %v4384, %v4507
        %v4577 = vmul.f32 %v4385, %v4512
        %v4578 = vmul.f32 %v4386, %v4517
        %v4579 = vmul.f32 %v4387, %v4522
        %v4580 = vmul.f32 %v4388, %v4527
        %v4581 = vmul.f32 %v4389, %v4532
        %v4582 = vmul.f32 %v4390, %v4537
        %v4583 = vmul.f32 %v4391, %v4542
        %v4584 = vmul.f32 %v4392, %v4547
        %v4585 = vmul.f32 %v4393, %v4552
        %v4586 = vpack.c.bf16 %v4555, %v4554
        %v4587 = vpack.c.bf16 %v4557, %v4556
        %v4588 = vpack.c.bf16 %v4559, %v4558
        %v4589 = vpack.c.bf16 %v4561, %v4560
        %v4590 = vpack.c.bf16 %v4563, %v4562
        %v4591 = vpack.c.bf16 %v4565, %v4564
        %v4592 = vpack.c.bf16 %v4567, %v4566
        %v4593 = vpack.c.bf16 %v4569, %v4568
        %v4594 = vpack.c.bf16 %v4571, %v4570
        %v4595 = vpack.c.bf16 %v4573, %v4572
        %v4596 = vpack.c.bf16 %v4575, %v4574
        %v4597 = vpack.c.bf16 %v4577, %v4576
        %v4598 = vpack.c.bf16 %v4579, %v4578
        %v4599 = vpack.c.bf16 %v4581, %v4580
        %v4600 = vpack.c.bf16 %v4583, %v4582
        %v4601 = vpack.c.bf16 %v4585, %v4584
        %v4618 = vunpack.c.l.b16 %v4586
        %v4619 = vunpack.c.h.b16 %v4586
        %v4620 = vunpack.c.l.b16 %v4587
        %v4621 = vunpack.c.h.b16 %v4587
        %v4622 = vunpack.c.l.b16 %v4588
        %v4623 = vunpack.c.h.b16 %v4588
        %v4624 = vunpack.c.l.b16 %v4589
        %v4625 = vunpack.c.h.b16 %v4589
        %v4626 = vunpack.c.l.b16 %v4590
        %v4627 = vunpack.c.h.b16 %v4590
        %v4628 = vunpack.c.l.b16 %v4591
        %v4629 = vunpack.c.h.b16 %v4591
        %v4630 = vunpack.c.l.b16 %v4592
        %v4631 = vunpack.c.h.b16 %v4592
        %v4632 = vunpack.c.l.b16 %v4593
        %v4633 = vunpack.c.h.b16 %v4593
        %v4634 = vunpack.c.l.b16 %v4594
        %v4635 = vunpack.c.h.b16 %v4594
        %v4636 = vunpack.c.l.b16 %v4595
        %v4637 = vunpack.c.h.b16 %v4595
        %v4638 = vunpack.c.l.b16 %v4596
        %v4639 = vunpack.c.h.b16 %v4596
        %v4640 = vunpack.c.l.b16 %v4597
        %v4641 = vunpack.c.h.b16 %v4597
        %v4642 = vunpack.c.l.b16 %v4598
        %v4643 = vunpack.c.h.b16 %v4598
        %v4644 = vunpack.c.l.b16 %v4599
        %v4645 = vunpack.c.h.b16 %v4599
        %v4646 = vunpack.c.l.b16 %v4600
        %v4647 = vunpack.c.h.b16 %v4600
        %v4648 = vunpack.c.l.b16 %v4601
        %v4649 = vunpack.c.h.b16 %v4601
        %v4650 = vpack.c.b16 %v4618, %v4618
        %v4651 = vpack.c.b16 %v4619, %v4619
        %v4652 = vpack.c.b16 %v4620, %v4620
        %v4653 = vpack.c.b16 %v4621, %v4621
        %v4654 = vpack.c.b16 %v4622, %v4622
        %v4655 = vpack.c.b16 %v4623, %v4623
        %v4656 = vpack.c.b16 %v4624, %v4624
        %v4657 = vpack.c.b16 %v4625, %v4625
        %v4658 = vpack.c.b16 %v4626, %v4626
        %v4659 = vpack.c.b16 %v4627, %v4627
        %v4660 = vpack.c.b16 %v4628, %v4628
        %v4661 = vpack.c.b16 %v4629, %v4629
        %v4662 = vpack.c.b16 %v4630, %v4630
        %v4663 = vpack.c.b16 %v4631, %v4631
        %v4664 = vpack.c.b16 %v4632, %v4632
        %v4665 = vpack.c.b16 %v4633, %v4633
        %v4666 = vpack.c.b16 %v4634, %v4634
        %v4667 = vpack.c.b16 %v4635, %v4635
        %v4668 = vpack.c.b16 %v4636, %v4636
        %v4669 = vpack.c.b16 %v4637, %v4637
        %v4670 = vpack.c.b16 %v4638, %v4638
        %v4671 = vpack.c.b16 %v4639, %v4639
        %v4672 = vpack.c.b16 %v4640, %v4640
        %v4673 = vpack.c.b16 %v4641, %v4641
        %v4674 = vpack.c.b16 %v4642, %v4642
        %v4675 = vpack.c.b16 %v4643, %v4643
        %v4676 = vpack.c.b16 %v4644, %v4644
        %v4677 = vpack.c.b16 %v4645, %v4645
        %v4678 = vpack.c.b16 %v4646, %v4646
        %v4679 = vpack.c.b16 %v4647, %v4647
        %v4680 = vpack.c.b16 %v4648, %v4648
        %v4681 = vpack.c.b16 %v4649, %v4649
        %4714 = vst [vmem:[%s382] sm:$0xf] %v4650
        %4715 = vst [vmem:[%s382 + $0x4] sm:$0xf] %v4651
        %4716 = vst [vmem:[%s382 + $0x8] sm:$0xf] %v4652
        %4717 = vst [vmem:[%s382 + $0xc] sm:$0xf] %v4653
        %4718 = vst [vmem:[%s382 + $0x10] sm:$0xf] %v4654
        %4719 = vst [vmem:[%s382 + $0x14] sm:$0xf] %v4655
        %4720 = vst [vmem:[%s382 + $0x18] sm:$0xf] %v4656
        %4721 = vst [vmem:[%s382 + $0x1c] sm:$0xf] %v4657
        %4722 = vst [vmem:[%s382 + $0x20] sm:$0xf] %v4658
        %4723 = vst [vmem:[%s382 + $0x24] sm:$0xf] %v4659
        %4724 = vst [vmem:[%s382 + $0x28] sm:$0xf] %v4660
        %4725 = vst [vmem:[%s382 + $0x2c] sm:$0xf] %v4661
        %4726 = vst [vmem:[%s382 + $0x30] sm:$0xf] %v4662
        %4727 = vst [vmem:[%s382 + $0x34] sm:$0xf] %v4663
        %4728 = vst [vmem:[%s382 + $0x38] sm:$0xf] %v4664
        %4729 = vst [vmem:[%s382 + $0x3c] sm:$0xf] %v4665
        %4730 = vst [vmem:[%s382 + $0x40] sm:$0xf] %v4666
        %4731 = vst [vmem:[%s382 + $0x44] sm:$0xf] %v4667
        %4732 = vst [vmem:[%s382 + $0x48] sm:$0xf] %v4668
        %4733 = vst [vmem:[%s382 + $0x4c] sm:$0xf] %v4669
        %4734 = vst [vmem:[%s382 + $0x50] sm:$0xf] %v4670
        %4735 = vst [vmem:[%s382 + $0x54] sm:$0xf] %v4671
        %4736 = vst [vmem:[%s382 + $0x58] sm:$0xf] %v4672
        %4737 = vst [vmem:[%s382 + $0x5c] sm:$0xf] %v4673
        %4738 = vst [vmem:[%s382 + $0x60] sm:$0xf] %v4674
        %4739 = vst [vmem:[%s382 + $0x64] sm:$0xf] %v4675
        %4740 = vst [vmem:[%s382 + $0x68] sm:$0xf] %v4676
        %4741 = vst [vmem:[%s382 + $0x6c] sm:$0xf] %v4677
        %4742 = vst [vmem:[%s382 + $0x70] sm:$0xf] %v4678
        %4743 = vst [vmem:[%s382 + $0x74] sm:$0xf] %v4679
        %4744 = vst [vmem:[%s382 + $0x78] sm:$0xf] %v4680
        %4745 = vst [vmem:[%s382 + $0x7c] sm:$0xf] %v4681
        %v4746 = vld [vmem:[%s4] sm:$0xf]
        %v4747 = vld [vmem:[%s4 + $0x4] sm:$0xf]
        %v4748 = vld [vmem:[%s4 + $0x8] sm:$0xf]
        %v4749 = vld [vmem:[%s4 + $0xc] sm:$0xf]
        %v4750 = vld [vmem:[%s4 + $0x10] sm:$0xf]
        %v4751 = vld [vmem:[%s4 + $0x14] sm:$0xf]
        %v4752 = vld [vmem:[%s4 + $0x18] sm:$0xf]
        %v4753 = vld [vmem:[%s4 + $0x1c] sm:$0xf]
        %v4754 = vld [vmem:[%s4 + $0x20] sm:$0xf]
        %v4755 = vld [vmem:[%s4 + $0x24] sm:$0xf]
        %v4756 = vld [vmem:[%s4 + $0x28] sm:$0xf]
        %v4757 = vld [vmem:[%s4 + $0x2c] sm:$0xf]
        %v4758 = vld [vmem:[%s4 + $0x30] sm:$0xf]
        %v4759 = vld [vmem:[%s4 + $0x34] sm:$0xf]
        %v4760 = vld [vmem:[%s4 + $0x38] sm:$0xf]
        %v4761 = vld [vmem:[%s4 + $0x3c] sm:$0xf]
        %v4762 = vld [vmem:[%s5] sm:$0x1]
        %v4764 = vlaneseq
        %v4765 = vshrl.u32 %v4764, 7
        %v4766 = vsub.s32 0, %v4765
        %v4767 = vrot.slane %v4762, %v4766
        %v4785 = vunpack.c.l.b16 %v4746
        %v4786 = vunpack.c.l.b16 %v4747
        %v4787 = vunpack.c.l.b16 %v4748
        %v4788 = vunpack.c.l.b16 %v4749
        %v4789 = vunpack.c.l.b16 %v4750
        %v4790 = vunpack.c.l.b16 %v4751
        %v4791 = vunpack.c.l.b16 %v4752
        %v4792 = vunpack.c.l.b16 %v4753
        %v4793 = vunpack.c.l.b16 %v4754
        %v4794 = vunpack.c.l.b16 %v4755
        %v4795 = vunpack.c.l.b16 %v4756
        %v4796 = vunpack.c.l.b16 %v4757
        %v4797 = vunpack.c.l.b16 %v4758
        %v4798 = vunpack.c.l.b16 %v4759
        %v4799 = vunpack.c.l.b16 %v4760
        %v4800 = vunpack.c.l.b16 %v4761
        %v4801 = vpack.c.b16 %v4786, %v4785
        %v4802 = vpack.c.b16 %v4788, %v4787
        %v4803 = vpack.c.b16 %v4790, %v4789
        %v4804 = vpack.c.b16 %v4792, %v4791
        %v4805 = vpack.c.b16 %v4794, %v4793
        %v4806 = vpack.c.b16 %v4796, %v4795
        %v4807 = vpack.c.b16 %v4798, %v4797
        %v4808 = vpack.c.b16 %v4800, %v4799
        %4817 = vmatprep.subr.bf16.mxu0 0
        %4818 = vmatpush1.bf16.msra.mxu0 %v4801
        %4819 = vmatprep.subr.bf16.mxu0 0
        %4820 = vmatpush1.bf16.msra.mxu0 %v4802
        %4821 = vmatprep.subr.bf16.mxu0 0
        %4822 = vmatpush1.bf16.msra.mxu0 %v4803
        %4823 = vmatprep.subr.bf16.mxu0 0
        %4824 = vmatpush1.bf16.msra.mxu0 %v4804
        %4825 = vmatprep.subr.bf16.mxu0 0
        %4826 = vmatpush1.bf16.msra.mxu0 %v4805
        %4827 = vmatprep.subr.bf16.mxu0 0
        %4828 = vmatpush1.bf16.msra.mxu0 %v4806
        %4829 = vmatprep.subr.bf16.mxu0 0
        %4830 = vmatpush1.bf16.msra.mxu0 %v4807
        %4831 = vmatprep.subr.bf16.mxu0 0
        %4832 = vmatpush1.bf16.msra.mxu0 %v4808
        %4833 = vmatprep.subr.bf16.mxu0 0
        %4834 = vmatpush1.bf16.msra.mxu0 0
        %4835 = vmatprep.subr.bf16.mxu0 0
        %4836 = vmatpush1.bf16.msra.mxu0 0
        %4837 = vmatprep.subr.bf16.mxu0 0
        %4838 = vmatpush1.bf16.msra.mxu0 0
        %4839 = vmatprep.subr.bf16.mxu0 0
        %4840 = vmatpush1.bf16.msra.mxu0 0
        %4841 = vmatprep.subr.bf16.mxu0 0
        %4842 = vmatpush1.bf16.msra.mxu0 0
        %4843 = vmatprep.subr.bf16.mxu0 0
        %4844 = vmatpush1.bf16.msra.mxu0 0
        %4845 = vmatprep.subr.bf16.mxu0 0
        %4846 = vmatpush1.bf16.msra.mxu0 0
        %4847 = vmatprep.subr.bf16.mxu0 0
        %4848 = vmatpush1.bf16.msra.mxu0 0
        %4849 = vmatprep.mubr.bf16.mxu0 0
        %4850 = vmatmul.mubr.bf16.gmra.mrb[0].mxu0 %v4586
        %v4851 = vpop.f32.mrb[0].mxu0
        %v4852 = vadd.f32 %v4767, %v4851
        %v4853 = vpop.f32.mrb[0].mxu0
        %v4854 = vpop.f32.mrb[0].mxu0
        %v4855 = vadd.f32 %v4767, %v4854
        %v4856 = vpop.f32.mrb[0].mxu0
        %4857 = vmatprep.mubr.bf16.mxu0 0
        %4858 = vmatmul.mubr.bf16.gmra.mrb[0].mxu0 %v4587
        %v4859 = vpop.f32.mrb[0].mxu0
        %v4860 = vadd.f32 %v4767, %v4859
        %v4861 = vpop.f32.mrb[0].mxu0
        %v4862 = vpop.f32.mrb[0].mxu0
        %v4863 = vadd.f32 %v4767, %v4862
        %v4864 = vpop.f32.mrb[0].mxu0
        %4865 = vmatprep.mubr.bf16.mxu0 0
        %4866 = vmatmul.mubr.bf16.gmra.mrb[0].mxu0 %v4588
        %v4867 = vpop.f32.mrb[0].mxu0
        %v4868 = vadd.f32 %v4767, %v4867
        %v4869 = vpop.f32.mrb[0].mxu0
        %v4870 = vpop.f32.mrb[0].mxu0
        %v4871 = vadd.f32 %v4767, %v4870
        %v4872 = vpop.f32.mrb[0].mxu0
        %4873 = vmatprep.mubr.bf16.mxu0 0
        %4874 = vmatmul.mubr.bf16.gmra.mrb[0].mxu0 %v4589
        %v4875 = vpop.f32.mrb[0].mxu0
        %v4876 = vadd.f32 %v4767, %v4875
        %v4877 = vpop.f32.mrb[0].mxu0
        %v4878 = vpop.f32.mrb[0].mxu0
        %v4879 = vadd.f32 %v4767, %v4878
        %v4880 = vpop.f32.mrb[0].mxu0
        %4881 = vmatprep.mubr.bf16.mxu0 0
        %4882 = vmatmul.mubr.bf16.gmra.mrb[0].mxu0 %v4590
        %v4883 = vpop.f32.mrb[0].mxu0
        %v4884 = vadd.f32 %v4767, %v4883
        %v4885 = vpop.f32.mrb[0].mxu0
        %v4886 = vpop.f32.mrb[0].mxu0
        %v4887 = vadd.f32 %v4767, %v4886
        %v4888 = vpop.f32.mrb[0].mxu0
        %4889 = vmatprep.mubr.bf16.mxu0 0
        %4890 = vmatmul.mubr.bf16.gmra.mrb[0].mxu0 %v4591
        %v4891 = vpop.f32.mrb[0].mxu0
        %v4892 = vadd.f32 %v4767, %v4891
        %v4893 = vpop.f32.mrb[0].mxu0
        %v4894 = vpop.f32.mrb[0].mxu0
        %v4895 = vadd.f32 %v4767, %v4894
        %v4896 = vpop.f32.mrb[0].mxu0
        %4897 = vmatprep.mubr.bf16.mxu0 0
        %4898 = vmatmul.mubr.bf16.gmra.mrb[0].mxu0 %v4592
        %v4899 = vpop.f32.mrb[0].mxu0
        %v4900 = vadd.f32 %v4767, %v4899
        %v4901 = vpop.f32.mrb[0].mxu0
        %v4902 = vpop.f32.mrb[0].mxu0
        %v4903 = vadd.f32 %v4767, %v4902
        %v4904 = vpop.f32.mrb[0].mxu0
        %4905 = vmatprep.mubr.bf16.mxu0 0
        %4906 = vmatmul.mubr.bf16.gmra.mrb[0].mxu0 %v4593
        %v4907 = vpop.f32.mrb[0].mxu0
        %v4908 = vadd.f32 %v4767, %v4907
        %v4909 = vpop.f32.mrb[0].mxu0
        %v4910 = vpop.f32.mrb[0].mxu0
        %v4911 = vadd.f32 %v4767, %v4910
        %v4912 = vpop.f32.mrb[0].mxu0
        %4913 = vmatprep.mubr.bf16.mxu0 0
        %4914 = vmatmul.mubr.bf16.gmra.mrb[0].mxu0 %v4594
        %v4915 = vpop.f32.mrb[0].mxu0
        %v4916 = vadd.f32 %v4767, %v4915
        %v4917 = vpop.f32.mrb[0].mxu0
        %v4918 = vpop.f32.mrb[0].mxu0
        %v4919 = vadd.f32 %v4767, %v4918
        %v4920 = vpop.f32.mrb[0].mxu0
        %4921 = vmatprep.mubr.bf16.mxu0 0
        %4922 = vmatmul.mubr.bf16.gmra.mrb[0].mxu0 %v4595
        %v4923 = vpop.f32.mrb[0].mxu0
        %v4924 = vadd.f32 %v4767, %v4923
        %v4925 = vpop.f32.mrb[0].mxu0
        %v4926 = vpop.f32.mrb[0].mxu0
        %v4927 = vadd.f32 %v4767, %v4926
        %v4928 = vpop.f32.mrb[0].mxu0
        %4929 = vmatprep.mubr.bf16.mxu0 0
        %4930 = vmatmul.mubr.bf16.gmra.mrb[0].mxu0 %v4596
        %v4931 = vpop.f32.mrb[0].mxu0
        %v4932 = vadd.f32 %v4767, %v4931
        %v4933 = vpop.f32.mrb[0].mxu0
        %v4934 = vpop.f32.mrb[0].mxu0
        %v4935 = vadd.f32 %v4767, %v4934
        %v4936 = vpop.f32.mrb[0].mxu0
        %4937 = vmatprep.mubr.bf16.mxu0 0
        %4938 = vmatmul.mubr.bf16.gmra.mrb[0].mxu0 %v4597
        %v4939 = vpop.f32.mrb[0].mxu0
        %v4940 = vadd.f32 %v4767, %v4939
        %v4941 = vpop.f32.mrb[0].mxu0
        %v4942 = vpop.f32.mrb[0].mxu0
        %v4943 = vadd.f32 %v4767, %v4942
        %v4944 = vpop.f32.mrb[0].mxu0
        %4945 = vmatprep.mubr.bf16.mxu0 0
        %4946 = vmatmul.mubr.bf16.gmra.mrb[0].mxu0 %v4598
        %v4947 = vpop.f32.mrb[0].mxu0
        %v4948 = vadd.f32 %v4767, %v4947
        %v4949 = vpop.f32.mrb[0].mxu0
        %v4950 = vpop.f32.mrb[0].mxu0
        %v4951 = vadd.f32 %v4767, %v4950
        %v4952 = vpop.f32.mrb[0].mxu0
        %4953 = vmatprep.mubr.bf16.mxu0 0
        %4954 = vmatmul.mubr.bf16.gmra.mrb[0].mxu0 %v4599
        %v4955 = vpop.f32.mrb[0].mxu0
        %v4956 = vadd.f32 %v4767, %v4955
        %v4957 = vpop.f32.mrb[0].mxu0
        %v4958 = vpop.f32.mrb[0].mxu0
        %v4959 = vadd.f32 %v4767, %v4958
        %v4960 = vpop.f32.mrb[0].mxu0
        %4961 = vmatprep.mubr.bf16.mxu0 0
        %4962 = vmatmul.mubr.bf16.gmra.mrb[0].mxu0 %v4600
        %v4963 = vpop.f32.mrb[0].mxu0
        %v4964 = vadd.f32 %v4767, %v4963
        %v4965 = vpop.f32.mrb[0].mxu0
        %v4966 = vpop.f32.mrb[0].mxu0
        %v4967 = vadd.f32 %v4767, %v4966
        %v4968 = vpop.f32.mrb[0].mxu0
        %4969 = vmatprep.mubr.bf16.mxu0 0
        %4970 = vmatmul.mubr.bf16.gmra.mrb[0].mxu0 %v4601
        %v4971 = vpop.f32.mrb[0].mxu0
        %v4972 = vadd.f32 %v4767, %v4971
        %v4973 = vpop.f32.mrb[0].mxu0
        %v4974 = vpop.f32.mrb[0].mxu0
        %v4975 = vadd.f32 %v4767, %v4974
        %v4976 = vpop.f32.mrb[0].mxu0
        %4977 = vdwg.mxu0
        %4978 = vmax.xlane.f32.xlu0 %v4852
        %v4979 = vpop.xlane.xlu0 %4978
        %4980 = vmax.xlane.f32.xlu0 %v4855
        %v4981 = vpop.xlane.xlu0 %4980
        %4982 = vmax.xlane.f32.xlu0 %v4860
        %v4983 = vpop.xlane.xlu0 %4982
        %4984 = vmax.xlane.f32.xlu0 %v4863
        %v4985 = vpop.xlane.xlu0 %4984
        %4986 = vmax.xlane.f32.xlu0 %v4868
        %v4987 = vpop.xlane.xlu0 %4986
        %4988 = vmax.xlane.f32.xlu0 %v4871
        %v4989 = vpop.xlane.xlu0 %4988
        %4990 = vmax.xlane.f32.xlu0 %v4876
        %v4991 = vpop.xlane.xlu0 %4990
        %4992 = vmax.xlane.f32.xlu0 %v4879
        %v4993 = vpop.xlane.xlu0 %4992
        %4994 = vmax.xlane.f32.xlu0 %v4884
        %v4995 = vpop.xlane.xlu0 %4994
        %4996 = vmax.xlane.f32.xlu0 %v4887
        %v4997 = vpop.xlane.xlu0 %4996
        %4998 = vmax.xlane.f32.xlu0 %v4892
        %v4999 = vpop.xlane.xlu0 %4998
        %5000 = vmax.xlane.f32.xlu0 %v4895
        %v5001 = vpop.xlane.xlu0 %5000
        %5002 = vmax.xlane.f32.xlu0 %v4900
        %v5003 = vpop.xlane.xlu0 %5002
        %5004 = vmax.xlane.f32.xlu0 %v4903
        %v5005 = vpop.xlane.xlu0 %5004
        %5006 = vmax.xlane.f32.xlu0 %v4908
        %v5007 = vpop.xlane.xlu0 %5006
        %5008 = vmax.xlane.f32.xlu0 %v4911
        %v5009 = vpop.xlane.xlu0 %5008
        %5010 = vmax.xlane.f32.xlu0 %v4916
        %v5011 = vpop.xlane.xlu0 %5010
        %5012 = vmax.xlane.f32.xlu0 %v4919
        %v5013 = vpop.xlane.xlu0 %5012
        %5014 = vmax.xlane.f32.xlu0 %v4924
        %v5015 = vpop.xlane.xlu0 %5014
        %5016 = vmax.xlane.f32.xlu0 %v4927
        %v5017 = vpop.xlane.xlu0 %5016
        %5018 = vmax.xlane.f32.xlu0 %v4932
        %v5019 = vpop.xlane.xlu0 %5018
        %5020 = vmax.xlane.f32.xlu0 %v4935
        %v5021 = vpop.xlane.xlu0 %5020
        %5022 = vmax.xlane.f32.xlu0 %v4940
        %v5023 = vpop.xlane.xlu0 %5022
        %5024 = vmax.xlane.f32.xlu0 %v4943
        %v5025 = vpop.xlane.xlu0 %5024
        %5026 = vmax.xlane.f32.xlu0 %v4948
        %v5027 = vpop.xlane.xlu0 %5026
        %5028 = vmax.xlane.f32.xlu0 %v4951
        %v5029 = vpop.xlane.xlu0 %5028
        %5030 = vmax.xlane.f32.xlu0 %v4956
        %v5031 = vpop.xlane.xlu0 %5030
        %5032 = vmax.xlane.f32.xlu0 %v4959
        %v5033 = vpop.xlane.xlu0 %5032
        %5034 = vmax.xlane.f32.xlu0 %v4964
        %v5035 = vpop.xlane.xlu0 %5034
        %5036 = vmax.xlane.f32.xlu0 %v4967
        %v5037 = vpop.xlane.xlu0 %5036
        %5038 = vmax.xlane.f32.xlu0 %v4972
        %v5039 = vpop.xlane.xlu0 %5038
        %5040 = vmax.xlane.f32.xlu0 %v4975
        %v5041 = vpop.xlane.xlu0 %5040
        %v5042 = vsub.f32 %v4852, %v4979
        %v5043 = vsub.f32 %v4855, %v4981
        %v5044 = vsub.f32 %v4860, %v4983
        %v5045 = vsub.f32 %v4863, %v4985
        %v5046 = vsub.f32 %v4868, %v4987
        %v5047 = vsub.f32 %v4871, %v4989
        %v5048 = vsub.f32 %v4876, %v4991
        %v5049 = vsub.f32 %v4879, %v4993
        %v5050 = vsub.f32 %v4884, %v4995
        %v5051 = vsub.f32 %v4887, %v4997
        %v5052 = vsub.f32 %v4892, %v4999
        %v5053 = vsub.f32 %v4895, %v5001
        %v5054 = vsub.f32 %v4900, %v5003
        %v5055 = vsub.f32 %v4903, %v5005
        %v5056 = vsub.f32 %v4908, %v5007
        %v5057 = vsub.f32 %v4911, %v5009
        %v5058 = vsub.f32 %v4916, %v5011
        %v5059 = vsub.f32 %v4919, %v5013
        %v5060 = vsub.f32 %v4924, %v5015
        %v5061 = vsub.f32 %v4927, %v5017
        %v5062 = vsub.f32 %v4932, %v5019
        %v5063 = vsub.f32 %v4935, %v5021
        %v5064 = vsub.f32 %v4940, %v5023
        %v5065 = vsub.f32 %v4943, %v5025
        %v5066 = vsub.f32 %v4948, %v5027
        %v5067 = vsub.f32 %v4951, %v5029
        %v5068 = vsub.f32 %v4956, %v5031
        %v5069 = vsub.f32 %v4959, %v5033
        %v5070 = vsub.f32 %v4964, %v5035
        %v5071 = vsub.f32 %v4967, %v5037
        %v5072 = vsub.f32 %v4972, %v5039
        %v5073 = vsub.f32 %v4975, %v5041
        %v5074 = vmul.f32 %v5042, 1.442695
        %v5075 = vpow.pop %v5074
        %v5076 = vmul.f32 %v5043, 1.442695
        %v5077 = vpow.pop %v5076
        %v5078 = vmul.f32 %v5044, 1.442695
        %v5079 = vpow.pop %v5078
        %v5080 = vmul.f32 %v5045, 1.442695
        %v5081 = vpow.pop %v5080
        %v5082 = vmul.f32 %v5046, 1.442695
        %v5083 = vpow.pop %v5082
        %v5084 = vmul.f32 %v5047, 1.442695
        %v5085 = vpow.pop %v5084
        %v5086 = vmul.f32 %v5048, 1.442695
        %v5087 = vpow.pop %v5086
        %v5088 = vmul.f32 %v5049, 1.442695
        %v5089 = vpow.pop %v5088
        %v5090 = vmul.f32 %v5050, 1.442695
        %v5091 = vpow.pop %v5090
        %v5092 = vmul.f32 %v5051, 1.442695
        %v5093 = vpow.pop %v5092
        %v5094 = vmul.f32 %v5052, 1.442695
        %v5095 = vpow.pop %v5094
        %v5096 = vmul.f32 %v5053, 1.442695
        %v5097 = vpow.pop %v5096
        %v5098 = vmul.f32 %v5054, 1.442695
        %v5099 = vpow.pop %v5098
        %v5100 = vmul.f32 %v5055, 1.442695
        %v5101 = vpow.pop %v5100
        %v5102 = vmul.f32 %v5056, 1.442695
        %v5103 = vpow.pop %v5102
        %v5104 = vmul.f32 %v5057, 1.442695
        %v5105 = vpow.pop %v5104
        %v5106 = vmul.f32 %v5058, 1.442695
        %v5107 = vpow.pop %v5106
        %v5108 = vmul.f32 %v5059, 1.442695
        %v5109 = vpow.pop %v5108
        %v5110 = vmul.f32 %v5060, 1.442695
        %v5111 = vpow.pop %v5110
        %v5112 = vmul.f32 %v5061, 1.442695
        %v5113 = vpow.pop %v5112
        %v5114 = vmul.f32 %v5062, 1.442695
        %v5115 = vpow.pop %v5114
        %v5116 = vmul.f32 %v5063, 1.442695
        %v5117 = vpow.pop %v5116
        %v5118 = vmul.f32 %v5064, 1.442695
        %v5119 = vpow.pop %v5118
        %v5120 = vmul.f32 %v5065, 1.442695
        %v5121 = vpow.pop %v5120
        %v5122 = vmul.f32 %v5066, 1.442695
        %v5123 = vpow.pop %v5122
        %v5124 = vmul.f32 %v5067, 1.442695
        %v5125 = vpow.pop %v5124
        %v5126 = vmul.f32 %v5068, 1.442695
        %v5127 = vpow.pop %v5126
        %v5128 = vmul.f32 %v5069, 1.442695
        %v5129 = vpow.pop %v5128
        %v5130 = vmul.f32 %v5070, 1.442695
        %v5131 = vpow.pop %v5130
        %v5132 = vmul.f32 %v5071, 1.442695
        %v5133 = vpow.pop %v5132
        %v5134 = vmul.f32 %v5072, 1.442695
        %v5135 = vpow.pop %v5134
        %v5136 = vmul.f32 %v5073, 1.442695
        %v5137 = vpow.pop %v5136
        %5138 = vadd.xlane.f32.xlu0 %v5075
        %v5139 = vpop.xlane.xlu0 %5138
        %5140 = vadd.xlane.f32.xlu0 %v5077
        %v5141 = vpop.xlane.xlu0 %5140
        %5142 = vadd.xlane.f32.xlu0 %v5079
        %v5143 = vpop.xlane.xlu0 %5142
        %5144 = vadd.xlane.f32.xlu0 %v5081
        %v5145 = vpop.xlane.xlu0 %5144
        %5146 = vadd.xlane.f32.xlu0 %v5083
        %v5147 = vpop.xlane.xlu0 %5146
        %5148 = vadd.xlane.f32.xlu0 %v5085
        %v5149 = vpop.xlane.xlu0 %5148
        %5150 = vadd.xlane.f32.xlu0 %v5087
        %v5151 = vpop.xlane.xlu0 %5150
        %5152 = vadd.xlane.f32.xlu0 %v5089
        %v5153 = vpop.xlane.xlu0 %5152
        %5154 = vadd.xlane.f32.xlu0 %v5091
        %v5155 = vpop.xlane.xlu0 %5154
        %5156 = vadd.xlane.f32.xlu0 %v5093
        %v5157 = vpop.xlane.xlu0 %5156
        %5158 = vadd.xlane.f32.xlu0 %v5095
        %v5159 = vpop.xlane.xlu0 %5158
        %5160 = vadd.xlane.f32.xlu0 %v5097
        %v5161 = vpop.xlane.xlu0 %5160
        %5162 = vadd.xlane.f32.xlu0 %v5099
        %v5163 = vpop.xlane.xlu0 %5162
        %5164 = vadd.xlane.f32.xlu0 %v5101
        %v5165 = vpop.xlane.xlu0 %5164
        %5166 = vadd.xlane.f32.xlu0 %v5103
        %v5167 = vpop.xlane.xlu0 %5166
        %5168 = vadd.xlane.f32.xlu0 %v5105
        %v5169 = vpop.xlane.xlu0 %5168
        %5170 = vadd.xlane.f32.xlu0 %v5107
        %v5171 = vpop.xlane.xlu0 %5170
        %5172 = vadd.xlane.f32.xlu0 %v5109
        %v5173 = vpop.xlane.xlu0 %5172
        %5174 = vadd.xlane.f32.xlu0 %v5111
        %v5175 = vpop.xlane.xlu0 %5174
        %5176 = vadd.xlane.f32.xlu0 %v5113
        %v5177 = vpop.xlane.xlu0 %5176
        %5178 = vadd.xlane.f32.xlu0 %v5115
        %v5179 = vpop.xlane.xlu0 %5178
        %5180 = vadd.xlane.f32.xlu0 %v5117
        %v5181 = vpop.xlane.xlu0 %5180
        %5182 = vadd.xlane.f32.xlu0 %v5119
        %v5183 = vpop.xlane.xlu0 %5182
        %5184 = vadd.xlane.f32.xlu0 %v5121
        %v5185 = vpop.xlane.xlu0 %5184
        %5186 = vadd.xlane.f32.xlu0 %v5123
        %v5187 = vpop.xlane.xlu0 %5186
        %5188 = vadd.xlane.f32.xlu0 %v5125
        %v5189 = vpop.xlane.xlu0 %5188
        %5190 = vadd.xlane.f32.xlu0 %v5127
        %v5191 = vpop.xlane.xlu0 %5190
        %5192 = vadd.xlane.f32.xlu0 %v5129
        %v5193 = vpop.xlane.xlu0 %5192
        %5194 = vadd.xlane.f32.xlu0 %v5131
        %v5195 = vpop.xlane.xlu0 %5194
        %5196 = vadd.xlane.f32.xlu0 %v5133
        %v5197 = vpop.xlane.xlu0 %5196
        %5198 = vadd.xlane.f32.xlu0 %v5135
        %v5199 = vpop.xlane.xlu0 %5198
        %5200 = vadd.xlane.f32.xlu0 %v5137
        %v5201 = vpop.xlane.xlu0 %5200
        %v5202 = vlog2.pop %v5139
        %v5203 = vmul.f32 %v5202, 0.6931472
        %v5204 = vlog2.pop %v5141
        %v5205 = vmul.f32 %v5204, 0.6931472
        %v5206 = vlog2.pop %v5143
        %v5207 = vmul.f32 %v5206, 0.6931472
        %v5208 = vlog2.pop %v5145
        %v5209 = vmul.f32 %v5208, 0.6931472
        %v5210 = vlog2.pop %v5147
        %v5211 = vmul.f32 %v5210, 0.6931472
        %v5212 = vlog2.pop %v5149
        %v5213 = vmul.f32 %v5212, 0.6931472
        %v5214 = vlog2.pop %v5151
        %v5215 = vmul.f32 %v5214, 0.6931472
        %v5216 = vlog2.pop %v5153
        %v5217 = vmul.f32 %v5216, 0.6931472
        %v5218 = vlog2.pop %v5155
        %v5219 = vmul.f32 %v5218, 0.6931472
        %v5220 = vlog2.pop %v5157
        %v5221 = vmul.f32 %v5220, 0.6931472
        %v5222 = vlog2.pop %v5159
        %v5223 = vmul.f32 %v5222, 0.6931472
        %v5224 = vlog2.pop %v5161
        %v5225 = vmul.f32 %v5224, 0.6931472
        %v5226 = vlog2.pop %v5163
        %v5227 = vmul.f32 %v5226, 0.6931472
        %v5228 = vlog2.pop %v5165
        %v5229 = vmul.f32 %v5228, 0.6931472
        %v5230 = vlog2.pop %v5167
        %v5231 = vmul.f32 %v5230, 0.6931472
        %v5232 = vlog2.pop %v5169
        %v5233 = vmul.f32 %v5232, 0.6931472
        %v5234 = vlog2.pop %v5171
        %v5235 = vmul.f32 %v5234, 0.6931472
        %v5236 = vlog2.pop %v5173
        %v5237 = vmul.f32 %v5236, 0.6931472
        %v5238 = vlog2.pop %v5175
        %v5239 = vmul.f32 %v5238, 0.6931472
        %v5240 = vlog2.pop %v5177
        %v5241 = vmul.f32 %v5240, 0.6931472
        %v5242 = vlog2.pop %v5179
        %v5243 = vmul.f32 %v5242, 0.6931472
        %v5244 = vlog2.pop %v5181
        %v5245 = vmul.f32 %v5244, 0.6931472
        %v5246 = vlog2.pop %v5183
        %v5247 = vmul.f32 %v5246, 0.6931472
        %v5248 = vlog2.pop %v5185
        %v5249 = vmul.f32 %v5248, 0.6931472
        %v5250 = vlog2.pop %v5187
        %v5251 = vmul.f32 %v5250, 0.6931472
        %v5252 = vlog2.pop %v5189
        %v5253 = vmul.f32 %v5252, 0.6931472
        %v5254 = vlog2.pop %v5191
        %v5255 = vmul.f32 %v5254, 0.6931472
        %v5256 = vlog2.pop %v5193
        %v5257 = vmul.f32 %v5256, 0.6931472
        %v5258 = vlog2.pop %v5195
        %v5259 = vmul.f32 %v5258, 0.6931472
        %v5260 = vlog2.pop %v5197
        %v5261 = vmul.f32 %v5260, 0.6931472
        %v5262 = vlog2.pop %v5199
        %v5263 = vmul.f32 %v5262, 0.6931472
        %v5264 = vlog2.pop %v5201
        %v5265 = vmul.f32 %v5264, 0.6931472
        %v5266 = vsub.f32 %v5042, %v5203
        %v5267 = vsub.f32 %v5043, %v5205
        %v5268 = vsub.f32 %v5044, %v5207
        %v5269 = vsub.f32 %v5045, %v5209
        %v5270 = vsub.f32 %v5046, %v5211
        %v5271 = vsub.f32 %v5047, %v5213
        %v5272 = vsub.f32 %v5048, %v5215
        %v5273 = vsub.f32 %v5049, %v5217
        %v5274 = vsub.f32 %v5050, %v5219
        %v5275 = vsub.f32 %v5051, %v5221
        %v5276 = vsub.f32 %v5052, %v5223
        %v5277 = vsub.f32 %v5053, %v5225
        %v5278 = vsub.f32 %v5054, %v5227
        %v5279 = vsub.f32 %v5055, %v5229
        %v5280 = vsub.f32 %v5056, %v5231
        %v5281 = vsub.f32 %v5057, %v5233
        %v5282 = vsub.f32 %v5058, %v5235
        %v5283 = vsub.f32 %v5059, %v5237
        %v5284 = vsub.f32 %v5060, %v5239
        %v5285 = vsub.f32 %v5061, %v5241
        %v5286 = vsub.f32 %v5062, %v5243
        %v5287 = vsub.f32 %v5063, %v5245
        %v5288 = vsub.f32 %v5064, %v5247
        %v5289 = vsub.f32 %v5065, %v5249
        %v5290 = vsub.f32 %v5066, %v5251
        %v5291 = vsub.f32 %v5067, %v5253
        %v5292 = vsub.f32 %v5068, %v5255
        %v5293 = vsub.f32 %v5069, %v5257
        %v5294 = vsub.f32 %v5070, %v5259
        %v5295 = vsub.f32 %v5071, %v5261
        %v5296 = vsub.f32 %v5072, %v5263
        %v5297 = vsub.f32 %v5073, %v5265
        %5298 = vst [vmem:[%s388] sm:$0xff] %v5266
        %5299 = vst [vmem:[%s388 + $0x8] sm:$0xff] %v5267
        %5300 = vst [vmem:[%s388 + $0x10] sm:$0xff] %v5268
        %5301 = vst [vmem:[%s388 + $0x18] sm:$0xff] %v5269
        %5302 = vst [vmem:[%s388 + $0x20] sm:$0xff] %v5270
        %5303 = vst [vmem:[%s388 + $0x28] sm:$0xff] %v5271
        %5304 = vst [vmem:[%s388 + $0x30] sm:$0xff] %v5272
        %5305 = vst [vmem:[%s388 + $0x38] sm:$0xff] %v5273
        %5306 = vst [vmem:[%s388 + $0x40] sm:$0xff] %v5274
        %5307 = vst [vmem:[%s388 + $0x48] sm:$0xff] %v5275
        %5308 = vst [vmem:[%s388 + $0x50] sm:$0xff] %v5276
        %5309 = vst [vmem:[%s388 + $0x58] sm:$0xff] %v5277
        %5310 = vst [vmem:[%s388 + $0x60] sm:$0xff] %v5278
        %5311 = vst [vmem:[%s388 + $0x68] sm:$0xff] %v5279
        %5312 = vst [vmem:[%s388 + $0x70] sm:$0xff] %v5280
        %5313 = vst [vmem:[%s388 + $0x78] sm:$0xff] %v5281
        %5314 = vst [vmem:[%s388 + $0x80] sm:$0xff] %v5282
        %5315 = vst [vmem:[%s388 + $0x88] sm:$0xff] %v5283
        %5316 = vst [vmem:[%s388 + $0x90] sm:$0xff] %v5284
        %5317 = vst [vmem:[%s388 + $0x98] sm:$0xff] %v5285
        %5318 = vst [vmem:[%s388 + $0xa0] sm:$0xff] %v5286
        %5319 = vst [vmem:[%s388 + $0xa8] sm:$0xff] %v5287
        %5320 = vst [vmem:[%s388 + $0xb0] sm:$0xff] %v5288
        %5321 = vst [vmem:[%s388 + $0xb8] sm:$0xff] %v5289
        %5322 = vst [vmem:[%s388 + $0xc0] sm:$0xff] %v5290
        %5323 = vst [vmem:[%s388 + $0xc8] sm:$0xff] %v5291
        %5324 = vst [vmem:[%s388 + $0xd0] sm:$0xff] %v5292
        %5325 = vst [vmem:[%s388 + $0xd8] sm:$0xff] %v5293
        %5326 = vst [vmem:[%s388 + $0xe0] sm:$0xff] %v5294
        %5327 = vst [vmem:[%s388 + $0xe8] sm:$0xff] %v5295
        %5328 = vst [vmem:[%s388 + $0xf0] sm:$0xff] %v5296
        %5329 = vst [vmem:[%s388 + $0xf8] sm:$0xff] %v5297
      $region52: #{gat_forward.3} parent=43 // pred_fallthru
        _
      %s5330 = smul.u32 32, %s23
      %p5331 = scmp.lt.s32.totalorder %s5330, 63
      %s5332 = scalar_select %p5331, %s5330, 63
      %s5333 = smul.addr %s5332, 4
      %s5334 = scalar_lea.vmem %s6, %s5333
      %s5335 = smul.u32 32, %s23
      %p5336 = scmp.lt.s32.totalorder %s5335, 63
      %s5337 = scalar_select %p5336, %s5335, 63
      %s5338 = smul.addr %s5337, 8
      %s5339 = scalar_lea.vmem %s7, %s5338
      // Predicated region
      $region53: #{gat_forward.3} parent=43 // pred_check
        %p5340 = pneg %p197
      $region54: #{gat_forward.3} parent=43 // pred_check_branch
        %5342 = sbr.rel (%p5340) target = $region56
      $region55: #{gat_forward.3} parent=43 // pred_region
        %s5343 = smul.u32 32, %s23
      $region56: #{gat_forward.3} parent=43 // pred_fallthru
        _
      // Predicated region
      $region57: #{gat_forward.3} parent=43 // pred_check
        %p5344 = pneg %p223
      $region58: #{gat_forward.3} parent=43 // pred_check_branch
        %5346 = sbr.rel (%p5344) target = $region60
      $region59: #{gat_forward.3} parent=43 // pred_region
        %s5347 = smul.u32 32, %s23
      $region60: #{gat_forward.3} parent=43 // pred_fallthru
        _
    $region44: #{gat_forward.3} parent=5 // pred_fallthru
      _
    %p5348 = scmp.le.s32.totalorder 2, %s14
    // Predicated region
    $region61: #{gat_forward.3} parent=5 // pred_check
      %p5349 = pneg %p5348
    $region62: #{gat_forward.3} parent=5 // pred_check_branch
      %5351 = sbr.rel (%p5349) target = $region64
    $region63: #{gat_forward.3} parent=5 // pred_region
      %s5352 = ssub.s32 %s14, 2
      // Predicated region
      $region65: #{gat_forward.3} parent=63 // pred_check
        %p5353 = pneg %p203
      $region66: #{gat_forward.3} parent=63 // pred_check_branch
        %5355 = sbr.rel (%p5353) target = $region68
      $region67: #{gat_forward.3} parent=63 // pred_region
        %s5356 = smul.u32 32, %s25
        %p5357 = scmp.lt.s32.totalorder %s5356, 63
        %s5358 = scalar_select %p5357, %s5356, 63
        %s5359 = smul.addr %s5358, 4
        %s5360 = scalar_lea.vmem %s6, %s5359
      $region68: #{gat_forward.3} parent=63 // pred_fallthru
        _
      // Predicated region
      $region69: #{gat_forward.3} parent=63 // pred_check
        %p5361 = pneg %p229
      $region70: #{gat_forward.3} parent=63 // pred_check_branch
        %5363 = sbr.rel (%p5361) target = $region72
      $region71: #{gat_forward.3} parent=63 // pred_region
        %s5364 = smul.u32 32, %s25
        %p5365 = scmp.lt.s32.totalorder %s5364, 63
        %s5366 = scalar_select %p5365, %s5364, 63
        %s5367 = smul.addr %s5366, 8
        %s5368 = scalar_lea.vmem %s7, %s5367
      $region72: #{gat_forward.3} parent=63 // pred_fallthru
        _
    $region64: #{gat_forward.3} parent=5 // pred_fallthru
      _
  $region6: #{gat_forward.3} parent=0 // loop_footer
    %s18 = sadd.s32 1, %s14
  $region7: #{gat_forward.3} parent=0 // loop_footer_branch
    %13 = sbr.rel target = $region3
  $region8: #{gat_forward.3} parent=0 // loop_exit
    _

</llo_original>
